<compile_context>
chip_gen: v7x
topology: tpu7x:2x2x1
jax: 0.10.0
libtpu: 0.0.40
codegen_flags: <defaults>
</compile_context>

<pallas_src>
import functools

import jax
import jax.numpy as jnp
from jax import lax
from jax.experimental import pallas as pl
from jax.experimental.pallas import tpu as pltpu


# ----------------------------- fused Pallas kernel -----------------------------

def _cvim_fused_kernel(xl_ref, xr_ref,
                       w1l_ref, b1l_ref, wdl_ref, bdl_ref,
                       w1r_ref, b1r_ref, wdr_ref, bdr_ref,
                       w3l_ref, b3l_ref, w3r_ref, b3r_ref,
                       o_ref, pad_ref, *, c, scale):
    C = c
    H = o_ref.shape[1]
    W = o_ref.shape[2]

    # Single shared padded scratch for all four projections.  Only the 1-pixel
    # border must be zero (the interior is fully overwritten by every path);
    # zeroing the whole (H+2, W+2, C) buffer once per grid step is tiny and
    # stays correct when the "parallel" batch axis is sharded across cores
    # (a @pl.when(program_id==0) guard would leave the second core's scratch
    # uninitialized).
    pad_ref[...] = jnp.zeros(pad_ref.shape, jnp.float32)

    xl = xl_ref[0]                                    # (H, W, C) f32 residual path
    xr = xr_ref[0]
    # bf16 MXU operands (f32 accumulate); shared by the Q and V dots of a view.
    xl_bf = xl.reshape(H * W, C).astype(jnp.bfloat16)
    xr_bf = xr.reshape(H * W, C).astype(jnp.bfloat16)

    def project(x_bf, path, w1_ref, b1_ref, wd_ref, bd_ref):
        """1x1 conv (bf16 MXU) + depthwise 3x3 pad=1 (f32 VPU) for one Q/V path."""
        y = jnp.dot(x_bf, w1_ref[path],
                    preferred_element_type=jnp.float32) + b1_ref[path]   # (HW, C)
        pad_ref[1:H + 1, 1:W + 1, :] = y.reshape(H, W, C)
        wd = wd_ref[path]                             # (9, C); tap index = 3*dy + dx
        # H shifts are leading-axis (free-offset) slices of the padded scratch.
        r0 = pad_ref[0:H, :, :]                       # in[h-1] (row 0 is zero border)
        r1 = pad_ref[1:H + 1, :, :]                   # in[h]
        r2 = pad_ref[2:H + 2, :, :]                   # in[h+1] (row H+1 is zero border)
        # Group taps by dx: 3 dx-grouped sums over the padded width, then only
        # 3 width-W windows (2 sublane-shifted) instead of 9 misaligned reads.
        acc = None
        for dx in range(3):
            s = r0 * wd[dx] + r1 * wd[3 + dx] + r2 * wd[6 + dx]          # (H, W+2, C)
            win = s[:, dx:dx + W, :]                                     # (H, W, C)
            acc = win if acc is None else acc + win
        return acc + bd_ref[path]                      # (H, W, C) f32

    q_l = project(xl_bf, 0, w1l_ref, b1l_ref, wdl_ref, bdl_ref)
    v_l = project(xl_bf, 1, w1l_ref, b1l_ref, wdl_ref, bdl_ref)
    q_r = project(xr_bf, 0, w1r_ref, b1r_ref, wdr_ref, bdr_ref)
    v_r = project(xr_bf, 1, w1r_ref, b1r_ref, wdr_ref, bdr_ref)

    # 1/sqrt(C) folded into q_l once; bf16 MXU operands for all attention matmuls.
    q_l_bf = (q_l * scale).astype(jnp.bfloat16)
    q_r_bf = q_r.astype(jnp.bfloat16)
    v_l_bf = v_l.astype(jnp.bfloat16)
    v_r_bf = v_r.astype(jnp.bfloat16)

    # Row-batched cross attention over all H rows.
    attn = jnp.einsum('hic,hjc->hij', q_l_bf, q_r_bf,
                      preferred_element_type=jnp.float32)                # (H, W, W)
    # TODO(synk): attn_t == attn^T; recomputed with a second bf16 QK einsum
    #   (guaranteed Mosaic lowering) instead of a batched transpose or a
    #   transposed-contraction dot_general — see header TODO.
    attn_t = jnp.einsum('hic,hjc->hij', q_r_bf, q_l_bf,
                        preferred_element_type=jnp.float32)

    def softmax_last(a):
        e = jnp.exp(a - jnp.max(a, axis=-1, keepdims=True))
        return e * pl.reciprocal(jnp.sum(e, axis=-1, keepdims=True), approx=True)

    p_r2l = softmax_last(attn).astype(jnp.bfloat16)
    p_l2r = softmax_last(attn_t).astype(jnp.bfloat16)

    f_r2l = jnp.einsum('hij,hjc->hic', p_r2l, v_r_bf,
                       preferred_element_type=jnp.float32)               # (H, W, C)
    f_l2r = jnp.einsum('hij,hjc->hic', p_l2r, v_l_bf,
                       preferred_element_type=jnp.float32)

    # Fused epilogue: l_proj3 / r_proj3 1x1 convs + residual sum, single store.
    res_l = jnp.dot(f_r2l.reshape(H * W, C).astype(jnp.bfloat16), w3l_ref[...],
                    preferred_element_type=jnp.float32) + b3l_ref[...]
    res_r = jnp.dot(f_l2r.reshape(H * W, C).astype(jnp.bfloat16), w3r_ref[...],
                    preferred_element_type=jnp.float32) + b3r_ref[...]
    out = xl + xr + res_l.reshape(H, W, C) + res_r.reshape(H, W, C)
    # TODO(synk): masked vst when C < 128 — see lane-padding TODO in the header.
    o_ref[0] = out.astype(o_ref.dtype)


# ----------------------------- wrapper -----------------------------

def _stack_view_params(p_q, p_v, c):
    """Stack one view's Q-path/V-path projection weights along a leading axis."""
    w1q, b1q, wdq, bdq = p_q
    w1v, b1v, wdv, bdv = p_v
    w1 = jnp.stack([w1q[:, :, 0, 0].T, w1v[:, :, 0, 0].T]).astype(jnp.bfloat16)  # (2, C, C)
    b1 = jnp.stack([b1q, b1v]).reshape(2, 1, c)                                   # (2, 1, C)
    wd = jnp.stack([wdq[:, 0].reshape(c, 9).T, wdv[:, 0].reshape(c, 9).T])        # (2, 9, C)
    bd = jnp.stack([bdq, bdv]).reshape(2, 1, c)                                   # (2, 1, C)
    return w1, b1, wd, bd


def cvim_pallas(x_l_nchw, x_r_nchw, params, c):
    B, C, H, W = x_l_nchw.shape
    assert C == c
    scale = c ** (-0.5)

    # NCHW -> NHWC at the wrapper boundary only (see TODO at top of file).
    xl = jnp.transpose(x_l_nchw, (0, 2, 3, 1))
    xr = jnp.transpose(x_r_nchw, (0, 2, 3, 1))

    w1_l, b1_l, wd_l, bd_l = _stack_view_params(params['l1'], params['l2'], c)
    w1_r, b1_r, wd_r, bd_r = _stack_view_params(params['r1'], params['r2'], c)
    w3l_t = params['l3'][0][:, :, 0, 0].T.astype(jnp.bfloat16)
    b3l = params['l3'][1].reshape(1, c)
    w3r_t = params['r3'][0][:, :, 0, 0].T.astype(jnp.bfloat16)
    b3r = params['r3'][1].reshape(1, c)

    x_spec = pl.BlockSpec((1, H, W, C), lambda b: (b, 0, 0, 0))

    def full(shape):
        n = len(shape)
        return pl.BlockSpec(shape, lambda b: (0,) * n)

    out_nhwc = pl.pallas_call(
        functools.partial(_cvim_fused_kernel, c=c, scale=scale),
        out_shape=jax.ShapeDtypeStruct((B, H, W, C), x_l_nchw.dtype),
        grid=(B,),
        in_specs=[
            x_spec, x_spec,
            full((2, C, C)), full((2, 1, C)), full((2, 9, C)), full((2, 1, C)),
            full((2, C, C)), full((2, 1, C)), full((2, 9, C)), full((2, 1, C)),
            full((C, C)), full((1, C)), full((C, C)), full((1, C)),
        ],
        out_specs=x_spec,
        scratch_shapes=[pltpu.VMEM((H + 2, W + 2, C), jnp.float32)],
        compiler_params=pltpu.CompilerParams(
            dimension_semantics=("parallel",),
            # 32 MiB is above every chip's scoped default and well below v7x's
            # 64 MiB physical VMEM; raise on v6e/v5e if H*W*C grows.
            vmem_limit_bytes=32 * 1024 * 1024),
    )(xl, xr,
      w1_l, b1_l, wd_l, bd_l,
      w1_r, b1_r, wd_r, bd_r,
      w3l_t, b3l, w3r_t, b3r)

    return jnp.transpose(out_nhwc, (0, 3, 1, 2))             # NHWC -> NCHW


# ----------------------------- params & pure-JAX reference -----------------------------

def init_params(key, c):
    """Deterministic synthetic weights with the PyTorch module's shapes."""
    def conv1x1_p(k):
        k1, k2 = jax.random.split(k)
        return (jax.random.normal(k1, (c, c, 1, 1), jnp.float32) * 0.1,
                jax.random.normal(k2, (c,), jnp.float32) * 0.1)

    def dw_p(k):
        k1, k2 = jax.random.split(k)
        return (jax.random.normal(k1, (c, 1, 3, 3), jnp.float32) * 0.1,
                jax.random.normal(k2, (c,), jnp.float32) * 0.1)

    ks = jax.random.split(key, 10)
    return {
        'l1': conv1x1_p(ks[0]) + dw_p(ks[1]),
        'r1': conv1x1_p(ks[2]) + dw_p(ks[3]),
        'l2': conv1x1_p(ks[4]) + dw_p(ks[5]),
        'r2': conv1x1_p(ks[6]) + dw_p(ks[7]),
        'l3': conv1x1_p(ks[8]),
        'r3': conv1x1_p(ks[9]),
    }


def cvim_ref(x_l, x_r, params, c):
    scale = c ** (-0.5)
    dn = ('NCHW', 'OIHW', 'NCHW')

    def conv1x1(x, w, b):
        return lax.conv_general_dilated(x, w, (1, 1), 'VALID',
                                        dimension_numbers=dn) + b[None, :, None, None]

    def dw3x3(x, w, b):
        return lax.conv_general_dilated(x, w, (1, 1), ((1, 1), (1, 1)),
                                        dimension_numbers=dn,
                                        feature_group_count=c) + b[None, :, None, None]

    def proj(x, p):
        return dw3x3(conv1x1(x, p[0], p[1]), p[2], p[3])

    Q_l = jnp.transpose(proj(x_l, params['l1']), (0, 2, 3, 1))
    Q_r = jnp.transpose(proj(x_r, params['r1']), (0, 2, 3, 1))
    V_l = jnp.transpose(proj(x_l, params['l2']), (0, 2, 3, 1))
    V_r = jnp.transpose(proj(x_r, params['r2']), (0, 2, 3, 1))

    attn = jnp.einsum('bhic,bhjc->bhij', Q_l, Q_r) * scale
    F_r2l = jnp.einsum('bhij,bhjc->bhic', jax.nn.softmax(attn, axis=-1), V_r)
    F_l2r = jnp.einsum('bhij,bhjc->bhic',
                       jax.nn.softmax(jnp.swapaxes(attn, -1, -2), axis=-1), V_l)

    F_r2l = conv1x1(jnp.transpose(F_r2l, (0, 3, 1, 2)), *params['l3'])
    F_l2r = conv1x1(jnp.transpose(F_l2r, (0, 3, 1, 2)), *params['r3'])
    return x_l + F_r2l + x_r + F_l2r


# ----------------------------- main -----------------------------

if __name__ == "__main__":
    B, C, H, W = 2, 4, 16, 16
    key = jax.random.PRNGKey(0)
    kx, ky, kp = jax.random.split(key, 3)
    x_l = jax.random.normal(kx, (B, C, H, W), jnp.float32)
    x_r = jax.random.normal(ky, (B, C, H, W), jnp.float32)
    params = init_params(kp, C)

    out = cvim_pallas(x_l, x_r, params, C)
    out = jax.block_until_ready(out)

    ref = cvim_ref(x_l, x_r, params, C)
    assert out.shape == (B, C, H, W), out.shape
    err = float(jnp.max(jnp.abs(out - ref)))
    assert jnp.allclose(out, ref, atol=2e-2, rtol=2e-2), f"max abs err = {err}"
    print("KERNEL_OK")
</pallas_src>

<mosaic_0001>
module attributes {stable_mosaic.version = 11 : i64} {
  func.func @_cvim_fused_kernel(%arg0: i32, %arg1: memref<1x16x16x4xf32, #tpu.memory_space<vmem>>, %arg2: memref<1x16x16x4xf32, #tpu.memory_space<vmem>>, %arg3: memref<2x4x4xbf16, #tpu.memory_space<vmem>>, %arg4: memref<2x1x4xf32, #tpu.memory_space<vmem>>, %arg5: memref<2x9x4xf32, #tpu.memory_space<vmem>>, %arg6: memref<2x1x4xf32, #tpu.memory_space<vmem>>, %arg7: memref<2x4x4xbf16, #tpu.memory_space<vmem>>, %arg8: memref<2x1x4xf32, #tpu.memory_space<vmem>>, %arg9: memref<2x9x4xf32, #tpu.memory_space<vmem>>, %arg10: memref<2x1x4xf32, #tpu.memory_space<vmem>>, %arg11: memref<4x4xbf16, #tpu.memory_space<vmem>>, %arg12: memref<1x4xf32, #tpu.memory_space<vmem>>, %arg13: memref<4x4xbf16, #tpu.memory_space<vmem>>, %arg14: memref<1x4xf32, #tpu.memory_space<vmem>>, %arg15: memref<1x16x16x4xf32, #tpu.memory_space<vmem>>, %arg16: memref<18x18x4xf32, #tpu.memory_space<vmem>>) attributes {dimension_semantics = [#tpu.dimension_semantics<parallel>], iteration_bounds = array<i64: 2>, scalar_prefetch = 0 : i64, scratch_operands = 1 : i64, tpu.core_type = #tpu.core_type<tc>, window_params = [{transform_indices = @transform_0, window_bounds = array<i64: 1, 16, 16, 4>}, {transform_indices = @transform_1, window_bounds = array<i64: 1, 16, 16, 4>}, {pipeline_mode = #tpu.pipeline_mode<synchronous>, transform_indices = @transform_2, window_bounds = array<i64: 2, 4, 4>}, {pipeline_mode = #tpu.pipeline_mode<synchronous>, transform_indices = @transform_3, window_bounds = array<i64: 2, 1, 4>}, {pipeline_mode = #tpu.pipeline_mode<synchronous>, transform_indices = @transform_4, window_bounds = array<i64: 2, 9, 4>}, {pipeline_mode = #tpu.pipeline_mode<synchronous>, transform_indices = @transform_5, window_bounds = array<i64: 2, 1, 4>}, {pipeline_mode = #tpu.pipeline_mode<synchronous>, transform_indices = @transform_6, window_bounds = array<i64: 2, 4, 4>}, {pipeline_mode = #tpu.pipeline_mode<synchronous>, transform_indices = @transform_7, window_bounds = array<i64: 2, 1, 4>}, {pipeline_mode = #tpu.pipeline_mode<synchronous>, transform_indices = @transform_8, window_bounds = array<i64: 2, 9, 4>}, {pipeline_mode = #tpu.pipeline_mode<synchronous>, transform_indices = @transform_9, window_bounds = array<i64: 2, 1, 4>}, {pipeline_mode = #tpu.pipeline_mode<synchronous>, transform_indices = @transform_10, window_bounds = array<i64: 4, 4>}, {pipeline_mode = #tpu.pipeline_mode<synchronous>, transform_indices = @transform_11, window_bounds = array<i64: 1, 4>}, {pipeline_mode = #tpu.pipeline_mode<synchronous>, transform_indices = @transform_12, window_bounds = array<i64: 4, 4>}, {pipeline_mode = #tpu.pipeline_mode<synchronous>, transform_indices = @transform_13, window_bounds = array<i64: 1, 4>}, {transform_indices = @transform_14, window_bounds = array<i64: 1, 16, 16, 4>}]} {
    %cst = arith.constant 0.000000e+00 : f32
    %0 = vector.broadcast %cst : f32 to vector<18x18x4xf32>
    %c0 = arith.constant 0 : index
    %c0_0 = arith.constant 0 : index
    %c0_1 = arith.constant 0 : index
    %1 = vector.load %arg16[%c0, %c0_0, %c0_1] : memref<18x18x4xf32, #tpu.memory_space<vmem>>, vector<18x18x4xf32>
    tpu.vector_store %arg16[%c0, %c0_0, %c0_1], %0 {strides = array<i32>} : memref<18x18x4xf32, #tpu.memory_space<vmem>>, vector<18x18x4xf32>,
    %c0_2 = arith.constant 0 : index
    %c0_3 = arith.constant 0 : index
    %c0_4 = arith.constant 0 : index
    %c0_5 = arith.constant 0 : index
    %2 = vector.load %arg1[%c0_2, %c0_3, %c0_4, %c0_5] : memref<1x16x16x4xf32, #tpu.memory_space<vmem>>, vector<1x16x16x4xf32>
    %3 = vector.shape_cast %2 : vector<1x16x16x4xf32> to vector<16x16x4xf32>
    %c0_6 = arith.constant 0 : index
    %c0_7 = arith.constant 0 : index
    %c0_8 = arith.constant 0 : index
    %c0_9 = arith.constant 0 : index
    %4 = vector.load %arg2[%c0_6, %c0_7, %c0_8, %c0_9] : memref<1x16x16x4xf32, #tpu.memory_space<vmem>>, vector<1x16x16x4xf32>
    %5 = vector.shape_cast %4 : vector<1x16x16x4xf32> to vector<16x16x4xf32>
    %6 = vector.shape_cast %3 : vector<16x16x4xf32> to vector<256x4xf32>
    %7 = arith.truncf %6 : vector<256x4xf32> to vector<256x4xbf16>
    %8 = vector.shape_cast %5 : vector<16x16x4xf32> to vector<256x4xf32>
    %9 = arith.truncf %8 : vector<256x4xf32> to vector<256x4xbf16>
    %c0_10 = arith.constant 0 : index
    %c0_11 = arith.constant 0 : index
    %c0_12 = arith.constant 0 : index
    %10 = vector.load %arg3[%c0_10, %c0_11, %c0_12] : memref<2x4x4xbf16, #tpu.memory_space<vmem>>, vector<1x4x4xbf16>
    %11 = vector.shape_cast %10 : vector<1x4x4xbf16> to vector<4x4xbf16>
    %cst_13 = arith.constant dense<0.000000e+00> : vector<256x4xf32>
    %12 = tpu.matmul %7, %11, %cst_13 {dimension_numbers = #tpu.dot_dimension_numbers<[1], [0], [0], [1], [0, 0, 1, 1], [], []>} : vector<256x4xbf16>, vector<4x4xbf16>, vector<256x4xf32> -> vector<256x4xf32>
    %c0_14 = arith.constant 0 : index
    %c0_15 = arith.constant 0 : index
    %c0_16 = arith.constant 0 : index
    %13 = vector.load %arg4[%c0_14, %c0_15, %c0_16] : memref<2x1x4xf32, #tpu.memory_space<vmem>>, vector<1x1x4xf32>
    %14 = vector.shape_cast %13 : vector<1x1x4xf32> to vector<1x4xf32>
    %15 = vector.broadcast %14 : vector<1x4xf32> to vector<256x4xf32>
    %16 = arith.addf %12, %15 : vector<256x4xf32>
    %17 = vector.shape_cast %16 : vector<256x4xf32> to vector<16x16x4xf32>
    %c1 = arith.constant 1 : index
    %c1_17 = arith.constant 1 : index
    %c0_18 = arith.constant 0 : index
    %18 = vector.load %arg16[%c1, %c1_17, %c0_18] : memref<18x18x4xf32, #tpu.memory_space<vmem>>, vector<16x16x4xf32>
    tpu.vector_store %arg16[%c1, %c1_17, %c0_18], %17 {strides = array<i32>} : memref<18x18x4xf32, #tpu.memory_space<vmem>>, vector<16x16x4xf32>,
    %c0_19 = arith.constant 0 : index
    %c0_20 = arith.constant 0 : index
    %c0_21 = arith.constant 0 : index
    %19 = vector.load %arg5[%c0_19, %c0_20, %c0_21] : memref<2x9x4xf32, #tpu.memory_space<vmem>>, vector<1x9x4xf32>
    %20 = vector.shape_cast %19 : vector<1x9x4xf32> to vector<9x4xf32>
    %c0_22 = arith.constant 0 : index
    %c0_23 = arith.constant 0 : index
    %c0_24 = arith.constant 0 : index
    %21 = vector.load %arg16[%c0_22, %c0_23, %c0_24] : memref<18x18x4xf32, #tpu.memory_space<vmem>>, vector<16x18x4xf32>
    %c1_25 = arith.constant 1 : index
    %c0_26 = arith.constant 0 : index
    %c0_27 = arith.constant 0 : index
    %22 = vector.load %arg16[%c1_25, %c0_26, %c0_27] : memref<18x18x4xf32, #tpu.memory_space<vmem>>, vector<16x18x4xf32>
    %c2 = arith.constant 2 : index
    %c0_28 = arith.constant 0 : index
    %c0_29 = arith.constant 0 : index
    %23 = vector.load %arg16[%c2, %c0_28, %c0_29] : memref<18x18x4xf32, #tpu.memory_space<vmem>>, vector<16x18x4xf32>
    %24 = vector.extract_strided_slice %20 {offsets = [0, 0], sizes = [1, 4], strides = [1, 1]} : vector<9x4xf32> to vector<1x4xf32>
    %25 = vector.shape_cast %24 : vector<1x4xf32> to vector<4xf32>
    %26 = vector.shape_cast %25 : vector<4xf32> to vector<1x1x4xf32>
    %27 = vector.broadcast %26 : vector<1x1x4xf32> to vector<16x18x4xf32>
    %28 = arith.mulf %21, %27 : vector<16x18x4xf32>
    %29 = vector.extract_strided_slice %20 {offsets = [3, 0], sizes = [1, 4], strides = [1, 1]} : vector<9x4xf32> to vector<1x4xf32>
    %30 = vector.shape_cast %29 : vector<1x4xf32> to vector<4xf32>
    %31 = vector.shape_cast %30 : vector<4xf32> to vector<1x1x4xf32>
    %32 = vector.broadcast %31 : vector<1x1x4xf32> to vector<16x18x4xf32>
    %33 = arith.mulf %22, %32 : vector<16x18x4xf32>
    %34 = arith.addf %28, %33 : vector<16x18x4xf32>
    %35 = vector.extract_strided_slice %20 {offsets = [6, 0], sizes = [1, 4], strides = [1, 1]} : vector<9x4xf32> to vector<1x4xf32>
    %36 = vector.shape_cast %35 : vector<1x4xf32> to vector<4xf32>
    %37 = vector.shape_cast %36 : vector<4xf32> to vector<1x1x4xf32>
    %38 = vector.broadcast %37 : vector<1x1x4xf32> to vector<16x18x4xf32>
    %39 = arith.mulf %23, %38 : vector<16x18x4xf32>
    %40 = arith.addf %34, %39 : vector<16x18x4xf32>
    %41 = vector.extract_strided_slice %40 {offsets = [0, 0, 0], sizes = [16, 16, 4], strides = [1, 1, 1]} : vector<16x18x4xf32> to vector<16x16x4xf32>
    %42 = vector.extract_strided_slice %20 {offsets = [1, 0], sizes = [1, 4], strides = [1, 1]} : vector<9x4xf32> to vector<1x4xf32>
    %43 = vector.shape_cast %42 : vector<1x4xf32> to vector<4xf32>
    %44 = vector.shape_cast %43 : vector<4xf32> to vector<1x1x4xf32>
    %45 = vector.broadcast %44 : vector<1x1x4xf32> to vector<16x18x4xf32>
    %46 = arith.mulf %21, %45 : vector<16x18x4xf32>
    %47 = vector.extract_strided_slice %20 {offsets = [4, 0], sizes = [1, 4], strides = [1, 1]} : vector<9x4xf32> to vector<1x4xf32>
    %48 = vector.shape_cast %47 : vector<1x4xf32> to vector<4xf32>
    %49 = vector.shape_cast %48 : vector<4xf32> to vector<1x1x4xf32>
    %50 = vector.broadcast %49 : vector<1x1x4xf32> to vector<16x18x4xf32>
    %51 = arith.mulf %22, %50 : vector<16x18x4xf32>
    %52 = arith.addf %46, %51 : vector<16x18x4xf32>
    %53 = vector.extract_strided_slice %20 {offsets = [7, 0], sizes = [1, 4], strides = [1, 1]} : vector<9x4xf32> to vector<1x4xf32>
    %54 = vector.shape_cast %53 : vector<1x4xf32> to vector<4xf32>
    %55 = vector.shape_cast %54 : vector<4xf32> to vector<1x1x4xf32>
    %56 = vector.broadcast %55 : vector<1x1x4xf32> to vector<16x18x4xf32>
    %57 = arith.mulf %23, %56 : vector<16x18x4xf32>
    %58 = arith.addf %52, %57 : vector<16x18x4xf32>
    %59 = vector.extract_strided_slice %58 {offsets = [0, 1, 0], sizes = [16, 16, 4], strides = [1, 1, 1]} : vector<16x18x4xf32> to vector<16x16x4xf32>
    %60 = arith.addf %41, %59 : vector<16x16x4xf32>
    %61 = vector.extract_strided_slice %20 {offsets = [2, 0], sizes = [1, 4], strides = [1, 1]} : vector<9x4xf32> to vector<1x4xf32>
    %62 = vector.shape_cast %61 : vector<1x4xf32> to vector<4xf32>
    %63 = vector.shape_cast %62 : vector<4xf32> to vector<1x1x4xf32>
    %64 = vector.broadcast %63 : vector<1x1x4xf32> to vector<16x18x4xf32>
    %65 = arith.mulf %21, %64 : vector<16x18x4xf32>
    %66 = vector.extract_strided_slice %20 {offsets = [5, 0], sizes = [1, 4], strides = [1, 1]} : vector<9x4xf32> to vector<1x4xf32>
    %67 = vector.shape_cast %66 : vector<1x4xf32> to vector<4xf32>
    %68 = vector.shape_cast %67 : vector<4xf32> to vector<1x1x4xf32>
    %69 = vector.broadcast %68 : vector<1x1x4xf32> to vector<16x18x4xf32>
    %70 = arith.mulf %22, %69 : vector<16x18x4xf32>
    %71 = arith.addf %65, %70 : vector<16x18x4xf32>
    %72 = vector.extract_strided_slice %20 {offsets = [8, 0], sizes = [1, 4], strides = [1, 1]} : vector<9x4xf32> to vector<1x4xf32>
    %73 = vector.shape_cast %72 : vector<1x4xf32> to vector<4xf32>
    %74 = vector.shape_cast %73 : vector<4xf32> to vector<1x1x4xf32>
    %75 = vector.broadcast %74 : vector<1x1x4xf32> to vector<16x18x4xf32>
    %76 = arith.mulf %23, %75 : vector<16x18x4xf32>
    %77 = arith.addf %71, %76 : vector<16x18x4xf32>
    %78 = vector.extract_strided_slice %77 {offsets = [0, 2, 0], sizes = [16, 16, 4], strides = [1, 1, 1]} : vector<16x18x4xf32> to vector<16x16x4xf32>
    %79 = arith.addf %60, %78 : vector<16x16x4xf32>
    %c0_30 = arith.constant 0 : index
    %c0_31 = arith.constant 0 : index
    %c0_32 = arith.constant 0 : index
    %80 = vector.load %arg6[%c0_30, %c0_31, %c0_32] : memref<2x1x4xf32, #tpu.memory_space<vmem>>, vector<1x1x4xf32>
    %81 = vector.shape_cast %80 : vector<1x1x4xf32> to vector<1x4xf32>
    %82 = vector.shape_cast %81 : vector<1x4xf32> to vector<1x1x4xf32>
    %83 = vector.broadcast %82 : vector<1x1x4xf32> to vector<16x16x4xf32>
    %84 = arith.addf %79, %83 : vector<16x16x4xf32>
    %c1_33 = arith.constant 1 : index
    %c0_34 = arith.constant 0 : index
    %c0_35 = arith.constant 0 : index
    %85 = vector.load %arg3[%c1_33, %c0_34, %c0_35] : memref<2x4x4xbf16, #tpu.memory_space<vmem>>, vector<1x4x4xbf16>
    %86 = vector.shape_cast %85 : vector<1x4x4xbf16> to vector<4x4xbf16>
    %cst_36 = arith.constant dense<0.000000e+00> : vector<256x4xf32>
    %87 = tpu.matmul %7, %86, %cst_36 {dimension_numbers = #tpu.dot_dimension_numbers<[1], [0], [0], [1], [0, 0, 1, 1], [], []>} : vector<256x4xbf16>, vector<4x4xbf16>, vector<256x4xf32> -> vector<256x4xf32>
    %c1_37 = arith.constant 1 : index
    %c0_38 = arith.constant 0 : index
    %c0_39 = arith.constant 0 : index
    %88 = vector.load %arg4[%c1_37, %c0_38, %c0_39] : memref<2x1x4xf32, #tpu.memory_space<vmem>>, vector<1x1x4xf32>
    %89 = vector.shape_cast %88 : vector<1x1x4xf32> to vector<1x4xf32>
    %90 = vector.broadcast %89 : vector<1x4xf32> to vector<256x4xf32>
    %91 = arith.addf %87, %90 : vector<256x4xf32>
    %92 = vector.shape_cast %91 : vector<256x4xf32> to vector<16x16x4xf32>
    %c1_40 = arith.constant 1 : index
    %c1_41 = arith.constant 1 : index
    %c0_42 = arith.constant 0 : index
    %93 = vector.load %arg16[%c1_40, %c1_41, %c0_42] : memref<18x18x4xf32, #tpu.memory_space<vmem>>, vector<16x16x4xf32>
    tpu.vector_store %arg16[%c1_40, %c1_41, %c0_42], %92 {strides = array<i32>} : memref<18x18x4xf32, #tpu.memory_space<vmem>>, vector<16x16x4xf32>,
    %c1_43 = arith.constant 1 : index
    %c0_44 = arith.constant 0 : index
    %c0_45 = arith.constant 0 : index
    %94 = vector.load %arg5[%c1_43, %c0_44, %c0_45] : memref<2x9x4xf32, #tpu.memory_space<vmem>>, vector<1x9x4xf32>
    %95 = vector.shape_cast %94 : vector<1x9x4xf32> to vector<9x4xf32>
    %c0_46 = arith.constant 0 : index
    %c0_47 = arith.constant 0 : index
    %c0_48 = arith.constant 0 : index
    %96 = vector.load %arg16[%c0_46, %c0_47, %c0_48] : memref<18x18x4xf32, #tpu.memory_space<vmem>>, vector<16x18x4xf32>
    %c1_49 = arith.constant 1 : index
    %c0_50 = arith.constant 0 : index
    %c0_51 = arith.constant 0 : index
    %97 = vector.load %arg16[%c1_49, %c0_50, %c0_51] : memref<18x18x4xf32, #tpu.memory_space<vmem>>, vector<16x18x4xf32>
    %c2_52 = arith.constant 2 : index
    %c0_53 = arith.constant 0 : index
    %c0_54 = arith.constant 0 : index
    %98 = vector.load %arg16[%c2_52, %c0_53, %c0_54] : memref<18x18x4xf32, #tpu.memory_space<vmem>>, vector<16x18x4xf32>
    %99 = vector.extract_strided_slice %95 {offsets = [0, 0], sizes = [1, 4], strides = [1, 1]} : vector<9x4xf32> to vector<1x4xf32>
    %100 = vector.shape_cast %99 : vector<1x4xf32> to vector<4xf32>
    %101 = vector.shape_cast %100 : vector<4xf32> to vector<1x1x4xf32>
    %102 = vector.broadcast %101 : vector<1x1x4xf32> to vector<16x18x4xf32>
    %103 = arith.mulf %96, %102 : vector<16x18x4xf32>
    %104 = vector.extract_strided_slice %95 {offsets = [3, 0], sizes = [1, 4], strides = [1, 1]} : vector<9x4xf32> to vector<1x4xf32>
    %105 = vector.shape_cast %104 : vector<1x4xf32> to vector<4xf32>
    %106 = vector.shape_cast %105 : vector<4xf32> to vector<1x1x4xf32>
    %107 = vector.broadcast %106 : vector<1x1x4xf32> to vector<16x18x4xf32>
    %108 = arith.mulf %97, %107 : vector<16x18x4xf32>
    %109 = arith.addf %103, %108 : vector<16x18x4xf32>
    %110 = vector.extract_strided_slice %95 {offsets = [6, 0], sizes = [1, 4], strides = [1, 1]} : vector<9x4xf32> to vector<1x4xf32>
    %111 = vector.shape_cast %110 : vector<1x4xf32> to vector<4xf32>
    %112 = vector.shape_cast %111 : vector<4xf32> to vector<1x1x4xf32>
    %113 = vector.broadcast %112 : vector<1x1x4xf32> to vector<16x18x4xf32>
    %114 = arith.mulf %98, %113 : vector<16x18x4xf32>
    %115 = arith.addf %109, %114 : vector<16x18x4xf32>
    %116 = vector.extract_strided_slice %115 {offsets = [0, 0, 0], sizes = [16, 16, 4], strides = [1, 1, 1]} : vector<16x18x4xf32> to vector<16x16x4xf32>
    %117 = vector.extract_strided_slice %95 {offsets = [1, 0], sizes = [1, 4], strides = [1, 1]} : vector<9x4xf32> to vector<1x4xf32>
    %118 = vector.shape_cast %117 : vector<1x4xf32> to vector<4xf32>
    %119 = vector.shape_cast %118 : vector<4xf32> to vector<1x1x4xf32>
    %120 = vector.broadcast %119 : vector<1x1x4xf32> to vector<16x18x4xf32>
    %121 = arith.mulf %96, %120 : vector<16x18x4xf32>
    %122 = vector.extract_strided_slice %95 {offsets = [4, 0], sizes = [1, 4], strides = [1, 1]} : vector<9x4xf32> to vector<1x4xf32>
    %123 = vector.shape_cast %122 : vector<1x4xf32> to vector<4xf32>
    %124 = vector.shape_cast %123 : vector<4xf32> to vector<1x1x4xf32>
    %125 = vector.broadcast %124 : vector<1x1x4xf32> to vector<16x18x4xf32>
    %126 = arith.mulf %97, %125 : vector<16x18x4xf32>
    %127 = arith.addf %121, %126 : vector<16x18x4xf32>
    %128 = vector.extract_strided_slice %95 {offsets = [7, 0], sizes = [1, 4], strides = [1, 1]} : vector<9x4xf32> to vector<1x4xf32>
    %129 = vector.shape_cast %128 : vector<1x4xf32> to vector<4xf32>
    %130 = vector.shape_cast %129 : vector<4xf32> to vector<1x1x4xf32>
    %131 = vector.broadcast %130 : vector<1x1x4xf32> to vector<16x18x4xf32>
    %132 = arith.mulf %98, %131 : vector<16x18x4xf32>
    %133 = arith.addf %127, %132 : vector<16x18x4xf32>
    %134 = vector.extract_strided_slice %133 {offsets = [0, 1, 0], sizes = [16, 16, 4], strides = [1, 1, 1]} : vector<16x18x4xf32> to vector<16x16x4xf32>
    %135 = arith.addf %116, %134 : vector<16x16x4xf32>
    %136 = vector.extract_strided_slice %95 {offsets = [2, 0], sizes = [1, 4], strides = [1, 1]} : vector<9x4xf32> to vector<1x4xf32>
    %137 = vector.shape_cast %136 : vector<1x4xf32> to vector<4xf32>
    %138 = vector.shape_cast %137 : vector<4xf32> to vector<1x1x4xf32>
    %139 = vector.broadcast %138 : vector<1x1x4xf32> to vector<16x18x4xf32>
    %140 = arith.mulf %96, %139 : vector<16x18x4xf32>
    %141 = vector.extract_strided_slice %95 {offsets = [5, 0], sizes = [1, 4], strides = [1, 1]} : vector<9x4xf32> to vector<1x4xf32>
    %142 = vector.shape_cast %141 : vector<1x4xf32> to vector<4xf32>
    %143 = vector.shape_cast %142 : vector<4xf32> to vector<1x1x4xf32>
    %144 = vector.broadcast %143 : vector<1x1x4xf32> to vector<16x18x4xf32>
    %145 = arith.mulf %97, %144 : vector<16x18x4xf32>
    %146 = arith.addf %140, %145 : vector<16x18x4xf32>
    %147 = vector.extract_strided_slice %95 {offsets = [8, 0], sizes = [1, 4], strides = [1, 1]} : vector<9x4xf32> to vector<1x4xf32>
    %148 = vector.shape_cast %147 : vector<1x4xf32> to vector<4xf32>
    %149 = vector.shape_cast %148 : vector<4xf32> to vector<1x1x4xf32>
    %150 = vector.broadcast %149 : vector<1x1x4xf32> to vector<16x18x4xf32>
    %151 = arith.mulf %98, %150 : vector<16x18x4xf32>
    %152 = arith.addf %146, %151 : vector<16x18x4xf32>
    %153 = vector.extract_strided_slice %152 {offsets = [0, 2, 0], sizes = [16, 16, 4], strides = [1, 1, 1]} : vector<16x18x4xf32> to vector<16x16x4xf32>
    %154 = arith.addf %135, %153 : vector<16x16x4xf32>
    %c1_55 = arith.constant 1 : index
    %c0_56 = arith.constant 0 : index
    %c0_57 = arith.constant 0 : index
    %155 = vector.load %arg6[%c1_55, %c0_56, %c0_57] : memref<2x1x4xf32, #tpu.memory_space<vmem>>, vector<1x1x4xf32>
    %156 = vector.shape_cast %155 : vector<1x1x4xf32> to vector<1x4xf32>
    %157 = vector.shape_cast %156 : vector<1x4xf32> to vector<1x1x4xf32>
    %158 = vector.broadcast %157 : vector<1x1x4xf32> to vector<16x16x4xf32>
    %159 = arith.addf %154, %158 : vector<16x16x4xf32>
    %c0_58 = arith.constant 0 : index
    %c0_59 = arith.constant 0 : index
    %c0_60 = arith.constant 0 : index
    %160 = vector.load %arg7[%c0_58, %c0_59, %c0_60] : memref<2x4x4xbf16, #tpu.memory_space<vmem>>, vector<1x4x4xbf16>
    %161 = vector.shape_cast %160 : vector<1x4x4xbf16> to vector<4x4xbf16>
    %cst_61 = arith.constant dense<0.000000e+00> : vector<256x4xf32>
    %162 = tpu.matmul %9, %161, %cst_61 {dimension_numbers = #tpu.dot_dimension_numbers<[1], [0], [0], [1], [0, 0, 1, 1], [], []>} : vector<256x4xbf16>, vector<4x4xbf16>, vector<256x4xf32> -> vector<256x4xf32>
    %c0_62 = arith.constant 0 : index
    %c0_63 = arith.constant 0 : index
    %c0_64 = arith.constant 0 : index
    %163 = vector.load %arg8[%c0_62, %c0_63, %c0_64] : memref<2x1x4xf32, #tpu.memory_space<vmem>>, vector<1x1x4xf32>
    %164 = vector.shape_cast %163 : vector<1x1x4xf32> to vector<1x4xf32>
    %165 = vector.broadcast %164 : vector<1x4xf32> to vector<256x4xf32>
    %166 = arith.addf %162, %165 : vector<256x4xf32>
    %167 = vector.shape_cast %166 : vector<256x4xf32> to vector<16x16x4xf32>
    %c1_65 = arith.constant 1 : index
    %c1_66 = arith.constant 1 : index
    %c0_67 = arith.constant 0 : index
    %168 = vector.load %arg16[%c1_65, %c1_66, %c0_67] : memref<18x18x4xf32, #tpu.memory_space<vmem>>, vector<16x16x4xf32>
    tpu.vector_store %arg16[%c1_65, %c1_66, %c0_67], %167 {strides = array<i32>} : memref<18x18x4xf32, #tpu.memory_space<vmem>>, vector<16x16x4xf32>,
    %c0_68 = arith.constant 0 : index
    %c0_69 = arith.constant 0 : index
    %c0_70 = arith.constant 0 : index
    %169 = vector.load %arg9[%c0_68, %c0_69, %c0_70] : memref<2x9x4xf32, #tpu.memory_space<vmem>>, vector<1x9x4xf32>
    %170 = vector.shape_cast %169 : vector<1x9x4xf32> to vector<9x4xf32>
    %c0_71 = arith.constant 0 : index
    %c0_72 = arith.constant 0 : index
    %c0_73 = arith.constant 0 : index
    %171 = vector.load %arg16[%c0_71, %c0_72, %c0_73] : memref<18x18x4xf32, #tpu.memory_space<vmem>>, vector<16x18x4xf32>
    %c1_74 = arith.constant 1 : index
    %c0_75 = arith.constant 0 : index
    %c0_76 = arith.constant 0 : index
    %172 = vector.load %arg16[%c1_74, %c0_75, %c0_76] : memref<18x18x4xf32, #tpu.memory_space<vmem>>, vector<16x18x4xf32>
    %c2_77 = arith.constant 2 : index
    %c0_78 = arith.constant 0 : index
    %c0_79 = arith.constant 0 : index
    %173 = vector.load %arg16[%c2_77, %c0_78, %c0_79] : memref<18x18x4xf32, #tpu.memory_space<vmem>>, vector<16x18x4xf32>
    %174 = vector.extract_strided_slice %170 {offsets = [0, 0], sizes = [1, 4], strides = [1, 1]} : vector<9x4xf32> to vector<1x4xf32>
    %175 = vector.shape_cast %174 : vector<1x4xf32> to vector<4xf32>
    %176 = vector.shape_cast %175 : vector<4xf32> to vector<1x1x4xf32>
    %177 = vector.broadcast %176 : vector<1x1x4xf32> to vector<16x18x4xf32>
    %178 = arith.mulf %171, %177 : vector<16x18x4xf32>
    %179 = vector.extract_strided_slice %170 {offsets = [3, 0], sizes = [1, 4], strides = [1, 1]} : vector<9x4xf32> to vector<1x4xf32>
    %180 = vector.shape_cast %179 : vector<1x4xf32> to vector<4xf32>
    %181 = vector.shape_cast %180 : vector<4xf32> to vector<1x1x4xf32>
    %182 = vector.broadcast %181 : vector<1x1x4xf32> to vector<16x18x4xf32>
    %183 = arith.mulf %172, %182 : vector<16x18x4xf32>
    %184 = arith.addf %178, %183 : vector<16x18x4xf32>
    %185 = vector.extract_strided_slice %170 {offsets = [6, 0], sizes = [1, 4], strides = [1, 1]} : vector<9x4xf32> to vector<1x4xf32>
    %186 = vector.shape_cast %185 : vector<1x4xf32> to vector<4xf32>
    %187 = vector.shape_cast %186 : vector<4xf32> to vector<1x1x4xf32>
    %188 = vector.broadcast %187 : vector<1x1x4xf32> to vector<16x18x4xf32>
    %189 = arith.mulf %173, %188 : vector<16x18x4xf32>
    %190 = arith.addf %184, %189 : vector<16x18x4xf32>
    %191 = vector.extract_strided_slice %190 {offsets = [0, 0, 0], sizes = [16, 16, 4], strides = [1, 1, 1]} : vector<16x18x4xf32> to vector<16x16x4xf32>
    %192 = vector.extract_strided_slice %170 {offsets = [1, 0], sizes = [1, 4], strides = [1, 1]} : vector<9x4xf32> to vector<1x4xf32>
    %193 = vector.shape_cast %192 : vector<1x4xf32> to vector<4xf32>
    %194 = vector.shape_cast %193 : vector<4xf32> to vector<1x1x4xf32>
    %195 = vector.broadcast %194 : vector<1x1x4xf32> to vector<16x18x4xf32>
    %196 = arith.mulf %171, %195 : vector<16x18x4xf32>
    %197 = vector.extract_strided_slice %170 {offsets = [4, 0], sizes = [1, 4], strides = [1, 1]} : vector<9x4xf32> to vector<1x4xf32>
    %198 = vector.shape_cast %197 : vector<1x4xf32> to vector<4xf32>
    %199 = vector.shape_cast %198 : vector<4xf32> to vector<1x1x4xf32>
    %200 = vector.broadcast %199 : vector<1x1x4xf32> to vector<16x18x4xf32>
    %201 = arith.mulf %172, %200 : vector<16x18x4xf32>
    %202 = arith.addf %196, %201 : vector<16x18x4xf32>
    %203 = vector.extract_strided_slice %170 {offsets = [7, 0], sizes = [1, 4], strides = [1, 1]} : vector<9x4xf32> to vector<1x4xf32>
    %204 = vector.shape_cast %203 : vector<1x4xf32> to vector<4xf32>
    %205 = vector.shape_cast %204 : vector<4xf32> to vector<1x1x4xf32>
    %206 = vector.broadcast %205 : vector<1x1x4xf32> to vector<16x18x4xf32>
    %207 = arith.mulf %173, %206 : vector<16x18x4xf32>
    %208 = arith.addf %202, %207 : vector<16x18x4xf32>
    %209 = vector.extract_strided_slice %208 {offsets = [0, 1, 0], sizes = [16, 16, 4], strides = [1, 1, 1]} : vector<16x18x4xf32> to vector<16x16x4xf32>
    %210 = arith.addf %191, %209 : vector<16x16x4xf32>
    %211 = vector.extract_strided_slice %170 {offsets = [2, 0], sizes = [1, 4], strides = [1, 1]} : vector<9x4xf32> to vector<1x4xf32>
    %212 = vector.shape_cast %211 : vector<1x4xf32> to vector<4xf32>
    %213 = vector.shape_cast %212 : vector<4xf32> to vector<1x1x4xf32>
    %214 = vector.broadcast %213 : vector<1x1x4xf32> to vector<16x18x4xf32>
    %215 = arith.mulf %171, %214 : vector<16x18x4xf32>
    %216 = vector.extract_strided_slice %170 {offsets = [5, 0], sizes = [1, 4], strides = [1, 1]} : vector<9x4xf32> to vector<1x4xf32>
    %217 = vector.shape_cast %216 : vector<1x4xf32> to vector<4xf32>
    %218 = vector.shape_cast %217 : vector<4xf32> to vector<1x1x4xf32>
    %219 = vector.broadcast %218 : vector<1x1x4xf32> to vector<16x18x4xf32>
    %220 = arith.mulf %172, %219 : vector<16x18x4xf32>
    %221 = arith.addf %215, %220 : vector<16x18x4xf32>
    %222 = vector.extract_strided_slice %170 {offsets = [8, 0], sizes = [1, 4], strides = [1, 1]} : vector<9x4xf32> to vector<1x4xf32>
    %223 = vector.shape_cast %222 : vector<1x4xf32> to vector<4xf32>
    %224 = vector.shape_cast %223 : vector<4xf32> to vector<1x1x4xf32>
    %225 = vector.broadcast %224 : vector<1x1x4xf32> to vector<16x18x4xf32>
    %226 = arith.mulf %173, %225 : vector<16x18x4xf32>
    %227 = arith.addf %221, %226 : vector<16x18x4xf32>
    %228 = vector.extract_strided_slice %227 {offsets = [0, 2, 0], sizes = [16, 16, 4], strides = [1, 1, 1]} : vector<16x18x4xf32> to vector<16x16x4xf32>
    %229 = arith.addf %210, %228 : vector<16x16x4xf32>
    %c0_80 = arith.constant 0 : index
    %c0_81 = arith.constant 0 : index
    %c0_82 = arith.constant 0 : index
    %230 = vector.load %arg10[%c0_80, %c0_81, %c0_82] : memref<2x1x4xf32, #tpu.memory_space<vmem>>, vector<1x1x4xf32>
    %231 = vector.shape_cast %230 : vector<1x1x4xf32> to vector<1x4xf32>
    %232 = vector.shape_cast %231 : vector<1x4xf32> to vector<1x1x4xf32>
    %233 = vector.broadcast %232 : vector<1x1x4xf32> to vector<16x16x4xf32>
    %234 = arith.addf %229, %233 : vector<16x16x4xf32>
    %c1_83 = arith.constant 1 : index
    %c0_84 = arith.constant 0 : index
    %c0_85 = arith.constant 0 : index
    %235 = vector.load %arg7[%c1_83, %c0_84, %c0_85] : memref<2x4x4xbf16, #tpu.memory_space<vmem>>, vector<1x4x4xbf16>
    %236 = vector.shape_cast %235 : vector<1x4x4xbf16> to vector<4x4xbf16>
    %cst_86 = arith.constant dense<0.000000e+00> : vector<256x4xf32>
    %237 = tpu.matmul %9, %236, %cst_86 {dimension_numbers = #tpu.dot_dimension_numbers<[1], [0], [0], [1], [0, 0, 1, 1], [], []>} : vector<256x4xbf16>, vector<4x4xbf16>, vector<256x4xf32> -> vector<256x4xf32>
    %c1_87 = arith.constant 1 : index
    %c0_88 = arith.constant 0 : index
    %c0_89 = arith.constant 0 : index
    %238 = vector.load %arg8[%c1_87, %c0_88, %c0_89] : memref<2x1x4xf32, #tpu.memory_space<vmem>>, vector<1x1x4xf32>
    %239 = vector.shape_cast %238 : vector<1x1x4xf32> to vector<1x4xf32>
    %240 = vector.broadcast %239 : vector<1x4xf32> to vector<256x4xf32>
    %241 = arith.addf %237, %240 : vector<256x4xf32>
    %242 = vector.shape_cast %241 : vector<256x4xf32> to vector<16x16x4xf32>
    %c1_90 = arith.constant 1 : index
    %c1_91 = arith.constant 1 : index
    %c0_92 = arith.constant 0 : index
    %243 = vector.load %arg16[%c1_90, %c1_91, %c0_92] : memref<18x18x4xf32, #tpu.memory_space<vmem>>, vector<16x16x4xf32>
    tpu.vector_store %arg16[%c1_90, %c1_91, %c0_92], %242 {strides = array<i32>} : memref<18x18x4xf32, #tpu.memory_space<vmem>>, vector<16x16x4xf32>,
    %c1_93 = arith.constant 1 : index
    %c0_94 = arith.constant 0 : index
    %c0_95 = arith.constant 0 : index
    %244 = vector.load %arg9[%c1_93, %c0_94, %c0_95] : memref<2x9x4xf32, #tpu.memory_space<vmem>>, vector<1x9x4xf32>
    %245 = vector.shape_cast %244 : vector<1x9x4xf32> to vector<9x4xf32>
    %c0_96 = arith.constant 0 : index
    %c0_97 = arith.constant 0 : index
    %c0_98 = arith.constant 0 : index
    %246 = vector.load %arg16[%c0_96, %c0_97, %c0_98] : memref<18x18x4xf32, #tpu.memory_space<vmem>>, vector<16x18x4xf32>
    %c1_99 = arith.constant 1 : index
    %c0_100 = arith.constant 0 : index
    %c0_101 = arith.constant 0 : index
    %247 = vector.load %arg16[%c1_99, %c0_100, %c0_101] : memref<18x18x4xf32, #tpu.memory_space<vmem>>, vector<16x18x4xf32>
    %c2_102 = arith.constant 2 : index
    %c0_103 = arith.constant 0 : index
    %c0_104 = arith.constant 0 : index
    %248 = vector.load %arg16[%c2_102, %c0_103, %c0_104] : memref<18x18x4xf32, #tpu.memory_space<vmem>>, vector<16x18x4xf32>
    %249 = vector.extract_strided_slice %245 {offsets = [0, 0], sizes = [1, 4], strides = [1, 1]} : vector<9x4xf32> to vector<1x4xf32>
    %250 = vector.shape_cast %249 : vector<1x4xf32> to vector<4xf32>
    %251 = vector.shape_cast %250 : vector<4xf32> to vector<1x1x4xf32>
    %252 = vector.broadcast %251 : vector<1x1x4xf32> to vector<16x18x4xf32>
    %253 = arith.mulf %246, %252 : vector<16x18x4xf32>
    %254 = vector.extract_strided_slice %245 {offsets = [3, 0], sizes = [1, 4], strides = [1, 1]} : vector<9x4xf32> to vector<1x4xf32>
    %255 = vector.shape_cast %254 : vector<1x4xf32> to vector<4xf32>
    %256 = vector.shape_cast %255 : vector<4xf32> to vector<1x1x4xf32>
    %257 = vector.broadcast %256 : vector<1x1x4xf32> to vector<16x18x4xf32>
    %258 = arith.mulf %247, %257 : vector<16x18x4xf32>
    %259 = arith.addf %253, %258 : vector<16x18x4xf32>
    %260 = vector.extract_strided_slice %245 {offsets = [6, 0], sizes = [1, 4], strides = [1, 1]} : vector<9x4xf32> to vector<1x4xf32>
    %261 = vector.shape_cast %260 : vector<1x4xf32> to vector<4xf32>
    %262 = vector.shape_cast %261 : vector<4xf32> to vector<1x1x4xf32>
    %263 = vector.broadcast %262 : vector<1x1x4xf32> to vector<16x18x4xf32>
    %264 = arith.mulf %248, %263 : vector<16x18x4xf32>
    %265 = arith.addf %259, %264 : vector<16x18x4xf32>
    %266 = vector.extract_strided_slice %265 {offsets = [0, 0, 0], sizes = [16, 16, 4], strides = [1, 1, 1]} : vector<16x18x4xf32> to vector<16x16x4xf32>
    %267 = vector.extract_strided_slice %245 {offsets = [1, 0], sizes = [1, 4], strides = [1, 1]} : vector<9x4xf32> to vector<1x4xf32>
    %268 = vector.shape_cast %267 : vector<1x4xf32> to vector<4xf32>
    %269 = vector.shape_cast %268 : vector<4xf32> to vector<1x1x4xf32>
    %270 = vector.broadcast %269 : vector<1x1x4xf32> to vector<16x18x4xf32>
    %271 = arith.mulf %246, %270 : vector<16x18x4xf32>
    %272 = vector.extract_strided_slice %245 {offsets = [4, 0], sizes = [1, 4], strides = [1, 1]} : vector<9x4xf32> to vector<1x4xf32>
    %273 = vector.shape_cast %272 : vector<1x4xf32> to vector<4xf32>
    %274 = vector.shape_cast %273 : vector<4xf32> to vector<1x1x4xf32>
    %275 = vector.broadcast %274 : vector<1x1x4xf32> to vector<16x18x4xf32>
    %276 = arith.mulf %247, %275 : vector<16x18x4xf32>
    %277 = arith.addf %271, %276 : vector<16x18x4xf32>
    %278 = vector.extract_strided_slice %245 {offsets = [7, 0], sizes = [1, 4], strides = [1, 1]} : vector<9x4xf32> to vector<1x4xf32>
    %279 = vector.shape_cast %278 : vector<1x4xf32> to vector<4xf32>
    %280 = vector.shape_cast %279 : vector<4xf32> to vector<1x1x4xf32>
    %281 = vector.broadcast %280 : vector<1x1x4xf32> to vector<16x18x4xf32>
    %282 = arith.mulf %248, %281 : vector<16x18x4xf32>
    %283 = arith.addf %277, %282 : vector<16x18x4xf32>
    %284 = vector.extract_strided_slice %283 {offsets = [0, 1, 0], sizes = [16, 16, 4], strides = [1, 1, 1]} : vector<16x18x4xf32> to vector<16x16x4xf32>
    %285 = arith.addf %266, %284 : vector<16x16x4xf32>
    %286 = vector.extract_strided_slice %245 {offsets = [2, 0], sizes = [1, 4], strides = [1, 1]} : vector<9x4xf32> to vector<1x4xf32>
    %287 = vector.shape_cast %286 : vector<1x4xf32> to vector<4xf32>
    %288 = vector.shape_cast %287 : vector<4xf32> to vector<1x1x4xf32>
    %289 = vector.broadcast %288 : vector<1x1x4xf32> to vector<16x18x4xf32>
    %290 = arith.mulf %246, %289 : vector<16x18x4xf32>
    %291 = vector.extract_strided_slice %245 {offsets = [5, 0], sizes = [1, 4], strides = [1, 1]} : vector<9x4xf32> to vector<1x4xf32>
    %292 = vector.shape_cast %291 : vector<1x4xf32> to vector<4xf32>
    %293 = vector.shape_cast %292 : vector<4xf32> to vector<1x1x4xf32>
    %294 = vector.broadcast %293 : vector<1x1x4xf32> to vector<16x18x4xf32>
    %295 = arith.mulf %247, %294 : vector<16x18x4xf32>
    %296 = arith.addf %290, %295 : vector<16x18x4xf32>
    %297 = vector.extract_strided_slice %245 {offsets = [8, 0], sizes = [1, 4], strides = [1, 1]} : vector<9x4xf32> to vector<1x4xf32>
    %298 = vector.shape_cast %297 : vector<1x4xf32> to vector<4xf32>
    %299 = vector.shape_cast %298 : vector<4xf32> to vector<1x1x4xf32>
    %300 = vector.broadcast %299 : vector<1x1x4xf32> to vector<16x18x4xf32>
    %301 = arith.mulf %248, %300 : vector<16x18x4xf32>
    %302 = arith.addf %296, %301 : vector<16x18x4xf32>
    %303 = vector.extract_strided_slice %302 {offsets = [0, 2, 0], sizes = [16, 16, 4], strides = [1, 1, 1]} : vector<16x18x4xf32> to vector<16x16x4xf32>
    %304 = arith.addf %285, %303 : vector<16x16x4xf32>
    %c1_105 = arith.constant 1 : index
    %c0_106 = arith.constant 0 : index
    %c0_107 = arith.constant 0 : index
    %305 = vector.load %arg10[%c1_105, %c0_106, %c0_107] : memref<2x1x4xf32, #tpu.memory_space<vmem>>, vector<1x1x4xf32>
    %306 = vector.shape_cast %305 : vector<1x1x4xf32> to vector<1x4xf32>
    %307 = vector.shape_cast %306 : vector<1x4xf32> to vector<1x1x4xf32>
    %308 = vector.broadcast %307 : vector<1x1x4xf32> to vector<16x16x4xf32>
    %309 = arith.addf %304, %308 : vector<16x16x4xf32>
    %cst_108 = arith.constant 5.000000e-01 : f32
    %310 = vector.broadcast %cst_108 : f32 to vector<16x16x4xf32>
    %311 = arith.mulf %84, %310 : vector<16x16x4xf32>
    %312 = arith.truncf %311 : vector<16x16x4xf32> to vector<16x16x4xbf16>
    %313 = arith.truncf %234 : vector<16x16x4xf32> to vector<16x16x4xbf16>
    %314 = arith.truncf %159 : vector<16x16x4xf32> to vector<16x16x4xbf16>
    %315 = arith.truncf %309 : vector<16x16x4xf32> to vector<16x16x4xbf16>
    "tpu.trace_start"() <{level = 10 : i32, message = "hic,hjc->hij"}> : () -> ()
    %cst_109 = arith.constant dense<0.000000e+00> : vector<16x16x16xf32>
    %316 = tpu.matmul %312, %313, %cst_109 {dimension_numbers = #tpu.dot_dimension_numbers<[2], [2], [1], [1], [0, 0, 0, 1, 1, 1], [0], [0]>} : vector<16x16x4xbf16>, vector<16x16x4xbf16>, vector<16x16x16xf32> -> vector<16x16x16xf32>
    %cst_110 = arith.constant dense<0.000000e+00> : vector<16x16x16xf32>
    %317 = tpu.matmul %313, %312, %cst_110 {dimension_numbers = #tpu.dot_dimension_numbers<[2], [2], [1], [1], [0, 0, 0, 1, 1, 1], [0], [0]>} : vector<16x16x4xbf16>, vector<16x16x4xbf16>, vector<16x16x16xf32> -> vector<16x16x16xf32>
    "tpu.trace_stop"() : () -> ()
    %cst_111 = arith.constant dense<0xFF800000> : vector<16x16xf32>
    %318 = vector.multi_reduction <maximumf>, %316, %cst_111 [2] : vector<16x16x16xf32> to vector<16x16xf32>
    %319 = vector.shape_cast %318 : vector<16x16xf32> to vector<16x16x1xf32>
    %320 = vector.broadcast %319 : vector<16x16x1xf32> to vector<16x16x16xf32>
    %321 = arith.subf %316, %320 : vector<16x16x16xf32>
    %322 = math.exp %321 : vector<16x16x16xf32>
    %cst_112 = arith.constant dense<0.000000e+00> : vector<16x16xf32>
    %323 = vector.multi_reduction <add>, %322, %cst_112 [2] : vector<16x16x16xf32> to vector<16x16xf32>
    %324 = vector.shape_cast %323 : vector<16x16xf32> to vector<16x16x1xf32>
    %325 = tpu.reciprocal %324 {approx = true} : vector<16x16x1xf32> -> vector<16x16x1xf32>
    %326 = vector.broadcast %325 : vector<16x16x1xf32> to vector<16x16x16xf32>
    %327 = arith.mulf %322, %326 : vector<16x16x16xf32>
    %328 = arith.truncf %327 : vector<16x16x16xf32> to vector<16x16x16xbf16>
    %cst_113 = arith.constant dense<0xFF800000> : vector<16x16xf32>
    %329 = vector.multi_reduction <maximumf>, %317, %cst_113 [2] : vector<16x16x16xf32> to vector<16x16xf32>
    %330 = vector.shape_cast %329 : vector<16x16xf32> to vector<16x16x1xf32>
    %331 = vector.broadcast %330 : vector<16x16x1xf32> to vector<16x16x16xf32>
    %332 = arith.subf %317, %331 : vector<16x16x16xf32>
    %333 = math.exp %332 : vector<16x16x16xf32>
    %cst_114 = arith.constant dense<0.000000e+00> : vector<16x16xf32>
    %334 = vector.multi_reduction <add>, %333, %cst_114 [2] : vector<16x16x16xf32> to vector<16x16xf32>
    %335 = vector.shape_cast %334 : vector<16x16xf32> to vector<16x16x1xf32>
    %336 = tpu.reciprocal %335 {approx = true} : vector<16x16x1xf32> -> vector<16x16x1xf32>
    %337 = vector.broadcast %336 : vector<16x16x1xf32> to vector<16x16x16xf32>
    %338 = arith.mulf %333, %337 : vector<16x16x16xf32>
    %339 = arith.truncf %338 : vector<16x16x16xf32> to vector<16x16x16xbf16>
    "tpu.trace_start"() <{level = 10 : i32, message = "hij,hjc->hic"}> : () -> ()
    %cst_115 = arith.constant dense<0.000000e+00> : vector<16x16x4xf32>
    %340 = tpu.matmul %328, %315, %cst_115 {dimension_numbers = #tpu.dot_dimension_numbers<[2], [1], [1], [2], [0, 0, 0, 1, 1, 2], [0], [0]>} : vector<16x16x16xbf16>, vector<16x16x4xbf16>, vector<16x16x4xf32> -> vector<16x16x4xf32>
    %cst_116 = arith.constant dense<0.000000e+00> : vector<16x16x4xf32>
    %341 = tpu.matmul %339, %314, %cst_116 {dimension_numbers = #tpu.dot_dimension_numbers<[2], [1], [1], [2], [0, 0, 0, 1, 1, 2], [0], [0]>} : vector<16x16x16xbf16>, vector<16x16x4xbf16>, vector<16x16x4xf32> -> vector<16x16x4xf32>
    "tpu.trace_stop"() : () -> ()
    %342 = vector.shape_cast %340 : vector<16x16x4xf32> to vector<256x4xf32>
    %343 = arith.truncf %342 : vector<256x4xf32> to vector<256x4xbf16>
    %c0_117 = arith.constant 0 : index
    %c0_118 = arith.constant 0 : index
    %344 = vector.load %arg11[%c0_117, %c0_118] : memref<4x4xbf16, #tpu.memory_space<vmem>>, vector<4x4xbf16>
    %cst_119 = arith.constant dense<0.000000e+00> : vector<256x4xf32>
    %345 = tpu.matmul %343, %344, %cst_119 {dimension_numbers = #tpu.dot_dimension_numbers<[1], [0], [0], [1], [0, 0, 1, 1], [], []>} : vector<256x4xbf16>, vector<4x4xbf16>, vector<256x4xf32> -> vector<256x4xf32>
    %c0_120 = arith.constant 0 : index
    %c0_121 = arith.constant 0 : index
    %346 = vector.load %arg12[%c0_120, %c0_121] : memref<1x4xf32, #tpu.memory_space<vmem>>, vector<1x4xf32>
    %347 = vector.broadcast %346 : vector<1x4xf32> to vector<256x4xf32>
    %348 = arith.addf %345, %347 : vector<256x4xf32>
    %349 = vector.shape_cast %341 : vector<16x16x4xf32> to vector<256x4xf32>
    %350 = arith.truncf %349 : vector<256x4xf32> to vector<256x4xbf16>
    %c0_122 = arith.constant 0 : index
    %c0_123 = arith.constant 0 : index
    %351 = vector.load %arg13[%c0_122, %c0_123] : memref<4x4xbf16, #tpu.memory_space<vmem>>, vector<4x4xbf16>
    %cst_124 = arith.constant dense<0.000000e+00> : vector<256x4xf32>
    %352 = tpu.matmul %350, %351, %cst_124 {dimension_numbers = #tpu.dot_dimension_numbers<[1], [0], [0], [1], [0, 0, 1, 1], [], []>} : vector<256x4xbf16>, vector<4x4xbf16>, vector<256x4xf32> -> vector<256x4xf32>
    %c0_125 = arith.constant 0 : index
    %c0_126 = arith.constant 0 : index
    %353 = vector.load %arg14[%c0_125, %c0_126] : memref<1x4xf32, #tpu.memory_space<vmem>>, vector<1x4xf32>
    %354 = vector.broadcast %353 : vector<1x4xf32> to vector<256x4xf32>
    %355 = arith.addf %352, %354 : vector<256x4xf32>
    %356 = arith.addf %3, %5 : vector<16x16x4xf32>
    %357 = vector.shape_cast %348 : vector<256x4xf32> to vector<16x16x4xf32>
    %358 = arith.addf %356, %357 : vector<16x16x4xf32>
    %359 = vector.shape_cast %355 : vector<256x4xf32> to vector<16x16x4xf32>
    %360 = arith.addf %358, %359 : vector<16x16x4xf32>
    %c0_127 = arith.constant 0 : index
    %c0_128 = arith.constant 0 : index
    %c0_129 = arith.constant 0 : index
    %c0_130 = arith.constant 0 : index
    %361 = vector.load %arg15[%c0_127, %c0_128, %c0_129, %c0_130] : memref<1x16x16x4xf32, #tpu.memory_space<vmem>>, vector<1x16x16x4xf32>
    %362 = vector.shape_cast %361 : vector<1x16x16x4xf32> to vector<16x16x4xf32>
    %363 = vector.shape_cast %360 : vector<16x16x4xf32> to vector<1x16x16x4xf32>
    tpu.vector_store %arg15[%c0_127, %c0_128, %c0_129, %c0_130], %363 {strides = array<i32>} : memref<1x16x16x4xf32, #tpu.memory_space<vmem>>, vector<1x16x16x4xf32>,
    return
  }
  func.func @transform_0(%arg0: i32) -> (i32, i32, i32, i32) {
    %c0_i32 = arith.constant 0 : i32
    %c0_i32_0 = arith.constant 0 : i32
    %c0_i32_1 = arith.constant 0 : i32
    %c0_i32_2 = arith.constant 0 : i32
    return %arg0, %c0_i32, %c0_i32_0, %c0_i32_1 : i32, i32, i32, i32
  }
  func.func @transform_1(%arg0: i32) -> (i32, i32, i32, i32) {
    %c0_i32 = arith.constant 0 : i32
    %c0_i32_0 = arith.constant 0 : i32
    %c0_i32_1 = arith.constant 0 : i32
    %c0_i32_2 = arith.constant 0 : i32
    return %arg0, %c0_i32, %c0_i32_0, %c0_i32_1 : i32, i32, i32, i32
  }
  func.func @transform_2(%arg0: i32) -> (i32, i32, i32) {
    %c0_i32 = arith.constant 0 : i32
    %c0_i32_0 = arith.constant 0 : i32
    %c0_i32_1 = arith.constant 0 : i32
    %c0_i32_2 = arith.constant 0 : i32
    return %c0_i32, %c0_i32_0, %c0_i32_1 : i32, i32, i32
  }
  func.func @transform_3(%arg0: i32) -> (i32, i32, i32) {
    %c0_i32 = arith.constant 0 : i32
    %c0_i32_0 = arith.constant 0 : i32
    %c0_i32_1 = arith.constant 0 : i32
    %c0_i32_2 = arith.constant 0 : i32
    return %c0_i32, %c0_i32_0, %c0_i32_1 : i32, i32, i32
  }
  func.func @transform_4(%arg0: i32) -> (i32, i32, i32) {
    %c0_i32 = arith.constant 0 : i32
    %c0_i32_0 = arith.constant 0 : i32
    %c0_i32_1 = arith.constant 0 : i32
    %c0_i32_2 = arith.constant 0 : i32
    return %c0_i32, %c0_i32_0, %c0_i32_1 : i32, i32, i32
  }
  func.func @transform_5(%arg0: i32) -> (i32, i32, i32) {
    %c0_i32 = arith.constant 0 : i32
    %c0_i32_0 = arith.constant 0 : i32
    %c0_i32_1 = arith.constant 0 : i32
    %c0_i32_2 = arith.constant 0 : i32
    return %c0_i32, %c0_i32_0, %c0_i32_1 : i32, i32, i32
  }
  func.func @transform_6(%arg0: i32) -> (i32, i32, i32) {
    %c0_i32 = arith.constant 0 : i32
    %c0_i32_0 = arith.constant 0 : i32
    %c0_i32_1 = arith.constant 0 : i32
    %c0_i32_2 = arith.constant 0 : i32
    return %c0_i32, %c0_i32_0, %c0_i32_1 : i32, i32, i32
  }
  func.func @transform_7(%arg0: i32) -> (i32, i32, i32) {
    %c0_i32 = arith.constant 0 : i32
    %c0_i32_0 = arith.constant 0 : i32
    %c0_i32_1 = arith.constant 0 : i32
    %c0_i32_2 = arith.constant 0 : i32
    return %c0_i32, %c0_i32_0, %c0_i32_1 : i32, i32, i32
  }
  func.func @transform_8(%arg0: i32) -> (i32, i32, i32) {
    %c0_i32 = arith.constant 0 : i32
    %c0_i32_0 = arith.constant 0 : i32
    %c0_i32_1 = arith.constant 0 : i32
    %c0_i32_2 = arith.constant 0 : i32
    return %c0_i32, %c0_i32_0, %c0_i32_1 : i32, i32, i32
  }
  func.func @transform_9(%arg0: i32) -> (i32, i32, i32) {
    %c0_i32 = arith.constant 0 : i32
    %c0_i32_0 = arith.constant 0 : i32
    %c0_i32_1 = arith.constant 0 : i32
    %c0_i32_2 = arith.constant 0 : i32
    return %c0_i32, %c0_i32_0, %c0_i32_1 : i32, i32, i32
  }
  func.func @transform_10(%arg0: i32) -> (i32, i32) {
    %c0_i32 = arith.constant 0 : i32
    %c0_i32_0 = arith.constant 0 : i32
    %c0_i32_1 = arith.constant 0 : i32
    return %c0_i32, %c0_i32_0 : i32, i32
  }
  func.func @transform_11(%arg0: i32) -> (i32, i32) {
    %c0_i32 = arith.constant 0 : i32
    %c0_i32_0 = arith.constant 0 : i32
    %c0_i32_1 = arith.constant 0 : i32
    return %c0_i32, %c0_i32_0 : i32, i32
  }
  func.func @transform_12(%arg0: i32) -> (i32, i32) {
    %c0_i32 = arith.constant 0 : i32
    %c0_i32_0 = arith.constant 0 : i32
    %c0_i32_1 = arith.constant 0 : i32
    return %c0_i32, %c0_i32_0 : i32, i32
  }
  func.func @transform_13(%arg0: i32) -> (i32, i32) {
    %c0_i32 = arith.constant 0 : i32
    %c0_i32_0 = arith.constant 0 : i32
    %c0_i32_1 = arith.constant 0 : i32
    return %c0_i32, %c0_i32_0 : i32, i32
  }
  func.func @transform_14(%arg0: i32) -> (i32, i32, i32, i32) {
    %c0_i32 = arith.constant 0 : i32
    %c0_i32_0 = arith.constant 0 : i32
    %c0_i32_1 = arith.constant 0 : i32
    %c0_i32_2 = arith.constant 0 : i32
    return %arg0, %c0_i32, %c0_i32_0, %c0_i32_1 : i32, i32, i32, i32
  }
}

</mosaic_0001>

<llo_original>
// kernel: tpu_custom_call.1
$region0: #{tpu_custom_call.1}
  #allocation0 [shape = 'u32[]', space=smem, size = 0x4, offset = 0x4, fixed_abs, tag = 'smem constant byte address 0x4 - core index']
  #allocation1 [shape = 'u32[144,128]{1,0:T(1,128)}', space=vmem, size = 0x12000, scoped, tag = 'internal scratch']
  #allocation2 [shape = 'f32[18,18,4]{2,1,0:T(8,128)}', space=vmem, size = 0x36000, scoped, tag = 'scratch operand']
  %s0 = inlined_call_operand.vmem [shape: f32[2,16,16,4], index: 0, kind: input, shape index: {}]
  %s1 = inlined_call_operand.vmem [shape: f32[2,16,16,4], index: 1, kind: input, shape index: {}]
  %s2 = inlined_call_operand.vmem [shape: bf16[2,4,4], index: 2, kind: input, shape index: {}]
  %s3 = inlined_call_operand.vmem [shape: f32[2,1,4], index: 3, kind: input, shape index: {}]
  %s4 = inlined_call_operand.vmem [shape: f32[2,9,4], index: 4, kind: input, shape index: {}]
  %s5 = inlined_call_operand.vmem [shape: f32[2,1,4], index: 5, kind: input, shape index: {}]
  %s6 = inlined_call_operand.vmem [shape: bf16[2,4,4], index: 6, kind: input, shape index: {}]
  %s7 = inlined_call_operand.vmem [shape: f32[2,1,4], index: 7, kind: input, shape index: {}]
  %s8 = inlined_call_operand.vmem [shape: f32[2,9,4], index: 8, kind: input, shape index: {}]
  %s9 = inlined_call_operand.vmem [shape: f32[2,1,4], index: 9, kind: input, shape index: {}]
  %s10 = inlined_call_operand.vmem [shape: bf16[4,4], index: 10, kind: input, shape index: {}]
  %s11 = inlined_call_operand.vmem [shape: f32[1,4], index: 11, kind: input, shape index: {}]
  %s12 = inlined_call_operand.vmem [shape: bf16[4,4], index: 12, kind: input, shape index: {}]
  %s13 = inlined_call_operand.vmem [shape: f32[1,4], index: 13, kind: input, shape index: {}]
  %s14 = inlined_call_operand.vmem [shape: f32[2,16,16,4], index: 14, kind: output, shape index: {}]
  %s15 = sld [smem:[#allocation0]]
  $region89: #{tpu_custom_call.1} parent=0
    _
  %s17 = ssub.s32 1, %s15
  %s18 = scalar_select 0, %s17, %s15
  loop: start=0, step=1, limit=4
  $region2: #{tpu_custom_call.1} parent=0 // loop_pre_header
    _
  $region3: #{tpu_custom_call.1} parent=0 // loop_header
    %s20 = sphi 0, %s24
    %p21 = scmp.ge.s32.totalorder %s20, 4
    %s30 = sphi 0, %s32
    %s33 = sphi 0, %s30
    %s34 = sphi 0, %s33
    %s50 = sphi 0, %s34
    %s56 = sphi 0, %s58
    %s59 = sphi 0, %s56
    %s60 = sphi 0, %s59
    %s76 = sphi 0, %s60
    %s80 = sphi 0, %s80
    %s82 = sphi 0, %s80
    %s83 = sphi 0, %s82
    %s97 = sphi 0, %s83
    %s101 = sphi 0, %s101
    %s103 = sphi 0, %s101
    %s104 = sphi 0, %s103
    %s118 = sphi 0, %s104
    %s122 = sphi 0, %s122
    %s124 = sphi 0, %s122
    %s125 = sphi 0, %s124
    %s139 = sphi 0, %s125
    %s143 = sphi 0, %s143
    %s145 = sphi 0, %s143
    %s146 = sphi 0, %s145
    %s160 = sphi 0, %s146
    %s164 = sphi 0, %s164
    %s166 = sphi 0, %s164
    %s167 = sphi 0, %s166
    %s181 = sphi 0, %s167
    %s185 = sphi 0, %s185
    %s187 = sphi 0, %s185
    %s188 = sphi 0, %s187
    %s202 = sphi 0, %s188
    %s206 = sphi 0, %s206
    %s208 = sphi 0, %s206
    %s209 = sphi 0, %s208
    %s223 = sphi 0, %s209
    %s227 = sphi 0, %s227
    %s229 = sphi 0, %s227
    %s230 = sphi 0, %s229
    %s244 = sphi 0, %s230
    %s248 = sphi 0, %s248
    %s250 = sphi 0, %s248
    %s251 = sphi 0, %s250
    %s265 = sphi 0, %s251
    %s269 = sphi 0, %s269
    %s271 = sphi 0, %s269
    %s272 = sphi 0, %s271
    %s286 = sphi 0, %s272
    %s290 = sphi 0, %s290
    %s292 = sphi 0, %s290
    %s293 = sphi 0, %s292
    %s307 = sphi 0, %s293
    %s311 = sphi 0, %s311
    %s313 = sphi 0, %s311
    %s314 = sphi 0, %s313
    %s328 = sphi 0, %s314
    %s334 = sphi 0, %s336
    %s337 = sphi 0, %s334
    %s338 = sphi 0, %s337
    %s354 = sphi 0, %s338
  $region4: #{tpu_custom_call.1} parent=0 // loop_header_branch
    %23 = sbr.rel (%p21) target = $region8
  $region5: #{tpu_custom_call.1} parent=0 // loop_body
    %s25 = ssub.s32 %s20, 1
    %s26 = ssub.s32 %s20, 2
    %s27 = sadd.s32 %s20, 1
    %s28 = ssub.s32 %s20, %s27
    %p29 = scmp.eq.s32.totalorder %s28, 0
    %s31 = sadd.s32 %s30, 1
    %s32 = scalar_select %p29, %s30, %s31
    %p35 = pneg %p29
    %p36 = scmp.eq.s32.totalorder %s20, 1
    %p37 = por %p35, %p36
    %p38 = scmp.ne.s32.totalorder %s30, %s33
    %p39 = scmp.eq.s32.totalorder %s20, 0
    %p40 = por %p38, %p39
    %p41 = scmp.ne.s32.totalorder %s30, %s33
    %p42 = scmp.eq.s32.totalorder %s25, 1
    %p43 = por %p41, %p42
    %p44 = scmp.ne.s32.totalorder %s33, %s34
    %p45 = scmp.eq.s32.totalorder %s25, 0
    %p46 = por %p44, %p45
    %p47 = scmp.ne.s32.totalorder %s33, %s34
    %p48 = scmp.eq.s32.totalorder %s26, 1
    %p49 = por %p47, %p48
    %p51 = scmp.ne.s32.totalorder %s34, %s50
    %p52 = scmp.eq.s32.totalorder %s26, 0
    %p53 = por %p51, %p52
    %s54 = ssub.s32 %s20, %s27
    %p55 = scmp.eq.s32.totalorder %s54, 0
    %s57 = sadd.s32 %s56, 1
    %s58 = scalar_select %p55, %s56, %s57
    %p61 = pneg %p55
    %p62 = scmp.eq.s32.totalorder %s20, 1
    %p63 = por %p61, %p62
    %p64 = scmp.ne.s32.totalorder %s56, %s59
    %p65 = scmp.eq.s32.totalorder %s20, 0
    %p66 = por %p64, %p65
    %p67 = scmp.ne.s32.totalorder %s56, %s59
    %p68 = scmp.eq.s32.totalorder %s25, 1
    %p69 = por %p67, %p68
    %p70 = scmp.ne.s32.totalorder %s59, %s60
    %p71 = scmp.eq.s32.totalorder %s25, 0
    %p72 = por %p70, %p71
    %p73 = scmp.ne.s32.totalorder %s59, %s60
    %p74 = scmp.eq.s32.totalorder %s26, 1
    %p75 = por %p73, %p74
    %p77 = scmp.ne.s32.totalorder %s60, %s76
    %p78 = scmp.eq.s32.totalorder %s26, 0
    %p79 = por %p77, %p78
    %s81 = sadd.s32 %s80, 1
    %p84 = scmp.eq.s32.totalorder %s20, 1
    %p85 = scmp.ne.s32.totalorder %s80, %s82
    %p86 = scmp.eq.s32.totalorder %s20, 0
    %p87 = por %p85, %p86
    %p88 = scmp.ne.s32.totalorder %s80, %s82
    %p89 = scmp.eq.s32.totalorder %s25, 1
    %p90 = por %p88, %p89
    %p91 = scmp.ne.s32.totalorder %s82, %s83
    %p92 = scmp.eq.s32.totalorder %s25, 0
    %p93 = por %p91, %p92
    %p94 = scmp.ne.s32.totalorder %s82, %s83
    %p95 = scmp.eq.s32.totalorder %s26, 1
    %p96 = por %p94, %p95
    %p98 = scmp.ne.s32.totalorder %s83, %s97
    %p99 = scmp.eq.s32.totalorder %s26, 0
    %p100 = por %p98, %p99
    %s102 = sadd.s32 %s101, 1
    %p105 = scmp.eq.s32.totalorder %s20, 1
    %p106 = scmp.ne.s32.totalorder %s101, %s103
    %p107 = scmp.eq.s32.totalorder %s20, 0
    %p108 = por %p106, %p107
    %p109 = scmp.ne.s32.totalorder %s101, %s103
    %p110 = scmp.eq.s32.totalorder %s25, 1
    %p111 = por %p109, %p110
    %p112 = scmp.ne.s32.totalorder %s103, %s104
    %p113 = scmp.eq.s32.totalorder %s25, 0
    %p114 = por %p112, %p113
    %p115 = scmp.ne.s32.totalorder %s103, %s104
    %p116 = scmp.eq.s32.totalorder %s26, 1
    %p117 = por %p115, %p116
    %p119 = scmp.ne.s32.totalorder %s104, %s118
    %p120 = scmp.eq.s32.totalorder %s26, 0
    %p121 = por %p119, %p120
    %s123 = sadd.s32 %s122, 1
    %p126 = scmp.eq.s32.totalorder %s20, 1
    %p127 = scmp.ne.s32.totalorder %s122, %s124
    %p128 = scmp.eq.s32.totalorder %s20, 0
    %p129 = por %p127, %p128
    %p130 = scmp.ne.s32.totalorder %s122, %s124
    %p131 = scmp.eq.s32.totalorder %s25, 1
    %p132 = por %p130, %p131
    %p133 = scmp.ne.s32.totalorder %s124, %s125
    %p134 = scmp.eq.s32.totalorder %s25, 0
    %p135 = por %p133, %p134
    %p136 = scmp.ne.s32.totalorder %s124, %s125
    %p137 = scmp.eq.s32.totalorder %s26, 1
    %p138 = por %p136, %p137
    %p140 = scmp.ne.s32.totalorder %s125, %s139
    %p141 = scmp.eq.s32.totalorder %s26, 0
    %p142 = por %p140, %p141
    %s144 = sadd.s32 %s143, 1
    %p147 = scmp.eq.s32.totalorder %s20, 1
    %p148 = scmp.ne.s32.totalorder %s143, %s145
    %p149 = scmp.eq.s32.totalorder %s20, 0
    %p150 = por %p148, %p149
    %p151 = scmp.ne.s32.totalorder %s143, %s145
    %p152 = scmp.eq.s32.totalorder %s25, 1
    %p153 = por %p151, %p152
    %p154 = scmp.ne.s32.totalorder %s145, %s146
    %p155 = scmp.eq.s32.totalorder %s25, 0
    %p156 = por %p154, %p155
    %p157 = scmp.ne.s32.totalorder %s145, %s146
    %p158 = scmp.eq.s32.totalorder %s26, 1
    %p159 = por %p157, %p158
    %p161 = scmp.ne.s32.totalorder %s146, %s160
    %p162 = scmp.eq.s32.totalorder %s26, 0
    %p163 = por %p161, %p162
    %s165 = sadd.s32 %s164, 1
    %p168 = scmp.eq.s32.totalorder %s20, 1
    %p169 = scmp.ne.s32.totalorder %s164, %s166
    %p170 = scmp.eq.s32.totalorder %s20, 0
    %p171 = por %p169, %p170
    %p172 = scmp.ne.s32.totalorder %s164, %s166
    %p173 = scmp.eq.s32.totalorder %s25, 1
    %p174 = por %p172, %p173
    %p175 = scmp.ne.s32.totalorder %s166, %s167
    %p176 = scmp.eq.s32.totalorder %s25, 0
    %p177 = por %p175, %p176
    %p178 = scmp.ne.s32.totalorder %s166, %s167
    %p179 = scmp.eq.s32.totalorder %s26, 1
    %p180 = por %p178, %p179
    %p182 = scmp.ne.s32.totalorder %s167, %s181
    %p183 = scmp.eq.s32.totalorder %s26, 0
    %p184 = por %p182, %p183
    %s186 = sadd.s32 %s185, 1
    %p189 = scmp.eq.s32.totalorder %s20, 1
    %p190 = scmp.ne.s32.totalorder %s185, %s187
    %p191 = scmp.eq.s32.totalorder %s20, 0
    %p192 = por %p190, %p191
    %p193 = scmp.ne.s32.totalorder %s185, %s187
    %p194 = scmp.eq.s32.totalorder %s25, 1
    %p195 = por %p193, %p194
    %p196 = scmp.ne.s32.totalorder %s187, %s188
    %p197 = scmp.eq.s32.totalorder %s25, 0
    %p198 = por %p196, %p197
    %p199 = scmp.ne.s32.totalorder %s187, %s188
    %p200 = scmp.eq.s32.totalorder %s26, 1
    %p201 = por %p199, %p200
    %p203 = scmp.ne.s32.totalorder %s188, %s202
    %p204 = scmp.eq.s32.totalorder %s26, 0
    %p205 = por %p203, %p204
    %s207 = sadd.s32 %s206, 1
    %p210 = scmp.eq.s32.totalorder %s20, 1
    %p211 = scmp.ne.s32.totalorder %s206, %s208
    %p212 = scmp.eq.s32.totalorder %s20, 0
    %p213 = por %p211, %p212
    %p214 = scmp.ne.s32.totalorder %s206, %s208
    %p215 = scmp.eq.s32.totalorder %s25, 1
    %p216 = por %p214, %p215
    %p217 = scmp.ne.s32.totalorder %s208, %s209
    %p218 = scmp.eq.s32.totalorder %s25, 0
    %p219 = por %p217, %p218
    %p220 = scmp.ne.s32.totalorder %s208, %s209
    %p221 = scmp.eq.s32.totalorder %s26, 1
    %p222 = por %p220, %p221
    %p224 = scmp.ne.s32.totalorder %s209, %s223
    %p225 = scmp.eq.s32.totalorder %s26, 0
    %p226 = por %p224, %p225
    %s228 = sadd.s32 %s227, 1
    %p231 = scmp.eq.s32.totalorder %s20, 1
    %p232 = scmp.ne.s32.totalorder %s227, %s229
    %p233 = scmp.eq.s32.totalorder %s20, 0
    %p234 = por %p232, %p233
    %p235 = scmp.ne.s32.totalorder %s227, %s229
    %p236 = scmp.eq.s32.totalorder %s25, 1
    %p237 = por %p235, %p236
    %p238 = scmp.ne.s32.totalorder %s229, %s230
    %p239 = scmp.eq.s32.totalorder %s25, 0
    %p240 = por %p238, %p239
    %p241 = scmp.ne.s32.totalorder %s229, %s230
    %p242 = scmp.eq.s32.totalorder %s26, 1
    %p243 = por %p241, %p242
    %p245 = scmp.ne.s32.totalorder %s230, %s244
    %p246 = scmp.eq.s32.totalorder %s26, 0
    %p247 = por %p245, %p246
    %s249 = sadd.s32 %s248, 1
    %p252 = scmp.eq.s32.totalorder %s20, 1
    %p253 = scmp.ne.s32.totalorder %s248, %s250
    %p254 = scmp.eq.s32.totalorder %s20, 0
    %p255 = por %p253, %p254
    %p256 = scmp.ne.s32.totalorder %s248, %s250
    %p257 = scmp.eq.s32.totalorder %s25, 1
    %p258 = por %p256, %p257
    %p259 = scmp.ne.s32.totalorder %s250, %s251
    %p260 = scmp.eq.s32.totalorder %s25, 0
    %p261 = por %p259, %p260
    %p262 = scmp.ne.s32.totalorder %s250, %s251
    %p263 = scmp.eq.s32.totalorder %s26, 1
    %p264 = por %p262, %p263
    %p266 = scmp.ne.s32.totalorder %s251, %s265
    %p267 = scmp.eq.s32.totalorder %s26, 0
    %p268 = por %p266, %p267
    %s270 = sadd.s32 %s269, 1
    %p273 = scmp.eq.s32.totalorder %s20, 1
    %p274 = scmp.ne.s32.totalorder %s269, %s271
    %p275 = scmp.eq.s32.totalorder %s20, 0
    %p276 = por %p274, %p275
    %p277 = scmp.ne.s32.totalorder %s269, %s271
    %p278 = scmp.eq.s32.totalorder %s25, 1
    %p279 = por %p277, %p278
    %p280 = scmp.ne.s32.totalorder %s271, %s272
    %p281 = scmp.eq.s32.totalorder %s25, 0
    %p282 = por %p280, %p281
    %p283 = scmp.ne.s32.totalorder %s271, %s272
    %p284 = scmp.eq.s32.totalorder %s26, 1
    %p285 = por %p283, %p284
    %p287 = scmp.ne.s32.totalorder %s272, %s286
    %p288 = scmp.eq.s32.totalorder %s26, 0
    %p289 = por %p287, %p288
    %s291 = sadd.s32 %s290, 1
    %p294 = scmp.eq.s32.totalorder %s20, 1
    %p295 = scmp.ne.s32.totalorder %s290, %s292
    %p296 = scmp.eq.s32.totalorder %s20, 0
    %p297 = por %p295, %p296
    %p298 = scmp.ne.s32.totalorder %s290, %s292
    %p299 = scmp.eq.s32.totalorder %s25, 1
    %p300 = por %p298, %p299
    %p301 = scmp.ne.s32.totalorder %s292, %s293
    %p302 = scmp.eq.s32.totalorder %s25, 0
    %p303 = por %p301, %p302
    %p304 = scmp.ne.s32.totalorder %s292, %s293
    %p305 = scmp.eq.s32.totalorder %s26, 1
    %p306 = por %p304, %p305
    %p308 = scmp.ne.s32.totalorder %s293, %s307
    %p309 = scmp.eq.s32.totalorder %s26, 0
    %p310 = por %p308, %p309
    %s312 = sadd.s32 %s311, 1
    %p315 = scmp.eq.s32.totalorder %s20, 1
    %p316 = scmp.ne.s32.totalorder %s311, %s313
    %p317 = scmp.eq.s32.totalorder %s20, 0
    %p318 = por %p316, %p317
    %p319 = scmp.ne.s32.totalorder %s311, %s313
    %p320 = scmp.eq.s32.totalorder %s25, 1
    %p321 = por %p319, %p320
    %p322 = scmp.ne.s32.totalorder %s313, %s314
    %p323 = scmp.eq.s32.totalorder %s25, 0
    %p324 = por %p322, %p323
    %p325 = scmp.ne.s32.totalorder %s313, %s314
    %p326 = scmp.eq.s32.totalorder %s26, 1
    %p327 = por %p325, %p326
    %p329 = scmp.ne.s32.totalorder %s314, %s328
    %p330 = scmp.eq.s32.totalorder %s26, 0
    %p331 = por %p329, %p330
    %s332 = ssub.s32 %s20, %s27
    %p333 = scmp.eq.s32.totalorder %s332, 0
    %s335 = sadd.s32 %s334, 1
    %s336 = scalar_select %p333, %s334, %s335
    %p339 = pneg %p333
    %p340 = scmp.eq.s32.totalorder %s20, 1
    %p341 = por %p339, %p340
    %p342 = scmp.ne.s32.totalorder %s334, %s337
    %p343 = scmp.eq.s32.totalorder %s20, 0
    %p344 = por %p342, %p343
    %p345 = scmp.ne.s32.totalorder %s334, %s337
    %p346 = scmp.eq.s32.totalorder %s25, 1
    %p347 = por %p345, %p346
    %p348 = scmp.ne.s32.totalorder %s337, %s338
    %p349 = scmp.eq.s32.totalorder %s25, 0
    %p350 = por %p348, %p349
    %p351 = scmp.ne.s32.totalorder %s337, %s338
    %p352 = scmp.eq.s32.totalorder %s26, 1
    %p353 = por %p351, %p352
    %p355 = scmp.ne.s32.totalorder %s338, %s354
    %p356 = scmp.eq.s32.totalorder %s26, 0
    %p357 = por %p355, %p356
    %p358 = scmp.le.s32.totalorder 1, %s20
    %p359 = scmp.lt.s32.totalorder %s20, 3
    %p360 = pnand %p358, %p359
    %p361 = pneg %p360
    // Predicated region
    $region9: #{tpu_custom_call.1} parent=5 // pred_check
      _
    $region10: #{tpu_custom_call.1} parent=5 // pred_check_branch
      %363 = sbr.rel (%p360) target = $region12
    $region11: #{tpu_custom_call.1} parent=5 // pred_region
      %s364 = ssub.s32 %s20, 1
      // Predicated region
      $region13: #{tpu_custom_call.1} parent=11 // pred_check
        %p365 = pneg %p93
      $region14: #{tpu_custom_call.1} parent=11 // pred_check_branch
        %367 = sbr.rel (%p365) target = $region16
      $region15: #{tpu_custom_call.1} parent=11 // pred_region
        _
      $region16: #{tpu_custom_call.1} parent=11 // pred_fallthru
        _
      // Predicated region
      $region17: #{tpu_custom_call.1} parent=11 // pred_check
        %p368 = pneg %p114
      $region18: #{tpu_custom_call.1} parent=11 // pred_check_branch
        %370 = sbr.rel (%p368) target = $region20
      $region19: #{tpu_custom_call.1} parent=11 // pred_region
        _
      $region20: #{tpu_custom_call.1} parent=11 // pred_fallthru
        _
      // Predicated region
      $region21: #{tpu_custom_call.1} parent=11 // pred_check
        %p371 = pneg %p135
      $region22: #{tpu_custom_call.1} parent=11 // pred_check_branch
        %373 = sbr.rel (%p371) target = $region24
      $region23: #{tpu_custom_call.1} parent=11 // pred_region
        _
      $region24: #{tpu_custom_call.1} parent=11 // pred_fallthru
        _
      // Predicated region
      $region25: #{tpu_custom_call.1} parent=11 // pred_check
        %p374 = pneg %p156
      $region26: #{tpu_custom_call.1} parent=11 // pred_check_branch
        %376 = sbr.rel (%p374) target = $region28
      $region27: #{tpu_custom_call.1} parent=11 // pred_region
        _
      $region28: #{tpu_custom_call.1} parent=11 // pred_fallthru
        _
      // Predicated region
      $region29: #{tpu_custom_call.1} parent=11 // pred_check
        %p377 = pneg %p177
      $region30: #{tpu_custom_call.1} parent=11 // pred_check_branch
        %379 = sbr.rel (%p377) target = $region32
      $region31: #{tpu_custom_call.1} parent=11 // pred_region
        _
      $region32: #{tpu_custom_call.1} parent=11 // pred_fallthru
        _
      // Predicated region
      $region33: #{tpu_custom_call.1} parent=11 // pred_check
        %p380 = pneg %p198
      $region34: #{tpu_custom_call.1} parent=11 // pred_check_branch
        %382 = sbr.rel (%p380) target = $region36
      $region35: #{tpu_custom_call.1} parent=11 // pred_region
        _
      $region36: #{tpu_custom_call.1} parent=11 // pred_fallthru
        _
      // Predicated region
      $region37: #{tpu_custom_call.1} parent=11 // pred_check
        %p383 = pneg %p219
      $region38: #{tpu_custom_call.1} parent=11 // pred_check_branch
        %385 = sbr.rel (%p383) target = $region40
      $region39: #{tpu_custom_call.1} parent=11 // pred_region
        _
      $region40: #{tpu_custom_call.1} parent=11 // pred_fallthru
        _
      // Predicated region
      $region41: #{tpu_custom_call.1} parent=11 // pred_check
        %p386 = pneg %p240
      $region42: #{tpu_custom_call.1} parent=11 // pred_check_branch
        %388 = sbr.rel (%p386) target = $region44
      $region43: #{tpu_custom_call.1} parent=11 // pred_region
        _
      $region44: #{tpu_custom_call.1} parent=11 // pred_fallthru
        _
      // Predicated region
      $region45: #{tpu_custom_call.1} parent=11 // pred_check
        %p389 = pneg %p261
      $region46: #{tpu_custom_call.1} parent=11 // pred_check_branch
        %391 = sbr.rel (%p389) target = $region48
      $region47: #{tpu_custom_call.1} parent=11 // pred_region
        _
      $region48: #{tpu_custom_call.1} parent=11 // pred_fallthru
        _
      // Predicated region
      $region49: #{tpu_custom_call.1} parent=11 // pred_check
        %p392 = pneg %p282
      $region50: #{tpu_custom_call.1} parent=11 // pred_check_branch
        %394 = sbr.rel (%p392) target = $region52
      $region51: #{tpu_custom_call.1} parent=11 // pred_region
        _
      $region52: #{tpu_custom_call.1} parent=11 // pred_fallthru
        _
      // Predicated region
      $region53: #{tpu_custom_call.1} parent=11 // pred_check
        %p395 = pneg %p303
      $region54: #{tpu_custom_call.1} parent=11 // pred_check_branch
        %397 = sbr.rel (%p395) target = $region56
      $region55: #{tpu_custom_call.1} parent=11 // pred_region
        _
      $region56: #{tpu_custom_call.1} parent=11 // pred_fallthru
        _
      // Predicated region
      $region57: #{tpu_custom_call.1} parent=11 // pred_check
        %p398 = pneg %p324
      $region58: #{tpu_custom_call.1} parent=11 // pred_check_branch
        %400 = sbr.rel (%p398) target = $region60
      $region59: #{tpu_custom_call.1} parent=11 // pred_region
        _
      $region60: #{tpu_custom_call.1} parent=11 // pred_fallthru
        _
    $region12: #{tpu_custom_call.1} parent=5 // pred_fallthru
      _
    %p401 = scmp.lt.s32.totalorder %s20, 2
    // Predicated region
    $region61: #{tpu_custom_call.1} parent=5 // pred_check
      %p402 = pneg %p401
    $region62: #{tpu_custom_call.1} parent=5 // pred_check_branch
      %404 = sbr.rel (%p402) target = $region64
    $region63: #{tpu_custom_call.1} parent=5 // pred_region
      // Predicated region
      $region65: #{tpu_custom_call.1} parent=63 // pred_check
        %p405 = pneg %p40
      $region66: #{tpu_custom_call.1} parent=63 // pred_check_branch
        %407 = sbr.rel (%p405) target = $region68
      $region67: #{tpu_custom_call.1} parent=63 // pred_region
        %p408 = scmp.lt.s32.totalorder %s20, 1
        %s409 = scalar_select %p408, %s20, 1
        %s410 = smul.addr %s409, 32
        %s411 = smul.addr %s410, 8
        %s412 = scalar_lea.vmem %s0, %s411
      $region68: #{tpu_custom_call.1} parent=63 // pred_fallthru
        _
      // Predicated region
      $region69: #{tpu_custom_call.1} parent=63 // pred_check
        %p413 = pneg %p66
      $region70: #{tpu_custom_call.1} parent=63 // pred_check_branch
        %415 = sbr.rel (%p413) target = $region72
      $region71: #{tpu_custom_call.1} parent=63 // pred_region
        %p416 = scmp.lt.s32.totalorder %s20, 1
        %s417 = scalar_select %p416, %s20, 1
        %s418 = smul.addr %s417, 32
        %s419 = smul.addr %s418, 8
        %s420 = scalar_lea.vmem %s1, %s419
      $region72: #{tpu_custom_call.1} parent=63 // pred_fallthru
        _
    $region64: #{tpu_custom_call.1} parent=5 // pred_fallthru
      _
    %p421 = scmp.le.s32.totalorder 1, %s20
    %p422 = scmp.lt.s32.totalorder %s20, 3
    %p423 = pnand %p421, %p422
    %p424 = pneg %p423
    // Predicated region
    $region73: #{tpu_custom_call.1} parent=5 // pred_check
      _
    $region74: #{tpu_custom_call.1} parent=5 // pred_check_branch
      %426 = sbr.rel (%p423) target = $region76
    $region75: #{tpu_custom_call.1} parent=5 // pred_region
      %s427 = ssub.s32 %s20, 1
      %p428 = scmp.lt.s32.totalorder %s25, 1
      %s429 = scalar_select %p428, %s25, 1
      %s430 = smul.addr %s429, 32
      %s431 = smul.addr %s430, 8
      %s432 = scalar_lea.vmem %s0, %s431
      %p433 = pneg %p46
      %p434 = pneg %p43
      %p435 = scmp.lt.s32.totalorder %s25, 1
      %s436 = scalar_select %p435, %s25, 1
      %s437 = smul.addr %s436, 32
      %s438 = smul.addr %s437, 8
      %s439 = scalar_lea.vmem %s1, %s438
      %p440 = pneg %p72
      %p441 = pneg %p69
      %p442 = pneg %p93
      %p443 = pneg %p90
      %p444 = pneg %p114
      %p445 = pneg %p111
      %p446 = pneg %p135
      %p447 = pneg %p132
      %p448 = pneg %p156
      %p449 = pneg %p153
      %p450 = pneg %p177
      %p451 = pneg %p174
      %p452 = pneg %p198
      %p453 = pneg %p195
      %p454 = pneg %p219
      %p455 = pneg %p216
      %p456 = pneg %p240
      %p457 = pneg %p237
      %p458 = pneg %p261
      %p459 = pneg %p258
      %p460 = pneg %p282
      %p461 = pneg %p279
      %p462 = pneg %p303
      %p463 = pneg %p300
      %p464 = pneg %p324
      %p465 = pneg %p321
      %p466 = pneg %p350
      %p467 = pneg %p347
      %p468 = scmp.lt.s32.totalorder %s25, 1
      %s469 = scalar_select %p468, %s25, 1
      %s470 = smul.addr %s469, 32
      %s471 = smul.addr %s470, 8
      %s472 = scalar_lea.vmem %s14, %s471
      %p473 = scmp.lt.s32.totalorder %s25, 1
      %s474 = scalar_select %p473, %s25, 1
      %s475 = smul.addr %s474, 32
      %s476 = smul.addr %s475, 8
      %s477 = scalar_lea.vmem %s0, %s476
      %p478 = scmp.lt.s32.totalorder %s25, 1
      %s479 = scalar_select %p478, %s25, 1
      %s480 = smul.addr %s479, 32
      %s481 = smul.addr %s480, 8
      %s482 = scalar_lea.vmem %s1, %s481
      %p483 = scmp.lt.s32.totalorder %s25, 1
      %s484 = scalar_select %p483, %s25, 1
      %s485 = smul.addr %s484, 32
      %s486 = smul.addr %s485, 8
      %s487 = scalar_lea.vmem %s14, %s486
      %vm489 = vcmask 31744
      %490 = vst.msk [vmem:[#allocation2] sm:$0xff] %vm489, 0.0
      %491 = vst.msk [vmem:[#allocation2 + $0x8] sm:$0xff] %vm489, 0.0
      %vm492 = vcmask 25600
      %493 = vst.msk [vmem:[#allocation2 + $0x10] sm:$0x3] %vm492, 0.0
      %494 = vst.msk [vmem:[#allocation2 + $0x18] sm:$0xff] %vm489, 0.0
      %495 = vst.msk [vmem:[#allocation2 + $0x20] sm:$0xff] %vm489, 0.0
      %496 = vst.msk [vmem:[#allocation2 + $0x28] sm:$0x3] %vm492, 0.0
      %497 = vst.msk [vmem:[#allocation2 + $0x30] sm:$0xff] %vm489, 0.0
      %498 = vst.msk [vmem:[#allocation2 + $0x38] sm:$0xff] %vm489, 0.0
      %499 = vst.msk [vmem:[#allocation2 + $0x40] sm:$0x3] %vm492, 0.0
      %500 = vst.msk [vmem:[#allocation2 + $0x48] sm:$0xff] %vm489, 0.0
      %501 = vst.msk [vmem:[#allocation2 + $0x50] sm:$0xff] %vm489, 0.0
      %502 = vst.msk [vmem:[#allocation2 + $0x58] sm:$0x3] %vm492, 0.0
      %503 = vst.msk [vmem:[#allocation2 + $0x60] sm:$0xff] %vm489, 0.0
      %504 = vst.msk [vmem:[#allocation2 + $0x68] sm:$0xff] %vm489, 0.0
      %505 = vst.msk [vmem:[#allocation2 + $0x70] sm:$0x3] %vm492, 0.0
      %506 = vst.msk [vmem:[#allocation2 + $0x78] sm:$0xff] %vm489, 0.0
      %507 = vst.msk [vmem:[#allocation2 + $0x80] sm:$0xff] %vm489, 0.0
      %508 = vst.msk [vmem:[#allocation2 + $0x88] sm:$0x3] %vm492, 0.0
      %509 = vst.msk [vmem:[#allocation2 + $0x90] sm:$0xff] %vm489, 0.0
      %510 = vst.msk [vmem:[#allocation2 + $0x98] sm:$0xff] %vm489, 0.0
      %511 = vst.msk [vmem:[#allocation2 + $0xa0] sm:$0x3] %vm492, 0.0
      %512 = vst.msk [vmem:[#allocation2 + $0xa8] sm:$0xff] %vm489, 0.0
      %513 = vst.msk [vmem:[#allocation2 + $0xb0] sm:$0xff] %vm489, 0.0
      %514 = vst.msk [vmem:[#allocation2 + $0xb8] sm:$0x3] %vm492, 0.0
      %515 = vst.msk [vmem:[#allocation2 + $0xc0] sm:$0xff] %vm489, 0.0
      %516 = vst.msk [vmem:[#allocation2 + $0xc8] sm:$0xff] %vm489, 0.0
      %517 = vst.msk [vmem:[#allocation2 + $0xd0] sm:$0x3] %vm492, 0.0
      %518 = vst.msk [vmem:[#allocation2 + $0xd8] sm:$0xff] %vm489, 0.0
      %519 = vst.msk [vmem:[#allocation2 + $0xe0] sm:$0xff] %vm489, 0.0
      %520 = vst.msk [vmem:[#allocation2 + $0xe8] sm:$0x3] %vm492, 0.0
      %521 = vst.msk [vmem:[#allocation2 + $0xf0] sm:$0xff] %vm489, 0.0
      %522 = vst.msk [vmem:[#allocation2 + $0xf8] sm:$0xff] %vm489, 0.0
      %523 = vst.msk [vmem:[#allocation2 + $0x100] sm:$0x3] %vm492, 0.0
      %524 = vst.msk [vmem:[#allocation2 + $0x108] sm:$0xff] %vm489, 0.0
      %525 = vst.msk [vmem:[#allocation2 + $0x110] sm:$0xff] %vm489, 0.0
      %526 = vst.msk [vmem:[#allocation2 + $0x118] sm:$0x3] %vm492, 0.0
      %527 = vst.msk [vmem:[#allocation2 + $0x120] sm:$0xff] %vm489, 0.0
      %528 = vst.msk [vmem:[#allocation2 + $0x128] sm:$0xff] %vm489, 0.0
      %529 = vst.msk [vmem:[#allocation2 + $0x130] sm:$0x3] %vm492, 0.0
      %530 = vst.msk [vmem:[#allocation2 + $0x138] sm:$0xff] %vm489, 0.0
      %531 = vst.msk [vmem:[#allocation2 + $0x140] sm:$0xff] %vm489, 0.0
      %532 = vst.msk [vmem:[#allocation2 + $0x148] sm:$0x3] %vm492, 0.0
      %533 = vst.msk [vmem:[#allocation2 + $0x150] sm:$0xff] %vm489, 0.0
      %534 = vst.msk [vmem:[#allocation2 + $0x158] sm:$0xff] %vm489, 0.0
      %535 = vst.msk [vmem:[#allocation2 + $0x160] sm:$0x3] %vm492, 0.0
      %536 = vst.msk [vmem:[#allocation2 + $0x168] sm:$0xff] %vm489, 0.0
      %537 = vst.msk [vmem:[#allocation2 + $0x170] sm:$0xff] %vm489, 0.0
      %538 = vst.msk [vmem:[#allocation2 + $0x178] sm:$0x3] %vm492, 0.0
      %539 = vst.msk [vmem:[#allocation2 + $0x180] sm:$0xff] %vm489, 0.0
      %540 = vst.msk [vmem:[#allocation2 + $0x188] sm:$0xff] %vm489, 0.0
      %541 = vst.msk [vmem:[#allocation2 + $0x190] sm:$0x3] %vm492, 0.0
      %542 = vst.msk [vmem:[#allocation2 + $0x198] sm:$0xff] %vm489, 0.0
      %543 = vst.msk [vmem:[#allocation2 + $0x1a0] sm:$0xff] %vm489, 0.0
      %544 = vst.msk [vmem:[#allocation2 + $0x1a8] sm:$0x3] %vm492, 0.0
      %v545 = vld [vmem:[%s477] sm:$0xff]
      %v546 = vld [vmem:[%s477 + $0x8] sm:$0xff]
      %v547 = vld [vmem:[%s477 + $0x10] sm:$0xff]
      %v548 = vld [vmem:[%s477 + $0x18] sm:$0xff]
      %v549 = vld [vmem:[%s477 + $0x20] sm:$0xff]
      %v550 = vld [vmem:[%s477 + $0x28] sm:$0xff]
      %v551 = vld [vmem:[%s477 + $0x30] sm:$0xff]
      %v552 = vld [vmem:[%s477 + $0x38] sm:$0xff]
      %v553 = vld [vmem:[%s477 + $0x40] sm:$0xff]
      %v554 = vld [vmem:[%s477 + $0x48] sm:$0xff]
      %v555 = vld [vmem:[%s477 + $0x50] sm:$0xff]
      %v556 = vld [vmem:[%s477 + $0x58] sm:$0xff]
      %v557 = vld [vmem:[%s477 + $0x60] sm:$0xff]
      %v558 = vld [vmem:[%s477 + $0x68] sm:$0xff]
      %v559 = vld [vmem:[%s477 + $0x70] sm:$0xff]
      %v560 = vld [vmem:[%s477 + $0x78] sm:$0xff]
      %v561 = vld [vmem:[%s477 + $0x80] sm:$0xff]
      %v562 = vld [vmem:[%s477 + $0x88] sm:$0xff]
      %v563 = vld [vmem:[%s477 + $0x90] sm:$0xff]
      %v564 = vld [vmem:[%s477 + $0x98] sm:$0xff]
      %v565 = vld [vmem:[%s477 + $0xa0] sm:$0xff]
      %v566 = vld [vmem:[%s477 + $0xa8] sm:$0xff]
      %v567 = vld [vmem:[%s477 + $0xb0] sm:$0xff]
      %v568 = vld [vmem:[%s477 + $0xb8] sm:$0xff]
      %v569 = vld [vmem:[%s477 + $0xc0] sm:$0xff]
      %v570 = vld [vmem:[%s477 + $0xc8] sm:$0xff]
      %v571 = vld [vmem:[%s477 + $0xd0] sm:$0xff]
      %v572 = vld [vmem:[%s477 + $0xd8] sm:$0xff]
      %v573 = vld [vmem:[%s477 + $0xe0] sm:$0xff]
      %v574 = vld [vmem:[%s477 + $0xe8] sm:$0xff]
      %v575 = vld [vmem:[%s477 + $0xf0] sm:$0xff]
      %v576 = vld [vmem:[%s477 + $0xf8] sm:$0xff]
      %v577 = vld [vmem:[%s482] sm:$0xff]
      %v578 = vld [vmem:[%s482 + $0x8] sm:$0xff]
      %v579 = vld [vmem:[%s482 + $0x10] sm:$0xff]
      %v580 = vld [vmem:[%s482 + $0x18] sm:$0xff]
      %v581 = vld [vmem:[%s482 + $0x20] sm:$0xff]
      %v582 = vld [vmem:[%s482 + $0x28] sm:$0xff]
      %v583 = vld [vmem:[%s482 + $0x30] sm:$0xff]
      %v584 = vld [vmem:[%s482 + $0x38] sm:$0xff]
      %v585 = vld [vmem:[%s482 + $0x40] sm:$0xff]
      %v586 = vld [vmem:[%s482 + $0x48] sm:$0xff]
      %v587 = vld [vmem:[%s482 + $0x50] sm:$0xff]
      %v588 = vld [vmem:[%s482 + $0x58] sm:$0xff]
      %v589 = vld [vmem:[%s482 + $0x60] sm:$0xff]
      %v590 = vld [vmem:[%s482 + $0x68] sm:$0xff]
      %v591 = vld [vmem:[%s482 + $0x70] sm:$0xff]
      %v592 = vld [vmem:[%s482 + $0x78] sm:$0xff]
      %v593 = vld [vmem:[%s482 + $0x80] sm:$0xff]
      %v594 = vld [vmem:[%s482 + $0x88] sm:$0xff]
      %v595 = vld [vmem:[%s482 + $0x90] sm:$0xff]
      %v596 = vld [vmem:[%s482 + $0x98] sm:$0xff]
      %v597 = vld [vmem:[%s482 + $0xa0] sm:$0xff]
      %v598 = vld [vmem:[%s482 + $0xa8] sm:$0xff]
      %v599 = vld [vmem:[%s482 + $0xb0] sm:$0xff]
      %v600 = vld [vmem:[%s482 + $0xb8] sm:$0xff]
      %v601 = vld [vmem:[%s482 + $0xc0] sm:$0xff]
      %v602 = vld [vmem:[%s482 + $0xc8] sm:$0xff]
      %v603 = vld [vmem:[%s482 + $0xd0] sm:$0xff]
      %v604 = vld [vmem:[%s482 + $0xd8] sm:$0xff]
      %v605 = vld [vmem:[%s482 + $0xe0] sm:$0xff]
      %v606 = vld [vmem:[%s482 + $0xe8] sm:$0xff]
      %v607 = vld [vmem:[%s482 + $0xf0] sm:$0xff]
      %v608 = vld [vmem:[%s482 + $0xf8] sm:$0xff]
      %v609 = vpack.c.bf16 %v546, %v545
      %v610 = vpack.c.bf16 %v548, %v547
      %v611 = vpack.c.bf16 %v550, %v549
      %v612 = vpack.c.bf16 %v552, %v551
      %v613 = vpack.c.bf16 %v554, %v553
      %v614 = vpack.c.bf16 %v556, %v555
      %v615 = vpack.c.bf16 %v558, %v557
      %v616 = vpack.c.bf16 %v560, %v559
      %v617 = vpack.c.bf16 %v562, %v561
      %v618 = vpack.c.bf16 %v564, %v563
      %v619 = vpack.c.bf16 %v566, %v565
      %v620 = vpack.c.bf16 %v568, %v567
      %v621 = vpack.c.bf16 %v570, %v569
      %v622 = vpack.c.bf16 %v572, %v571
      %v623 = vpack.c.bf16 %v574, %v573
      %v624 = vpack.c.bf16 %v576, %v575
      %v625 = vpack.c.bf16 %v578, %v577
      %v626 = vpack.c.bf16 %v580, %v579
      %v627 = vpack.c.bf16 %v582, %v581
      %v628 = vpack.c.bf16 %v584, %v583
      %v629 = vpack.c.bf16 %v586, %v585
      %v630 = vpack.c.bf16 %v588, %v587
      %v631 = vpack.c.bf16 %v590, %v589
      %v632 = vpack.c.bf16 %v592, %v591
      %v633 = vpack.c.bf16 %v594, %v593
      %v634 = vpack.c.bf16 %v596, %v595
      %v635 = vpack.c.bf16 %v598, %v597
      %v636 = vpack.c.bf16 %v600, %v599
      %v637 = vpack.c.bf16 %v602, %v601
      %v638 = vpack.c.bf16 %v604, %v603
      %v639 = vpack.c.bf16 %v606, %v605
      %v640 = vpack.c.bf16 %v608, %v607
      %v641 = vld [vmem:[%s2] sm:$0x3]
      %v642 = vld [vmem:[%s3] sm:$0x1]
      %v644 = vlaneseq
      %v645 = vshrl.u32 %v644, 7
      %v646 = vsub.s32 0, %v645
      %v647 = vrot.slane %v642, %v646
      %v650 = vsel %vm489, %v609, 0
      %v653 = vsel %vm489, %v610, 0
      %v656 = vsel %vm489, %v611, 0
      %v659 = vsel %vm489, %v612, 0
      %v662 = vsel %vm489, %v613, 0
      %v665 = vsel %vm489, %v614, 0
      %v668 = vsel %vm489, %v615, 0
      %v671 = vsel %vm489, %v616, 0
      %v674 = vsel %vm489, %v617, 0
      %v677 = vsel %vm489, %v618, 0
      %v680 = vsel %vm489, %v619, 0
      %v683 = vsel %vm489, %v620, 0
      %v686 = vsel %vm489, %v621, 0
      %v689 = vsel %vm489, %v622, 0
      %v692 = vsel %vm489, %v623, 0
      %v695 = vsel %vm489, %v624, 0
      %vm697 = vcmask 1041408
      %v699 = vsel %vm697, %v641, 0
      %701 = vmatprep.subr.bf16.mxu0 0
      %702 = vmatpush1.bf16.msra.mxu0 %v699
      %703 = vmatprep.subr.bf16.mxu0 0
      %704 = vmatpush1.bf16.msra.mxu0 0
      %705 = vmatprep.subr.bf16.mxu0 0
      %706 = vmatpush1.bf16.msra.mxu0 0
      %707 = vmatprep.subr.bf16.mxu0 0
      %708 = vmatpush1.bf16.msra.mxu0 0
      %709 = vmatprep.subr.bf16.mxu0 0
      %710 = vmatpush1.bf16.msra.mxu0 0
      %711 = vmatprep.subr.bf16.mxu0 0
      %712 = vmatpush1.bf16.msra.mxu0 0
      %713 = vmatprep.subr.bf16.mxu0 0
      %714 = vmatpush1.bf16.msra.mxu0 0
      %715 = vmatprep.subr.bf16.mxu0 0
      %716 = vmatpush1.bf16.msra.mxu0 0
      %717 = vmatprep.subr.bf16.mxu0 0
      %718 = vmatpush1.bf16.msra.mxu0 0
      %719 = vmatprep.subr.bf16.mxu0 0
      %720 = vmatpush1.bf16.msra.mxu0 0
      %721 = vmatprep.subr.bf16.mxu0 0
      %722 = vmatpush1.bf16.msra.mxu0 0
      %723 = vmatprep.subr.bf16.mxu0 0
      %724 = vmatpush1.bf16.msra.mxu0 0
      %725 = vmatprep.subr.bf16.mxu0 0
      %726 = vmatpush1.bf16.msra.mxu0 0
      %727 = vmatprep.subr.bf16.mxu0 0
      %728 = vmatpush1.bf16.msra.mxu0 0
      %729 = vmatprep.subr.bf16.mxu0 0
      %730 = vmatpush1.bf16.msra.mxu0 0
      %731 = vmatprep.subr.bf16.mxu0 0
      %732 = vmatpush1.bf16.msra.mxu0 0
      %733 = vmatprep.mubr.bf16.mxu0 0
      %734 = vmatmul.mubr.bf16.gmra.mrb[0].mxu0 %v650
      %v735 = vpop.f32.mrb[0].mxu0
      %v736 = vadd.f32 %v647, %v735
      %v737 = vpop.f32.mrb[0].mxu0
      %v738 = vpop.f32.mrb[0].mxu0
      %v739 = vadd.f32 %v647, %v738
      %v740 = vpop.f32.mrb[0].mxu0
      %741 = vmatprep.mubr.bf16.mxu0 0
      %742 = vmatmul.mubr.bf16.gmra.mrb[0].mxu0 %v653
      %v743 = vpop.f32.mrb[0].mxu0
      %v744 = vadd.f32 %v647, %v743
      %v745 = vpop.f32.mrb[0].mxu0
      %v746 = vpop.f32.mrb[0].mxu0
      %v747 = vadd.f32 %v647, %v746
      %v748 = vpop.f32.mrb[0].mxu0
      %749 = vmatprep.mubr.bf16.mxu0 0
      %750 = vmatmul.mubr.bf16.gmra.mrb[0].mxu0 %v656
      %v751 = vpop.f32.mrb[0].mxu0
      %v752 = vadd.f32 %v647, %v751
      %v753 = vpop.f32.mrb[0].mxu0
      %v754 = vpop.f32.mrb[0].mxu0
      %v755 = vadd.f32 %v647, %v754
      %v756 = vpop.f32.mrb[0].mxu0
      %757 = vmatprep.mubr.bf16.mxu0 0
      %758 = vmatmul.mubr.bf16.gmra.mrb[0].mxu0 %v659
      %v759 = vpop.f32.mrb[0].mxu0
      %v760 = vadd.f32 %v647, %v759
      %v761 = vpop.f32.mrb[0].mxu0
      %v762 = vpop.f32.mrb[0].mxu0
      %v763 = vadd.f32 %v647, %v762
      %v764 = vpop.f32.mrb[0].mxu0
      %765 = vmatprep.mubr.bf16.mxu0 0
      %766 = vmatmul.mubr.bf16.gmra.mrb[0].mxu0 %v662
      %v767 = vpop.f32.mrb[0].mxu0
      %v768 = vadd.f32 %v647, %v767
      %v769 = vpop.f32.mrb[0].mxu0
      %v770 = vpop.f32.mrb[0].mxu0
      %v771 = vadd.f32 %v647, %v770
      %v772 = vpop.f32.mrb[0].mxu0
      %773 = vmatprep.mubr.bf16.mxu0 0
      %774 = vmatmul.mubr.bf16.gmra.mrb[0].mxu0 %v665
      %v775 = vpop.f32.mrb[0].mxu0
      %v776 = vadd.f32 %v647, %v775
      %v777 = vpop.f32.mrb[0].mxu0
      %v778 = vpop.f32.mrb[0].mxu0
      %v779 = vadd.f32 %v647, %v778
      %v780 = vpop.f32.mrb[0].mxu0
      %781 = vmatprep.mubr.bf16.mxu0 0
      %782 = vmatmul.mubr.bf16.gmra.mrb[0].mxu0 %v668
      %v783 = vpop.f32.mrb[0].mxu0
      %v784 = vadd.f32 %v647, %v783
      %v785 = vpop.f32.mrb[0].mxu0
      %v786 = vpop.f32.mrb[0].mxu0
      %v787 = vadd.f32 %v647, %v786
      %v788 = vpop.f32.mrb[0].mxu0
      %789 = vmatprep.mubr.bf16.mxu0 0
      %790 = vmatmul.mubr.bf16.gmra.mrb[0].mxu0 %v671
      %v791 = vpop.f32.mrb[0].mxu0
      %v792 = vadd.f32 %v647, %v791
      %v793 = vpop.f32.mrb[0].mxu0
      %v794 = vpop.f32.mrb[0].mxu0
      %v795 = vadd.f32 %v647, %v794
      %v796 = vpop.f32.mrb[0].mxu0
      %797 = vmatprep.mubr.bf16.mxu0 0
      %798 = vmatmul.mubr.bf16.gmra.mrb[0].mxu0 %v674
      %v799 = vpop.f32.mrb[0].mxu0
      %v800 = vadd.f32 %v647, %v799
      %v801 = vpop.f32.mrb[0].mxu0
      %v802 = vpop.f32.mrb[0].mxu0
      %v803 = vadd.f32 %v647, %v802
      %v804 = vpop.f32.mrb[0].mxu0
      %805 = vmatprep.mubr.bf16.mxu0 0
      %806 = vmatmul.mubr.bf16.gmra.mrb[0].mxu0 %v677
      %v807 = vpop.f32.mrb[0].mxu0
      %v808 = vadd.f32 %v647, %v807
      %v809 = vpop.f32.mrb[0].mxu0
      %v810 = vpop.f32.mrb[0].mxu0
      %v811 = vadd.f32 %v647, %v810
      %v812 = vpop.f32.mrb[0].mxu0
      %813 = vmatprep.mubr.bf16.mxu0 0
      %814 = vmatmul.mubr.bf16.gmra.mrb[0].mxu0 %v680
      %v815 = vpop.f32.mrb[0].mxu0
      %v816 = vadd.f32 %v647, %v815
      %v817 = vpop.f32.mrb[0].mxu0
      %v818 = vpop.f32.mrb[0].mxu0
      %v819 = vadd.f32 %v647, %v818
      %v820 = vpop.f32.mrb[0].mxu0
      %821 = vmatprep.mubr.bf16.mxu0 0
      %822 = vmatmul.mubr.bf16.gmra.mrb[0].mxu0 %v683
      %v823 = vpop.f32.mrb[0].mxu0
      %v824 = vadd.f32 %v647, %v823
      %v825 = vpop.f32.mrb[0].mxu0
      %v826 = vpop.f32.mrb[0].mxu0
      %v827 = vadd.f32 %v647, %v826
      %v828 = vpop.f32.mrb[0].mxu0
      %829 = vmatprep.mubr.bf16.mxu0 0
      %830 = vmatmul.mubr.bf16.gmra.mrb[0].mxu0 %v686
      %v831 = vpop.f32.mrb[0].mxu0
      %v832 = vadd.f32 %v647, %v831
      %v833 = vpop.f32.mrb[0].mxu0
      %v834 = vpop.f32.mrb[0].mxu0
      %v835 = vadd.f32 %v647, %v834
      %v836 = vpop.f32.mrb[0].mxu0
      %837 = vmatprep.mubr.bf16.mxu0 0
      %838 = vmatmul.mubr.bf16.gmra.mrb[0].mxu0 %v689
      %v839 = vpop.f32.mrb[0].mxu0
      %v840 = vadd.f32 %v647, %v839
      %v841 = vpop.f32.mrb[0].mxu0
      %v842 = vpop.f32.mrb[0].mxu0
      %v843 = vadd.f32 %v647, %v842
      %v844 = vpop.f32.mrb[0].mxu0
      %845 = vmatprep.mubr.bf16.mxu0 0
      %846 = vmatmul.mubr.bf16.gmra.mrb[0].mxu0 %v692
      %v847 = vpop.f32.mrb[0].mxu0
      %v848 = vadd.f32 %v647, %v847
      %v849 = vpop.f32.mrb[0].mxu0
      %v850 = vpop.f32.mrb[0].mxu0
      %v851 = vadd.f32 %v647, %v850
      %v852 = vpop.f32.mrb[0].mxu0
      %853 = vmatprep.mubr.bf16.mxu0 0
      %854 = vmatmul.mubr.bf16.gmra.mrb[0].mxu0 %v695
      %v855 = vpop.f32.mrb[0].mxu0
      %v856 = vadd.f32 %v647, %v855
      %v857 = vpop.f32.mrb[0].mxu0
      %v858 = vpop.f32.mrb[0].mxu0
      %v859 = vadd.f32 %v647, %v858
      %v860 = vpop.f32.mrb[0].mxu0
      %861 = vdwg.mxu0
      %s862 = scalar_lea.vmem [#allocation2], 24
      %863 = vst.msk [vmem:[%s862 + $0x1] sm:$0xff] %vm489, %v736
      %864 = vst.msk [vmem:[%s862 + $0x9] sm:$0xff] %vm489, %v739
      %865 = vst.msk [vmem:[%s862 + $0x19] sm:$0xff] %vm489, %v744
      %866 = vst.msk [vmem:[%s862 + $0x21] sm:$0xff] %vm489, %v747
      %867 = vst.msk [vmem:[%s862 + $0x31] sm:$0xff] %vm489, %v752
      %868 = vst.msk [vmem:[%s862 + $0x39] sm:$0xff] %vm489, %v755
      %869 = vst.msk [vmem:[%s862 + $0x49] sm:$0xff] %vm489, %v760
      %870 = vst.msk [vmem:[%s862 + $0x51] sm:$0xff] %vm489, %v763
      %871 = vst.msk [vmem:[%s862 + $0x61] sm:$0xff] %vm489, %v768
      %872 = vst.msk [vmem:[%s862 + $0x69] sm:$0xff] %vm489, %v771
      %873 = vst.msk [vmem:[%s862 + $0x79] sm:$0xff] %vm489, %v776
      %874 = vst.msk [vmem:[%s862 + $0x81] sm:$0xff] %vm489, %v779
      %875 = vst.msk [vmem:[%s862 + $0x91] sm:$0xff] %vm489, %v784
      %876 = vst.msk [vmem:[%s862 + $0x99] sm:$0xff] %vm489, %v787
      %877 = vst.msk [vmem:[%s862 + $0xa9] sm:$0xff] %vm489, %v792
      %878 = vst.msk [vmem:[%s862 + $0xb1] sm:$0xff] %vm489, %v795
      %879 = vst.msk [vmem:[%s862 + $0xc1] sm:$0xff] %vm489, %v800
      %880 = vst.msk [vmem:[%s862 + $0xc9] sm:$0xff] %vm489, %v803
      %881 = vst.msk [vmem:[%s862 + $0xd9] sm:$0xff] %vm489, %v808
      %882 = vst.msk [vmem:[%s862 + $0xe1] sm:$0xff] %vm489, %v811
      %883 = vst.msk [vmem:[%s862 + $0xf1] sm:$0xff] %vm489, %v816
      %884 = vst.msk [vmem:[%s862 + $0xf9] sm:$0xff] %vm489, %v819
      %885 = vst.msk [vmem:[%s862 + $0x109] sm:$0xff] %vm489, %v824
      %886 = vst.msk [vmem:[%s862 + $0x111] sm:$0xff] %vm489, %v827
      %887 = vst.msk [vmem:[%s862 + $0x121] sm:$0xff] %vm489, %v832
      %888 = vst.msk [vmem:[%s862 + $0x129] sm:$0xff] %vm489, %v835
      %889 = vst.msk [vmem:[%s862 + $0x139] sm:$0xff] %vm489, %v840
      %890 = vst.msk [vmem:[%s862 + $0x141] sm:$0xff] %vm489, %v843
      %891 = vst.msk [vmem:[%s862 + $0x151] sm:$0xff] %vm489, %v848
      %892 = vst.msk [vmem:[%s862 + $0x159] sm:$0xff] %vm489, %v851
      %893 = vst.msk [vmem:[%s862 + $0x169] sm:$0xff] %vm489, %v856
      %894 = vst.msk [vmem:[%s862 + $0x171] sm:$0xff] %vm489, %v859
      %v895 = vld [vmem:[%s4] sm:$0xff]
      %v896 = vld [vmem:[%s4 + $0x8] sm:$0x1]
      %v897 = vld [vmem:[#allocation2] sm:$0xff]
      %v898 = vld [vmem:[#allocation2 + $0x8] sm:$0xff]
      %v899 = vld [vmem:[#allocation2 + $0x10] sm:$0x3]
      %v900 = vld [vmem:[#allocation2 + $0x18] sm:$0xff]
      %v901 = vld [vmem:[#allocation2 + $0x20] sm:$0xff]
      %v902 = vld [vmem:[#allocation2 + $0x28] sm:$0x3]
      %v903 = vld [vmem:[#allocation2 + $0x30] sm:$0xff]
      %v904 = vld [vmem:[#allocation2 + $0x38] sm:$0xff]
      %v905 = vld [vmem:[#allocation2 + $0x40] sm:$0x3]
      %v906 = vld [vmem:[#allocation2 + $0x48] sm:$0xff]
      %v907 = vld [vmem:[#allocation2 + $0x50] sm:$0xff]
      %v908 = vld [vmem:[#allocation2 + $0x58] sm:$0x3]
      %v909 = vld [vmem:[#allocation2 + $0x60] sm:$0xff]
      %v910 = vld [vmem:[#allocation2 + $0x68] sm:$0xff]
      %v911 = vld [vmem:[#allocation2 + $0x70] sm:$0x3]
      %v912 = vld [vmem:[#allocation2 + $0x78] sm:$0xff]
      %v913 = vld [vmem:[#allocation2 + $0x80] sm:$0xff]
      %v914 = vld [vmem:[#allocation2 + $0x88] sm:$0x3]
      %v915 = vld [vmem:[#allocation2 + $0x90] sm:$0xff]
      %v916 = vld [vmem:[#allocation2 + $0x98] sm:$0xff]
      %v917 = vld [vmem:[#allocation2 + $0xa0] sm:$0x3]
      %v918 = vld [vmem:[#allocation2 + $0xa8] sm:$0xff]
      %v919 = vld [vmem:[#allocation2 + $0xb0] sm:$0xff]
      %v920 = vld [vmem:[#allocation2 + $0xb8] sm:$0x3]
      %v921 = vld [vmem:[#allocation2 + $0xc0] sm:$0xff]
      %v922 = vld [vmem:[#allocation2 + $0xc8] sm:$0xff]
      %v923 = vld [vmem:[#allocation2 + $0xd0] sm:$0x3]
      %v924 = vld [vmem:[#allocation2 + $0xd8] sm:$0xff]
      %v925 = vld [vmem:[#allocation2 + $0xe0] sm:$0xff]
      %v926 = vld [vmem:[#allocation2 + $0xe8] sm:$0x3]
      %v927 = vld [vmem:[#allocation2 + $0xf0] sm:$0xff]
      %v928 = vld [vmem:[#allocation2 + $0xf8] sm:$0xff]
      %v929 = vld [vmem:[#allocation2 + $0x100] sm:$0x3]
      %v930 = vld [vmem:[#allocation2 + $0x108] sm:$0xff]
      %v931 = vld [vmem:[#allocation2 + $0x110] sm:$0xff]
      %v932 = vld [vmem:[#allocation2 + $0x118] sm:$0x3]
      %v933 = vld [vmem:[#allocation2 + $0x120] sm:$0xff]
      %v934 = vld [vmem:[#allocation2 + $0x128] sm:$0xff]
      %v935 = vld [vmem:[#allocation2 + $0x130] sm:$0x3]
      %v936 = vld [vmem:[#allocation2 + $0x138] sm:$0xff]
      %v937 = vld [vmem:[#allocation2 + $0x140] sm:$0xff]
      %v938 = vld [vmem:[#allocation2 + $0x148] sm:$0x3]
      %v939 = vld [vmem:[#allocation2 + $0x150] sm:$0xff]
      %v940 = vld [vmem:[#allocation2 + $0x158] sm:$0xff]
      %v941 = vld [vmem:[#allocation2 + $0x160] sm:$0x3]
      %v942 = vld [vmem:[#allocation2 + $0x168] sm:$0xff]
      %v943 = vld [vmem:[#allocation2 + $0x170] sm:$0xff]
      %v944 = vld [vmem:[#allocation2 + $0x178] sm:$0x3]
      %v945 = vld [vmem:[%s862] sm:$0xff]
      %v946 = vld [vmem:[%s862 + $0x8] sm:$0xff]
      %v947 = vld [vmem:[%s862 + $0x10] sm:$0x3]
      %v948 = vld [vmem:[%s862 + $0x18] sm:$0xff]
      %v949 = vld [vmem:[%s862 + $0x20] sm:$0xff]
      %v950 = vld [vmem:[%s862 + $0x28] sm:$0x3]
      %v951 = vld [vmem:[%s862 + $0x30] sm:$0xff]
      %v952 = vld [vmem:[%s862 + $0x38] sm:$0xff]
      %v953 = vld [vmem:[%s862 + $0x40] sm:$0x3]
      %v954 = vld [vmem:[%s862 + $0x48] sm:$0xff]
      %v955 = vld [vmem:[%s862 + $0x50] sm:$0xff]
      %v956 = vld [vmem:[%s862 + $0x58] sm:$0x3]
      %v957 = vld [vmem:[%s862 + $0x60] sm:$0xff]
      %v958 = vld [vmem:[%s862 + $0x68] sm:$0xff]
      %v959 = vld [vmem:[%s862 + $0x70] sm:$0x3]
      %v960 = vld [vmem:[%s862 + $0x78] sm:$0xff]
      %v961 = vld [vmem:[%s862 + $0x80] sm:$0xff]
      %v962 = vld [vmem:[%s862 + $0x88] sm:$0x3]
      %v963 = vld [vmem:[%s862 + $0x90] sm:$0xff]
      %v964 = vld [vmem:[%s862 + $0x98] sm:$0xff]
      %v965 = vld [vmem:[%s862 + $0xa0] sm:$0x3]
      %v966 = vld [vmem:[%s862 + $0xa8] sm:$0xff]
      %v967 = vld [vmem:[%s862 + $0xb0] sm:$0xff]
      %v968 = vld [vmem:[%s862 + $0xb8] sm:$0x3]
      %v969 = vld [vmem:[%s862 + $0xc0] sm:$0xff]
      %v970 = vld [vmem:[%s862 + $0xc8] sm:$0xff]
      %v971 = vld [vmem:[%s862 + $0xd0] sm:$0x3]
      %v972 = vld [vmem:[%s862 + $0xd8] sm:$0xff]
      %v973 = vld [vmem:[%s862 + $0xe0] sm:$0xff]
      %v974 = vld [vmem:[%s862 + $0xe8] sm:$0x3]
      %v975 = vld [vmem:[%s862 + $0xf0] sm:$0xff]
      %v976 = vld [vmem:[%s862 + $0xf8] sm:$0xff]
      %v977 = vld [vmem:[%s862 + $0x100] sm:$0x3]
      %v978 = vld [vmem:[%s862 + $0x108] sm:$0xff]
      %v979 = vld [vmem:[%s862 + $0x110] sm:$0xff]
      %v980 = vld [vmem:[%s862 + $0x118] sm:$0x3]
      %v981 = vld [vmem:[%s862 + $0x120] sm:$0xff]
      %v982 = vld [vmem:[%s862 + $0x128] sm:$0xff]
      %v983 = vld [vmem:[%s862 + $0x130] sm:$0x3]
      %v984 = vld [vmem:[%s862 + $0x138] sm:$0xff]
      %v985 = vld [vmem:[%s862 + $0x140] sm:$0xff]
      %v986 = vld [vmem:[%s862 + $0x148] sm:$0x3]
      %v987 = vld [vmem:[%s862 + $0x150] sm:$0xff]
      %v988 = vld [vmem:[%s862 + $0x158] sm:$0xff]
      %v989 = vld [vmem:[%s862 + $0x160] sm:$0x3]
      %v990 = vld [vmem:[%s862 + $0x168] sm:$0xff]
      %v991 = vld [vmem:[%s862 + $0x170] sm:$0xff]
      %v992 = vld [vmem:[%s862 + $0x178] sm:$0x3]
      %s993 = scalar_lea.vmem [#allocation2], 48
      %v994 = vld [vmem:[%s993] sm:$0xff]
      %v995 = vld [vmem:[%s993 + $0x8] sm:$0xff]
      %v996 = vld [vmem:[%s993 + $0x10] sm:$0x3]
      %v997 = vld [vmem:[%s993 + $0x18] sm:$0xff]
      %v998 = vld [vmem:[%s993 + $0x20] sm:$0xff]
      %v999 = vld [vmem:[%s993 + $0x28] sm:$0x3]
      %v1000 = vld [vmem:[%s993 + $0x30] sm:$0xff]
      %v1001 = vld [vmem:[%s993 + $0x38] sm:$0xff]
      %v1002 = vld [vmem:[%s993 + $0x40] sm:$0x3]
      %v1003 = vld [vmem:[%s993 + $0x48] sm:$0xff]
      %v1004 = vld [vmem:[%s993 + $0x50] sm:$0xff]
      %v1005 = vld [vmem:[%s993 + $0x58] sm:$0x3]
      %v1006 = vld [vmem:[%s993 + $0x60] sm:$0xff]
      %v1007 = vld [vmem:[%s993 + $0x68] sm:$0xff]
      %v1008 = vld [vmem:[%s993 + $0x70] sm:$0x3]
      %v1009 = vld [vmem:[%s993 + $0x78] sm:$0xff]
      %v1010 = vld [vmem:[%s993 + $0x80] sm:$0xff]
      %v1011 = vld [vmem:[%s993 + $0x88] sm:$0x3]
      %v1012 = vld [vmem:[%s993 + $0x90] sm:$0xff]
      %v1013 = vld [vmem:[%s993 + $0x98] sm:$0xff]
      %v1014 = vld [vmem:[%s993 + $0xa0] sm:$0x3]
      %v1015 = vld [vmem:[%s993 + $0xa8] sm:$0xff]
      %v1016 = vld [vmem:[%s993 + $0xb0] sm:$0xff]
      %v1017 = vld [vmem:[%s993 + $0xb8] sm:$0x3]
      %v1018 = vld [vmem:[%s993 + $0xc0] sm:$0xff]
      %v1019 = vld [vmem:[%s993 + $0xc8] sm:$0xff]
      %v1020 = vld [vmem:[%s993 + $0xd0] sm:$0x3]
      %v1021 = vld [vmem:[%s993 + $0xd8] sm:$0xff]
      %v1022 = vld [vmem:[%s993 + $0xe0] sm:$0xff]
      %v1023 = vld [vmem:[%s993 + $0xe8] sm:$0x3]
      %v1024 = vld [vmem:[%s993 + $0xf0] sm:$0xff]
      %v1025 = vld [vmem:[%s993 + $0xf8] sm:$0xff]
      %v1026 = vld [vmem:[%s993 + $0x100] sm:$0x3]
      %v1027 = vld [vmem:[%s993 + $0x108] sm:$0xff]
      %v1028 = vld [vmem:[%s993 + $0x110] sm:$0xff]
      %v1029 = vld [vmem:[%s993 + $0x118] sm:$0x3]
      %v1030 = vld [vmem:[%s993 + $0x120] sm:$0xff]
      %v1031 = vld [vmem:[%s993 + $0x128] sm:$0xff]
      %v1032 = vld [vmem:[%s993 + $0x130] sm:$0x3]
      %v1033 = vld [vmem:[%s993 + $0x138] sm:$0xff]
      %v1034 = vld [vmem:[%s993 + $0x140] sm:$0xff]
      %v1035 = vld [vmem:[%s993 + $0x148] sm:$0x3]
      %v1036 = vld [vmem:[%s993 + $0x150] sm:$0xff]
      %v1037 = vld [vmem:[%s993 + $0x158] sm:$0xff]
      %v1038 = vld [vmem:[%s993 + $0x160] sm:$0x3]
      %v1039 = vld [vmem:[%s993 + $0x168] sm:$0xff]
      %v1040 = vld [vmem:[%s993 + $0x170] sm:$0xff]
      %v1041 = vld [vmem:[%s993 + $0x178] sm:$0x3]
      %v1042 = vlaneseq
      %v1043 = vshrl.u32 %v1042, 7
      %v1044 = vsub.s32 0, %v1043
      %v1045 = vrot.slane %v895, %v1044
      %v1046 = vmul.f32 %v897, %v1045
      %v1047 = vmul.f32 %v898, %v1045
      %v1048 = vmul.f32 %v900, %v1045
      %v1049 = vmul.f32 %v901, %v1045
      %v1050 = vmul.f32 %v903, %v1045
      %v1051 = vmul.f32 %v904, %v1045
      %v1052 = vmul.f32 %v906, %v1045
      %v1053 = vmul.f32 %v907, %v1045
      %v1054 = vmul.f32 %v909, %v1045
      %v1055 = vmul.f32 %v910, %v1045
      %v1056 = vmul.f32 %v912, %v1045
      %v1057 = vmul.f32 %v913, %v1045
      %v1058 = vmul.f32 %v915, %v1045
      %v1059 = vmul.f32 %v916, %v1045
      %v1060 = vmul.f32 %v918, %v1045
      %v1061 = vmul.f32 %v919, %v1045
      %v1062 = vmul.f32 %v921, %v1045
      %v1063 = vmul.f32 %v922, %v1045
      %v1064 = vmul.f32 %v924, %v1045
      %v1065 = vmul.f32 %v925, %v1045
      %v1066 = vmul.f32 %v927, %v1045
      %v1067 = vmul.f32 %v928, %v1045
      %v1068 = vmul.f32 %v930, %v1045
      %v1069 = vmul.f32 %v931, %v1045
      %v1070 = vmul.f32 %v933, %v1045
      %v1071 = vmul.f32 %v934, %v1045
      %v1072 = vmul.f32 %v936, %v1045
      %v1073 = vmul.f32 %v937, %v1045
      %v1074 = vmul.f32 %v939, %v1045
      %v1075 = vmul.f32 %v940, %v1045
      %v1076 = vmul.f32 %v942, %v1045
      %v1077 = vmul.f32 %v943, %v1045
      %v1078 = vlaneseq
      %v1079 = vshrl.u32 %v1078, 7
      %v1080 = vsub.s32 3, %v1079
      %v1081 = vrot.slane %v895, %v1080
      %v1082 = vmul.f32 %v945, %v1081
      %v1083 = vmul.f32 %v946, %v1081
      %v1084 = vmul.f32 %v948, %v1081
      %v1085 = vmul.f32 %v949, %v1081
      %v1086 = vmul.f32 %v951, %v1081
      %v1087 = vmul.f32 %v952, %v1081
      %v1088 = vmul.f32 %v954, %v1081
      %v1089 = vmul.f32 %v955, %v1081
      %v1090 = vmul.f32 %v957, %v1081
      %v1091 = vmul.f32 %v958, %v1081
      %v1092 = vmul.f32 %v960, %v1081
      %v1093 = vmul.f32 %v961, %v1081
      %v1094 = vmul.f32 %v963, %v1081
      %v1095 = vmul.f32 %v964, %v1081
      %v1096 = vmul.f32 %v966, %v1081
      %v1097 = vmul.f32 %v967, %v1081
      %v1098 = vmul.f32 %v969, %v1081
      %v1099 = vmul.f32 %v970, %v1081
      %v1100 = vmul.f32 %v972, %v1081
      %v1101 = vmul.f32 %v973, %v1081
      %v1102 = vmul.f32 %v975, %v1081
      %v1103 = vmul.f32 %v976, %v1081
      %v1104 = vmul.f32 %v978, %v1081
      %v1105 = vmul.f32 %v979, %v1081
      %v1106 = vmul.f32 %v981, %v1081
      %v1107 = vmul.f32 %v982, %v1081
      %v1108 = vmul.f32 %v984, %v1081
      %v1109 = vmul.f32 %v985, %v1081
      %v1110 = vmul.f32 %v987, %v1081
      %v1111 = vmul.f32 %v988, %v1081
      %v1112 = vmul.f32 %v990, %v1081
      %v1113 = vmul.f32 %v991, %v1081
      %v1114 = vadd.f32 %v1046, %v1082
      %v1115 = vadd.f32 %v1047, %v1083
      %v1116 = vadd.f32 %v1048, %v1084
      %v1117 = vadd.f32 %v1049, %v1085
      %v1118 = vadd.f32 %v1050, %v1086
      %v1119 = vadd.f32 %v1051, %v1087
      %v1120 = vadd.f32 %v1052, %v1088
      %v1121 = vadd.f32 %v1053, %v1089
      %v1122 = vadd.f32 %v1054, %v1090
      %v1123 = vadd.f32 %v1055, %v1091
      %v1124 = vadd.f32 %v1056, %v1092
      %v1125 = vadd.f32 %v1057, %v1093
      %v1126 = vadd.f32 %v1058, %v1094
      %v1127 = vadd.f32 %v1059, %v1095
      %v1128 = vadd.f32 %v1060, %v1096
      %v1129 = vadd.f32 %v1061, %v1097
      %v1130 = vadd.f32 %v1062, %v1098
      %v1131 = vadd.f32 %v1063, %v1099
      %v1132 = vadd.f32 %v1064, %v1100
      %v1133 = vadd.f32 %v1065, %v1101
      %v1134 = vadd.f32 %v1066, %v1102
      %v1135 = vadd.f32 %v1067, %v1103
      %v1136 = vadd.f32 %v1068, %v1104
      %v1137 = vadd.f32 %v1069, %v1105
      %v1138 = vadd.f32 %v1070, %v1106
      %v1139 = vadd.f32 %v1071, %v1107
      %v1140 = vadd.f32 %v1072, %v1108
      %v1141 = vadd.f32 %v1073, %v1109
      %v1142 = vadd.f32 %v1074, %v1110
      %v1143 = vadd.f32 %v1075, %v1111
      %v1144 = vadd.f32 %v1076, %v1112
      %v1145 = vadd.f32 %v1077, %v1113
      %v1146 = vlaneseq
      %v1147 = vshrl.u32 %v1146, 7
      %v1148 = vsub.s32 6, %v1147
      %v1149 = vrot.slane %v895, %v1148
      %v1150 = vmul.f32 %v994, %v1149
      %v1151 = vmul.f32 %v995, %v1149
      %v1152 = vmul.f32 %v997, %v1149
      %v1153 = vmul.f32 %v998, %v1149
      %v1154 = vmul.f32 %v1000, %v1149
      %v1155 = vmul.f32 %v1001, %v1149
      %v1156 = vmul.f32 %v1003, %v1149
      %v1157 = vmul.f32 %v1004, %v1149
      %v1158 = vmul.f32 %v1006, %v1149
      %v1159 = vmul.f32 %v1007, %v1149
      %v1160 = vmul.f32 %v1009, %v1149
      %v1161 = vmul.f32 %v1010, %v1149
      %v1162 = vmul.f32 %v1012, %v1149
      %v1163 = vmul.f32 %v1013, %v1149
      %v1164 = vmul.f32 %v1015, %v1149
      %v1165 = vmul.f32 %v1016, %v1149
      %v1166 = vmul.f32 %v1018, %v1149
      %v1167 = vmul.f32 %v1019, %v1149
      %v1168 = vmul.f32 %v1021, %v1149
      %v1169 = vmul.f32 %v1022, %v1149
      %v1170 = vmul.f32 %v1024, %v1149
      %v1171 = vmul.f32 %v1025, %v1149
      %v1172 = vmul.f32 %v1027, %v1149
      %v1173 = vmul.f32 %v1028, %v1149
      %v1174 = vmul.f32 %v1030, %v1149
      %v1175 = vmul.f32 %v1031, %v1149
      %v1176 = vmul.f32 %v1033, %v1149
      %v1177 = vmul.f32 %v1034, %v1149
      %v1178 = vmul.f32 %v1036, %v1149
      %v1179 = vmul.f32 %v1037, %v1149
      %v1180 = vmul.f32 %v1039, %v1149
      %v1181 = vmul.f32 %v1040, %v1149
      %v1182 = vadd.f32 %v1114, %v1150
      %v1183 = vadd.f32 %v1115, %v1151
      %v1184 = vadd.f32 %v1116, %v1152
      %v1185 = vadd.f32 %v1117, %v1153
      %v1186 = vadd.f32 %v1118, %v1154
      %v1187 = vadd.f32 %v1119, %v1155
      %v1188 = vadd.f32 %v1120, %v1156
      %v1189 = vadd.f32 %v1121, %v1157
      %v1190 = vadd.f32 %v1122, %v1158
      %v1191 = vadd.f32 %v1123, %v1159
      %v1192 = vadd.f32 %v1124, %v1160
      %v1193 = vadd.f32 %v1125, %v1161
      %v1194 = vadd.f32 %v1126, %v1162
      %v1195 = vadd.f32 %v1127, %v1163
      %v1196 = vadd.f32 %v1128, %v1164
      %v1197 = vadd.f32 %v1129, %v1165
      %v1198 = vadd.f32 %v1130, %v1166
      %v1199 = vadd.f32 %v1131, %v1167
      %v1200 = vadd.f32 %v1132, %v1168
      %v1201 = vadd.f32 %v1133, %v1169
      %v1202 = vadd.f32 %v1134, %v1170
      %v1203 = vadd.f32 %v1135, %v1171
      %v1204 = vadd.f32 %v1136, %v1172
      %v1205 = vadd.f32 %v1137, %v1173
      %v1206 = vadd.f32 %v1138, %v1174
      %v1207 = vadd.f32 %v1139, %v1175
      %v1208 = vadd.f32 %v1140, %v1176
      %v1209 = vadd.f32 %v1141, %v1177
      %v1210 = vadd.f32 %v1142, %v1178
      %v1211 = vadd.f32 %v1143, %v1179
      %v1212 = vadd.f32 %v1144, %v1180
      %v1213 = vadd.f32 %v1145, %v1181
      %v1214 = vlaneseq
      %v1215 = vshrl.u32 %v1214, 7
      %v1216 = vsub.s32 1, %v1215
      %v1217 = vrot.slane %v895, %v1216
      %v1218 = vmul.f32 %v897, %v1217
      %v1219 = vmul.f32 %v898, %v1217
      %v1220 = vmul.f32 %v899, %v1217
      %v1221 = vmul.f32 %v900, %v1217
      %v1222 = vmul.f32 %v901, %v1217
      %v1223 = vmul.f32 %v902, %v1217
      %v1224 = vmul.f32 %v903, %v1217
      %v1225 = vmul.f32 %v904, %v1217
      %v1226 = vmul.f32 %v905, %v1217
      %v1227 = vmul.f32 %v906, %v1217
      %v1228 = vmul.f32 %v907, %v1217
      %v1229 = vmul.f32 %v908, %v1217
      %v1230 = vmul.f32 %v909, %v1217
      %v1231 = vmul.f32 %v910, %v1217
      %v1232 = vmul.f32 %v911, %v1217
      %v1233 = vmul.f32 %v912, %v1217
      %v1234 = vmul.f32 %v913, %v1217
      %v1235 = vmul.f32 %v914, %v1217
      %v1236 = vmul.f32 %v915, %v1217
      %v1237 = vmul.f32 %v916, %v1217
      %v1238 = vmul.f32 %v917, %v1217
      %v1239 = vmul.f32 %v918, %v1217
      %v1240 = vmul.f32 %v919, %v1217
      %v1241 = vmul.f32 %v920, %v1217
      %v1242 = vmul.f32 %v921, %v1217
      %v1243 = vmul.f32 %v922, %v1217
      %v1244 = vmul.f32 %v923, %v1217
      %v1245 = vmul.f32 %v924, %v1217
      %v1246 = vmul.f32 %v925, %v1217
      %v1247 = vmul.f32 %v926, %v1217
      %v1248 = vmul.f32 %v927, %v1217
      %v1249 = vmul.f32 %v928, %v1217
      %v1250 = vmul.f32 %v929, %v1217
      %v1251 = vmul.f32 %v930, %v1217
      %v1252 = vmul.f32 %v931, %v1217
      %v1253 = vmul.f32 %v932, %v1217
      %v1254 = vmul.f32 %v933, %v1217
      %v1255 = vmul.f32 %v934, %v1217
      %v1256 = vmul.f32 %v935, %v1217
      %v1257 = vmul.f32 %v936, %v1217
      %v1258 = vmul.f32 %v937, %v1217
      %v1259 = vmul.f32 %v938, %v1217
      %v1260 = vmul.f32 %v939, %v1217
      %v1261 = vmul.f32 %v940, %v1217
      %v1262 = vmul.f32 %v941, %v1217
      %v1263 = vmul.f32 %v942, %v1217
      %v1264 = vmul.f32 %v943, %v1217
      %v1265 = vmul.f32 %v944, %v1217
      %v1266 = vlaneseq
      %v1267 = vshrl.u32 %v1266, 7
      %v1268 = vsub.s32 4, %v1267
      %v1269 = vrot.slane %v895, %v1268
      %v1270 = vmul.f32 %v945, %v1269
      %v1271 = vmul.f32 %v946, %v1269
      %v1272 = vmul.f32 %v947, %v1269
      %v1273 = vmul.f32 %v948, %v1269
      %v1274 = vmul.f32 %v949, %v1269
      %v1275 = vmul.f32 %v950, %v1269
      %v1276 = vmul.f32 %v951, %v1269
      %v1277 = vmul.f32 %v952, %v1269
      %v1278 = vmul.f32 %v953, %v1269
      %v1279 = vmul.f32 %v954, %v1269
      %v1280 = vmul.f32 %v955, %v1269
      %v1281 = vmul.f32 %v956, %v1269
      %v1282 = vmul.f32 %v957, %v1269
      %v1283 = vmul.f32 %v958, %v1269
      %v1284 = vmul.f32 %v959, %v1269
      %v1285 = vmul.f32 %v960, %v1269
      %v1286 = vmul.f32 %v961, %v1269
      %v1287 = vmul.f32 %v962, %v1269
      %v1288 = vmul.f32 %v963, %v1269
      %v1289 = vmul.f32 %v964, %v1269
      %v1290 = vmul.f32 %v965, %v1269
      %v1291 = vmul.f32 %v966, %v1269
      %v1292 = vmul.f32 %v967, %v1269
      %v1293 = vmul.f32 %v968, %v1269
      %v1294 = vmul.f32 %v969, %v1269
      %v1295 = vmul.f32 %v970, %v1269
      %v1296 = vmul.f32 %v971, %v1269
      %v1297 = vmul.f32 %v972, %v1269
      %v1298 = vmul.f32 %v973, %v1269
      %v1299 = vmul.f32 %v974, %v1269
      %v1300 = vmul.f32 %v975, %v1269
      %v1301 = vmul.f32 %v976, %v1269
      %v1302 = vmul.f32 %v977, %v1269
      %v1303 = vmul.f32 %v978, %v1269
      %v1304 = vmul.f32 %v979, %v1269
      %v1305 = vmul.f32 %v980, %v1269
      %v1306 = vmul.f32 %v981, %v1269
      %v1307 = vmul.f32 %v982, %v1269
      %v1308 = vmul.f32 %v983, %v1269
      %v1309 = vmul.f32 %v984, %v1269
      %v1310 = vmul.f32 %v985, %v1269
      %v1311 = vmul.f32 %v986, %v1269
      %v1312 = vmul.f32 %v987, %v1269
      %v1313 = vmul.f32 %v988, %v1269
      %v1314 = vmul.f32 %v989, %v1269
      %v1315 = vmul.f32 %v990, %v1269
      %v1316 = vmul.f32 %v991, %v1269
      %v1317 = vmul.f32 %v992, %v1269
      %v1318 = vadd.f32 %v1218, %v1270
      %v1319 = vadd.f32 %v1219, %v1271
      %v1320 = vadd.f32 %v1220, %v1272
      %v1321 = vadd.f32 %v1221, %v1273
      %v1322 = vadd.f32 %v1222, %v1274
      %v1323 = vadd.f32 %v1223, %v1275
      %v1324 = vadd.f32 %v1224, %v1276
      %v1325 = vadd.f32 %v1225, %v1277
      %v1326 = vadd.f32 %v1226, %v1278
      %v1327 = vadd.f32 %v1227, %v1279
      %v1328 = vadd.f32 %v1228, %v1280
      %v1329 = vadd.f32 %v1229, %v1281
      %v1330 = vadd.f32 %v1230, %v1282
      %v1331 = vadd.f32 %v1231, %v1283
      %v1332 = vadd.f32 %v1232, %v1284
      %v1333 = vadd.f32 %v1233, %v1285
      %v1334 = vadd.f32 %v1234, %v1286
      %v1335 = vadd.f32 %v1235, %v1287
      %v1336 = vadd.f32 %v1236, %v1288
      %v1337 = vadd.f32 %v1237, %v1289
      %v1338 = vadd.f32 %v1238, %v1290
      %v1339 = vadd.f32 %v1239, %v1291
      %v1340 = vadd.f32 %v1240, %v1292
      %v1341 = vadd.f32 %v1241, %v1293
      %v1342 = vadd.f32 %v1242, %v1294
      %v1343 = vadd.f32 %v1243, %v1295
      %v1344 = vadd.f32 %v1244, %v1296
      %v1345 = vadd.f32 %v1245, %v1297
      %v1346 = vadd.f32 %v1246, %v1298
      %v1347 = vadd.f32 %v1247, %v1299
      %v1348 = vadd.f32 %v1248, %v1300
      %v1349 = vadd.f32 %v1249, %v1301
      %v1350 = vadd.f32 %v1250, %v1302
      %v1351 = vadd.f32 %v1251, %v1303
      %v1352 = vadd.f32 %v1252, %v1304
      %v1353 = vadd.f32 %v1253, %v1305
      %v1354 = vadd.f32 %v1254, %v1306
      %v1355 = vadd.f32 %v1255, %v1307
      %v1356 = vadd.f32 %v1256, %v1308
      %v1357 = vadd.f32 %v1257, %v1309
      %v1358 = vadd.f32 %v1258, %v1310
      %v1359 = vadd.f32 %v1259, %v1311
      %v1360 = vadd.f32 %v1260, %v1312
      %v1361 = vadd.f32 %v1261, %v1313
      %v1362 = vadd.f32 %v1262, %v1314
      %v1363 = vadd.f32 %v1263, %v1315
      %v1364 = vadd.f32 %v1264, %v1316
      %v1365 = vadd.f32 %v1265, %v1317
      %v1366 = vlaneseq
      %v1367 = vshrl.u32 %v1366, 7
      %v1368 = vsub.s32 7, %v1367
      %v1369 = vrot.slane %v895, %v1368
      %v1370 = vmul.f32 %v994, %v1369
      %v1371 = vmul.f32 %v995, %v1369
      %v1372 = vmul.f32 %v996, %v1369
      %v1373 = vmul.f32 %v997, %v1369
      %v1374 = vmul.f32 %v998, %v1369
      %v1375 = vmul.f32 %v999, %v1369
      %v1376 = vmul.f32 %v1000, %v1369
      %v1377 = vmul.f32 %v1001, %v1369
      %v1378 = vmul.f32 %v1002, %v1369
      %v1379 = vmul.f32 %v1003, %v1369
      %v1380 = vmul.f32 %v1004, %v1369
      %v1381 = vmul.f32 %v1005, %v1369
      %v1382 = vmul.f32 %v1006, %v1369
      %v1383 = vmul.f32 %v1007, %v1369
      %v1384 = vmul.f32 %v1008, %v1369
      %v1385 = vmul.f32 %v1009, %v1369
      %v1386 = vmul.f32 %v1010, %v1369
      %v1387 = vmul.f32 %v1011, %v1369
      %v1388 = vmul.f32 %v1012, %v1369
      %v1389 = vmul.f32 %v1013, %v1369
      %v1390 = vmul.f32 %v1014, %v1369
      %v1391 = vmul.f32 %v1015, %v1369
      %v1392 = vmul.f32 %v1016, %v1369
      %v1393 = vmul.f32 %v1017, %v1369
      %v1394 = vmul.f32 %v1018, %v1369
      %v1395 = vmul.f32 %v1019, %v1369
      %v1396 = vmul.f32 %v1020, %v1369
      %v1397 = vmul.f32 %v1021, %v1369
      %v1398 = vmul.f32 %v1022, %v1369
      %v1399 = vmul.f32 %v1023, %v1369
      %v1400 = vmul.f32 %v1024, %v1369
      %v1401 = vmul.f32 %v1025, %v1369
      %v1402 = vmul.f32 %v1026, %v1369
      %v1403 = vmul.f32 %v1027, %v1369
      %v1404 = vmul.f32 %v1028, %v1369
      %v1405 = vmul.f32 %v1029, %v1369
      %v1406 = vmul.f32 %v1030, %v1369
      %v1407 = vmul.f32 %v1031, %v1369
      %v1408 = vmul.f32 %v1032, %v1369
      %v1409 = vmul.f32 %v1033, %v1369
      %v1410 = vmul.f32 %v1034, %v1369
      %v1411 = vmul.f32 %v1035, %v1369
      %v1412 = vmul.f32 %v1036, %v1369
      %v1413 = vmul.f32 %v1037, %v1369
      %v1414 = vmul.f32 %v1038, %v1369
      %v1415 = vmul.f32 %v1039, %v1369
      %v1416 = vmul.f32 %v1040, %v1369
      %v1417 = vmul.f32 %v1041, %v1369
      %v1418 = vadd.f32 %v1318, %v1370
      %v1419 = vadd.f32 %v1319, %v1371
      %v1420 = vadd.f32 %v1320, %v1372
      %v1421 = vadd.f32 %v1321, %v1373
      %v1422 = vadd.f32 %v1322, %v1374
      %v1423 = vadd.f32 %v1323, %v1375
      %v1424 = vadd.f32 %v1324, %v1376
      %v1425 = vadd.f32 %v1325, %v1377
      %v1426 = vadd.f32 %v1326, %v1378
      %v1427 = vadd.f32 %v1327, %v1379
      %v1428 = vadd.f32 %v1328, %v1380
      %v1429 = vadd.f32 %v1329, %v1381
      %v1430 = vadd.f32 %v1330, %v1382
      %v1431 = vadd.f32 %v1331, %v1383
      %v1432 = vadd.f32 %v1332, %v1384
      %v1433 = vadd.f32 %v1333, %v1385
      %v1434 = vadd.f32 %v1334, %v1386
      %v1435 = vadd.f32 %v1335, %v1387
      %v1436 = vadd.f32 %v1336, %v1388
      %v1437 = vadd.f32 %v1337, %v1389
      %v1438 = vadd.f32 %v1338, %v1390
      %v1439 = vadd.f32 %v1339, %v1391
      %v1440 = vadd.f32 %v1340, %v1392
      %v1441 = vadd.f32 %v1341, %v1393
      %v1442 = vadd.f32 %v1342, %v1394
      %v1443 = vadd.f32 %v1343, %v1395
      %v1444 = vadd.f32 %v1344, %v1396
      %v1445 = vadd.f32 %v1345, %v1397
      %v1446 = vadd.f32 %v1346, %v1398
      %v1447 = vadd.f32 %v1347, %v1399
      %v1448 = vadd.f32 %v1348, %v1400
      %v1449 = vadd.f32 %v1349, %v1401
      %v1450 = vadd.f32 %v1350, %v1402
      %v1451 = vadd.f32 %v1351, %v1403
      %v1452 = vadd.f32 %v1352, %v1404
      %v1453 = vadd.f32 %v1353, %v1405
      %v1454 = vadd.f32 %v1354, %v1406
      %v1455 = vadd.f32 %v1355, %v1407
      %v1456 = vadd.f32 %v1356, %v1408
      %v1457 = vadd.f32 %v1357, %v1409
      %v1458 = vadd.f32 %v1358, %v1410
      %v1459 = vadd.f32 %v1359, %v1411
      %v1460 = vadd.f32 %v1360, %v1412
      %v1461 = vadd.f32 %v1361, %v1413
      %v1462 = vadd.f32 %v1362, %v1414
      %v1463 = vadd.f32 %v1363, %v1415
      %v1464 = vadd.f32 %v1364, %v1416
      %v1465 = vadd.f32 %v1365, %v1417
      %vm1514 = vcmask 1046528
      %v1515 = vrot.slane %v1418, 1
      %v1516 = vrot.slane %v1419, 1
      %v1517 = vsel %vm1514, %v1515, %v1516
      %v1518 = vrot.slane %v1420, 1
      %v1519 = vsel %vm1514, %v1516, %v1518
      %v1520 = vrot.slane %v1421, 1
      %v1521 = vrot.slane %v1422, 1
      %v1522 = vsel %vm1514, %v1520, %v1521
      %v1523 = vrot.slane %v1423, 1
      %v1524 = vsel %vm1514, %v1521, %v1523
      %v1525 = vrot.slane %v1424, 1
      %v1526 = vrot.slane %v1425, 1
      %v1527 = vsel %vm1514, %v1525, %v1526
      %v1528 = vrot.slane %v1426, 1
      %v1529 = vsel %vm1514, %v1526, %v1528
      %v1530 = vrot.slane %v1427, 1
      %v1531 = vrot.slane %v1428, 1
      %v1532 = vsel %vm1514, %v1530, %v1531
      %v1533 = vrot.slane %v1429, 1
      %v1534 = vsel %vm1514, %v1531, %v1533
      %v1535 = vrot.slane %v1430, 1
      %v1536 = vrot.slane %v1431, 1
      %v1537 = vsel %vm1514, %v1535, %v1536
      %v1538 = vrot.slane %v1432, 1
      %v1539 = vsel %vm1514, %v1536, %v1538
      %v1540 = vrot.slane %v1433, 1
      %v1541 = vrot.slane %v1434, 1
      %v1542 = vsel %vm1514, %v1540, %v1541
      %v1543 = vrot.slane %v1435, 1
      %v1544 = vsel %vm1514, %v1541, %v1543
      %v1545 = vrot.slane %v1436, 1
      %v1546 = vrot.slane %v1437, 1
      %v1547 = vsel %vm1514, %v1545, %v1546
      %v1548 = vrot.slane %v1438, 1
      %v1549 = vsel %vm1514, %v1546, %v1548
      %v1550 = vrot.slane %v1439, 1
      %v1551 = vrot.slane %v1440, 1
      %v1552 = vsel %vm1514, %v1550, %v1551
      %v1553 = vrot.slane %v1441, 1
      %v1554 = vsel %vm1514, %v1551, %v1553
      %v1555 = vrot.slane %v1442, 1
      %v1556 = vrot.slane %v1443, 1
      %v1557 = vsel %vm1514, %v1555, %v1556
      %v1558 = vrot.slane %v1444, 1
      %v1559 = vsel %vm1514, %v1556, %v1558
      %v1560 = vrot.slane %v1445, 1
      %v1561 = vrot.slane %v1446, 1
      %v1562 = vsel %vm1514, %v1560, %v1561
      %v1563 = vrot.slane %v1447, 1
      %v1564 = vsel %vm1514, %v1561, %v1563
      %v1565 = vrot.slane %v1448, 1
      %v1566 = vrot.slane %v1449, 1
      %v1567 = vsel %vm1514, %v1565, %v1566
      %v1568 = vrot.slane %v1450, 1
      %v1569 = vsel %vm1514, %v1566, %v1568
      %v1570 = vrot.slane %v1451, 1
      %v1571 = vrot.slane %v1452, 1
      %v1572 = vsel %vm1514, %v1570, %v1571
      %v1573 = vrot.slane %v1453, 1
      %v1574 = vsel %vm1514, %v1571, %v1573
      %v1575 = vrot.slane %v1454, 1
      %v1576 = vrot.slane %v1455, 1
      %v1577 = vsel %vm1514, %v1575, %v1576
      %v1578 = vrot.slane %v1456, 1
      %v1579 = vsel %vm1514, %v1576, %v1578
      %v1580 = vrot.slane %v1457, 1
      %v1581 = vrot.slane %v1458, 1
      %v1582 = vsel %vm1514, %v1580, %v1581
      %v1583 = vrot.slane %v1459, 1
      %v1584 = vsel %vm1514, %v1581, %v1583
      %v1585 = vrot.slane %v1460, 1
      %v1586 = vrot.slane %v1461, 1
      %v1587 = vsel %vm1514, %v1585, %v1586
      %v1588 = vrot.slane %v1462, 1
      %v1589 = vsel %vm1514, %v1586, %v1588
      %v1590 = vrot.slane %v1463, 1
      %v1591 = vrot.slane %v1464, 1
      %v1592 = vsel %vm1514, %v1590, %v1591
      %v1593 = vrot.slane %v1465, 1
      %v1594 = vsel %vm1514, %v1591, %v1593
      %v1627 = vadd.f32 %v1182, %v1517
      %v1628 = vadd.f32 %v1183, %v1519
      %v1629 = vadd.f32 %v1184, %v1522
      %v1630 = vadd.f32 %v1185, %v1524
      %v1631 = vadd.f32 %v1186, %v1527
      %v1632 = vadd.f32 %v1187, %v1529
      %v1633 = vadd.f32 %v1188, %v1532
      %v1634 = vadd.f32 %v1189, %v1534
      %v1635 = vadd.f32 %v1190, %v1537
      %v1636 = vadd.f32 %v1191, %v1539
      %v1637 = vadd.f32 %v1192, %v1542
      %v1638 = vadd.f32 %v1193, %v1544
      %v1639 = vadd.f32 %v1194, %v1547
      %v1640 = vadd.f32 %v1195, %v1549
      %v1641 = vadd.f32 %v1196, %v1552
      %v1642 = vadd.f32 %v1197, %v1554
      %v1643 = vadd.f32 %v1198, %v1557
      %v1644 = vadd.f32 %v1199, %v1559
      %v1645 = vadd.f32 %v1200, %v1562
      %v1646 = vadd.f32 %v1201, %v1564
      %v1647 = vadd.f32 %v1202, %v1567
      %v1648 = vadd.f32 %v1203, %v1569
      %v1649 = vadd.f32 %v1204, %v1572
      %v1650 = vadd.f32 %v1205, %v1574
      %v1651 = vadd.f32 %v1206, %v1577
      %v1652 = vadd.f32 %v1207, %v1579
      %v1653 = vadd.f32 %v1208, %v1582
      %v1654 = vadd.f32 %v1209, %v1584
      %v1655 = vadd.f32 %v1210, %v1587
      %v1656 = vadd.f32 %v1211, %v1589
      %v1657 = vadd.f32 %v1212, %v1592
      %v1658 = vadd.f32 %v1213, %v1594
      %v1659 = vlaneseq
      %v1660 = vshrl.u32 %v1659, 7
      %v1661 = vsub.s32 2, %v1660
      %v1662 = vrot.slane %v895, %v1661
      %v1663 = vmul.f32 %v897, %v1662
      %v1664 = vmul.f32 %v898, %v1662
      %v1665 = vmul.f32 %v899, %v1662
      %v1666 = vmul.f32 %v900, %v1662
      %v1667 = vmul.f32 %v901, %v1662
      %v1668 = vmul.f32 %v902, %v1662
      %v1669 = vmul.f32 %v903, %v1662
      %v1670 = vmul.f32 %v904, %v1662
      %v1671 = vmul.f32 %v905, %v1662
      %v1672 = vmul.f32 %v906, %v1662
      %v1673 = vmul.f32 %v907, %v1662
      %v1674 = vmul.f32 %v908, %v1662
      %v1675 = vmul.f32 %v909, %v1662
      %v1676 = vmul.f32 %v910, %v1662
      %v1677 = vmul.f32 %v911, %v1662
      %v1678 = vmul.f32 %v912, %v1662
      %v1679 = vmul.f32 %v913, %v1662
      %v1680 = vmul.f32 %v914, %v1662
      %v1681 = vmul.f32 %v915, %v1662
      %v1682 = vmul.f32 %v916, %v1662
      %v1683 = vmul.f32 %v917, %v1662
      %v1684 = vmul.f32 %v918, %v1662
      %v1685 = vmul.f32 %v919, %v1662
      %v1686 = vmul.f32 %v920, %v1662
      %v1687 = vmul.f32 %v921, %v1662
      %v1688 = vmul.f32 %v922, %v1662
      %v1689 = vmul.f32 %v923, %v1662
      %v1690 = vmul.f32 %v924, %v1662
      %v1691 = vmul.f32 %v925, %v1662
      %v1692 = vmul.f32 %v926, %v1662
      %v1693 = vmul.f32 %v927, %v1662
      %v1694 = vmul.f32 %v928, %v1662
      %v1695 = vmul.f32 %v929, %v1662
      %v1696 = vmul.f32 %v930, %v1662
      %v1697 = vmul.f32 %v931, %v1662
      %v1698 = vmul.f32 %v932, %v1662
      %v1699 = vmul.f32 %v933, %v1662
      %v1700 = vmul.f32 %v934, %v1662
      %v1701 = vmul.f32 %v935, %v1662
      %v1702 = vmul.f32 %v936, %v1662
      %v1703 = vmul.f32 %v937, %v1662
      %v1704 = vmul.f32 %v938, %v1662
      %v1705 = vmul.f32 %v939, %v1662
      %v1706 = vmul.f32 %v940, %v1662
      %v1707 = vmul.f32 %v941, %v1662
      %v1708 = vmul.f32 %v942, %v1662
      %v1709 = vmul.f32 %v943, %v1662
      %v1710 = vmul.f32 %v944, %v1662
      %v1711 = vlaneseq
      %v1712 = vshrl.u32 %v1711, 7
      %v1713 = vsub.s32 5, %v1712
      %v1714 = vrot.slane %v895, %v1713
      %v1715 = vmul.f32 %v945, %v1714
      %v1716 = vmul.f32 %v946, %v1714
      %v1717 = vmul.f32 %v947, %v1714
      %v1718 = vmul.f32 %v948, %v1714
      %v1719 = vmul.f32 %v949, %v1714
      %v1720 = vmul.f32 %v950, %v1714
      %v1721 = vmul.f32 %v951, %v1714
      %v1722 = vmul.f32 %v952, %v1714
      %v1723 = vmul.f32 %v953, %v1714
      %v1724 = vmul.f32 %v954, %v1714
      %v1725 = vmul.f32 %v955, %v1714
      %v1726 = vmul.f32 %v956, %v1714
      %v1727 = vmul.f32 %v957, %v1714
      %v1728 = vmul.f32 %v958, %v1714
      %v1729 = vmul.f32 %v959, %v1714
      %v1730 = vmul.f32 %v960, %v1714
      %v1731 = vmul.f32 %v961, %v1714
      %v1732 = vmul.f32 %v962, %v1714
      %v1733 = vmul.f32 %v963, %v1714
      %v1734 = vmul.f32 %v964, %v1714
      %v1735 = vmul.f32 %v965, %v1714
      %v1736 = vmul.f32 %v966, %v1714
      %v1737 = vmul.f32 %v967, %v1714
      %v1738 = vmul.f32 %v968, %v1714
      %v1739 = vmul.f32 %v969, %v1714
      %v1740 = vmul.f32 %v970, %v1714
      %v1741 = vmul.f32 %v971, %v1714
      %v1742 = vmul.f32 %v972, %v1714
      %v1743 = vmul.f32 %v973, %v1714
      %v1744 = vmul.f32 %v974, %v1714
      %v1745 = vmul.f32 %v975, %v1714
      %v1746 = vmul.f32 %v976, %v1714
      %v1747 = vmul.f32 %v977, %v1714
      %v1748 = vmul.f32 %v978, %v1714
      %v1749 = vmul.f32 %v979, %v1714
      %v1750 = vmul.f32 %v980, %v1714
      %v1751 = vmul.f32 %v981, %v1714
      %v1752 = vmul.f32 %v982, %v1714
      %v1753 = vmul.f32 %v983, %v1714
      %v1754 = vmul.f32 %v984, %v1714
      %v1755 = vmul.f32 %v985, %v1714
      %v1756 = vmul.f32 %v986, %v1714
      %v1757 = vmul.f32 %v987, %v1714
      %v1758 = vmul.f32 %v988, %v1714
      %v1759 = vmul.f32 %v989, %v1714
      %v1760 = vmul.f32 %v990, %v1714
      %v1761 = vmul.f32 %v991, %v1714
      %v1762 = vmul.f32 %v992, %v1714
      %v1763 = vadd.f32 %v1663, %v1715
      %v1764 = vadd.f32 %v1664, %v1716
      %v1765 = vadd.f32 %v1665, %v1717
      %v1766 = vadd.f32 %v1666, %v1718
      %v1767 = vadd.f32 %v1667, %v1719
      %v1768 = vadd.f32 %v1668, %v1720
      %v1769 = vadd.f32 %v1669, %v1721
      %v1770 = vadd.f32 %v1670, %v1722
      %v1771 = vadd.f32 %v1671, %v1723
      %v1772 = vadd.f32 %v1672, %v1724
      %v1773 = vadd.f32 %v1673, %v1725
      %v1774 = vadd.f32 %v1674, %v1726
      %v1775 = vadd.f32 %v1675, %v1727
      %v1776 = vadd.f32 %v1676, %v1728
      %v1777 = vadd.f32 %v1677, %v1729
      %v1778 = vadd.f32 %v1678, %v1730
      %v1779 = vadd.f32 %v1679, %v1731
      %v1780 = vadd.f32 %v1680, %v1732
      %v1781 = vadd.f32 %v1681, %v1733
      %v1782 = vadd.f32 %v1682, %v1734
      %v1783 = vadd.f32 %v1683, %v1735
      %v1784 = vadd.f32 %v1684, %v1736
      %v1785 = vadd.f32 %v1685, %v1737
      %v1786 = vadd.f32 %v1686, %v1738
      %v1787 = vadd.f32 %v1687, %v1739
      %v1788 = vadd.f32 %v1688, %v1740
      %v1789 = vadd.f32 %v1689, %v1741
      %v1790 = vadd.f32 %v1690, %v1742
      %v1791 = vadd.f32 %v1691, %v1743
      %v1792 = vadd.f32 %v1692, %v1744
      %v1793 = vadd.f32 %v1693, %v1745
      %v1794 = vadd.f32 %v1694, %v1746
      %v1795 = vadd.f32 %v1695, %v1747
      %v1796 = vadd.f32 %v1696, %v1748
      %v1797 = vadd.f32 %v1697, %v1749
      %v1798 = vadd.f32 %v1698, %v1750
      %v1799 = vadd.f32 %v1699, %v1751
      %v1800 = vadd.f32 %v1700, %v1752
      %v1801 = vadd.f32 %v1701, %v1753
      %v1802 = vadd.f32 %v1702, %v1754
      %v1803 = vadd.f32 %v1703, %v1755
      %v1804 = vadd.f32 %v1704, %v1756
      %v1805 = vadd.f32 %v1705, %v1757
      %v1806 = vadd.f32 %v1706, %v1758
      %v1807 = vadd.f32 %v1707, %v1759
      %v1808 = vadd.f32 %v1708, %v1760
      %v1809 = vadd.f32 %v1709, %v1761
      %v1810 = vadd.f32 %v1710, %v1762
      %v1811 = vlaneseq
      %v1812 = vshrl.u32 %v1811, 7
      %v1813 = vsub.s32 0, %v1812
      %v1814 = vrot.slane %v896, %v1813
      %v1815 = vmul.f32 %v994, %v1814
      %v1816 = vmul.f32 %v995, %v1814
      %v1817 = vmul.f32 %v996, %v1814
      %v1818 = vmul.f32 %v997, %v1814
      %v1819 = vmul.f32 %v998, %v1814
      %v1820 = vmul.f32 %v999, %v1814
      %v1821 = vmul.f32 %v1000, %v1814
      %v1822 = vmul.f32 %v1001, %v1814
      %v1823 = vmul.f32 %v1002, %v1814
      %v1824 = vmul.f32 %v1003, %v1814
      %v1825 = vmul.f32 %v1004, %v1814
      %v1826 = vmul.f32 %v1005, %v1814
      %v1827 = vmul.f32 %v1006, %v1814
      %v1828 = vmul.f32 %v1007, %v1814
      %v1829 = vmul.f32 %v1008, %v1814
      %v1830 = vmul.f32 %v1009, %v1814
      %v1831 = vmul.f32 %v1010, %v1814
      %v1832 = vmul.f32 %v1011, %v1814
      %v1833 = vmul.f32 %v1012, %v1814
      %v1834 = vmul.f32 %v1013, %v1814
      %v1835 = vmul.f32 %v1014, %v1814
      %v1836 = vmul.f32 %v1015, %v1814
      %v1837 = vmul.f32 %v1016, %v1814
      %v1838 = vmul.f32 %v1017, %v1814
      %v1839 = vmul.f32 %v1018, %v1814
      %v1840 = vmul.f32 %v1019, %v1814
      %v1841 = vmul.f32 %v1020, %v1814
      %v1842 = vmul.f32 %v1021, %v1814
      %v1843 = vmul.f32 %v1022, %v1814
      %v1844 = vmul.f32 %v1023, %v1814
      %v1845 = vmul.f32 %v1024, %v1814
      %v1846 = vmul.f32 %v1025, %v1814
      %v1847 = vmul.f32 %v1026, %v1814
      %v1848 = vmul.f32 %v1027, %v1814
      %v1849 = vmul.f32 %v1028, %v1814
      %v1850 = vmul.f32 %v1029, %v1814
      %v1851 = vmul.f32 %v1030, %v1814
      %v1852 = vmul.f32 %v1031, %v1814
      %v1853 = vmul.f32 %v1032, %v1814
      %v1854 = vmul.f32 %v1033, %v1814
      %v1855 = vmul.f32 %v1034, %v1814
      %v1856 = vmul.f32 %v1035, %v1814
      %v1857 = vmul.f32 %v1036, %v1814
      %v1858 = vmul.f32 %v1037, %v1814
      %v1859 = vmul.f32 %v1038, %v1814
      %v1860 = vmul.f32 %v1039, %v1814
      %v1861 = vmul.f32 %v1040, %v1814
      %v1862 = vmul.f32 %v1041, %v1814
      %v1863 = vadd.f32 %v1763, %v1815
      %v1864 = vadd.f32 %v1764, %v1816
      %v1865 = vadd.f32 %v1765, %v1817
      %v1866 = vadd.f32 %v1766, %v1818
      %v1867 = vadd.f32 %v1767, %v1819
      %v1868 = vadd.f32 %v1768, %v1820
      %v1869 = vadd.f32 %v1769, %v1821
      %v1870 = vadd.f32 %v1770, %v1822
      %v1871 = vadd.f32 %v1771, %v1823
      %v1872 = vadd.f32 %v1772, %v1824
      %v1873 = vadd.f32 %v1773, %v1825
      %v1874 = vadd.f32 %v1774, %v1826
      %v1875 = vadd.f32 %v1775, %v1827
      %v1876 = vadd.f32 %v1776, %v1828
      %v1877 = vadd.f32 %v1777, %v1829
      %v1878 = vadd.f32 %v1778, %v1830
      %v1879 = vadd.f32 %v1779, %v1831
      %v1880 = vadd.f32 %v1780, %v1832
      %v1881 = vadd.f32 %v1781, %v1833
      %v1882 = vadd.f32 %v1782, %v1834
      %v1883 = vadd.f32 %v1783, %v1835
      %v1884 = vadd.f32 %v1784, %v1836
      %v1885 = vadd.f32 %v1785, %v1837
      %v1886 = vadd.f32 %v1786, %v1838
      %v1887 = vadd.f32 %v1787, %v1839
      %v1888 = vadd.f32 %v1788, %v1840
      %v1889 = vadd.f32 %v1789, %v1841
      %v1890 = vadd.f32 %v1790, %v1842
      %v1891 = vadd.f32 %v1791, %v1843
      %v1892 = vadd.f32 %v1792, %v1844
      %v1893 = vadd.f32 %v1793, %v1845
      %v1894 = vadd.f32 %v1794, %v1846
      %v1895 = vadd.f32 %v1795, %v1847
      %v1896 = vadd.f32 %v1796, %v1848
      %v1897 = vadd.f32 %v1797, %v1849
      %v1898 = vadd.f32 %v1798, %v1850
      %v1899 = vadd.f32 %v1799, %v1851
      %v1900 = vadd.f32 %v1800, %v1852
      %v1901 = vadd.f32 %v1801, %v1853
      %v1902 = vadd.f32 %v1802, %v1854
      %v1903 = vadd.f32 %v1803, %v1855
      %v1904 = vadd.f32 %v1804, %v1856
      %v1905 = vadd.f32 %v1805, %v1857
      %v1906 = vadd.f32 %v1806, %v1858
      %v1907 = vadd.f32 %v1807, %v1859
      %v1908 = vadd.f32 %v1808, %v1860
      %v1909 = vadd.f32 %v1809, %v1861
      %v1910 = vadd.f32 %v1810, %v1862
      %vm1959 = vcmask 1045504
      %v1960 = vrot.slane %v1863, 2
      %v1961 = vrot.slane %v1864, 2
      %v1962 = vsel %vm1959, %v1960, %v1961
      %v1963 = vrot.slane %v1865, 2
      %v1964 = vsel %vm1959, %v1961, %v1963
      %v1965 = vrot.slane %v1866, 2
      %v1966 = vrot.slane %v1867, 2
      %v1967 = vsel %vm1959, %v1965, %v1966
      %v1968 = vrot.slane %v1868, 2
      %v1969 = vsel %vm1959, %v1966, %v1968
      %v1970 = vrot.slane %v1869, 2
      %v1971 = vrot.slane %v1870, 2
      %v1972 = vsel %vm1959, %v1970, %v1971
      %v1973 = vrot.slane %v1871, 2
      %v1974 = vsel %vm1959, %v1971, %v1973
      %v1975 = vrot.slane %v1872, 2
      %v1976 = vrot.slane %v1873, 2
      %v1977 = vsel %vm1959, %v1975, %v1976
      %v1978 = vrot.slane %v1874, 2
      %v1979 = vsel %vm1959, %v1976, %v1978
      %v1980 = vrot.slane %v1875, 2
      %v1981 = vrot.slane %v1876, 2
      %v1982 = vsel %vm1959, %v1980, %v1981
      %v1983 = vrot.slane %v1877, 2
      %v1984 = vsel %vm1959, %v1981, %v1983
      %v1985 = vrot.slane %v1878, 2
      %v1986 = vrot.slane %v1879, 2
      %v1987 = vsel %vm1959, %v1985, %v1986
      %v1988 = vrot.slane %v1880, 2
      %v1989 = vsel %vm1959, %v1986, %v1988
      %v1990 = vrot.slane %v1881, 2
      %v1991 = vrot.slane %v1882, 2
      %v1992 = vsel %vm1959, %v1990, %v1991
      %v1993 = vrot.slane %v1883, 2
      %v1994 = vsel %vm1959, %v1991, %v1993
      %v1995 = vrot.slane %v1884, 2
      %v1996 = vrot.slane %v1885, 2
      %v1997 = vsel %vm1959, %v1995, %v1996
      %v1998 = vrot.slane %v1886, 2
      %v1999 = vsel %vm1959, %v1996, %v1998
      %v2000 = vrot.slane %v1887, 2
      %v2001 = vrot.slane %v1888, 2
      %v2002 = vsel %vm1959, %v2000, %v2001
      %v2003 = vrot.slane %v1889, 2
      %v2004 = vsel %vm1959, %v2001, %v2003
      %v2005 = vrot.slane %v1890, 2
      %v2006 = vrot.slane %v1891, 2
      %v2007 = vsel %vm1959, %v2005, %v2006
      %v2008 = vrot.slane %v1892, 2
      %v2009 = vsel %vm1959, %v2006, %v2008
      %v2010 = vrot.slane %v1893, 2
      %v2011 = vrot.slane %v1894, 2
      %v2012 = vsel %vm1959, %v2010, %v2011
      %v2013 = vrot.slane %v1895, 2
      %v2014 = vsel %vm1959, %v2011, %v2013
      %v2015 = vrot.slane %v1896, 2
      %v2016 = vrot.slane %v1897, 2
      %v2017 = vsel %vm1959, %v2015, %v2016
      %v2018 = vrot.slane %v1898, 2
      %v2019 = vsel %vm1959, %v2016, %v2018
      %v2020 = vrot.slane %v1899, 2
      %v2021 = vrot.slane %v1900, 2
      %v2022 = vsel %vm1959, %v2020, %v2021
      %v2023 = vrot.slane %v1901, 2
      %v2024 = vsel %vm1959, %v2021, %v2023
      %v2025 = vrot.slane %v1902, 2
      %v2026 = vrot.slane %v1903, 2
      %v2027 = vsel %vm1959, %v2025, %v2026
      %v2028 = vrot.slane %v1904, 2
      %v2029 = vsel %vm1959, %v2026, %v2028
      %v2030 = vrot.slane %v1905, 2
      %v2031 = vrot.slane %v1906, 2
      %v2032 = vsel %vm1959, %v2030, %v2031
      %v2033 = vrot.slane %v1907, 2
      %v2034 = vsel %vm1959, %v2031, %v2033
      %v2035 = vrot.slane %v1908, 2
      %v2036 = vrot.slane %v1909, 2
      %v2037 = vsel %vm1959, %v2035, %v2036
      %v2038 = vrot.slane %v1910, 2
      %v2039 = vsel %vm1959, %v2036, %v2038
      %v2072 = vadd.f32 %v1627, %v1962
      %v2073 = vadd.f32 %v1628, %v1964
      %v2074 = vadd.f32 %v1629, %v1967
      %v2075 = vadd.f32 %v1630, %v1969
      %v2076 = vadd.f32 %v1631, %v1972
      %v2077 = vadd.f32 %v1632, %v1974
      %v2078 = vadd.f32 %v1633, %v1977
      %v2079 = vadd.f32 %v1634, %v1979
      %v2080 = vadd.f32 %v1635, %v1982
      %v2081 = vadd.f32 %v1636, %v1984
      %v2082 = vadd.f32 %v1637, %v1987
      %v2083 = vadd.f32 %v1638, %v1989
      %v2084 = vadd.f32 %v1639, %v1992
      %v2085 = vadd.f32 %v1640, %v1994
      %v2086 = vadd.f32 %v1641, %v1997
      %v2087 = vadd.f32 %v1642, %v1999
      %v2088 = vadd.f32 %v1643, %v2002
      %v2089 = vadd.f32 %v1644, %v2004
      %v2090 = vadd.f32 %v1645, %v2007
      %v2091 = vadd.f32 %v1646, %v2009
      %v2092 = vadd.f32 %v1647, %v2012
      %v2093 = vadd.f32 %v1648, %v2014
      %v2094 = vadd.f32 %v1649, %v2017
      %v2095 = vadd.f32 %v1650, %v2019
      %v2096 = vadd.f32 %v1651, %v2022
      %v2097 = vadd.f32 %v1652, %v2024
      %v2098 = vadd.f32 %v1653, %v2027
      %v2099 = vadd.f32 %v1654, %v2029
      %v2100 = vadd.f32 %v1655, %v2032
      %v2101 = vadd.f32 %v1656, %v2034
      %v2102 = vadd.f32 %v1657, %v2037
      %v2103 = vadd.f32 %v1658, %v2039
      %v2104 = vld [vmem:[%s5] sm:$0x1]
      %v2106 = vlaneseq
      %v2107 = vshrl.u32 %v2106, 7
      %v2108 = vsub.s32 0, %v2107
      %v2109 = vrot.slane %v2104, %v2108
      %v2111 = vadd.f32 %v2072, %v2109
      %v2112 = vadd.f32 %v2073, %v2109
      %v2113 = vadd.f32 %v2074, %v2109
      %v2114 = vadd.f32 %v2075, %v2109
      %v2115 = vadd.f32 %v2076, %v2109
      %v2116 = vadd.f32 %v2077, %v2109
      %v2117 = vadd.f32 %v2078, %v2109
      %v2118 = vadd.f32 %v2079, %v2109
      %v2119 = vadd.f32 %v2080, %v2109
      %v2120 = vadd.f32 %v2081, %v2109
      %v2121 = vadd.f32 %v2082, %v2109
      %v2122 = vadd.f32 %v2083, %v2109
      %v2123 = vadd.f32 %v2084, %v2109
      %v2124 = vadd.f32 %v2085, %v2109
      %v2125 = vadd.f32 %v2086, %v2109
      %v2126 = vadd.f32 %v2087, %v2109
      %v2127 = vadd.f32 %v2088, %v2109
      %v2128 = vadd.f32 %v2089, %v2109
      %v2129 = vadd.f32 %v2090, %v2109
      %v2130 = vadd.f32 %v2091, %v2109
      %v2131 = vadd.f32 %v2092, %v2109
      %v2132 = vadd.f32 %v2093, %v2109
      %v2133 = vadd.f32 %v2094, %v2109
      %v2134 = vadd.f32 %v2095, %v2109
      %v2135 = vadd.f32 %v2096, %v2109
      %v2136 = vadd.f32 %v2097, %v2109
      %v2137 = vadd.f32 %v2098, %v2109
      %v2138 = vadd.f32 %v2099, %v2109
      %v2139 = vadd.f32 %v2100, %v2109
      %v2140 = vadd.f32 %v2101, %v2109
      %v2141 = vadd.f32 %v2102, %v2109
      %v2142 = vadd.f32 %v2103, %v2109
      %s2143 = scalar_lea.vmem %s2, 2
      %v2144 = vld [vmem:[%s2143] sm:$0x3]
      %s2145 = scalar_lea.vmem %s3, 1
      %v2146 = vld [vmem:[%s2145] sm:$0x1]
      %v2148 = vlaneseq
      %v2149 = vshrl.u32 %v2148, 7
      %v2150 = vsub.s32 0, %v2149
      %v2151 = vrot.slane %v2146, %v2150
      %v2154 = vsel %vm697, %v2144, 0
      %2156 = vmatprep.subr.bf16.mxu0 0
      %2157 = vmatpush1.bf16.msra.mxu0 %v2154
      %2158 = vmatprep.subr.bf16.mxu0 0
      %2159 = vmatpush1.bf16.msra.mxu0 0
      %2160 = vmatprep.subr.bf16.mxu0 0
      %2161 = vmatpush1.bf16.msra.mxu0 0
      %2162 = vmatprep.subr.bf16.mxu0 0
      %2163 = vmatpush1.bf16.msra.mxu0 0
      %2164 = vmatprep.subr.bf16.mxu0 0
      %2165 = vmatpush1.bf16.msra.mxu0 0
      %2166 = vmatprep.subr.bf16.mxu0 0
      %2167 = vmatpush1.bf16.msra.mxu0 0
      %2168 = vmatprep.subr.bf16.mxu0 0
      %2169 = vmatpush1.bf16.msra.mxu0 0
      %2170 = vmatprep.subr.bf16.mxu0 0
      %2171 = vmatpush1.bf16.msra.mxu0 0
      %2172 = vmatprep.subr.bf16.mxu0 0
      %2173 = vmatpush1.bf16.msra.mxu0 0
      %2174 = vmatprep.subr.bf16.mxu0 0
      %2175 = vmatpush1.bf16.msra.mxu0 0
      %2176 = vmatprep.subr.bf16.mxu0 0
      %2177 = vmatpush1.bf16.msra.mxu0 0
      %2178 = vmatprep.subr.bf16.mxu0 0
      %2179 = vmatpush1.bf16.msra.mxu0 0
      %2180 = vmatprep.subr.bf16.mxu0 0
      %2181 = vmatpush1.bf16.msra.mxu0 0
      %2182 = vmatprep.subr.bf16.mxu0 0
      %2183 = vmatpush1.bf16.msra.mxu0 0
      %2184 = vmatprep.subr.bf16.mxu0 0
      %2185 = vmatpush1.bf16.msra.mxu0 0
      %2186 = vmatprep.subr.bf16.mxu0 0
      %2187 = vmatpush1.bf16.msra.mxu0 0
      %2188 = vmatprep.mubr.bf16.mxu0 0
      %2189 = vmatmul.mubr.bf16.gmra.mrb[0].mxu0 %v650
      %v2190 = vpop.f32.mrb[0].mxu0
      %v2191 = vadd.f32 %v2151, %v2190
      %v2192 = vpop.f32.mrb[0].mxu0
      %v2193 = vpop.f32.mrb[0].mxu0
      %v2194 = vadd.f32 %v2151, %v2193
      %v2195 = vpop.f32.mrb[0].mxu0
      %2196 = vmatprep.mubr.bf16.mxu0 0
      %2197 = vmatmul.mubr.bf16.gmra.mrb[0].mxu0 %v653
      %v2198 = vpop.f32.mrb[0].mxu0
      %v2199 = vadd.f32 %v2151, %v2198
      %v2200 = vpop.f32.mrb[0].mxu0
      %v2201 = vpop.f32.mrb[0].mxu0
      %v2202 = vadd.f32 %v2151, %v2201
      %v2203 = vpop.f32.mrb[0].mxu0
      %2204 = vmatprep.mubr.bf16.mxu0 0
      %2205 = vmatmul.mubr.bf16.gmra.mrb[0].mxu0 %v656
      %v2206 = vpop.f32.mrb[0].mxu0
      %v2207 = vadd.f32 %v2151, %v2206
      %v2208 = vpop.f32.mrb[0].mxu0
      %v2209 = vpop.f32.mrb[0].mxu0
      %v2210 = vadd.f32 %v2151, %v2209
      %v2211 = vpop.f32.mrb[0].mxu0
      %2212 = vmatprep.mubr.bf16.mxu0 0
      %2213 = vmatmul.mubr.bf16.gmra.mrb[0].mxu0 %v659
      %v2214 = vpop.f32.mrb[0].mxu0
      %v2215 = vadd.f32 %v2151, %v2214
      %v2216 = vpop.f32.mrb[0].mxu0
      %v2217 = vpop.f32.mrb[0].mxu0
      %v2218 = vadd.f32 %v2151, %v2217
      %v2219 = vpop.f32.mrb[0].mxu0
      %2220 = vmatprep.mubr.bf16.mxu0 0
      %2221 = vmatmul.mubr.bf16.gmra.mrb[0].mxu0 %v662
      %v2222 = vpop.f32.mrb[0].mxu0
      %v2223 = vadd.f32 %v2151, %v2222
      %v2224 = vpop.f32.mrb[0].mxu0
      %v2225 = vpop.f32.mrb[0].mxu0
      %v2226 = vadd.f32 %v2151, %v2225
      %v2227 = vpop.f32.mrb[0].mxu0
      %2228 = vmatprep.mubr.bf16.mxu0 0
      %2229 = vmatmul.mubr.bf16.gmra.mrb[0].mxu0 %v665
      %v2230 = vpop.f32.mrb[0].mxu0
      %v2231 = vadd.f32 %v2151, %v2230
      %v2232 = vpop.f32.mrb[0].mxu0
      %v2233 = vpop.f32.mrb[0].mxu0
      %v2234 = vadd.f32 %v2151, %v2233
      %v2235 = vpop.f32.mrb[0].mxu0
      %2236 = vmatprep.mubr.bf16.mxu0 0
      %2237 = vmatmul.mubr.bf16.gmra.mrb[0].mxu0 %v668
      %v2238 = vpop.f32.mrb[0].mxu0
      %v2239 = vadd.f32 %v2151, %v2238
      %v2240 = vpop.f32.mrb[0].mxu0
      %v2241 = vpop.f32.mrb[0].mxu0
      %v2242 = vadd.f32 %v2151, %v2241
      %v2243 = vpop.f32.mrb[0].mxu0
      %2244 = vmatprep.mubr.bf16.mxu0 0
      %2245 = vmatmul.mubr.bf16.gmra.mrb[0].mxu0 %v671
      %v2246 = vpop.f32.mrb[0].mxu0
      %v2247 = vadd.f32 %v2151, %v2246
      %v2248 = vpop.f32.mrb[0].mxu0
      %v2249 = vpop.f32.mrb[0].mxu0
      %v2250 = vadd.f32 %v2151, %v2249
      %v2251 = vpop.f32.mrb[0].mxu0
      %2252 = vmatprep.mubr.bf16.mxu0 0
      %2253 = vmatmul.mubr.bf16.gmra.mrb[0].mxu0 %v674
      %v2254 = vpop.f32.mrb[0].mxu0
      %v2255 = vadd.f32 %v2151, %v2254
      %v2256 = vpop.f32.mrb[0].mxu0
      %v2257 = vpop.f32.mrb[0].mxu0
      %v2258 = vadd.f32 %v2151, %v2257
      %v2259 = vpop.f32.mrb[0].mxu0
      %2260 = vmatprep.mubr.bf16.mxu0 0
      %2261 = vmatmul.mubr.bf16.gmra.mrb[0].mxu0 %v677
      %v2262 = vpop.f32.mrb[0].mxu0
      %v2263 = vadd.f32 %v2151, %v2262
      %v2264 = vpop.f32.mrb[0].mxu0
      %v2265 = vpop.f32.mrb[0].mxu0
      %v2266 = vadd.f32 %v2151, %v2265
      %v2267 = vpop.f32.mrb[0].mxu0
      %2268 = vmatprep.mubr.bf16.mxu0 0
      %2269 = vmatmul.mubr.bf16.gmra.mrb[0].mxu0 %v680
      %v2270 = vpop.f32.mrb[0].mxu0
      %v2271 = vadd.f32 %v2151, %v2270
      %v2272 = vpop.f32.mrb[0].mxu0
      %v2273 = vpop.f32.mrb[0].mxu0
      %v2274 = vadd.f32 %v2151, %v2273
      %v2275 = vpop.f32.mrb[0].mxu0
      %2276 = vmatprep.mubr.bf16.mxu0 0
      %2277 = vmatmul.mubr.bf16.gmra.mrb[0].mxu0 %v683
      %v2278 = vpop.f32.mrb[0].mxu0
      %v2279 = vadd.f32 %v2151, %v2278
      %v2280 = vpop.f32.mrb[0].mxu0
      %v2281 = vpop.f32.mrb[0].mxu0
      %v2282 = vadd.f32 %v2151, %v2281
      %v2283 = vpop.f32.mrb[0].mxu0
      %2284 = vmatprep.mubr.bf16.mxu0 0
      %2285 = vmatmul.mubr.bf16.gmra.mrb[0].mxu0 %v686
      %v2286 = vpop.f32.mrb[0].mxu0
      %v2287 = vadd.f32 %v2151, %v2286
      %v2288 = vpop.f32.mrb[0].mxu0
      %v2289 = vpop.f32.mrb[0].mxu0
      %v2290 = vadd.f32 %v2151, %v2289
      %v2291 = vpop.f32.mrb[0].mxu0
      %2292 = vmatprep.mubr.bf16.mxu0 0
      %2293 = vmatmul.mubr.bf16.gmra.mrb[0].mxu0 %v689
      %v2294 = vpop.f32.mrb[0].mxu0
      %v2295 = vadd.f32 %v2151, %v2294
      %v2296 = vpop.f32.mrb[0].mxu0
      %v2297 = vpop.f32.mrb[0].mxu0
      %v2298 = vadd.f32 %v2151, %v2297
      %v2299 = vpop.f32.mrb[0].mxu0
      %2300 = vmatprep.mubr.bf16.mxu0 0
      %2301 = vmatmul.mubr.bf16.gmra.mrb[0].mxu0 %v692
      %v2302 = vpop.f32.mrb[0].mxu0
      %v2303 = vadd.f32 %v2151, %v2302
      %v2304 = vpop.f32.mrb[0].mxu0
      %v2305 = vpop.f32.mrb[0].mxu0
      %v2306 = vadd.f32 %v2151, %v2305
      %v2307 = vpop.f32.mrb[0].mxu0
      %2308 = vmatprep.mubr.bf16.mxu0 0
      %2309 = vmatmul.mubr.bf16.gmra.mrb[0].mxu0 %v695
      %v2310 = vpop.f32.mrb[0].mxu0
      %v2311 = vadd.f32 %v2151, %v2310
      %v2312 = vpop.f32.mrb[0].mxu0
      %v2313 = vpop.f32.mrb[0].mxu0
      %v2314 = vadd.f32 %v2151, %v2313
      %v2315 = vpop.f32.mrb[0].mxu0
      %2316 = vdwg.mxu0
      %2317 = vst.msk [vmem:[%s862 + $0x1] sm:$0xff] %vm489, %v2191
      %2318 = vst.msk [vmem:[%s862 + $0x9] sm:$0xff] %vm489, %v2194
      %2319 = vst.msk [vmem:[%s862 + $0x19] sm:$0xff] %vm489, %v2199
      %2320 = vst.msk [vmem:[%s862 + $0x21] sm:$0xff] %vm489, %v2202
      %2321 = vst.msk [vmem:[%s862 + $0x31] sm:$0xff] %vm489, %v2207
      %2322 = vst.msk [vmem:[%s862 + $0x39] sm:$0xff] %vm489, %v2210
      %2323 = vst.msk [vmem:[%s862 + $0x49] sm:$0xff] %vm489, %v2215
      %2324 = vst.msk [vmem:[%s862 + $0x51] sm:$0xff] %vm489, %v2218
      %2325 = vst.msk [vmem:[%s862 + $0x61] sm:$0xff] %vm489, %v2223
      %2326 = vst.msk [vmem:[%s862 + $0x69] sm:$0xff] %vm489, %v2226
      %2327 = vst.msk [vmem:[%s862 + $0x79] sm:$0xff] %vm489, %v2231
      %2328 = vst.msk [vmem:[%s862 + $0x81] sm:$0xff] %vm489, %v2234
      %2329 = vst.msk [vmem:[%s862 + $0x91] sm:$0xff] %vm489, %v2239
      %2330 = vst.msk [vmem:[%s862 + $0x99] sm:$0xff] %vm489, %v2242
      %2331 = vst.msk [vmem:[%s862 + $0xa9] sm:$0xff] %vm489, %v2247
      %2332 = vst.msk [vmem:[%s862 + $0xb1] sm:$0xff] %vm489, %v2250
      %2333 = vst.msk [vmem:[%s862 + $0xc1] sm:$0xff] %vm489, %v2255
      %2334 = vst.msk [vmem:[%s862 + $0xc9] sm:$0xff] %vm489, %v2258
      %2335 = vst.msk [vmem:[%s862 + $0xd9] sm:$0xff] %vm489, %v2263
      %2336 = vst.msk [vmem:[%s862 + $0xe1] sm:$0xff] %vm489, %v2266
      %2337 = vst.msk [vmem:[%s862 + $0xf1] sm:$0xff] %vm489, %v2271
      %2338 = vst.msk [vmem:[%s862 + $0xf9] sm:$0xff] %vm489, %v2274
      %2339 = vst.msk [vmem:[%s862 + $0x109] sm:$0xff] %vm489, %v2279
      %2340 = vst.msk [vmem:[%s862 + $0x111] sm:$0xff] %vm489, %v2282
      %2341 = vst.msk [vmem:[%s862 + $0x121] sm:$0xff] %vm489, %v2287
      %2342 = vst.msk [vmem:[%s862 + $0x129] sm:$0xff] %vm489, %v2290
      %2343 = vst.msk [vmem:[%s862 + $0x139] sm:$0xff] %vm489, %v2295
      %2344 = vst.msk [vmem:[%s862 + $0x141] sm:$0xff] %vm489, %v2298
      %2345 = vst.msk [vmem:[%s862 + $0x151] sm:$0xff] %vm489, %v2303
      %2346 = vst.msk [vmem:[%s862 + $0x159] sm:$0xff] %vm489, %v2306
      %2347 = vst.msk [vmem:[%s862 + $0x169] sm:$0xff] %vm489, %v2311
      %2348 = vst.msk [vmem:[%s862 + $0x171] sm:$0xff] %vm489, %v2314
      %s2349 = scalar_lea.vmem %s4, 16
      %v2350 = vld [vmem:[%s2349] sm:$0xff]
      %v2351 = vld [vmem:[%s2349 + $0x8] sm:$0x1]
      %v2352 = vld [vmem:[#allocation2] sm:$0xff]
      %v2353 = vld [vmem:[#allocation2 + $0x8] sm:$0xff]
      %v2354 = vld [vmem:[#allocation2 + $0x10] sm:$0x3]
      %v2355 = vld [vmem:[#allocation2 + $0x18] sm:$0xff]
      %v2356 = vld [vmem:[#allocation2 + $0x20] sm:$0xff]
      %v2357 = vld [vmem:[#allocation2 + $0x28] sm:$0x3]
      %v2358 = vld [vmem:[#allocation2 + $0x30] sm:$0xff]
      %v2359 = vld [vmem:[#allocation2 + $0x38] sm:$0xff]
      %v2360 = vld [vmem:[#allocation2 + $0x40] sm:$0x3]
      %v2361 = vld [vmem:[#allocation2 + $0x48] sm:$0xff]
      %v2362 = vld [vmem:[#allocation2 + $0x50] sm:$0xff]
      %v2363 = vld [vmem:[#allocation2 + $0x58] sm:$0x3]
      %v2364 = vld [vmem:[#allocation2 + $0x60] sm:$0xff]
      %v2365 = vld [vmem:[#allocation2 + $0x68] sm:$0xff]
      %v2366 = vld [vmem:[#allocation2 + $0x70] sm:$0x3]
      %v2367 = vld [vmem:[#allocation2 + $0x78] sm:$0xff]
      %v2368 = vld [vmem:[#allocation2 + $0x80] sm:$0xff]
      %v2369 = vld [vmem:[#allocation2 + $0x88] sm:$0x3]
      %v2370 = vld [vmem:[#allocation2 + $0x90] sm:$0xff]
      %v2371 = vld [vmem:[#allocation2 + $0x98] sm:$0xff]
      %v2372 = vld [vmem:[#allocation2 + $0xa0] sm:$0x3]
      %v2373 = vld [vmem:[#allocation2 + $0xa8] sm:$0xff]
      %v2374 = vld [vmem:[#allocation2 + $0xb0] sm:$0xff]
      %v2375 = vld [vmem:[#allocation2 + $0xb8] sm:$0x3]
      %v2376 = vld [vmem:[#allocation2 + $0xc0] sm:$0xff]
      %v2377 = vld [vmem:[#allocation2 + $0xc8] sm:$0xff]
      %v2378 = vld [vmem:[#allocation2 + $0xd0] sm:$0x3]
      %v2379 = vld [vmem:[#allocation2 + $0xd8] sm:$0xff]
      %v2380 = vld [vmem:[#allocation2 + $0xe0] sm:$0xff]
      %v2381 = vld [vmem:[#allocation2 + $0xe8] sm:$0x3]
      %v2382 = vld [vmem:[#allocation2 + $0xf0] sm:$0xff]
      %v2383 = vld [vmem:[#allocation2 + $0xf8] sm:$0xff]
      %v2384 = vld [vmem:[#allocation2 + $0x100] sm:$0x3]
      %v2385 = vld [vmem:[#allocation2 + $0x108] sm:$0xff]
      %v2386 = vld [vmem:[#allocation2 + $0x110] sm:$0xff]
      %v2387 = vld [vmem:[#allocation2 + $0x118] sm:$0x3]
      %v2388 = vld [vmem:[#allocation2 + $0x120] sm:$0xff]
      %v2389 = vld [vmem:[#allocation2 + $0x128] sm:$0xff]
      %v2390 = vld [vmem:[#allocation2 + $0x130] sm:$0x3]
      %v2391 = vld [vmem:[#allocation2 + $0x138] sm:$0xff]
      %v2392 = vld [vmem:[#allocation2 + $0x140] sm:$0xff]
      %v2393 = vld [vmem:[#allocation2 + $0x148] sm:$0x3]
      %v2394 = vld [vmem:[#allocation2 + $0x150] sm:$0xff]
      %v2395 = vld [vmem:[#allocation2 + $0x158] sm:$0xff]
      %v2396 = vld [vmem:[#allocation2 + $0x160] sm:$0x3]
      %v2397 = vld [vmem:[#allocation2 + $0x168] sm:$0xff]
      %v2398 = vld [vmem:[#allocation2 + $0x170] sm:$0xff]
      %v2399 = vld [vmem:[#allocation2 + $0x178] sm:$0x3]
      %v2400 = vld [vmem:[%s862] sm:$0xff]
      %v2401 = vld [vmem:[%s862 + $0x8] sm:$0xff]
      %v2402 = vld [vmem:[%s862 + $0x10] sm:$0x3]
      %v2403 = vld [vmem:[%s862 + $0x18] sm:$0xff]
      %v2404 = vld [vmem:[%s862 + $0x20] sm:$0xff]
      %v2405 = vld [vmem:[%s862 + $0x28] sm:$0x3]
      %v2406 = vld [vmem:[%s862 + $0x30] sm:$0xff]
      %v2407 = vld [vmem:[%s862 + $0x38] sm:$0xff]
      %v2408 = vld [vmem:[%s862 + $0x40] sm:$0x3]
      %v2409 = vld [vmem:[%s862 + $0x48] sm:$0xff]
      %v2410 = vld [vmem:[%s862 + $0x50] sm:$0xff]
      %v2411 = vld [vmem:[%s862 + $0x58] sm:$0x3]
      %v2412 = vld [vmem:[%s862 + $0x60] sm:$0xff]
      %v2413 = vld [vmem:[%s862 + $0x68] sm:$0xff]
      %v2414 = vld [vmem:[%s862 + $0x70] sm:$0x3]
      %v2415 = vld [vmem:[%s862 + $0x78] sm:$0xff]
      %v2416 = vld [vmem:[%s862 + $0x80] sm:$0xff]
      %v2417 = vld [vmem:[%s862 + $0x88] sm:$0x3]
      %v2418 = vld [vmem:[%s862 + $0x90] sm:$0xff]
      %v2419 = vld [vmem:[%s862 + $0x98] sm:$0xff]
      %v2420 = vld [vmem:[%s862 + $0xa0] sm:$0x3]
      %v2421 = vld [vmem:[%s862 + $0xa8] sm:$0xff]
      %v2422 = vld [vmem:[%s862 + $0xb0] sm:$0xff]
      %v2423 = vld [vmem:[%s862 + $0xb8] sm:$0x3]
      %v2424 = vld [vmem:[%s862 + $0xc0] sm:$0xff]
      %v2425 = vld [vmem:[%s862 + $0xc8] sm:$0xff]
      %v2426 = vld [vmem:[%s862 + $0xd0] sm:$0x3]
      %v2427 = vld [vmem:[%s862 + $0xd8] sm:$0xff]
      %v2428 = vld [vmem:[%s862 + $0xe0] sm:$0xff]
      %v2429 = vld [vmem:[%s862 + $0xe8] sm:$0x3]
      %v2430 = vld [vmem:[%s862 + $0xf0] sm:$0xff]
      %v2431 = vld [vmem:[%s862 + $0xf8] sm:$0xff]
      %v2432 = vld [vmem:[%s862 + $0x100] sm:$0x3]
      %v2433 = vld [vmem:[%s862 + $0x108] sm:$0xff]
      %v2434 = vld [vmem:[%s862 + $0x110] sm:$0xff]
      %v2435 = vld [vmem:[%s862 + $0x118] sm:$0x3]
      %v2436 = vld [vmem:[%s862 + $0x120] sm:$0xff]
      %v2437 = vld [vmem:[%s862 + $0x128] sm:$0xff]
      %v2438 = vld [vmem:[%s862 + $0x130] sm:$0x3]
      %v2439 = vld [vmem:[%s862 + $0x138] sm:$0xff]
      %v2440 = vld [vmem:[%s862 + $0x140] sm:$0xff]
      %v2441 = vld [vmem:[%s862 + $0x148] sm:$0x3]
      %v2442 = vld [vmem:[%s862 + $0x150] sm:$0xff]
      %v2443 = vld [vmem:[%s862 + $0x158] sm:$0xff]
      %v2444 = vld [vmem:[%s862 + $0x160] sm:$0x3]
      %v2445 = vld [vmem:[%s862 + $0x168] sm:$0xff]
      %v2446 = vld [vmem:[%s862 + $0x170] sm:$0xff]
      %v2447 = vld [vmem:[%s862 + $0x178] sm:$0x3]
      %v2448 = vld [vmem:[%s993] sm:$0xff]
      %v2449 = vld [vmem:[%s993 + $0x8] sm:$0xff]
      %v2450 = vld [vmem:[%s993 + $0x10] sm:$0x3]
      %v2451 = vld [vmem:[%s993 + $0x18] sm:$0xff]
      %v2452 = vld [vmem:[%s993 + $0x20] sm:$0xff]
      %v2453 = vld [vmem:[%s993 + $0x28] sm:$0x3]
      %v2454 = vld [vmem:[%s993 + $0x30] sm:$0xff]
      %v2455 = vld [vmem:[%s993 + $0x38] sm:$0xff]
      %v2456 = vld [vmem:[%s993 + $0x40] sm:$0x3]
      %v2457 = vld [vmem:[%s993 + $0x48] sm:$0xff]
      %v2458 = vld [vmem:[%s993 + $0x50] sm:$0xff]
      %v2459 = vld [vmem:[%s993 + $0x58] sm:$0x3]
      %v2460 = vld [vmem:[%s993 + $0x60] sm:$0xff]
      %v2461 = vld [vmem:[%s993 + $0x68] sm:$0xff]
      %v2462 = vld [vmem:[%s993 + $0x70] sm:$0x3]
      %v2463 = vld [vmem:[%s993 + $0x78] sm:$0xff]
      %v2464 = vld [vmem:[%s993 + $0x80] sm:$0xff]
      %v2465 = vld [vmem:[%s993 + $0x88] sm:$0x3]
      %v2466 = vld [vmem:[%s993 + $0x90] sm:$0xff]
      %v2467 = vld [vmem:[%s993 + $0x98] sm:$0xff]
      %v2468 = vld [vmem:[%s993 + $0xa0] sm:$0x3]
      %v2469 = vld [vmem:[%s993 + $0xa8] sm:$0xff]
      %v2470 = vld [vmem:[%s993 + $0xb0] sm:$0xff]
      %v2471 = vld [vmem:[%s993 + $0xb8] sm:$0x3]
      %v2472 = vld [vmem:[%s993 + $0xc0] sm:$0xff]
      %v2473 = vld [vmem:[%s993 + $0xc8] sm:$0xff]
      %v2474 = vld [vmem:[%s993 + $0xd0] sm:$0x3]
      %v2475 = vld [vmem:[%s993 + $0xd8] sm:$0xff]
      %v2476 = vld [vmem:[%s993 + $0xe0] sm:$0xff]
      %v2477 = vld [vmem:[%s993 + $0xe8] sm:$0x3]
      %v2478 = vld [vmem:[%s993 + $0xf0] sm:$0xff]
      %v2479 = vld [vmem:[%s993 + $0xf8] sm:$0xff]
      %v2480 = vld [vmem:[%s993 + $0x100] sm:$0x3]
      %v2481 = vld [vmem:[%s993 + $0x108] sm:$0xff]
      %v2482 = vld [vmem:[%s993 + $0x110] sm:$0xff]
      %v2483 = vld [vmem:[%s993 + $0x118] sm:$0x3]
      %v2484 = vld [vmem:[%s993 + $0x120] sm:$0xff]
      %v2485 = vld [vmem:[%s993 + $0x128] sm:$0xff]
      %v2486 = vld [vmem:[%s993 + $0x130] sm:$0x3]
      %v2487 = vld [vmem:[%s993 + $0x138] sm:$0xff]
      %v2488 = vld [vmem:[%s993 + $0x140] sm:$0xff]
      %v2489 = vld [vmem:[%s993 + $0x148] sm:$0x3]
      %v2490 = vld [vmem:[%s993 + $0x150] sm:$0xff]
      %v2491 = vld [vmem:[%s993 + $0x158] sm:$0xff]
      %v2492 = vld [vmem:[%s993 + $0x160] sm:$0x3]
      %v2493 = vld [vmem:[%s993 + $0x168] sm:$0xff]
      %v2494 = vld [vmem:[%s993 + $0x170] sm:$0xff]
      %v2495 = vld [vmem:[%s993 + $0x178] sm:$0x3]
      %v2496 = vlaneseq
      %v2497 = vshrl.u32 %v2496, 7
      %v2498 = vsub.s32 0, %v2497
      %v2499 = vrot.slane %v2350, %v2498
      %v2500 = vmul.f32 %v2352, %v2499
      %v2501 = vmul.f32 %v2353, %v2499
      %v2502 = vmul.f32 %v2355, %v2499
      %v2503 = vmul.f32 %v2356, %v2499
      %v2504 = vmul.f32 %v2358, %v2499
      %v2505 = vmul.f32 %v2359, %v2499
      %v2506 = vmul.f32 %v2361, %v2499
      %v2507 = vmul.f32 %v2362, %v2499
      %v2508 = vmul.f32 %v2364, %v2499
      %v2509 = vmul.f32 %v2365, %v2499
      %v2510 = vmul.f32 %v2367, %v2499
      %v2511 = vmul.f32 %v2368, %v2499
      %v2512 = vmul.f32 %v2370, %v2499
      %v2513 = vmul.f32 %v2371, %v2499
      %v2514 = vmul.f32 %v2373, %v2499
      %v2515 = vmul.f32 %v2374, %v2499
      %v2516 = vmul.f32 %v2376, %v2499
      %v2517 = vmul.f32 %v2377, %v2499
      %v2518 = vmul.f32 %v2379, %v2499
      %v2519 = vmul.f32 %v2380, %v2499
      %v2520 = vmul.f32 %v2382, %v2499
      %v2521 = vmul.f32 %v2383, %v2499
      %v2522 = vmul.f32 %v2385, %v2499
      %v2523 = vmul.f32 %v2386, %v2499
      %v2524 = vmul.f32 %v2388, %v2499
      %v2525 = vmul.f32 %v2389, %v2499
      %v2526 = vmul.f32 %v2391, %v2499
      %v2527 = vmul.f32 %v2392, %v2499
      %v2528 = vmul.f32 %v2394, %v2499
      %v2529 = vmul.f32 %v2395, %v2499
      %v2530 = vmul.f32 %v2397, %v2499
      %v2531 = vmul.f32 %v2398, %v2499
      %v2532 = vlaneseq
      %v2533 = vshrl.u32 %v2532, 7
      %v2534 = vsub.s32 3, %v2533
      %v2535 = vrot.slane %v2350, %v2534
      %v2536 = vmul.f32 %v2400, %v2535
      %v2537 = vmul.f32 %v2401, %v2535
      %v2538 = vmul.f32 %v2403, %v2535
      %v2539 = vmul.f32 %v2404, %v2535
      %v2540 = vmul.f32 %v2406, %v2535
      %v2541 = vmul.f32 %v2407, %v2535
      %v2542 = vmul.f32 %v2409, %v2535
      %v2543 = vmul.f32 %v2410, %v2535
      %v2544 = vmul.f32 %v2412, %v2535
      %v2545 = vmul.f32 %v2413, %v2535
      %v2546 = vmul.f32 %v2415, %v2535
      %v2547 = vmul.f32 %v2416, %v2535
      %v2548 = vmul.f32 %v2418, %v2535
      %v2549 = vmul.f32 %v2419, %v2535
      %v2550 = vmul.f32 %v2421, %v2535
      %v2551 = vmul.f32 %v2422, %v2535
      %v2552 = vmul.f32 %v2424, %v2535
      %v2553 = vmul.f32 %v2425, %v2535
      %v2554 = vmul.f32 %v2427, %v2535
      %v2555 = vmul.f32 %v2428, %v2535
      %v2556 = vmul.f32 %v2430, %v2535
      %v2557 = vmul.f32 %v2431, %v2535
      %v2558 = vmul.f32 %v2433, %v2535
      %v2559 = vmul.f32 %v2434, %v2535
      %v2560 = vmul.f32 %v2436, %v2535
      %v2561 = vmul.f32 %v2437, %v2535
      %v2562 = vmul.f32 %v2439, %v2535
      %v2563 = vmul.f32 %v2440, %v2535
      %v2564 = vmul.f32 %v2442, %v2535
      %v2565 = vmul.f32 %v2443, %v2535
      %v2566 = vmul.f32 %v2445, %v2535
      %v2567 = vmul.f32 %v2446, %v2535
      %v2568 = vadd.f32 %v2500, %v2536
      %v2569 = vadd.f32 %v2501, %v2537
      %v2570 = vadd.f32 %v2502, %v2538
      %v2571 = vadd.f32 %v2503, %v2539
      %v2572 = vadd.f32 %v2504, %v2540
      %v2573 = vadd.f32 %v2505, %v2541
      %v2574 = vadd.f32 %v2506, %v2542
      %v2575 = vadd.f32 %v2507, %v2543
      %v2576 = vadd.f32 %v2508, %v2544
      %v2577 = vadd.f32 %v2509, %v2545
      %v2578 = vadd.f32 %v2510, %v2546
      %v2579 = vadd.f32 %v2511, %v2547
      %v2580 = vadd.f32 %v2512, %v2548
      %v2581 = vadd.f32 %v2513, %v2549
      %v2582 = vadd.f32 %v2514, %v2550
      %v2583 = vadd.f32 %v2515, %v2551
      %v2584 = vadd.f32 %v2516, %v2552
      %v2585 = vadd.f32 %v2517, %v2553
      %v2586 = vadd.f32 %v2518, %v2554
      %v2587 = vadd.f32 %v2519, %v2555
      %v2588 = vadd.f32 %v2520, %v2556
      %v2589 = vadd.f32 %v2521, %v2557
      %v2590 = vadd.f32 %v2522, %v2558
      %v2591 = vadd.f32 %v2523, %v2559
      %v2592 = vadd.f32 %v2524, %v2560
      %v2593 = vadd.f32 %v2525, %v2561
      %v2594 = vadd.f32 %v2526, %v2562
      %v2595 = vadd.f32 %v2527, %v2563
      %v2596 = vadd.f32 %v2528, %v2564
      %v2597 = vadd.f32 %v2529, %v2565
      %v2598 = vadd.f32 %v2530, %v2566
      %v2599 = vadd.f32 %v2531, %v2567
      %v2600 = vlaneseq
      %v2601 = vshrl.u32 %v2600, 7
      %v2602 = vsub.s32 6, %v2601
      %v2603 = vrot.slane %v2350, %v2602
      %v2604 = vmul.f32 %v2448, %v2603
      %v2605 = vmul.f32 %v2449, %v2603
      %v2606 = vmul.f32 %v2451, %v2603
      %v2607 = vmul.f32 %v2452, %v2603
      %v2608 = vmul.f32 %v2454, %v2603
      %v2609 = vmul.f32 %v2455, %v2603
      %v2610 = vmul.f32 %v2457, %v2603
      %v2611 = vmul.f32 %v2458, %v2603
      %v2612 = vmul.f32 %v2460, %v2603
      %v2613 = vmul.f32 %v2461, %v2603
      %v2614 = vmul.f32 %v2463, %v2603
      %v2615 = vmul.f32 %v2464, %v2603
      %v2616 = vmul.f32 %v2466, %v2603
      %v2617 = vmul.f32 %v2467, %v2603
      %v2618 = vmul.f32 %v2469, %v2603
      %v2619 = vmul.f32 %v2470, %v2603
      %v2620 = vmul.f32 %v2472, %v2603
      %v2621 = vmul.f32 %v2473, %v2603
      %v2622 = vmul.f32 %v2475, %v2603
      %v2623 = vmul.f32 %v2476, %v2603
      %v2624 = vmul.f32 %v2478, %v2603
      %v2625 = vmul.f32 %v2479, %v2603
      %v2626 = vmul.f32 %v2481, %v2603
      %v2627 = vmul.f32 %v2482, %v2603
      %v2628 = vmul.f32 %v2484, %v2603
      %v2629 = vmul.f32 %v2485, %v2603
      %v2630 = vmul.f32 %v2487, %v2603
      %v2631 = vmul.f32 %v2488, %v2603
      %v2632 = vmul.f32 %v2490, %v2603
      %v2633 = vmul.f32 %v2491, %v2603
      %v2634 = vmul.f32 %v2493, %v2603
      %v2635 = vmul.f32 %v2494, %v2603
      %v2636 = vadd.f32 %v2568, %v2604
      %v2637 = vadd.f32 %v2569, %v2605
      %v2638 = vadd.f32 %v2570, %v2606
      %v2639 = vadd.f32 %v2571, %v2607
      %v2640 = vadd.f32 %v2572, %v2608
      %v2641 = vadd.f32 %v2573, %v2609
      %v2642 = vadd.f32 %v2574, %v2610
      %v2643 = vadd.f32 %v2575, %v2611
      %v2644 = vadd.f32 %v2576, %v2612
      %v2645 = vadd.f32 %v2577, %v2613
      %v2646 = vadd.f32 %v2578, %v2614
      %v2647 = vadd.f32 %v2579, %v2615
      %v2648 = vadd.f32 %v2580, %v2616
      %v2649 = vadd.f32 %v2581, %v2617
      %v2650 = vadd.f32 %v2582, %v2618
      %v2651 = vadd.f32 %v2583, %v2619
      %v2652 = vadd.f32 %v2584, %v2620
      %v2653 = vadd.f32 %v2585, %v2621
      %v2654 = vadd.f32 %v2586, %v2622
      %v2655 = vadd.f32 %v2587, %v2623
      %v2656 = vadd.f32 %v2588, %v2624
      %v2657 = vadd.f32 %v2589, %v2625
      %v2658 = vadd.f32 %v2590, %v2626
      %v2659 = vadd.f32 %v2591, %v2627
      %v2660 = vadd.f32 %v2592, %v2628
      %v2661 = vadd.f32 %v2593, %v2629
      %v2662 = vadd.f32 %v2594, %v2630
      %v2663 = vadd.f32 %v2595, %v2631
      %v2664 = vadd.f32 %v2596, %v2632
      %v2665 = vadd.f32 %v2597, %v2633
      %v2666 = vadd.f32 %v2598, %v2634
      %v2667 = vadd.f32 %v2599, %v2635
      %v2668 = vlaneseq
      %v2669 = vshrl.u32 %v2668, 7
      %v2670 = vsub.s32 1, %v2669
      %v2671 = vrot.slane %v2350, %v2670
      %v2672 = vmul.f32 %v2352, %v2671
      %v2673 = vmul.f32 %v2353, %v2671
      %v2674 = vmul.f32 %v2354, %v2671
      %v2675 = vmul.f32 %v2355, %v2671
      %v2676 = vmul.f32 %v2356, %v2671
      %v2677 = vmul.f32 %v2357, %v2671
      %v2678 = vmul.f32 %v2358, %v2671
      %v2679 = vmul.f32 %v2359, %v2671
      %v2680 = vmul.f32 %v2360, %v2671
      %v2681 = vmul.f32 %v2361, %v2671
      %v2682 = vmul.f32 %v2362, %v2671
      %v2683 = vmul.f32 %v2363, %v2671
      %v2684 = vmul.f32 %v2364, %v2671
      %v2685 = vmul.f32 %v2365, %v2671
      %v2686 = vmul.f32 %v2366, %v2671
      %v2687 = vmul.f32 %v2367, %v2671
      %v2688 = vmul.f32 %v2368, %v2671
      %v2689 = vmul.f32 %v2369, %v2671
      %v2690 = vmul.f32 %v2370, %v2671
      %v2691 = vmul.f32 %v2371, %v2671
      %v2692 = vmul.f32 %v2372, %v2671
      %v2693 = vmul.f32 %v2373, %v2671
      %v2694 = vmul.f32 %v2374, %v2671
      %v2695 = vmul.f32 %v2375, %v2671
      %v2696 = vmul.f32 %v2376, %v2671
      %v2697 = vmul.f32 %v2377, %v2671
      %v2698 = vmul.f32 %v2378, %v2671
      %v2699 = vmul.f32 %v2379, %v2671
      %v2700 = vmul.f32 %v2380, %v2671
      %v2701 = vmul.f32 %v2381, %v2671
      %v2702 = vmul.f32 %v2382, %v2671
      %v2703 = vmul.f32 %v2383, %v2671
      %v2704 = vmul.f32 %v2384, %v2671
      %v2705 = vmul.f32 %v2385, %v2671
      %v2706 = vmul.f32 %v2386, %v2671
      %v2707 = vmul.f32 %v2387, %v2671
      %v2708 = vmul.f32 %v2388, %v2671
      %v2709 = vmul.f32 %v2389, %v2671
      %v2710 = vmul.f32 %v2390, %v2671
      %v2711 = vmul.f32 %v2391, %v2671
      %v2712 = vmul.f32 %v2392, %v2671
      %v2713 = vmul.f32 %v2393, %v2671
      %v2714 = vmul.f32 %v2394, %v2671
      %v2715 = vmul.f32 %v2395, %v2671
      %v2716 = vmul.f32 %v2396, %v2671
      %v2717 = vmul.f32 %v2397, %v2671
      %v2718 = vmul.f32 %v2398, %v2671
      %v2719 = vmul.f32 %v2399, %v2671
      %v2720 = vlaneseq
      %v2721 = vshrl.u32 %v2720, 7
      %v2722 = vsub.s32 4, %v2721
      %v2723 = vrot.slane %v2350, %v2722
      %v2724 = vmul.f32 %v2400, %v2723
      %v2725 = vmul.f32 %v2401, %v2723
      %v2726 = vmul.f32 %v2402, %v2723
      %v2727 = vmul.f32 %v2403, %v2723
      %v2728 = vmul.f32 %v2404, %v2723
      %v2729 = vmul.f32 %v2405, %v2723
      %v2730 = vmul.f32 %v2406, %v2723
      %v2731 = vmul.f32 %v2407, %v2723
      %v2732 = vmul.f32 %v2408, %v2723
      %v2733 = vmul.f32 %v2409, %v2723
      %v2734 = vmul.f32 %v2410, %v2723
      %v2735 = vmul.f32 %v2411, %v2723
      %v2736 = vmul.f32 %v2412, %v2723
      %v2737 = vmul.f32 %v2413, %v2723
      %v2738 = vmul.f32 %v2414, %v2723
      %v2739 = vmul.f32 %v2415, %v2723
      %v2740 = vmul.f32 %v2416, %v2723
      %v2741 = vmul.f32 %v2417, %v2723
      %v2742 = vmul.f32 %v2418, %v2723
      %v2743 = vmul.f32 %v2419, %v2723
      %v2744 = vmul.f32 %v2420, %v2723
      %v2745 = vmul.f32 %v2421, %v2723
      %v2746 = vmul.f32 %v2422, %v2723
      %v2747 = vmul.f32 %v2423, %v2723
      %v2748 = vmul.f32 %v2424, %v2723
      %v2749 = vmul.f32 %v2425, %v2723
      %v2750 = vmul.f32 %v2426, %v2723
      %v2751 = vmul.f32 %v2427, %v2723
      %v2752 = vmul.f32 %v2428, %v2723
      %v2753 = vmul.f32 %v2429, %v2723
      %v2754 = vmul.f32 %v2430, %v2723
      %v2755 = vmul.f32 %v2431, %v2723
      %v2756 = vmul.f32 %v2432, %v2723
      %v2757 = vmul.f32 %v2433, %v2723
      %v2758 = vmul.f32 %v2434, %v2723
      %v2759 = vmul.f32 %v2435, %v2723
      %v2760 = vmul.f32 %v2436, %v2723
      %v2761 = vmul.f32 %v2437, %v2723
      %v2762 = vmul.f32 %v2438, %v2723
      %v2763 = vmul.f32 %v2439, %v2723
      %v2764 = vmul.f32 %v2440, %v2723
      %v2765 = vmul.f32 %v2441, %v2723
      %v2766 = vmul.f32 %v2442, %v2723
      %v2767 = vmul.f32 %v2443, %v2723
      %v2768 = vmul.f32 %v2444, %v2723
      %v2769 = vmul.f32 %v2445, %v2723
      %v2770 = vmul.f32 %v2446, %v2723
      %v2771 = vmul.f32 %v2447, %v2723
      %v2772 = vadd.f32 %v2672, %v2724
      %v2773 = vadd.f32 %v2673, %v2725
      %v2774 = vadd.f32 %v2674, %v2726
      %v2775 = vadd.f32 %v2675, %v2727
      %v2776 = vadd.f32 %v2676, %v2728
      %v2777 = vadd.f32 %v2677, %v2729
      %v2778 = vadd.f32 %v2678, %v2730
      %v2779 = vadd.f32 %v2679, %v2731
      %v2780 = vadd.f32 %v2680, %v2732
      %v2781 = vadd.f32 %v2681, %v2733
      %v2782 = vadd.f32 %v2682, %v2734
      %v2783 = vadd.f32 %v2683, %v2735
      %v2784 = vadd.f32 %v2684, %v2736
      %v2785 = vadd.f32 %v2685, %v2737
      %v2786 = vadd.f32 %v2686, %v2738
      %v2787 = vadd.f32 %v2687, %v2739
      %v2788 = vadd.f32 %v2688, %v2740
      %v2789 = vadd.f32 %v2689, %v2741
      %v2790 = vadd.f32 %v2690, %v2742
      %v2791 = vadd.f32 %v2691, %v2743
      %v2792 = vadd.f32 %v2692, %v2744
      %v2793 = vadd.f32 %v2693, %v2745
      %v2794 = vadd.f32 %v2694, %v2746
      %v2795 = vadd.f32 %v2695, %v2747
      %v2796 = vadd.f32 %v2696, %v2748
      %v2797 = vadd.f32 %v2697, %v2749
      %v2798 = vadd.f32 %v2698, %v2750
      %v2799 = vadd.f32 %v2699, %v2751
      %v2800 = vadd.f32 %v2700, %v2752
      %v2801 = vadd.f32 %v2701, %v2753
      %v2802 = vadd.f32 %v2702, %v2754
      %v2803 = vadd.f32 %v2703, %v2755
      %v2804 = vadd.f32 %v2704, %v2756
      %v2805 = vadd.f32 %v2705, %v2757
      %v2806 = vadd.f32 %v2706, %v2758
      %v2807 = vadd.f32 %v2707, %v2759
      %v2808 = vadd.f32 %v2708, %v2760
      %v2809 = vadd.f32 %v2709, %v2761
      %v2810 = vadd.f32 %v2710, %v2762
      %v2811 = vadd.f32 %v2711, %v2763
      %v2812 = vadd.f32 %v2712, %v2764
      %v2813 = vadd.f32 %v2713, %v2765
      %v2814 = vadd.f32 %v2714, %v2766
      %v2815 = vadd.f32 %v2715, %v2767
      %v2816 = vadd.f32 %v2716, %v2768
      %v2817 = vadd.f32 %v2717, %v2769
      %v2818 = vadd.f32 %v2718, %v2770
      %v2819 = vadd.f32 %v2719, %v2771
      %v2820 = vlaneseq
      %v2821 = vshrl.u32 %v2820, 7
      %v2822 = vsub.s32 7, %v2821
      %v2823 = vrot.slane %v2350, %v2822
      %v2824 = vmul.f32 %v2448, %v2823
      %v2825 = vmul.f32 %v2449, %v2823
      %v2826 = vmul.f32 %v2450, %v2823
      %v2827 = vmul.f32 %v2451, %v2823
      %v2828 = vmul.f32 %v2452, %v2823
      %v2829 = vmul.f32 %v2453, %v2823
      %v2830 = vmul.f32 %v2454, %v2823
      %v2831 = vmul.f32 %v2455, %v2823
      %v2832 = vmul.f32 %v2456, %v2823
      %v2833 = vmul.f32 %v2457, %v2823
      %v2834 = vmul.f32 %v2458, %v2823
      %v2835 = vmul.f32 %v2459, %v2823
      %v2836 = vmul.f32 %v2460, %v2823
      %v2837 = vmul.f32 %v2461, %v2823
      %v2838 = vmul.f32 %v2462, %v2823
      %v2839 = vmul.f32 %v2463, %v2823
      %v2840 = vmul.f32 %v2464, %v2823
      %v2841 = vmul.f32 %v2465, %v2823
      %v2842 = vmul.f32 %v2466, %v2823
      %v2843 = vmul.f32 %v2467, %v2823
      %v2844 = vmul.f32 %v2468, %v2823
      %v2845 = vmul.f32 %v2469, %v2823
      %v2846 = vmul.f32 %v2470, %v2823
      %v2847 = vmul.f32 %v2471, %v2823
      %v2848 = vmul.f32 %v2472, %v2823
      %v2849 = vmul.f32 %v2473, %v2823
      %v2850 = vmul.f32 %v2474, %v2823
      %v2851 = vmul.f32 %v2475, %v2823
      %v2852 = vmul.f32 %v2476, %v2823
      %v2853 = vmul.f32 %v2477, %v2823
      %v2854 = vmul.f32 %v2478, %v2823
      %v2855 = vmul.f32 %v2479, %v2823
      %v2856 = vmul.f32 %v2480, %v2823
      %v2857 = vmul.f32 %v2481, %v2823
      %v2858 = vmul.f32 %v2482, %v2823
      %v2859 = vmul.f32 %v2483, %v2823
      %v2860 = vmul.f32 %v2484, %v2823
      %v2861 = vmul.f32 %v2485, %v2823
      %v2862 = vmul.f32 %v2486, %v2823
      %v2863 = vmul.f32 %v2487, %v2823
      %v2864 = vmul.f32 %v2488, %v2823
      %v2865 = vmul.f32 %v2489, %v2823
      %v2866 = vmul.f32 %v2490, %v2823
      %v2867 = vmul.f32 %v2491, %v2823
      %v2868 = vmul.f32 %v2492, %v2823
      %v2869 = vmul.f32 %v2493, %v2823
      %v2870 = vmul.f32 %v2494, %v2823
      %v2871 = vmul.f32 %v2495, %v2823
      %v2872 = vadd.f32 %v2772, %v2824
      %v2873 = vadd.f32 %v2773, %v2825
      %v2874 = vadd.f32 %v2774, %v2826
      %v2875 = vadd.f32 %v2775, %v2827
      %v2876 = vadd.f32 %v2776, %v2828
      %v2877 = vadd.f32 %v2777, %v2829
      %v2878 = vadd.f32 %v2778, %v2830
      %v2879 = vadd.f32 %v2779, %v2831
      %v2880 = vadd.f32 %v2780, %v2832
      %v2881 = vadd.f32 %v2781, %v2833
      %v2882 = vadd.f32 %v2782, %v2834
      %v2883 = vadd.f32 %v2783, %v2835
      %v2884 = vadd.f32 %v2784, %v2836
      %v2885 = vadd.f32 %v2785, %v2837
      %v2886 = vadd.f32 %v2786, %v2838
      %v2887 = vadd.f32 %v2787, %v2839
      %v2888 = vadd.f32 %v2788, %v2840
      %v2889 = vadd.f32 %v2789, %v2841
      %v2890 = vadd.f32 %v2790, %v2842
      %v2891 = vadd.f32 %v2791, %v2843
      %v2892 = vadd.f32 %v2792, %v2844
      %v2893 = vadd.f32 %v2793, %v2845
      %v2894 = vadd.f32 %v2794, %v2846
      %v2895 = vadd.f32 %v2795, %v2847
      %v2896 = vadd.f32 %v2796, %v2848
      %v2897 = vadd.f32 %v2797, %v2849
      %v2898 = vadd.f32 %v2798, %v2850
      %v2899 = vadd.f32 %v2799, %v2851
      %v2900 = vadd.f32 %v2800, %v2852
      %v2901 = vadd.f32 %v2801, %v2853
      %v2902 = vadd.f32 %v2802, %v2854
      %v2903 = vadd.f32 %v2803, %v2855
      %v2904 = vadd.f32 %v2804, %v2856
      %v2905 = vadd.f32 %v2805, %v2857
      %v2906 = vadd.f32 %v2806, %v2858
      %v2907 = vadd.f32 %v2807, %v2859
      %v2908 = vadd.f32 %v2808, %v2860
      %v2909 = vadd.f32 %v2809, %v2861
      %v2910 = vadd.f32 %v2810, %v2862
      %v2911 = vadd.f32 %v2811, %v2863
      %v2912 = vadd.f32 %v2812, %v2864
      %v2913 = vadd.f32 %v2813, %v2865
      %v2914 = vadd.f32 %v2814, %v2866
      %v2915 = vadd.f32 %v2815, %v2867
      %v2916 = vadd.f32 %v2816, %v2868
      %v2917 = vadd.f32 %v2817, %v2869
      %v2918 = vadd.f32 %v2818, %v2870
      %v2919 = vadd.f32 %v2819, %v2871
      %v2968 = vrot.slane %v2872, 1
      %v2969 = vrot.slane %v2873, 1
      %v2970 = vsel %vm1514, %v2968, %v2969
      %v2971 = vrot.slane %v2874, 1
      %v2972 = vsel %vm1514, %v2969, %v2971
      %v2973 = vrot.slane %v2875, 1
      %v2974 = vrot.slane %v2876, 1
      %v2975 = vsel %vm1514, %v2973, %v2974
      %v2976 = vrot.slane %v2877, 1
      %v2977 = vsel %vm1514, %v2974, %v2976
      %v2978 = vrot.slane %v2878, 1
      %v2979 = vrot.slane %v2879, 1
      %v2980 = vsel %vm1514, %v2978, %v2979
      %v2981 = vrot.slane %v2880, 1
      %v2982 = vsel %vm1514, %v2979, %v2981
      %v2983 = vrot.slane %v2881, 1
      %v2984 = vrot.slane %v2882, 1
      %v2985 = vsel %vm1514, %v2983, %v2984
      %v2986 = vrot.slane %v2883, 1
      %v2987 = vsel %vm1514, %v2984, %v2986
      %v2988 = vrot.slane %v2884, 1
      %v2989 = vrot.slane %v2885, 1
      %v2990 = vsel %vm1514, %v2988, %v2989
      %v2991 = vrot.slane %v2886, 1
      %v2992 = vsel %vm1514, %v2989, %v2991
      %v2993 = vrot.slane %v2887, 1
      %v2994 = vrot.slane %v2888, 1
      %v2995 = vsel %vm1514, %v2993, %v2994
      %v2996 = vrot.slane %v2889, 1
      %v2997 = vsel %vm1514, %v2994, %v2996
      %v2998 = vrot.slane %v2890, 1
      %v2999 = vrot.slane %v2891, 1
      %v3000 = vsel %vm1514, %v2998, %v2999
      %v3001 = vrot.slane %v2892, 1
      %v3002 = vsel %vm1514, %v2999, %v3001
      %v3003 = vrot.slane %v2893, 1
      %v3004 = vrot.slane %v2894, 1
      %v3005 = vsel %vm1514, %v3003, %v3004
      %v3006 = vrot.slane %v2895, 1
      %v3007 = vsel %vm1514, %v3004, %v3006
      %v3008 = vrot.slane %v2896, 1
      %v3009 = vrot.slane %v2897, 1
      %v3010 = vsel %vm1514, %v3008, %v3009
      %v3011 = vrot.slane %v2898, 1
      %v3012 = vsel %vm1514, %v3009, %v3011
      %v3013 = vrot.slane %v2899, 1
      %v3014 = vrot.slane %v2900, 1
      %v3015 = vsel %vm1514, %v3013, %v3014
      %v3016 = vrot.slane %v2901, 1
      %v3017 = vsel %vm1514, %v3014, %v3016
      %v3018 = vrot.slane %v2902, 1
      %v3019 = vrot.slane %v2903, 1
      %v3020 = vsel %vm1514, %v3018, %v3019
      %v3021 = vrot.slane %v2904, 1
      %v3022 = vsel %vm1514, %v3019, %v3021
      %v3023 = vrot.slane %v2905, 1
      %v3024 = vrot.slane %v2906, 1
      %v3025 = vsel %vm1514, %v3023, %v3024
      %v3026 = vrot.slane %v2907, 1
      %v3027 = vsel %vm1514, %v3024, %v3026
      %v3028 = vrot.slane %v2908, 1
      %v3029 = vrot.slane %v2909, 1
      %v3030 = vsel %vm1514, %v3028, %v3029
      %v3031 = vrot.slane %v2910, 1
      %v3032 = vsel %vm1514, %v3029, %v3031
      %v3033 = vrot.slane %v2911, 1
      %v3034 = vrot.slane %v2912, 1
      %v3035 = vsel %vm1514, %v3033, %v3034
      %v3036 = vrot.slane %v2913, 1
      %v3037 = vsel %vm1514, %v3034, %v3036
      %v3038 = vrot.slane %v2914, 1
      %v3039 = vrot.slane %v2915, 1
      %v3040 = vsel %vm1514, %v3038, %v3039
      %v3041 = vrot.slane %v2916, 1
      %v3042 = vsel %vm1514, %v3039, %v3041
      %v3043 = vrot.slane %v2917, 1
      %v3044 = vrot.slane %v2918, 1
      %v3045 = vsel %vm1514, %v3043, %v3044
      %v3046 = vrot.slane %v2919, 1
      %v3047 = vsel %vm1514, %v3044, %v3046
      %v3080 = vadd.f32 %v2636, %v2970
      %v3081 = vadd.f32 %v2637, %v2972
      %v3082 = vadd.f32 %v2638, %v2975
      %v3083 = vadd.f32 %v2639, %v2977
      %v3084 = vadd.f32 %v2640, %v2980
      %v3085 = vadd.f32 %v2641, %v2982
      %v3086 = vadd.f32 %v2642, %v2985
      %v3087 = vadd.f32 %v2643, %v2987
      %v3088 = vadd.f32 %v2644, %v2990
      %v3089 = vadd.f32 %v2645, %v2992
      %v3090 = vadd.f32 %v2646, %v2995
      %v3091 = vadd.f32 %v2647, %v2997
      %v3092 = vadd.f32 %v2648, %v3000
      %v3093 = vadd.f32 %v2649, %v3002
      %v3094 = vadd.f32 %v2650, %v3005
      %v3095 = vadd.f32 %v2651, %v3007
      %v3096 = vadd.f32 %v2652, %v3010
      %v3097 = vadd.f32 %v2653, %v3012
      %v3098 = vadd.f32 %v2654, %v3015
      %v3099 = vadd.f32 %v2655, %v3017
      %v3100 = vadd.f32 %v2656, %v3020
      %v3101 = vadd.f32 %v2657, %v3022
      %v3102 = vadd.f32 %v2658, %v3025
      %v3103 = vadd.f32 %v2659, %v3027
      %v3104 = vadd.f32 %v2660, %v3030
      %v3105 = vadd.f32 %v2661, %v3032
      %v3106 = vadd.f32 %v2662, %v3035
      %v3107 = vadd.f32 %v2663, %v3037
      %v3108 = vadd.f32 %v2664, %v3040
      %v3109 = vadd.f32 %v2665, %v3042
      %v3110 = vadd.f32 %v2666, %v3045
      %v3111 = vadd.f32 %v2667, %v3047
      %v3112 = vlaneseq
      %v3113 = vshrl.u32 %v3112, 7
      %v3114 = vsub.s32 2, %v3113
      %v3115 = vrot.slane %v2350, %v3114
      %v3116 = vmul.f32 %v2352, %v3115
      %v3117 = vmul.f32 %v2353, %v3115
      %v3118 = vmul.f32 %v2354, %v3115
      %v3119 = vmul.f32 %v2355, %v3115
      %v3120 = vmul.f32 %v2356, %v3115
      %v3121 = vmul.f32 %v2357, %v3115
      %v3122 = vmul.f32 %v2358, %v3115
      %v3123 = vmul.f32 %v2359, %v3115
      %v3124 = vmul.f32 %v2360, %v3115
      %v3125 = vmul.f32 %v2361, %v3115
      %v3126 = vmul.f32 %v2362, %v3115
      %v3127 = vmul.f32 %v2363, %v3115
      %v3128 = vmul.f32 %v2364, %v3115
      %v3129 = vmul.f32 %v2365, %v3115
      %v3130 = vmul.f32 %v2366, %v3115
      %v3131 = vmul.f32 %v2367, %v3115
      %v3132 = vmul.f32 %v2368, %v3115
      %v3133 = vmul.f32 %v2369, %v3115
      %v3134 = vmul.f32 %v2370, %v3115
      %v3135 = vmul.f32 %v2371, %v3115
      %v3136 = vmul.f32 %v2372, %v3115
      %v3137 = vmul.f32 %v2373, %v3115
      %v3138 = vmul.f32 %v2374, %v3115
      %v3139 = vmul.f32 %v2375, %v3115
      %v3140 = vmul.f32 %v2376, %v3115
      %v3141 = vmul.f32 %v2377, %v3115
      %v3142 = vmul.f32 %v2378, %v3115
      %v3143 = vmul.f32 %v2379, %v3115
      %v3144 = vmul.f32 %v2380, %v3115
      %v3145 = vmul.f32 %v2381, %v3115
      %v3146 = vmul.f32 %v2382, %v3115
      %v3147 = vmul.f32 %v2383, %v3115
      %v3148 = vmul.f32 %v2384, %v3115
      %v3149 = vmul.f32 %v2385, %v3115
      %v3150 = vmul.f32 %v2386, %v3115
      %v3151 = vmul.f32 %v2387, %v3115
      %v3152 = vmul.f32 %v2388, %v3115
      %v3153 = vmul.f32 %v2389, %v3115
      %v3154 = vmul.f32 %v2390, %v3115
      %v3155 = vmul.f32 %v2391, %v3115
      %v3156 = vmul.f32 %v2392, %v3115
      %v3157 = vmul.f32 %v2393, %v3115
      %v3158 = vmul.f32 %v2394, %v3115
      %v3159 = vmul.f32 %v2395, %v3115
      %v3160 = vmul.f32 %v2396, %v3115
      %v3161 = vmul.f32 %v2397, %v3115
      %v3162 = vmul.f32 %v2398, %v3115
      %v3163 = vmul.f32 %v2399, %v3115
      %v3164 = vlaneseq
      %v3165 = vshrl.u32 %v3164, 7
      %v3166 = vsub.s32 5, %v3165
      %v3167 = vrot.slane %v2350, %v3166
      %v3168 = vmul.f32 %v2400, %v3167
      %v3169 = vmul.f32 %v2401, %v3167
      %v3170 = vmul.f32 %v2402, %v3167
      %v3171 = vmul.f32 %v2403, %v3167
      %v3172 = vmul.f32 %v2404, %v3167
      %v3173 = vmul.f32 %v2405, %v3167
      %v3174 = vmul.f32 %v2406, %v3167
      %v3175 = vmul.f32 %v2407, %v3167
      %v3176 = vmul.f32 %v2408, %v3167
      %v3177 = vmul.f32 %v2409, %v3167
      %v3178 = vmul.f32 %v2410, %v3167
      %v3179 = vmul.f32 %v2411, %v3167
      %v3180 = vmul.f32 %v2412, %v3167
      %v3181 = vmul.f32 %v2413, %v3167
      %v3182 = vmul.f32 %v2414, %v3167
      %v3183 = vmul.f32 %v2415, %v3167
      %v3184 = vmul.f32 %v2416, %v3167
      %v3185 = vmul.f32 %v2417, %v3167
      %v3186 = vmul.f32 %v2418, %v3167
      %v3187 = vmul.f32 %v2419, %v3167
      %v3188 = vmul.f32 %v2420, %v3167
      %v3189 = vmul.f32 %v2421, %v3167
      %v3190 = vmul.f32 %v2422, %v3167
      %v3191 = vmul.f32 %v2423, %v3167
      %v3192 = vmul.f32 %v2424, %v3167
      %v3193 = vmul.f32 %v2425, %v3167
      %v3194 = vmul.f32 %v2426, %v3167
      %v3195 = vmul.f32 %v2427, %v3167
      %v3196 = vmul.f32 %v2428, %v3167
      %v3197 = vmul.f32 %v2429, %v3167
      %v3198 = vmul.f32 %v2430, %v3167
      %v3199 = vmul.f32 %v2431, %v3167
      %v3200 = vmul.f32 %v2432, %v3167
      %v3201 = vmul.f32 %v2433, %v3167
      %v3202 = vmul.f32 %v2434, %v3167
      %v3203 = vmul.f32 %v2435, %v3167
      %v3204 = vmul.f32 %v2436, %v3167
      %v3205 = vmul.f32 %v2437, %v3167
      %v3206 = vmul.f32 %v2438, %v3167
      %v3207 = vmul.f32 %v2439, %v3167
      %v3208 = vmul.f32 %v2440, %v3167
      %v3209 = vmul.f32 %v2441, %v3167
      %v3210 = vmul.f32 %v2442, %v3167
      %v3211 = vmul.f32 %v2443, %v3167
      %v3212 = vmul.f32 %v2444, %v3167
      %v3213 = vmul.f32 %v2445, %v3167
      %v3214 = vmul.f32 %v2446, %v3167
      %v3215 = vmul.f32 %v2447, %v3167
      %v3216 = vadd.f32 %v3116, %v3168
      %v3217 = vadd.f32 %v3117, %v3169
      %v3218 = vadd.f32 %v3118, %v3170
      %v3219 = vadd.f32 %v3119, %v3171
      %v3220 = vadd.f32 %v3120, %v3172
      %v3221 = vadd.f32 %v3121, %v3173
      %v3222 = vadd.f32 %v3122, %v3174
      %v3223 = vadd.f32 %v3123, %v3175
      %v3224 = vadd.f32 %v3124, %v3176
      %v3225 = vadd.f32 %v3125, %v3177
      %v3226 = vadd.f32 %v3126, %v3178
      %v3227 = vadd.f32 %v3127, %v3179
      %v3228 = vadd.f32 %v3128, %v3180
      %v3229 = vadd.f32 %v3129, %v3181
      %v3230 = vadd.f32 %v3130, %v3182
      %v3231 = vadd.f32 %v3131, %v3183
      %v3232 = vadd.f32 %v3132, %v3184
      %v3233 = vadd.f32 %v3133, %v3185
      %v3234 = vadd.f32 %v3134, %v3186
      %v3235 = vadd.f32 %v3135, %v3187
      %v3236 = vadd.f32 %v3136, %v3188
      %v3237 = vadd.f32 %v3137, %v3189
      %v3238 = vadd.f32 %v3138, %v3190
      %v3239 = vadd.f32 %v3139, %v3191
      %v3240 = vadd.f32 %v3140, %v3192
      %v3241 = vadd.f32 %v3141, %v3193
      %v3242 = vadd.f32 %v3142, %v3194
      %v3243 = vadd.f32 %v3143, %v3195
      %v3244 = vadd.f32 %v3144, %v3196
      %v3245 = vadd.f32 %v3145, %v3197
      %v3246 = vadd.f32 %v3146, %v3198
      %v3247 = vadd.f32 %v3147, %v3199
      %v3248 = vadd.f32 %v3148, %v3200
      %v3249 = vadd.f32 %v3149, %v3201
      %v3250 = vadd.f32 %v3150, %v3202
      %v3251 = vadd.f32 %v3151, %v3203
      %v3252 = vadd.f32 %v3152, %v3204
      %v3253 = vadd.f32 %v3153, %v3205
      %v3254 = vadd.f32 %v3154, %v3206
      %v3255 = vadd.f32 %v3155, %v3207
      %v3256 = vadd.f32 %v3156, %v3208
      %v3257 = vadd.f32 %v3157, %v3209
      %v3258 = vadd.f32 %v3158, %v3210
      %v3259 = vadd.f32 %v3159, %v3211
      %v3260 = vadd.f32 %v3160, %v3212
      %v3261 = vadd.f32 %v3161, %v3213
      %v3262 = vadd.f32 %v3162, %v3214
      %v3263 = vadd.f32 %v3163, %v3215
      %v3264 = vlaneseq
      %v3265 = vshrl.u32 %v3264, 7
      %v3266 = vsub.s32 0, %v3265
      %v3267 = vrot.slane %v2351, %v3266
      %v3268 = vmul.f32 %v2448, %v3267
      %v3269 = vmul.f32 %v2449, %v3267
      %v3270 = vmul.f32 %v2450, %v3267
      %v3271 = vmul.f32 %v2451, %v3267
      %v3272 = vmul.f32 %v2452, %v3267
      %v3273 = vmul.f32 %v2453, %v3267
      %v3274 = vmul.f32 %v2454, %v3267
      %v3275 = vmul.f32 %v2455, %v3267
      %v3276 = vmul.f32 %v2456, %v3267
      %v3277 = vmul.f32 %v2457, %v3267
      %v3278 = vmul.f32 %v2458, %v3267
      %v3279 = vmul.f32 %v2459, %v3267
      %v3280 = vmul.f32 %v2460, %v3267
      %v3281 = vmul.f32 %v2461, %v3267
      %v3282 = vmul.f32 %v2462, %v3267
      %v3283 = vmul.f32 %v2463, %v3267
      %v3284 = vmul.f32 %v2464, %v3267
      %v3285 = vmul.f32 %v2465, %v3267
      %v3286 = vmul.f32 %v2466, %v3267
      %v3287 = vmul.f32 %v2467, %v3267
      %v3288 = vmul.f32 %v2468, %v3267
      %v3289 = vmul.f32 %v2469, %v3267
      %v3290 = vmul.f32 %v2470, %v3267
      %v3291 = vmul.f32 %v2471, %v3267
      %v3292 = vmul.f32 %v2472, %v3267
      %v3293 = vmul.f32 %v2473, %v3267
      %v3294 = vmul.f32 %v2474, %v3267
      %v3295 = vmul.f32 %v2475, %v3267
      %v3296 = vmul.f32 %v2476, %v3267
      %v3297 = vmul.f32 %v2477, %v3267
      %v3298 = vmul.f32 %v2478, %v3267
      %v3299 = vmul.f32 %v2479, %v3267
      %v3300 = vmul.f32 %v2480, %v3267
      %v3301 = vmul.f32 %v2481, %v3267
      %v3302 = vmul.f32 %v2482, %v3267
      %v3303 = vmul.f32 %v2483, %v3267
      %v3304 = vmul.f32 %v2484, %v3267
      %v3305 = vmul.f32 %v2485, %v3267
      %v3306 = vmul.f32 %v2486, %v3267
      %v3307 = vmul.f32 %v2487, %v3267
      %v3308 = vmul.f32 %v2488, %v3267
      %v3309 = vmul.f32 %v2489, %v3267
      %v3310 = vmul.f32 %v2490, %v3267
      %v3311 = vmul.f32 %v2491, %v3267
      %v3312 = vmul.f32 %v2492, %v3267
      %v3313 = vmul.f32 %v2493, %v3267
      %v3314 = vmul.f32 %v2494, %v3267
      %v3315 = vmul.f32 %v2495, %v3267
      %v3316 = vadd.f32 %v3216, %v3268
      %v3317 = vadd.f32 %v3217, %v3269
      %v3318 = vadd.f32 %v3218, %v3270
      %v3319 = vadd.f32 %v3219, %v3271
      %v3320 = vadd.f32 %v3220, %v3272
      %v3321 = vadd.f32 %v3221, %v3273
      %v3322 = vadd.f32 %v3222, %v3274
      %v3323 = vadd.f32 %v3223, %v3275
      %v3324 = vadd.f32 %v3224, %v3276
      %v3325 = vadd.f32 %v3225, %v3277
      %v3326 = vadd.f32 %v3226, %v3278
      %v3327 = vadd.f32 %v3227, %v3279
      %v3328 = vadd.f32 %v3228, %v3280
      %v3329 = vadd.f32 %v3229, %v3281
      %v3330 = vadd.f32 %v3230, %v3282
      %v3331 = vadd.f32 %v3231, %v3283
      %v3332 = vadd.f32 %v3232, %v3284
      %v3333 = vadd.f32 %v3233, %v3285
      %v3334 = vadd.f32 %v3234, %v3286
      %v3335 = vadd.f32 %v3235, %v3287
      %v3336 = vadd.f32 %v3236, %v3288
      %v3337 = vadd.f32 %v3237, %v3289
      %v3338 = vadd.f32 %v3238, %v3290
      %v3339 = vadd.f32 %v3239, %v3291
      %v3340 = vadd.f32 %v3240, %v3292
      %v3341 = vadd.f32 %v3241, %v3293
      %v3342 = vadd.f32 %v3242, %v3294
      %v3343 = vadd.f32 %v3243, %v3295
      %v3344 = vadd.f32 %v3244, %v3296
      %v3345 = vadd.f32 %v3245, %v3297
      %v3346 = vadd.f32 %v3246, %v3298
      %v3347 = vadd.f32 %v3247, %v3299
      %v3348 = vadd.f32 %v3248, %v3300
      %v3349 = vadd.f32 %v3249, %v3301
      %v3350 = vadd.f32 %v3250, %v3302
      %v3351 = vadd.f32 %v3251, %v3303
      %v3352 = vadd.f32 %v3252, %v3304
      %v3353 = vadd.f32 %v3253, %v3305
      %v3354 = vadd.f32 %v3254, %v3306
      %v3355 = vadd.f32 %v3255, %v3307
      %v3356 = vadd.f32 %v3256, %v3308
      %v3357 = vadd.f32 %v3257, %v3309
      %v3358 = vadd.f32 %v3258, %v3310
      %v3359 = vadd.f32 %v3259, %v3311
      %v3360 = vadd.f32 %v3260, %v3312
      %v3361 = vadd.f32 %v3261, %v3313
      %v3362 = vadd.f32 %v3262, %v3314
      %v3363 = vadd.f32 %v3263, %v3315
      %v3412 = vrot.slane %v3316, 2
      %v3413 = vrot.slane %v3317, 2
      %v3414 = vsel %vm1959, %v3412, %v3413
      %v3415 = vrot.slane %v3318, 2
      %v3416 = vsel %vm1959, %v3413, %v3415
      %v3417 = vrot.slane %v3319, 2
      %v3418 = vrot.slane %v3320, 2
      %v3419 = vsel %vm1959, %v3417, %v3418
      %v3420 = vrot.slane %v3321, 2
      %v3421 = vsel %vm1959, %v3418, %v3420
      %v3422 = vrot.slane %v3322, 2
      %v3423 = vrot.slane %v3323, 2
      %v3424 = vsel %vm1959, %v3422, %v3423
      %v3425 = vrot.slane %v3324, 2
      %v3426 = vsel %vm1959, %v3423, %v3425
      %v3427 = vrot.slane %v3325, 2
      %v3428 = vrot.slane %v3326, 2
      %v3429 = vsel %vm1959, %v3427, %v3428
      %v3430 = vrot.slane %v3327, 2
      %v3431 = vsel %vm1959, %v3428, %v3430
      %v3432 = vrot.slane %v3328, 2
      %v3433 = vrot.slane %v3329, 2
      %v3434 = vsel %vm1959, %v3432, %v3433
      %v3435 = vrot.slane %v3330, 2
      %v3436 = vsel %vm1959, %v3433, %v3435
      %v3437 = vrot.slane %v3331, 2
      %v3438 = vrot.slane %v3332, 2
      %v3439 = vsel %vm1959, %v3437, %v3438
      %v3440 = vrot.slane %v3333, 2
      %v3441 = vsel %vm1959, %v3438, %v3440
      %v3442 = vrot.slane %v3334, 2
      %v3443 = vrot.slane %v3335, 2
      %v3444 = vsel %vm1959, %v3442, %v3443
      %v3445 = vrot.slane %v3336, 2
      %v3446 = vsel %vm1959, %v3443, %v3445
      %v3447 = vrot.slane %v3337, 2
      %v3448 = vrot.slane %v3338, 2
      %v3449 = vsel %vm1959, %v3447, %v3448
      %v3450 = vrot.slane %v3339, 2
      %v3451 = vsel %vm1959, %v3448, %v3450
      %v3452 = vrot.slane %v3340, 2
      %v3453 = vrot.slane %v3341, 2
      %v3454 = vsel %vm1959, %v3452, %v3453
      %v3455 = vrot.slane %v3342, 2
      %v3456 = vsel %vm1959, %v3453, %v3455
      %v3457 = vrot.slane %v3343, 2
      %v3458 = vrot.slane %v3344, 2
      %v3459 = vsel %vm1959, %v3457, %v3458
      %v3460 = vrot.slane %v3345, 2
      %v3461 = vsel %vm1959, %v3458, %v3460
      %v3462 = vrot.slane %v3346, 2
      %v3463 = vrot.slane %v3347, 2
      %v3464 = vsel %vm1959, %v3462, %v3463
      %v3465 = vrot.slane %v3348, 2
      %v3466 = vsel %vm1959, %v3463, %v3465
      %v3467 = vrot.slane %v3349, 2
      %v3468 = vrot.slane %v3350, 2
      %v3469 = vsel %vm1959, %v3467, %v3468
      %v3470 = vrot.slane %v3351, 2
      %v3471 = vsel %vm1959, %v3468, %v3470
      %v3472 = vrot.slane %v3352, 2
      %v3473 = vrot.slane %v3353, 2
      %v3474 = vsel %vm1959, %v3472, %v3473
      %v3475 = vrot.slane %v3354, 2
      %v3476 = vsel %vm1959, %v3473, %v3475
      %v3477 = vrot.slane %v3355, 2
      %v3478 = vrot.slane %v3356, 2
      %v3479 = vsel %vm1959, %v3477, %v3478
      %v3480 = vrot.slane %v3357, 2
      %v3481 = vsel %vm1959, %v3478, %v3480
      %v3482 = vrot.slane %v3358, 2
      %v3483 = vrot.slane %v3359, 2
      %v3484 = vsel %vm1959, %v3482, %v3483
      %v3485 = vrot.slane %v3360, 2
      %v3486 = vsel %vm1959, %v3483, %v3485
      %v3487 = vrot.slane %v3361, 2
      %v3488 = vrot.slane %v3362, 2
      %v3489 = vsel %vm1959, %v3487, %v3488
      %v3490 = vrot.slane %v3363, 2
      %v3491 = vsel %vm1959, %v3488, %v3490
      %v3524 = vadd.f32 %v3080, %v3414
      %v3525 = vadd.f32 %v3081, %v3416
      %v3526 = vadd.f32 %v3082, %v3419
      %v3527 = vadd.f32 %v3083, %v3421
      %v3528 = vadd.f32 %v3084, %v3424
      %v3529 = vadd.f32 %v3085, %v3426
      %v3530 = vadd.f32 %v3086, %v3429
      %v3531 = vadd.f32 %v3087, %v3431
      %v3532 = vadd.f32 %v3088, %v3434
      %v3533 = vadd.f32 %v3089, %v3436
      %v3534 = vadd.f32 %v3090, %v3439
      %v3535 = vadd.f32 %v3091, %v3441
      %v3536 = vadd.f32 %v3092, %v3444
      %v3537 = vadd.f32 %v3093, %v3446
      %v3538 = vadd.f32 %v3094, %v3449
      %v3539 = vadd.f32 %v3095, %v3451
      %v3540 = vadd.f32 %v3096, %v3454
      %v3541 = vadd.f32 %v3097, %v3456
      %v3542 = vadd.f32 %v3098, %v3459
      %v3543 = vadd.f32 %v3099, %v3461
      %v3544 = vadd.f32 %v3100, %v3464
      %v3545 = vadd.f32 %v3101, %v3466
      %v3546 = vadd.f32 %v3102, %v3469
      %v3547 = vadd.f32 %v3103, %v3471
      %v3548 = vadd.f32 %v3104, %v3474
      %v3549 = vadd.f32 %v3105, %v3476
      %v3550 = vadd.f32 %v3106, %v3479
      %v3551 = vadd.f32 %v3107, %v3481
      %v3552 = vadd.f32 %v3108, %v3484
      %v3553 = vadd.f32 %v3109, %v3486
      %v3554 = vadd.f32 %v3110, %v3489
      %v3555 = vadd.f32 %v3111, %v3491
      %s3556 = scalar_lea.vmem %s5, 1
      %v3557 = vld [vmem:[%s3556] sm:$0x1]
      %v3559 = vlaneseq
      %v3560 = vshrl.u32 %v3559, 7
      %v3561 = vsub.s32 0, %v3560
      %v3562 = vrot.slane %v3557, %v3561
      %v3564 = vadd.f32 %v3524, %v3562
      %v3565 = vadd.f32 %v3525, %v3562
      %v3566 = vadd.f32 %v3526, %v3562
      %v3567 = vadd.f32 %v3527, %v3562
      %v3568 = vadd.f32 %v3528, %v3562
      %v3569 = vadd.f32 %v3529, %v3562
      %v3570 = vadd.f32 %v3530, %v3562
      %v3571 = vadd.f32 %v3531, %v3562
      %v3572 = vadd.f32 %v3532, %v3562
      %v3573 = vadd.f32 %v3533, %v3562
      %v3574 = vadd.f32 %v3534, %v3562
      %v3575 = vadd.f32 %v3535, %v3562
      %v3576 = vadd.f32 %v3536, %v3562
      %v3577 = vadd.f32 %v3537, %v3562
      %v3578 = vadd.f32 %v3538, %v3562
      %v3579 = vadd.f32 %v3539, %v3562
      %v3580 = vadd.f32 %v3540, %v3562
      %v3581 = vadd.f32 %v3541, %v3562
      %v3582 = vadd.f32 %v3542, %v3562
      %v3583 = vadd.f32 %v3543, %v3562
      %v3584 = vadd.f32 %v3544, %v3562
      %v3585 = vadd.f32 %v3545, %v3562
      %v3586 = vadd.f32 %v3546, %v3562
      %v3587 = vadd.f32 %v3547, %v3562
      %v3588 = vadd.f32 %v3548, %v3562
      %v3589 = vadd.f32 %v3549, %v3562
      %v3590 = vadd.f32 %v3550, %v3562
      %v3591 = vadd.f32 %v3551, %v3562
      %v3592 = vadd.f32 %v3552, %v3562
      %v3593 = vadd.f32 %v3553, %v3562
      %v3594 = vadd.f32 %v3554, %v3562
      %v3595 = vadd.f32 %v3555, %v3562
      %v3596 = vld [vmem:[%s6] sm:$0x3]
      %v3597 = vld [vmem:[%s7] sm:$0x1]
      %v3599 = vlaneseq
      %v3600 = vshrl.u32 %v3599, 7
      %v3601 = vsub.s32 0, %v3600
      %v3602 = vrot.slane %v3597, %v3601
      %v3605 = vsel %vm489, %v625, 0
      %v3608 = vsel %vm489, %v626, 0
      %v3611 = vsel %vm489, %v627, 0
      %v3614 = vsel %vm489, %v628, 0
      %v3617 = vsel %vm489, %v629, 0
      %v3620 = vsel %vm489, %v630, 0
      %v3623 = vsel %vm489, %v631, 0
      %v3626 = vsel %vm489, %v632, 0
      %v3629 = vsel %vm489, %v633, 0
      %v3632 = vsel %vm489, %v634, 0
      %v3635 = vsel %vm489, %v635, 0
      %v3638 = vsel %vm489, %v636, 0
      %v3641 = vsel %vm489, %v637, 0
      %v3644 = vsel %vm489, %v638, 0
      %v3647 = vsel %vm489, %v639, 0
      %v3650 = vsel %vm489, %v640, 0
      %v3653 = vsel %vm697, %v3596, 0
      %3655 = vmatprep.subr.bf16.mxu0 0
      %3656 = vmatpush1.bf16.msra.mxu0 %v3653
      %3657 = vmatprep.subr.bf16.mxu0 0
      %3658 = vmatpush1.bf16.msra.mxu0 0
      %3659 = vmatprep.subr.bf16.mxu0 0
      %3660 = vmatpush1.bf16.msra.mxu0 0
      %3661 = vmatprep.subr.bf16.mxu0 0
      %3662 = vmatpush1.bf16.msra.mxu0 0
      %3663 = vmatprep.subr.bf16.mxu0 0
      %3664 = vmatpush1.bf16.msra.mxu0 0
      %3665 = vmatprep.subr.bf16.mxu0 0
      %3666 = vmatpush1.bf16.msra.mxu0 0
      %3667 = vmatprep.subr.bf16.mxu0 0
      %3668 = vmatpush1.bf16.msra.mxu0 0
      %3669 = vmatprep.subr.bf16.mxu0 0
      %3670 = vmatpush1.bf16.msra.mxu0 0
      %3671 = vmatprep.subr.bf16.mxu0 0
      %3672 = vmatpush1.bf16.msra.mxu0 0
      %3673 = vmatprep.subr.bf16.mxu0 0
      %3674 = vmatpush1.bf16.msra.mxu0 0
      %3675 = vmatprep.subr.bf16.mxu0 0
      %3676 = vmatpush1.bf16.msra.mxu0 0
      %3677 = vmatprep.subr.bf16.mxu0 0
      %3678 = vmatpush1.bf16.msra.mxu0 0
      %3679 = vmatprep.subr.bf16.mxu0 0
      %3680 = vmatpush1.bf16.msra.mxu0 0
      %3681 = vmatprep.subr.bf16.mxu0 0
      %3682 = vmatpush1.bf16.msra.mxu0 0
      %3683 = vmatprep.subr.bf16.mxu0 0
      %3684 = vmatpush1.bf16.msra.mxu0 0
      %3685 = vmatprep.subr.bf16.mxu0 0
      %3686 = vmatpush1.bf16.msra.mxu0 0
      %3687 = vmatprep.mubr.bf16.mxu0 0
      %3688 = vmatmul.mubr.bf16.gmra.mrb[0].mxu0 %v3605
      %v3689 = vpop.f32.mrb[0].mxu0
      %v3690 = vadd.f32 %v3602, %v3689
      %v3691 = vpop.f32.mrb[0].mxu0
      %v3692 = vpop.f32.mrb[0].mxu0
      %v3693 = vadd.f32 %v3602, %v3692
      %v3694 = vpop.f32.mrb[0].mxu0
      %3695 = vmatprep.mubr.bf16.mxu0 0
      %3696 = vmatmul.mubr.bf16.gmra.mrb[0].mxu0 %v3608
      %v3697 = vpop.f32.mrb[0].mxu0
      %v3698 = vadd.f32 %v3602, %v3697
      %v3699 = vpop.f32.mrb[0].mxu0
      %v3700 = vpop.f32.mrb[0].mxu0
      %v3701 = vadd.f32 %v3602, %v3700
      %v3702 = vpop.f32.mrb[0].mxu0
      %3703 = vmatprep.mubr.bf16.mxu0 0
      %3704 = vmatmul.mubr.bf16.gmra.mrb[0].mxu0 %v3611
      %v3705 = vpop.f32.mrb[0].mxu0
      %v3706 = vadd.f32 %v3602, %v3705
      %v3707 = vpop.f32.mrb[0].mxu0
      %v3708 = vpop.f32.mrb[0].mxu0
      %v3709 = vadd.f32 %v3602, %v3708
      %v3710 = vpop.f32.mrb[0].mxu0
      %3711 = vmatprep.mubr.bf16.mxu0 0
      %3712 = vmatmul.mubr.bf16.gmra.mrb[0].mxu0 %v3614
      %v3713 = vpop.f32.mrb[0].mxu0
      %v3714 = vadd.f32 %v3602, %v3713
      %v3715 = vpop.f32.mrb[0].mxu0
      %v3716 = vpop.f32.mrb[0].mxu0
      %v3717 = vadd.f32 %v3602, %v3716
      %v3718 = vpop.f32.mrb[0].mxu0
      %3719 = vmatprep.mubr.bf16.mxu0 0
      %3720 = vmatmul.mubr.bf16.gmra.mrb[0].mxu0 %v3617
      %v3721 = vpop.f32.mrb[0].mxu0
      %v3722 = vadd.f32 %v3602, %v3721
      %v3723 = vpop.f32.mrb[0].mxu0
      %v3724 = vpop.f32.mrb[0].mxu0
      %v3725 = vadd.f32 %v3602, %v3724
      %v3726 = vpop.f32.mrb[0].mxu0
      %3727 = vmatprep.mubr.bf16.mxu0 0
      %3728 = vmatmul.mubr.bf16.gmra.mrb[0].mxu0 %v3620
      %v3729 = vpop.f32.mrb[0].mxu0
      %v3730 = vadd.f32 %v3602, %v3729
      %v3731 = vpop.f32.mrb[0].mxu0
      %v3732 = vpop.f32.mrb[0].mxu0
      %v3733 = vadd.f32 %v3602, %v3732
      %v3734 = vpop.f32.mrb[0].mxu0
      %3735 = vmatprep.mubr.bf16.mxu0 0
      %3736 = vmatmul.mubr.bf16.gmra.mrb[0].mxu0 %v3623
      %v3737 = vpop.f32.mrb[0].mxu0
      %v3738 = vadd.f32 %v3602, %v3737
      %v3739 = vpop.f32.mrb[0].mxu0
      %v3740 = vpop.f32.mrb[0].mxu0
      %v3741 = vadd.f32 %v3602, %v3740
      %v3742 = vpop.f32.mrb[0].mxu0
      %3743 = vmatprep.mubr.bf16.mxu0 0
      %3744 = vmatmul.mubr.bf16.gmra.mrb[0].mxu0 %v3626
      %v3745 = vpop.f32.mrb[0].mxu0
      %v3746 = vadd.f32 %v3602, %v3745
      %v3747 = vpop.f32.mrb[0].mxu0
      %v3748 = vpop.f32.mrb[0].mxu0
      %v3749 = vadd.f32 %v3602, %v3748
      %v3750 = vpop.f32.mrb[0].mxu0
      %3751 = vmatprep.mubr.bf16.mxu0 0
      %3752 = vmatmul.mubr.bf16.gmra.mrb[0].mxu0 %v3629
      %v3753 = vpop.f32.mrb[0].mxu0
      %v3754 = vadd.f32 %v3602, %v3753
      %v3755 = vpop.f32.mrb[0].mxu0
      %v3756 = vpop.f32.mrb[0].mxu0
      %v3757 = vadd.f32 %v3602, %v3756
      %v3758 = vpop.f32.mrb[0].mxu0
      %3759 = vmatprep.mubr.bf16.mxu0 0
      %3760 = vmatmul.mubr.bf16.gmra.mrb[0].mxu0 %v3632
      %v3761 = vpop.f32.mrb[0].mxu0
      %v3762 = vadd.f32 %v3602, %v3761
      %v3763 = vpop.f32.mrb[0].mxu0
      %v3764 = vpop.f32.mrb[0].mxu0
      %v3765 = vadd.f32 %v3602, %v3764
      %v3766 = vpop.f32.mrb[0].mxu0
      %3767 = vmatprep.mubr.bf16.mxu0 0
      %3768 = vmatmul.mubr.bf16.gmra.mrb[0].mxu0 %v3635
      %v3769 = vpop.f32.mrb[0].mxu0
      %v3770 = vadd.f32 %v3602, %v3769
      %v3771 = vpop.f32.mrb[0].mxu0
      %v3772 = vpop.f32.mrb[0].mxu0
      %v3773 = vadd.f32 %v3602, %v3772
      %v3774 = vpop.f32.mrb[0].mxu0
      %3775 = vmatprep.mubr.bf16.mxu0 0
      %3776 = vmatmul.mubr.bf16.gmra.mrb[0].mxu0 %v3638
      %v3777 = vpop.f32.mrb[0].mxu0
      %v3778 = vadd.f32 %v3602, %v3777
      %v3779 = vpop.f32.mrb[0].mxu0
      %v3780 = vpop.f32.mrb[0].mxu0
      %v3781 = vadd.f32 %v3602, %v3780
      %v3782 = vpop.f32.mrb[0].mxu0
      %3783 = vmatprep.mubr.bf16.mxu0 0
      %3784 = vmatmul.mubr.bf16.gmra.mrb[0].mxu0 %v3641
      %v3785 = vpop.f32.mrb[0].mxu0
      %v3786 = vadd.f32 %v3602, %v3785
      %v3787 = vpop.f32.mrb[0].mxu0
      %v3788 = vpop.f32.mrb[0].mxu0
      %v3789 = vadd.f32 %v3602, %v3788
      %v3790 = vpop.f32.mrb[0].mxu0
      %3791 = vmatprep.mubr.bf16.mxu0 0
      %3792 = vmatmul.mubr.bf16.gmra.mrb[0].mxu0 %v3644
      %v3793 = vpop.f32.mrb[0].mxu0
      %v3794 = vadd.f32 %v3602, %v3793
      %v3795 = vpop.f32.mrb[0].mxu0
      %v3796 = vpop.f32.mrb[0].mxu0
      %v3797 = vadd.f32 %v3602, %v3796
      %v3798 = vpop.f32.mrb[0].mxu0
      %3799 = vmatprep.mubr.bf16.mxu0 0
      %3800 = vmatmul.mubr.bf16.gmra.mrb[0].mxu0 %v3647
      %v3801 = vpop.f32.mrb[0].mxu0
      %v3802 = vadd.f32 %v3602, %v3801
      %v3803 = vpop.f32.mrb[0].mxu0
      %v3804 = vpop.f32.mrb[0].mxu0
      %v3805 = vadd.f32 %v3602, %v3804
      %v3806 = vpop.f32.mrb[0].mxu0
      %3807 = vmatprep.mubr.bf16.mxu0 0
      %3808 = vmatmul.mubr.bf16.gmra.mrb[0].mxu0 %v3650
      %v3809 = vpop.f32.mrb[0].mxu0
      %v3810 = vadd.f32 %v3602, %v3809
      %v3811 = vpop.f32.mrb[0].mxu0
      %v3812 = vpop.f32.mrb[0].mxu0
      %v3813 = vadd.f32 %v3602, %v3812
      %v3814 = vpop.f32.mrb[0].mxu0
      %3815 = vdwg.mxu0
      %3816 = vst.msk [vmem:[%s862 + $0x1] sm:$0xff] %vm489, %v3690
      %3817 = vst.msk [vmem:[%s862 + $0x9] sm:$0xff] %vm489, %v3693
      %3818 = vst.msk [vmem:[%s862 + $0x19] sm:$0xff] %vm489, %v3698
      %3819 = vst.msk [vmem:[%s862 + $0x21] sm:$0xff] %vm489, %v3701
      %3820 = vst.msk [vmem:[%s862 + $0x31] sm:$0xff] %vm489, %v3706
      %3821 = vst.msk [vmem:[%s862 + $0x39] sm:$0xff] %vm489, %v3709
      %3822 = vst.msk [vmem:[%s862 + $0x49] sm:$0xff] %vm489, %v3714
      %3823 = vst.msk [vmem:[%s862 + $0x51] sm:$0xff] %vm489, %v3717
      %3824 = vst.msk [vmem:[%s862 + $0x61] sm:$0xff] %vm489, %v3722
      %3825 = vst.msk [vmem:[%s862 + $0x69] sm:$0xff] %vm489, %v3725
      %3826 = vst.msk [vmem:[%s862 + $0x79] sm:$0xff] %vm489, %v3730
      %3827 = vst.msk [vmem:[%s862 + $0x81] sm:$0xff] %vm489, %v3733
      %3828 = vst.msk [vmem:[%s862 + $0x91] sm:$0xff] %vm489, %v3738
      %3829 = vst.msk [vmem:[%s862 + $0x99] sm:$0xff] %vm489, %v3741
      %3830 = vst.msk [vmem:[%s862 + $0xa9] sm:$0xff] %vm489, %v3746
      %3831 = vst.msk [vmem:[%s862 + $0xb1] sm:$0xff] %vm489, %v3749
      %3832 = vst.msk [vmem:[%s862 + $0xc1] sm:$0xff] %vm489, %v3754
      %3833 = vst.msk [vmem:[%s862 + $0xc9] sm:$0xff] %vm489, %v3757
      %3834 = vst.msk [vmem:[%s862 + $0xd9] sm:$0xff] %vm489, %v3762
      %3835 = vst.msk [vmem:[%s862 + $0xe1] sm:$0xff] %vm489, %v3765
      %3836 = vst.msk [vmem:[%s862 + $0xf1] sm:$0xff] %vm489, %v3770
      %3837 = vst.msk [vmem:[%s862 + $0xf9] sm:$0xff] %vm489, %v3773
      %3838 = vst.msk [vmem:[%s862 + $0x109] sm:$0xff] %vm489, %v3778
      %3839 = vst.msk [vmem:[%s862 + $0x111] sm:$0xff] %vm489, %v3781
      %3840 = vst.msk [vmem:[%s862 + $0x121] sm:$0xff] %vm489, %v3786
      %3841 = vst.msk [vmem:[%s862 + $0x129] sm:$0xff] %vm489, %v3789
      %3842 = vst.msk [vmem:[%s862 + $0x139] sm:$0xff] %vm489, %v3794
      %3843 = vst.msk [vmem:[%s862 + $0x141] sm:$0xff] %vm489, %v3797
      %3844 = vst.msk [vmem:[%s862 + $0x151] sm:$0xff] %vm489, %v3802
      %3845 = vst.msk [vmem:[%s862 + $0x159] sm:$0xff] %vm489, %v3805
      %3846 = vst.msk [vmem:[%s862 + $0x169] sm:$0xff] %vm489, %v3810
      %3847 = vst.msk [vmem:[%s862 + $0x171] sm:$0xff] %vm489, %v3813
      %v3848 = vld [vmem:[%s8] sm:$0xff]
      %v3849 = vld [vmem:[%s8 + $0x8] sm:$0x1]
      %v3850 = vld [vmem:[#allocation2] sm:$0xff]
      %v3851 = vld [vmem:[#allocation2 + $0x8] sm:$0xff]
      %v3852 = vld [vmem:[#allocation2 + $0x10] sm:$0x3]
      %v3853 = vld [vmem:[#allocation2 + $0x18] sm:$0xff]
      %v3854 = vld [vmem:[#allocation2 + $0x20] sm:$0xff]
      %v3855 = vld [vmem:[#allocation2 + $0x28] sm:$0x3]
      %v3856 = vld [vmem:[#allocation2 + $0x30] sm:$0xff]
      %v3857 = vld [vmem:[#allocation2 + $0x38] sm:$0xff]
      %v3858 = vld [vmem:[#allocation2 + $0x40] sm:$0x3]
      %v3859 = vld [vmem:[#allocation2 + $0x48] sm:$0xff]
      %v3860 = vld [vmem:[#allocation2 + $0x50] sm:$0xff]
      %v3861 = vld [vmem:[#allocation2 + $0x58] sm:$0x3]
      %v3862 = vld [vmem:[#allocation2 + $0x60] sm:$0xff]
      %v3863 = vld [vmem:[#allocation2 + $0x68] sm:$0xff]
      %v3864 = vld [vmem:[#allocation2 + $0x70] sm:$0x3]
      %v3865 = vld [vmem:[#allocation2 + $0x78] sm:$0xff]
      %v3866 = vld [vmem:[#allocation2 + $0x80] sm:$0xff]
      %v3867 = vld [vmem:[#allocation2 + $0x88] sm:$0x3]
      %v3868 = vld [vmem:[#allocation2 + $0x90] sm:$0xff]
      %v3869 = vld [vmem:[#allocation2 + $0x98] sm:$0xff]
      %v3870 = vld [vmem:[#allocation2 + $0xa0] sm:$0x3]
      %v3871 = vld [vmem:[#allocation2 + $0xa8] sm:$0xff]
      %v3872 = vld [vmem:[#allocation2 + $0xb0] sm:$0xff]
      %v3873 = vld [vmem:[#allocation2 + $0xb8] sm:$0x3]
      %v3874 = vld [vmem:[#allocation2 + $0xc0] sm:$0xff]
      %v3875 = vld [vmem:[#allocation2 + $0xc8] sm:$0xff]
      %v3876 = vld [vmem:[#allocation2 + $0xd0] sm:$0x3]
      %v3877 = vld [vmem:[#allocation2 + $0xd8] sm:$0xff]
      %v3878 = vld [vmem:[#allocation2 + $0xe0] sm:$0xff]
      %v3879 = vld [vmem:[#allocation2 + $0xe8] sm:$0x3]
      %v3880 = vld [vmem:[#allocation2 + $0xf0] sm:$0xff]
      %v3881 = vld [vmem:[#allocation2 + $0xf8] sm:$0xff]
      %v3882 = vld [vmem:[#allocation2 + $0x100] sm:$0x3]
      %v3883 = vld [vmem:[#allocation2 + $0x108] sm:$0xff]
      %v3884 = vld [vmem:[#allocation2 + $0x110] sm:$0xff]
      %v3885 = vld [vmem:[#allocation2 + $0x118] sm:$0x3]
      %v3886 = vld [vmem:[#allocation2 + $0x120] sm:$0xff]
      %v3887 = vld [vmem:[#allocation2 + $0x128] sm:$0xff]
      %v3888 = vld [vmem:[#allocation2 + $0x130] sm:$0x3]
      %v3889 = vld [vmem:[#allocation2 + $0x138] sm:$0xff]
      %v3890 = vld [vmem:[#allocation2 + $0x140] sm:$0xff]
      %v3891 = vld [vmem:[#allocation2 + $0x148] sm:$0x3]
      %v3892 = vld [vmem:[#allocation2 + $0x150] sm:$0xff]
      %v3893 = vld [vmem:[#allocation2 + $0x158] sm:$0xff]
      %v3894 = vld [vmem:[#allocation2 + $0x160] sm:$0x3]
      %v3895 = vld [vmem:[#allocation2 + $0x168] sm:$0xff]
      %v3896 = vld [vmem:[#allocation2 + $0x170] sm:$0xff]
      %v3897 = vld [vmem:[#allocation2 + $0x178] sm:$0x3]
      %v3898 = vld [vmem:[%s862] sm:$0xff]
      %v3899 = vld [vmem:[%s862 + $0x8] sm:$0xff]
      %v3900 = vld [vmem:[%s862 + $0x10] sm:$0x3]
      %v3901 = vld [vmem:[%s862 + $0x18] sm:$0xff]
      %v3902 = vld [vmem:[%s862 + $0x20] sm:$0xff]
      %v3903 = vld [vmem:[%s862 + $0x28] sm:$0x3]
      %v3904 = vld [vmem:[%s862 + $0x30] sm:$0xff]
      %v3905 = vld [vmem:[%s862 + $0x38] sm:$0xff]
      %v3906 = vld [vmem:[%s862 + $0x40] sm:$0x3]
      %v3907 = vld [vmem:[%s862 + $0x48] sm:$0xff]
      %v3908 = vld [vmem:[%s862 + $0x50] sm:$0xff]
      %v3909 = vld [vmem:[%s862 + $0x58] sm:$0x3]
      %v3910 = vld [vmem:[%s862 + $0x60] sm:$0xff]
      %v3911 = vld [vmem:[%s862 + $0x68] sm:$0xff]
      %v3912 = vld [vmem:[%s862 + $0x70] sm:$0x3]
      %v3913 = vld [vmem:[%s862 + $0x78] sm:$0xff]
      %v3914 = vld [vmem:[%s862 + $0x80] sm:$0xff]
      %v3915 = vld [vmem:[%s862 + $0x88] sm:$0x3]
      %v3916 = vld [vmem:[%s862 + $0x90] sm:$0xff]
      %v3917 = vld [vmem:[%s862 + $0x98] sm:$0xff]
      %v3918 = vld [vmem:[%s862 + $0xa0] sm:$0x3]
      %v3919 = vld [vmem:[%s862 + $0xa8] sm:$0xff]
      %v3920 = vld [vmem:[%s862 + $0xb0] sm:$0xff]
      %v3921 = vld [vmem:[%s862 + $0xb8] sm:$0x3]
      %v3922 = vld [vmem:[%s862 + $0xc0] sm:$0xff]
      %v3923 = vld [vmem:[%s862 + $0xc8] sm:$0xff]
      %v3924 = vld [vmem:[%s862 + $0xd0] sm:$0x3]
      %v3925 = vld [vmem:[%s862 + $0xd8] sm:$0xff]
      %v3926 = vld [vmem:[%s862 + $0xe0] sm:$0xff]
      %v3927 = vld [vmem:[%s862 + $0xe8] sm:$0x3]
      %v3928 = vld [vmem:[%s862 + $0xf0] sm:$0xff]
      %v3929 = vld [vmem:[%s862 + $0xf8] sm:$0xff]
      %v3930 = vld [vmem:[%s862 + $0x100] sm:$0x3]
      %v3931 = vld [vmem:[%s862 + $0x108] sm:$0xff]
      %v3932 = vld [vmem:[%s862 + $0x110] sm:$0xff]
      %v3933 = vld [vmem:[%s862 + $0x118] sm:$0x3]
      %v3934 = vld [vmem:[%s862 + $0x120] sm:$0xff]
      %v3935 = vld [vmem:[%s862 + $0x128] sm:$0xff]
      %v3936 = vld [vmem:[%s862 + $0x130] sm:$0x3]
      %v3937 = vld [vmem:[%s862 + $0x138] sm:$0xff]
      %v3938 = vld [vmem:[%s862 + $0x140] sm:$0xff]
      %v3939 = vld [vmem:[%s862 + $0x148] sm:$0x3]
      %v3940 = vld [vmem:[%s862 + $0x150] sm:$0xff]
      %v3941 = vld [vmem:[%s862 + $0x158] sm:$0xff]
      %v3942 = vld [vmem:[%s862 + $0x160] sm:$0x3]
      %v3943 = vld [vmem:[%s862 + $0x168] sm:$0xff]
      %v3944 = vld [vmem:[%s862 + $0x170] sm:$0xff]
      %v3945 = vld [vmem:[%s862 + $0x178] sm:$0x3]
      %v3946 = vld [vmem:[%s993] sm:$0xff]
      %v3947 = vld [vmem:[%s993 + $0x8] sm:$0xff]
      %v3948 = vld [vmem:[%s993 + $0x10] sm:$0x3]
      %v3949 = vld [vmem:[%s993 + $0x18] sm:$0xff]
      %v3950 = vld [vmem:[%s993 + $0x20] sm:$0xff]
      %v3951 = vld [vmem:[%s993 + $0x28] sm:$0x3]
      %v3952 = vld [vmem:[%s993 + $0x30] sm:$0xff]
      %v3953 = vld [vmem:[%s993 + $0x38] sm:$0xff]
      %v3954 = vld [vmem:[%s993 + $0x40] sm:$0x3]
      %v3955 = vld [vmem:[%s993 + $0x48] sm:$0xff]
      %v3956 = vld [vmem:[%s993 + $0x50] sm:$0xff]
      %v3957 = vld [vmem:[%s993 + $0x58] sm:$0x3]
      %v3958 = vld [vmem:[%s993 + $0x60] sm:$0xff]
      %v3959 = vld [vmem:[%s993 + $0x68] sm:$0xff]
      %v3960 = vld [vmem:[%s993 + $0x70] sm:$0x3]
      %v3961 = vld [vmem:[%s993 + $0x78] sm:$0xff]
      %v3962 = vld [vmem:[%s993 + $0x80] sm:$0xff]
      %v3963 = vld [vmem:[%s993 + $0x88] sm:$0x3]
      %v3964 = vld [vmem:[%s993 + $0x90] sm:$0xff]
      %v3965 = vld [vmem:[%s993 + $0x98] sm:$0xff]
      %v3966 = vld [vmem:[%s993 + $0xa0] sm:$0x3]
      %v3967 = vld [vmem:[%s993 + $0xa8] sm:$0xff]
      %v3968 = vld [vmem:[%s993 + $0xb0] sm:$0xff]
      %v3969 = vld [vmem:[%s993 + $0xb8] sm:$0x3]
      %v3970 = vld [vmem:[%s993 + $0xc0] sm:$0xff]
      %v3971 = vld [vmem:[%s993 + $0xc8] sm:$0xff]
      %v3972 = vld [vmem:[%s993 + $0xd0] sm:$0x3]
      %v3973 = vld [vmem:[%s993 + $0xd8] sm:$0xff]
      %v3974 = vld [vmem:[%s993 + $0xe0] sm:$0xff]
      %v3975 = vld [vmem:[%s993 + $0xe8] sm:$0x3]
      %v3976 = vld [vmem:[%s993 + $0xf0] sm:$0xff]
      %v3977 = vld [vmem:[%s993 + $0xf8] sm:$0xff]
      %v3978 = vld [vmem:[%s993 + $0x100] sm:$0x3]
      %v3979 = vld [vmem:[%s993 + $0x108] sm:$0xff]
      %v3980 = vld [vmem:[%s993 + $0x110] sm:$0xff]
      %v3981 = vld [vmem:[%s993 + $0x118] sm:$0x3]
      %v3982 = vld [vmem:[%s993 + $0x120] sm:$0xff]
      %v3983 = vld [vmem:[%s993 + $0x128] sm:$0xff]
      %v3984 = vld [vmem:[%s993 + $0x130] sm:$0x3]
      %v3985 = vld [vmem:[%s993 + $0x138] sm:$0xff]
      %v3986 = vld [vmem:[%s993 + $0x140] sm:$0xff]
      %v3987 = vld [vmem:[%s993 + $0x148] sm:$0x3]
      %v3988 = vld [vmem:[%s993 + $0x150] sm:$0xff]
      %v3989 = vld [vmem:[%s993 + $0x158] sm:$0xff]
      %v3990 = vld [vmem:[%s993 + $0x160] sm:$0x3]
      %v3991 = vld [vmem:[%s993 + $0x168] sm:$0xff]
      %v3992 = vld [vmem:[%s993 + $0x170] sm:$0xff]
      %v3993 = vld [vmem:[%s993 + $0x178] sm:$0x3]
      %v3994 = vlaneseq
      %v3995 = vshrl.u32 %v3994, 7
      %v3996 = vsub.s32 0, %v3995
      %v3997 = vrot.slane %v3848, %v3996
      %v3998 = vmul.f32 %v3850, %v3997
      %v3999 = vmul.f32 %v3851, %v3997
      %v4000 = vmul.f32 %v3853, %v3997
      %v4001 = vmul.f32 %v3854, %v3997
      %v4002 = vmul.f32 %v3856, %v3997
      %v4003 = vmul.f32 %v3857, %v3997
      %v4004 = vmul.f32 %v3859, %v3997
      %v4005 = vmul.f32 %v3860, %v3997
      %v4006 = vmul.f32 %v3862, %v3997
      %v4007 = vmul.f32 %v3863, %v3997
      %v4008 = vmul.f32 %v3865, %v3997
      %v4009 = vmul.f32 %v3866, %v3997
      %v4010 = vmul.f32 %v3868, %v3997
      %v4011 = vmul.f32 %v3869, %v3997
      %v4012 = vmul.f32 %v3871, %v3997
      %v4013 = vmul.f32 %v3872, %v3997
      %v4014 = vmul.f32 %v3874, %v3997
      %v4015 = vmul.f32 %v3875, %v3997
      %v4016 = vmul.f32 %v3877, %v3997
      %v4017 = vmul.f32 %v3878, %v3997
      %v4018 = vmul.f32 %v3880, %v3997
      %v4019 = vmul.f32 %v3881, %v3997
      %v4020 = vmul.f32 %v3883, %v3997
      %v4021 = vmul.f32 %v3884, %v3997
      %v4022 = vmul.f32 %v3886, %v3997
      %v4023 = vmul.f32 %v3887, %v3997
      %v4024 = vmul.f32 %v3889, %v3997
      %v4025 = vmul.f32 %v3890, %v3997
      %v4026 = vmul.f32 %v3892, %v3997
      %v4027 = vmul.f32 %v3893, %v3997
      %v4028 = vmul.f32 %v3895, %v3997
      %v4029 = vmul.f32 %v3896, %v3997
      %v4030 = vlaneseq
      %v4031 = vshrl.u32 %v4030, 7
      %v4032 = vsub.s32 3, %v4031
      %v4033 = vrot.slane %v3848, %v4032
      %v4034 = vmul.f32 %v3898, %v4033
      %v4035 = vmul.f32 %v3899, %v4033
      %v4036 = vmul.f32 %v3901, %v4033
      %v4037 = vmul.f32 %v3902, %v4033
      %v4038 = vmul.f32 %v3904, %v4033
      %v4039 = vmul.f32 %v3905, %v4033
      %v4040 = vmul.f32 %v3907, %v4033
      %v4041 = vmul.f32 %v3908, %v4033
      %v4042 = vmul.f32 %v3910, %v4033
      %v4043 = vmul.f32 %v3911, %v4033
      %v4044 = vmul.f32 %v3913, %v4033
      %v4045 = vmul.f32 %v3914, %v4033
      %v4046 = vmul.f32 %v3916, %v4033
      %v4047 = vmul.f32 %v3917, %v4033
      %v4048 = vmul.f32 %v3919, %v4033
      %v4049 = vmul.f32 %v3920, %v4033
      %v4050 = vmul.f32 %v3922, %v4033
      %v4051 = vmul.f32 %v3923, %v4033
      %v4052 = vmul.f32 %v3925, %v4033
      %v4053 = vmul.f32 %v3926, %v4033
      %v4054 = vmul.f32 %v3928, %v4033
      %v4055 = vmul.f32 %v3929, %v4033
      %v4056 = vmul.f32 %v3931, %v4033
      %v4057 = vmul.f32 %v3932, %v4033
      %v4058 = vmul.f32 %v3934, %v4033
      %v4059 = vmul.f32 %v3935, %v4033
      %v4060 = vmul.f32 %v3937, %v4033
      %v4061 = vmul.f32 %v3938, %v4033
      %v4062 = vmul.f32 %v3940, %v4033
      %v4063 = vmul.f32 %v3941, %v4033
      %v4064 = vmul.f32 %v3943, %v4033
      %v4065 = vmul.f32 %v3944, %v4033
      %v4066 = vadd.f32 %v3998, %v4034
      %v4067 = vadd.f32 %v3999, %v4035
      %v4068 = vadd.f32 %v4000, %v4036
      %v4069 = vadd.f32 %v4001, %v4037
      %v4070 = vadd.f32 %v4002, %v4038
      %v4071 = vadd.f32 %v4003, %v4039
      %v4072 = vadd.f32 %v4004, %v4040
      %v4073 = vadd.f32 %v4005, %v4041
      %v4074 = vadd.f32 %v4006, %v4042
      %v4075 = vadd.f32 %v4007, %v4043
      %v4076 = vadd.f32 %v4008, %v4044
      %v4077 = vadd.f32 %v4009, %v4045
      %v4078 = vadd.f32 %v4010, %v4046
      %v4079 = vadd.f32 %v4011, %v4047
      %v4080 = vadd.f32 %v4012, %v4048
      %v4081 = vadd.f32 %v4013, %v4049
      %v4082 = vadd.f32 %v4014, %v4050
      %v4083 = vadd.f32 %v4015, %v4051
      %v4084 = vadd.f32 %v4016, %v4052
      %v4085 = vadd.f32 %v4017, %v4053
      %v4086 = vadd.f32 %v4018, %v4054
      %v4087 = vadd.f32 %v4019, %v4055
      %v4088 = vadd.f32 %v4020, %v4056
      %v4089 = vadd.f32 %v4021, %v4057
      %v4090 = vadd.f32 %v4022, %v4058
      %v4091 = vadd.f32 %v4023, %v4059
      %v4092 = vadd.f32 %v4024, %v4060
      %v4093 = vadd.f32 %v4025, %v4061
      %v4094 = vadd.f32 %v4026, %v4062
      %v4095 = vadd.f32 %v4027, %v4063
      %v4096 = vadd.f32 %v4028, %v4064
      %v4097 = vadd.f32 %v4029, %v4065
      %v4098 = vlaneseq
      %v4099 = vshrl.u32 %v4098, 7
      %v4100 = vsub.s32 6, %v4099
      %v4101 = vrot.slane %v3848, %v4100
      %v4102 = vmul.f32 %v3946, %v4101
      %v4103 = vmul.f32 %v3947, %v4101
      %v4104 = vmul.f32 %v3949, %v4101
      %v4105 = vmul.f32 %v3950, %v4101
      %v4106 = vmul.f32 %v3952, %v4101
      %v4107 = vmul.f32 %v3953, %v4101
      %v4108 = vmul.f32 %v3955, %v4101
      %v4109 = vmul.f32 %v3956, %v4101
      %v4110 = vmul.f32 %v3958, %v4101
      %v4111 = vmul.f32 %v3959, %v4101
      %v4112 = vmul.f32 %v3961, %v4101
      %v4113 = vmul.f32 %v3962, %v4101
      %v4114 = vmul.f32 %v3964, %v4101
      %v4115 = vmul.f32 %v3965, %v4101
      %v4116 = vmul.f32 %v3967, %v4101
      %v4117 = vmul.f32 %v3968, %v4101
      %v4118 = vmul.f32 %v3970, %v4101
      %v4119 = vmul.f32 %v3971, %v4101
      %v4120 = vmul.f32 %v3973, %v4101
      %v4121 = vmul.f32 %v3974, %v4101
      %v4122 = vmul.f32 %v3976, %v4101
      %v4123 = vmul.f32 %v3977, %v4101
      %v4124 = vmul.f32 %v3979, %v4101
      %v4125 = vmul.f32 %v3980, %v4101
      %v4126 = vmul.f32 %v3982, %v4101
      %v4127 = vmul.f32 %v3983, %v4101
      %v4128 = vmul.f32 %v3985, %v4101
      %v4129 = vmul.f32 %v3986, %v4101
      %v4130 = vmul.f32 %v3988, %v4101
      %v4131 = vmul.f32 %v3989, %v4101
      %v4132 = vmul.f32 %v3991, %v4101
      %v4133 = vmul.f32 %v3992, %v4101
      %v4134 = vadd.f32 %v4066, %v4102
      %v4135 = vadd.f32 %v4067, %v4103
      %v4136 = vadd.f32 %v4068, %v4104
      %v4137 = vadd.f32 %v4069, %v4105
      %v4138 = vadd.f32 %v4070, %v4106
      %v4139 = vadd.f32 %v4071, %v4107
      %v4140 = vadd.f32 %v4072, %v4108
      %v4141 = vadd.f32 %v4073, %v4109
      %v4142 = vadd.f32 %v4074, %v4110
      %v4143 = vadd.f32 %v4075, %v4111
      %v4144 = vadd.f32 %v4076, %v4112
      %v4145 = vadd.f32 %v4077, %v4113
      %v4146 = vadd.f32 %v4078, %v4114
      %v4147 = vadd.f32 %v4079, %v4115
      %v4148 = vadd.f32 %v4080, %v4116
      %v4149 = vadd.f32 %v4081, %v4117
      %v4150 = vadd.f32 %v4082, %v4118
      %v4151 = vadd.f32 %v4083, %v4119
      %v4152 = vadd.f32 %v4084, %v4120
      %v4153 = vadd.f32 %v4085, %v4121
      %v4154 = vadd.f32 %v4086, %v4122
      %v4155 = vadd.f32 %v4087, %v4123
      %v4156 = vadd.f32 %v4088, %v4124
      %v4157 = vadd.f32 %v4089, %v4125
      %v4158 = vadd.f32 %v4090, %v4126
      %v4159 = vadd.f32 %v4091, %v4127
      %v4160 = vadd.f32 %v4092, %v4128
      %v4161 = vadd.f32 %v4093, %v4129
      %v4162 = vadd.f32 %v4094, %v4130
      %v4163 = vadd.f32 %v4095, %v4131
      %v4164 = vadd.f32 %v4096, %v4132
      %v4165 = vadd.f32 %v4097, %v4133
      %v4166 = vlaneseq
      %v4167 = vshrl.u32 %v4166, 7
      %v4168 = vsub.s32 1, %v4167
      %v4169 = vrot.slane %v3848, %v4168
      %v4170 = vmul.f32 %v3850, %v4169
      %v4171 = vmul.f32 %v3851, %v4169
      %v4172 = vmul.f32 %v3852, %v4169
      %v4173 = vmul.f32 %v3853, %v4169
      %v4174 = vmul.f32 %v3854, %v4169
      %v4175 = vmul.f32 %v3855, %v4169
      %v4176 = vmul.f32 %v3856, %v4169
      %v4177 = vmul.f32 %v3857, %v4169
      %v4178 = vmul.f32 %v3858, %v4169
      %v4179 = vmul.f32 %v3859, %v4169
      %v4180 = vmul.f32 %v3860, %v4169
      %v4181 = vmul.f32 %v3861, %v4169
      %v4182 = vmul.f32 %v3862, %v4169
      %v4183 = vmul.f32 %v3863, %v4169
      %v4184 = vmul.f32 %v3864, %v4169
      %v4185 = vmul.f32 %v3865, %v4169
      %v4186 = vmul.f32 %v3866, %v4169
      %v4187 = vmul.f32 %v3867, %v4169
      %v4188 = vmul.f32 %v3868, %v4169
      %v4189 = vmul.f32 %v3869, %v4169
      %v4190 = vmul.f32 %v3870, %v4169
      %v4191 = vmul.f32 %v3871, %v4169
      %v4192 = vmul.f32 %v3872, %v4169
      %v4193 = vmul.f32 %v3873, %v4169
      %v4194 = vmul.f32 %v3874, %v4169
      %v4195 = vmul.f32 %v3875, %v4169
      %v4196 = vmul.f32 %v3876, %v4169
      %v4197 = vmul.f32 %v3877, %v4169
      %v4198 = vmul.f32 %v3878, %v4169
      %v4199 = vmul.f32 %v3879, %v4169
      %v4200 = vmul.f32 %v3880, %v4169
      %v4201 = vmul.f32 %v3881, %v4169
      %v4202 = vmul.f32 %v3882, %v4169
      %v4203 = vmul.f32 %v3883, %v4169
      %v4204 = vmul.f32 %v3884, %v4169
      %v4205 = vmul.f32 %v3885, %v4169
      %v4206 = vmul.f32 %v3886, %v4169
      %v4207 = vmul.f32 %v3887, %v4169
      %v4208 = vmul.f32 %v3888, %v4169
      %v4209 = vmul.f32 %v3889, %v4169
      %v4210 = vmul.f32 %v3890, %v4169
      %v4211 = vmul.f32 %v3891, %v4169
      %v4212 = vmul.f32 %v3892, %v4169
      %v4213 = vmul.f32 %v3893, %v4169
      %v4214 = vmul.f32 %v3894, %v4169
      %v4215 = vmul.f32 %v3895, %v4169
      %v4216 = vmul.f32 %v3896, %v4169
      %v4217 = vmul.f32 %v3897, %v4169
      %v4218 = vlaneseq
      %v4219 = vshrl.u32 %v4218, 7
      %v4220 = vsub.s32 4, %v4219
      %v4221 = vrot.slane %v3848, %v4220
      %v4222 = vmul.f32 %v3898, %v4221
      %v4223 = vmul.f32 %v3899, %v4221
      %v4224 = vmul.f32 %v3900, %v4221
      %v4225 = vmul.f32 %v3901, %v4221
      %v4226 = vmul.f32 %v3902, %v4221
      %v4227 = vmul.f32 %v3903, %v4221
      %v4228 = vmul.f32 %v3904, %v4221
      %v4229 = vmul.f32 %v3905, %v4221
      %v4230 = vmul.f32 %v3906, %v4221
      %v4231 = vmul.f32 %v3907, %v4221
      %v4232 = vmul.f32 %v3908, %v4221
      %v4233 = vmul.f32 %v3909, %v4221
      %v4234 = vmul.f32 %v3910, %v4221
      %v4235 = vmul.f32 %v3911, %v4221
      %v4236 = vmul.f32 %v3912, %v4221
      %v4237 = vmul.f32 %v3913, %v4221
      %v4238 = vmul.f32 %v3914, %v4221
      %v4239 = vmul.f32 %v3915, %v4221
      %v4240 = vmul.f32 %v3916, %v4221
      %v4241 = vmul.f32 %v3917, %v4221
      %v4242 = vmul.f32 %v3918, %v4221
      %v4243 = vmul.f32 %v3919, %v4221
      %v4244 = vmul.f32 %v3920, %v4221
      %v4245 = vmul.f32 %v3921, %v4221
      %v4246 = vmul.f32 %v3922, %v4221
      %v4247 = vmul.f32 %v3923, %v4221
      %v4248 = vmul.f32 %v3924, %v4221
      %v4249 = vmul.f32 %v3925, %v4221
      %v4250 = vmul.f32 %v3926, %v4221
      %v4251 = vmul.f32 %v3927, %v4221
      %v4252 = vmul.f32 %v3928, %v4221
      %v4253 = vmul.f32 %v3929, %v4221
      %v4254 = vmul.f32 %v3930, %v4221
      %v4255 = vmul.f32 %v3931, %v4221
      %v4256 = vmul.f32 %v3932, %v4221
      %v4257 = vmul.f32 %v3933, %v4221
      %v4258 = vmul.f32 %v3934, %v4221
      %v4259 = vmul.f32 %v3935, %v4221
      %v4260 = vmul.f32 %v3936, %v4221
      %v4261 = vmul.f32 %v3937, %v4221
      %v4262 = vmul.f32 %v3938, %v4221
      %v4263 = vmul.f32 %v3939, %v4221
      %v4264 = vmul.f32 %v3940, %v4221
      %v4265 = vmul.f32 %v3941, %v4221
      %v4266 = vmul.f32 %v3942, %v4221
      %v4267 = vmul.f32 %v3943, %v4221
      %v4268 = vmul.f32 %v3944, %v4221
      %v4269 = vmul.f32 %v3945, %v4221
      %v4270 = vadd.f32 %v4170, %v4222
      %v4271 = vadd.f32 %v4171, %v4223
      %v4272 = vadd.f32 %v4172, %v4224
      %v4273 = vadd.f32 %v4173, %v4225
      %v4274 = vadd.f32 %v4174, %v4226
      %v4275 = vadd.f32 %v4175, %v4227
      %v4276 = vadd.f32 %v4176, %v4228
      %v4277 = vadd.f32 %v4177, %v4229
      %v4278 = vadd.f32 %v4178, %v4230
      %v4279 = vadd.f32 %v4179, %v4231
      %v4280 = vadd.f32 %v4180, %v4232
      %v4281 = vadd.f32 %v4181, %v4233
      %v4282 = vadd.f32 %v4182, %v4234
      %v4283 = vadd.f32 %v4183, %v4235
      %v4284 = vadd.f32 %v4184, %v4236
      %v4285 = vadd.f32 %v4185, %v4237
      %v4286 = vadd.f32 %v4186, %v4238
      %v4287 = vadd.f32 %v4187, %v4239
      %v4288 = vadd.f32 %v4188, %v4240
      %v4289 = vadd.f32 %v4189, %v4241
      %v4290 = vadd.f32 %v4190, %v4242
      %v4291 = vadd.f32 %v4191, %v4243
      %v4292 = vadd.f32 %v4192, %v4244
      %v4293 = vadd.f32 %v4193, %v4245
      %v4294 = vadd.f32 %v4194, %v4246
      %v4295 = vadd.f32 %v4195, %v4247
      %v4296 = vadd.f32 %v4196, %v4248
      %v4297 = vadd.f32 %v4197, %v4249
      %v4298 = vadd.f32 %v4198, %v4250
      %v4299 = vadd.f32 %v4199, %v4251
      %v4300 = vadd.f32 %v4200, %v4252
      %v4301 = vadd.f32 %v4201, %v4253
      %v4302 = vadd.f32 %v4202, %v4254
      %v4303 = vadd.f32 %v4203, %v4255
      %v4304 = vadd.f32 %v4204, %v4256
      %v4305 = vadd.f32 %v4205, %v4257
      %v4306 = vadd.f32 %v4206, %v4258
      %v4307 = vadd.f32 %v4207, %v4259
      %v4308 = vadd.f32 %v4208, %v4260
      %v4309 = vadd.f32 %v4209, %v4261
      %v4310 = vadd.f32 %v4210, %v4262
      %v4311 = vadd.f32 %v4211, %v4263
      %v4312 = vadd.f32 %v4212, %v4264
      %v4313 = vadd.f32 %v4213, %v4265
      %v4314 = vadd.f32 %v4214, %v4266
      %v4315 = vadd.f32 %v4215, %v4267
      %v4316 = vadd.f32 %v4216, %v4268
      %v4317 = vadd.f32 %v4217, %v4269
      %v4318 = vlaneseq
      %v4319 = vshrl.u32 %v4318, 7
      %v4320 = vsub.s32 7, %v4319
      %v4321 = vrot.slane %v3848, %v4320
      %v4322 = vmul.f32 %v3946, %v4321
      %v4323 = vmul.f32 %v3947, %v4321
      %v4324 = vmul.f32 %v3948, %v4321
      %v4325 = vmul.f32 %v3949, %v4321
      %v4326 = vmul.f32 %v3950, %v4321
      %v4327 = vmul.f32 %v3951, %v4321
      %v4328 = vmul.f32 %v3952, %v4321
      %v4329 = vmul.f32 %v3953, %v4321
      %v4330 = vmul.f32 %v3954, %v4321
      %v4331 = vmul.f32 %v3955, %v4321
      %v4332 = vmul.f32 %v3956, %v4321
      %v4333 = vmul.f32 %v3957, %v4321
      %v4334 = vmul.f32 %v3958, %v4321
      %v4335 = vmul.f32 %v3959, %v4321
      %v4336 = vmul.f32 %v3960, %v4321
      %v4337 = vmul.f32 %v3961, %v4321
      %v4338 = vmul.f32 %v3962, %v4321
      %v4339 = vmul.f32 %v3963, %v4321
      %v4340 = vmul.f32 %v3964, %v4321
      %v4341 = vmul.f32 %v3965, %v4321
      %v4342 = vmul.f32 %v3966, %v4321
      %v4343 = vmul.f32 %v3967, %v4321
      %v4344 = vmul.f32 %v3968, %v4321
      %v4345 = vmul.f32 %v3969, %v4321
      %v4346 = vmul.f32 %v3970, %v4321
      %v4347 = vmul.f32 %v3971, %v4321
      %v4348 = vmul.f32 %v3972, %v4321
      %v4349 = vmul.f32 %v3973, %v4321
      %v4350 = vmul.f32 %v3974, %v4321
      %v4351 = vmul.f32 %v3975, %v4321
      %v4352 = vmul.f32 %v3976, %v4321
      %v4353 = vmul.f32 %v3977, %v4321
      %v4354 = vmul.f32 %v3978, %v4321
      %v4355 = vmul.f32 %v3979, %v4321
      %v4356 = vmul.f32 %v3980, %v4321
      %v4357 = vmul.f32 %v3981, %v4321
      %v4358 = vmul.f32 %v3982, %v4321
      %v4359 = vmul.f32 %v3983, %v4321
      %v4360 = vmul.f32 %v3984, %v4321
      %v4361 = vmul.f32 %v3985, %v4321
      %v4362 = vmul.f32 %v3986, %v4321
      %v4363 = vmul.f32 %v3987, %v4321
      %v4364 = vmul.f32 %v3988, %v4321
      %v4365 = vmul.f32 %v3989, %v4321
      %v4366 = vmul.f32 %v3990, %v4321
      %v4367 = vmul.f32 %v3991, %v4321
      %v4368 = vmul.f32 %v3992, %v4321
      %v4369 = vmul.f32 %v3993, %v4321
      %v4370 = vadd.f32 %v4270, %v4322
      %v4371 = vadd.f32 %v4271, %v4323
      %v4372 = vadd.f32 %v4272, %v4324
      %v4373 = vadd.f32 %v4273, %v4325
      %v4374 = vadd.f32 %v4274, %v4326
      %v4375 = vadd.f32 %v4275, %v4327
      %v4376 = vadd.f32 %v4276, %v4328
      %v4377 = vadd.f32 %v4277, %v4329
      %v4378 = vadd.f32 %v4278, %v4330
      %v4379 = vadd.f32 %v4279, %v4331
      %v4380 = vadd.f32 %v4280, %v4332
      %v4381 = vadd.f32 %v4281, %v4333
      %v4382 = vadd.f32 %v4282, %v4334
      %v4383 = vadd.f32 %v4283, %v4335
      %v4384 = vadd.f32 %v4284, %v4336
      %v4385 = vadd.f32 %v4285, %v4337
      %v4386 = vadd.f32 %v4286, %v4338
      %v4387 = vadd.f32 %v4287, %v4339
      %v4388 = vadd.f32 %v4288, %v4340
      %v4389 = vadd.f32 %v4289, %v4341
      %v4390 = vadd.f32 %v4290, %v4342
      %v4391 = vadd.f32 %v4291, %v4343
      %v4392 = vadd.f32 %v4292, %v4344
      %v4393 = vadd.f32 %v4293, %v4345
      %v4394 = vadd.f32 %v4294, %v4346
      %v4395 = vadd.f32 %v4295, %v4347
      %v4396 = vadd.f32 %v4296, %v4348
      %v4397 = vadd.f32 %v4297, %v4349
      %v4398 = vadd.f32 %v4298, %v4350
      %v4399 = vadd.f32 %v4299, %v4351
      %v4400 = vadd.f32 %v4300, %v4352
      %v4401 = vadd.f32 %v4301, %v4353
      %v4402 = vadd.f32 %v4302, %v4354
      %v4403 = vadd.f32 %v4303, %v4355
      %v4404 = vadd.f32 %v4304, %v4356
      %v4405 = vadd.f32 %v4305, %v4357
      %v4406 = vadd.f32 %v4306, %v4358
      %v4407 = vadd.f32 %v4307, %v4359
      %v4408 = vadd.f32 %v4308, %v4360
      %v4409 = vadd.f32 %v4309, %v4361
      %v4410 = vadd.f32 %v4310, %v4362
      %v4411 = vadd.f32 %v4311, %v4363
      %v4412 = vadd.f32 %v4312, %v4364
      %v4413 = vadd.f32 %v4313, %v4365
      %v4414 = vadd.f32 %v4314, %v4366
      %v4415 = vadd.f32 %v4315, %v4367
      %v4416 = vadd.f32 %v4316, %v4368
      %v4417 = vadd.f32 %v4317, %v4369
      %v4466 = vrot.slane %v4370, 1
      %v4467 = vrot.slane %v4371, 1
      %v4468 = vsel %vm1514, %v4466, %v4467
      %v4469 = vrot.slane %v4372, 1
      %v4470 = vsel %vm1514, %v4467, %v4469
      %v4471 = vrot.slane %v4373, 1
      %v4472 = vrot.slane %v4374, 1
      %v4473 = vsel %vm1514, %v4471, %v4472
      %v4474 = vrot.slane %v4375, 1
      %v4475 = vsel %vm1514, %v4472, %v4474
      %v4476 = vrot.slane %v4376, 1
      %v4477 = vrot.slane %v4377, 1
      %v4478 = vsel %vm1514, %v4476, %v4477
      %v4479 = vrot.slane %v4378, 1
      %v4480 = vsel %vm1514, %v4477, %v4479
      %v4481 = vrot.slane %v4379, 1
      %v4482 = vrot.slane %v4380, 1
      %v4483 = vsel %vm1514, %v4481, %v4482
      %v4484 = vrot.slane %v4381, 1
      %v4485 = vsel %vm1514, %v4482, %v4484
      %v4486 = vrot.slane %v4382, 1
      %v4487 = vrot.slane %v4383, 1
      %v4488 = vsel %vm1514, %v4486, %v4487
      %v4489 = vrot.slane %v4384, 1
      %v4490 = vsel %vm1514, %v4487, %v4489
      %v4491 = vrot.slane %v4385, 1
      %v4492 = vrot.slane %v4386, 1
      %v4493 = vsel %vm1514, %v4491, %v4492
      %v4494 = vrot.slane %v4387, 1
      %v4495 = vsel %vm1514, %v4492, %v4494
      %v4496 = vrot.slane %v4388, 1
      %v4497 = vrot.slane %v4389, 1
      %v4498 = vsel %vm1514, %v4496, %v4497
      %v4499 = vrot.slane %v4390, 1
      %v4500 = vsel %vm1514, %v4497, %v4499
      %v4501 = vrot.slane %v4391, 1
      %v4502 = vrot.slane %v4392, 1
      %v4503 = vsel %vm1514, %v4501, %v4502
      %v4504 = vrot.slane %v4393, 1
      %v4505 = vsel %vm1514, %v4502, %v4504
      %v4506 = vrot.slane %v4394, 1
      %v4507 = vrot.slane %v4395, 1
      %v4508 = vsel %vm1514, %v4506, %v4507
      %v4509 = vrot.slane %v4396, 1
      %v4510 = vsel %vm1514, %v4507, %v4509
      %v4511 = vrot.slane %v4397, 1
      %v4512 = vrot.slane %v4398, 1
      %v4513 = vsel %vm1514, %v4511, %v4512
      %v4514 = vrot.slane %v4399, 1
      %v4515 = vsel %vm1514, %v4512, %v4514
      %v4516 = vrot.slane %v4400, 1
      %v4517 = vrot.slane %v4401, 1
      %v4518 = vsel %vm1514, %v4516, %v4517
      %v4519 = vrot.slane %v4402, 1
      %v4520 = vsel %vm1514, %v4517, %v4519
      %v4521 = vrot.slane %v4403, 1
      %v4522 = vrot.slane %v4404, 1
      %v4523 = vsel %vm1514, %v4521, %v4522
      %v4524 = vrot.slane %v4405, 1
      %v4525 = vsel %vm1514, %v4522, %v4524
      %v4526 = vrot.slane %v4406, 1
      %v4527 = vrot.slane %v4407, 1
      %v4528 = vsel %vm1514, %v4526, %v4527
      %v4529 = vrot.slane %v4408, 1
      %v4530 = vsel %vm1514, %v4527, %v4529
      %v4531 = vrot.slane %v4409, 1
      %v4532 = vrot.slane %v4410, 1
      %v4533 = vsel %vm1514, %v4531, %v4532
      %v4534 = vrot.slane %v4411, 1
      %v4535 = vsel %vm1514, %v4532, %v4534
      %v4536 = vrot.slane %v4412, 1
      %v4537 = vrot.slane %v4413, 1
      %v4538 = vsel %vm1514, %v4536, %v4537
      %v4539 = vrot.slane %v4414, 1
      %v4540 = vsel %vm1514, %v4537, %v4539
      %v4541 = vrot.slane %v4415, 1
      %v4542 = vrot.slane %v4416, 1
      %v4543 = vsel %vm1514, %v4541, %v4542
      %v4544 = vrot.slane %v4417, 1
      %v4545 = vsel %vm1514, %v4542, %v4544
      %v4578 = vadd.f32 %v4134, %v4468
      %v4579 = vadd.f32 %v4135, %v4470
      %v4580 = vadd.f32 %v4136, %v4473
      %v4581 = vadd.f32 %v4137, %v4475
      %v4582 = vadd.f32 %v4138, %v4478
      %v4583 = vadd.f32 %v4139, %v4480
      %v4584 = vadd.f32 %v4140, %v4483
      %v4585 = vadd.f32 %v4141, %v4485
      %v4586 = vadd.f32 %v4142, %v4488
      %v4587 = vadd.f32 %v4143, %v4490
      %v4588 = vadd.f32 %v4144, %v4493
      %v4589 = vadd.f32 %v4145, %v4495
      %v4590 = vadd.f32 %v4146, %v4498
      %v4591 = vadd.f32 %v4147, %v4500
      %v4592 = vadd.f32 %v4148, %v4503
      %v4593 = vadd.f32 %v4149, %v4505
      %v4594 = vadd.f32 %v4150, %v4508
      %v4595 = vadd.f32 %v4151, %v4510
      %v4596 = vadd.f32 %v4152, %v4513
      %v4597 = vadd.f32 %v4153, %v4515
      %v4598 = vadd.f32 %v4154, %v4518
      %v4599 = vadd.f32 %v4155, %v4520
      %v4600 = vadd.f32 %v4156, %v4523
      %v4601 = vadd.f32 %v4157, %v4525
      %v4602 = vadd.f32 %v4158, %v4528
      %v4603 = vadd.f32 %v4159, %v4530
      %v4604 = vadd.f32 %v4160, %v4533
      %v4605 = vadd.f32 %v4161, %v4535
      %v4606 = vadd.f32 %v4162, %v4538
      %v4607 = vadd.f32 %v4163, %v4540
      %v4608 = vadd.f32 %v4164, %v4543
      %v4609 = vadd.f32 %v4165, %v4545
      %v4610 = vlaneseq
      %v4611 = vshrl.u32 %v4610, 7
      %v4612 = vsub.s32 2, %v4611
      %v4613 = vrot.slane %v3848, %v4612
      %v4614 = vmul.f32 %v3850, %v4613
      %v4615 = vmul.f32 %v3851, %v4613
      %v4616 = vmul.f32 %v3852, %v4613
      %v4617 = vmul.f32 %v3853, %v4613
      %v4618 = vmul.f32 %v3854, %v4613
      %v4619 = vmul.f32 %v3855, %v4613
      %v4620 = vmul.f32 %v3856, %v4613
      %v4621 = vmul.f32 %v3857, %v4613
      %v4622 = vmul.f32 %v3858, %v4613
      %v4623 = vmul.f32 %v3859, %v4613
      %v4624 = vmul.f32 %v3860, %v4613
      %v4625 = vmul.f32 %v3861, %v4613
      %v4626 = vmul.f32 %v3862, %v4613
      %v4627 = vmul.f32 %v3863, %v4613
      %v4628 = vmul.f32 %v3864, %v4613
      %v4629 = vmul.f32 %v3865, %v4613
      %v4630 = vmul.f32 %v3866, %v4613
      %v4631 = vmul.f32 %v3867, %v4613
      %v4632 = vmul.f32 %v3868, %v4613
      %v4633 = vmul.f32 %v3869, %v4613
      %v4634 = vmul.f32 %v3870, %v4613
      %v4635 = vmul.f32 %v3871, %v4613
      %v4636 = vmul.f32 %v3872, %v4613
      %v4637 = vmul.f32 %v3873, %v4613
      %v4638 = vmul.f32 %v3874, %v4613
      %v4639 = vmul.f32 %v3875, %v4613
      %v4640 = vmul.f32 %v3876, %v4613
      %v4641 = vmul.f32 %v3877, %v4613
      %v4642 = vmul.f32 %v3878, %v4613
      %v4643 = vmul.f32 %v3879, %v4613
      %v4644 = vmul.f32 %v3880, %v4613
      %v4645 = vmul.f32 %v3881, %v4613
      %v4646 = vmul.f32 %v3882, %v4613
      %v4647 = vmul.f32 %v3883, %v4613
      %v4648 = vmul.f32 %v3884, %v4613
      %v4649 = vmul.f32 %v3885, %v4613
      %v4650 = vmul.f32 %v3886, %v4613
      %v4651 = vmul.f32 %v3887, %v4613
      %v4652 = vmul.f32 %v3888, %v4613
      %v4653 = vmul.f32 %v3889, %v4613
      %v4654 = vmul.f32 %v3890, %v4613
      %v4655 = vmul.f32 %v3891, %v4613
      %v4656 = vmul.f32 %v3892, %v4613
      %v4657 = vmul.f32 %v3893, %v4613
      %v4658 = vmul.f32 %v3894, %v4613
      %v4659 = vmul.f32 %v3895, %v4613
      %v4660 = vmul.f32 %v3896, %v4613
      %v4661 = vmul.f32 %v3897, %v4613
      %v4662 = vlaneseq
      %v4663 = vshrl.u32 %v4662, 7
      %v4664 = vsub.s32 5, %v4663
      %v4665 = vrot.slane %v3848, %v4664
      %v4666 = vmul.f32 %v3898, %v4665
      %v4667 = vmul.f32 %v3899, %v4665
      %v4668 = vmul.f32 %v3900, %v4665
      %v4669 = vmul.f32 %v3901, %v4665
      %v4670 = vmul.f32 %v3902, %v4665
      %v4671 = vmul.f32 %v3903, %v4665
      %v4672 = vmul.f32 %v3904, %v4665
      %v4673 = vmul.f32 %v3905, %v4665
      %v4674 = vmul.f32 %v3906, %v4665
      %v4675 = vmul.f32 %v3907, %v4665
      %v4676 = vmul.f32 %v3908, %v4665
      %v4677 = vmul.f32 %v3909, %v4665
      %v4678 = vmul.f32 %v3910, %v4665
      %v4679 = vmul.f32 %v3911, %v4665
      %v4680 = vmul.f32 %v3912, %v4665
      %v4681 = vmul.f32 %v3913, %v4665
      %v4682 = vmul.f32 %v3914, %v4665
      %v4683 = vmul.f32 %v3915, %v4665
      %v4684 = vmul.f32 %v3916, %v4665
      %v4685 = vmul.f32 %v3917, %v4665
      %v4686 = vmul.f32 %v3918, %v4665
      %v4687 = vmul.f32 %v3919, %v4665
      %v4688 = vmul.f32 %v3920, %v4665
      %v4689 = vmul.f32 %v3921, %v4665
      %v4690 = vmul.f32 %v3922, %v4665
      %v4691 = vmul.f32 %v3923, %v4665
      %v4692 = vmul.f32 %v3924, %v4665
      %v4693 = vmul.f32 %v3925, %v4665
      %v4694 = vmul.f32 %v3926, %v4665
      %v4695 = vmul.f32 %v3927, %v4665
      %v4696 = vmul.f32 %v3928, %v4665
      %v4697 = vmul.f32 %v3929, %v4665
      %v4698 = vmul.f32 %v3930, %v4665
      %v4699 = vmul.f32 %v3931, %v4665
      %v4700 = vmul.f32 %v3932, %v4665
      %v4701 = vmul.f32 %v3933, %v4665
      %v4702 = vmul.f32 %v3934, %v4665
      %v4703 = vmul.f32 %v3935, %v4665
      %v4704 = vmul.f32 %v3936, %v4665
      %v4705 = vmul.f32 %v3937, %v4665
      %v4706 = vmul.f32 %v3938, %v4665
      %v4707 = vmul.f32 %v3939, %v4665
      %v4708 = vmul.f32 %v3940, %v4665
      %v4709 = vmul.f32 %v3941, %v4665
      %v4710 = vmul.f32 %v3942, %v4665
      %v4711 = vmul.f32 %v3943, %v4665
      %v4712 = vmul.f32 %v3944, %v4665
      %v4713 = vmul.f32 %v3945, %v4665
      %v4714 = vadd.f32 %v4614, %v4666
      %v4715 = vadd.f32 %v4615, %v4667
      %v4716 = vadd.f32 %v4616, %v4668
      %v4717 = vadd.f32 %v4617, %v4669
      %v4718 = vadd.f32 %v4618, %v4670
      %v4719 = vadd.f32 %v4619, %v4671
      %v4720 = vadd.f32 %v4620, %v4672
      %v4721 = vadd.f32 %v4621, %v4673
      %v4722 = vadd.f32 %v4622, %v4674
      %v4723 = vadd.f32 %v4623, %v4675
      %v4724 = vadd.f32 %v4624, %v4676
      %v4725 = vadd.f32 %v4625, %v4677
      %v4726 = vadd.f32 %v4626, %v4678
      %v4727 = vadd.f32 %v4627, %v4679
      %v4728 = vadd.f32 %v4628, %v4680
      %v4729 = vadd.f32 %v4629, %v4681
      %v4730 = vadd.f32 %v4630, %v4682
      %v4731 = vadd.f32 %v4631, %v4683
      %v4732 = vadd.f32 %v4632, %v4684
      %v4733 = vadd.f32 %v4633, %v4685
      %v4734 = vadd.f32 %v4634, %v4686
      %v4735 = vadd.f32 %v4635, %v4687
      %v4736 = vadd.f32 %v4636, %v4688
      %v4737 = vadd.f32 %v4637, %v4689
      %v4738 = vadd.f32 %v4638, %v4690
      %v4739 = vadd.f32 %v4639, %v4691
      %v4740 = vadd.f32 %v4640, %v4692
      %v4741 = vadd.f32 %v4641, %v4693
      %v4742 = vadd.f32 %v4642, %v4694
      %v4743 = vadd.f32 %v4643, %v4695
      %v4744 = vadd.f32 %v4644, %v4696
      %v4745 = vadd.f32 %v4645, %v4697
      %v4746 = vadd.f32 %v4646, %v4698
      %v4747 = vadd.f32 %v4647, %v4699
      %v4748 = vadd.f32 %v4648, %v4700
      %v4749 = vadd.f32 %v4649, %v4701
      %v4750 = vadd.f32 %v4650, %v4702
      %v4751 = vadd.f32 %v4651, %v4703
      %v4752 = vadd.f32 %v4652, %v4704
      %v4753 = vadd.f32 %v4653, %v4705
      %v4754 = vadd.f32 %v4654, %v4706
      %v4755 = vadd.f32 %v4655, %v4707
      %v4756 = vadd.f32 %v4656, %v4708
      %v4757 = vadd.f32 %v4657, %v4709
      %v4758 = vadd.f32 %v4658, %v4710
      %v4759 = vadd.f32 %v4659, %v4711
      %v4760 = vadd.f32 %v4660, %v4712
      %v4761 = vadd.f32 %v4661, %v4713
      %v4762 = vlaneseq
      %v4763 = vshrl.u32 %v4762, 7
      %v4764 = vsub.s32 0, %v4763
      %v4765 = vrot.slane %v3849, %v4764
      %v4766 = vmul.f32 %v3946, %v4765
      %v4767 = vmul.f32 %v3947, %v4765
      %v4768 = vmul.f32 %v3948, %v4765
      %v4769 = vmul.f32 %v3949, %v4765
      %v4770 = vmul.f32 %v3950, %v4765
      %v4771 = vmul.f32 %v3951, %v4765
      %v4772 = vmul.f32 %v3952, %v4765
      %v4773 = vmul.f32 %v3953, %v4765
      %v4774 = vmul.f32 %v3954, %v4765
      %v4775 = vmul.f32 %v3955, %v4765
      %v4776 = vmul.f32 %v3956, %v4765
      %v4777 = vmul.f32 %v3957, %v4765
      %v4778 = vmul.f32 %v3958, %v4765
      %v4779 = vmul.f32 %v3959, %v4765
      %v4780 = vmul.f32 %v3960, %v4765
      %v4781 = vmul.f32 %v3961, %v4765
      %v4782 = vmul.f32 %v3962, %v4765
      %v4783 = vmul.f32 %v3963, %v4765
      %v4784 = vmul.f32 %v3964, %v4765
      %v4785 = vmul.f32 %v3965, %v4765
      %v4786 = vmul.f32 %v3966, %v4765
      %v4787 = vmul.f32 %v3967, %v4765
      %v4788 = vmul.f32 %v3968, %v4765
      %v4789 = vmul.f32 %v3969, %v4765
      %v4790 = vmul.f32 %v3970, %v4765
      %v4791 = vmul.f32 %v3971, %v4765
      %v4792 = vmul.f32 %v3972, %v4765
      %v4793 = vmul.f32 %v3973, %v4765
      %v4794 = vmul.f32 %v3974, %v4765
      %v4795 = vmul.f32 %v3975, %v4765
      %v4796 = vmul.f32 %v3976, %v4765
      %v4797 = vmul.f32 %v3977, %v4765
      %v4798 = vmul.f32 %v3978, %v4765
      %v4799 = vmul.f32 %v3979, %v4765
      %v4800 = vmul.f32 %v3980, %v4765
      %v4801 = vmul.f32 %v3981, %v4765
      %v4802 = vmul.f32 %v3982, %v4765
      %v4803 = vmul.f32 %v3983, %v4765
      %v4804 = vmul.f32 %v3984, %v4765
      %v4805 = vmul.f32 %v3985, %v4765
      %v4806 = vmul.f32 %v3986, %v4765
      %v4807 = vmul.f32 %v3987, %v4765
      %v4808 = vmul.f32 %v3988, %v4765
      %v4809 = vmul.f32 %v3989, %v4765
      %v4810 = vmul.f32 %v3990, %v4765
      %v4811 = vmul.f32 %v3991, %v4765
      %v4812 = vmul.f32 %v3992, %v4765
      %v4813 = vmul.f32 %v3993, %v4765
      %v4814 = vadd.f32 %v4714, %v4766
      %v4815 = vadd.f32 %v4715, %v4767
      %v4816 = vadd.f32 %v4716, %v4768
      %v4817 = vadd.f32 %v4717, %v4769
      %v4818 = vadd.f32 %v4718, %v4770
      %v4819 = vadd.f32 %v4719, %v4771
      %v4820 = vadd.f32 %v4720, %v4772
      %v4821 = vadd.f32 %v4721, %v4773
      %v4822 = vadd.f32 %v4722, %v4774
      %v4823 = vadd.f32 %v4723, %v4775
      %v4824 = vadd.f32 %v4724, %v4776
      %v4825 = vadd.f32 %v4725, %v4777
      %v4826 = vadd.f32 %v4726, %v4778
      %v4827 = vadd.f32 %v4727, %v4779
      %v4828 = vadd.f32 %v4728, %v4780
      %v4829 = vadd.f32 %v4729, %v4781
      %v4830 = vadd.f32 %v4730, %v4782
      %v4831 = vadd.f32 %v4731, %v4783
      %v4832 = vadd.f32 %v4732, %v4784
      %v4833 = vadd.f32 %v4733, %v4785
      %v4834 = vadd.f32 %v4734, %v4786
      %v4835 = vadd.f32 %v4735, %v4787
      %v4836 = vadd.f32 %v4736, %v4788
      %v4837 = vadd.f32 %v4737, %v4789
      %v4838 = vadd.f32 %v4738, %v4790
      %v4839 = vadd.f32 %v4739, %v4791
      %v4840 = vadd.f32 %v4740, %v4792
      %v4841 = vadd.f32 %v4741, %v4793
      %v4842 = vadd.f32 %v4742, %v4794
      %v4843 = vadd.f32 %v4743, %v4795
      %v4844 = vadd.f32 %v4744, %v4796
      %v4845 = vadd.f32 %v4745, %v4797
      %v4846 = vadd.f32 %v4746, %v4798
      %v4847 = vadd.f32 %v4747, %v4799
      %v4848 = vadd.f32 %v4748, %v4800
      %v4849 = vadd.f32 %v4749, %v4801
      %v4850 = vadd.f32 %v4750, %v4802
      %v4851 = vadd.f32 %v4751, %v4803
      %v4852 = vadd.f32 %v4752, %v4804
      %v4853 = vadd.f32 %v4753, %v4805
      %v4854 = vadd.f32 %v4754, %v4806
      %v4855 = vadd.f32 %v4755, %v4807
      %v4856 = vadd.f32 %v4756, %v4808
      %v4857 = vadd.f32 %v4757, %v4809
      %v4858 = vadd.f32 %v4758, %v4810
      %v4859 = vadd.f32 %v4759, %v4811
      %v4860 = vadd.f32 %v4760, %v4812
      %v4861 = vadd.f32 %v4761, %v4813
      %v4910 = vrot.slane %v4814, 2
      %v4911 = vrot.slane %v4815, 2
      %v4912 = vsel %vm1959, %v4910, %v4911
      %v4913 = vrot.slane %v4816, 2
      %v4914 = vsel %vm1959, %v4911, %v4913
      %v4915 = vrot.slane %v4817, 2
      %v4916 = vrot.slane %v4818, 2
      %v4917 = vsel %vm1959, %v4915, %v4916
      %v4918 = vrot.slane %v4819, 2
      %v4919 = vsel %vm1959, %v4916, %v4918
      %v4920 = vrot.slane %v4820, 2
      %v4921 = vrot.slane %v4821, 2
      %v4922 = vsel %vm1959, %v4920, %v4921
      %v4923 = vrot.slane %v4822, 2
      %v4924 = vsel %vm1959, %v4921, %v4923
      %v4925 = vrot.slane %v4823, 2
      %v4926 = vrot.slane %v4824, 2
      %v4927 = vsel %vm1959, %v4925, %v4926
      %v4928 = vrot.slane %v4825, 2
      %v4929 = vsel %vm1959, %v4926, %v4928
      %v4930 = vrot.slane %v4826, 2
      %v4931 = vrot.slane %v4827, 2
      %v4932 = vsel %vm1959, %v4930, %v4931
      %v4933 = vrot.slane %v4828, 2
      %v4934 = vsel %vm1959, %v4931, %v4933
      %v4935 = vrot.slane %v4829, 2
      %v4936 = vrot.slane %v4830, 2
      %v4937 = vsel %vm1959, %v4935, %v4936
      %v4938 = vrot.slane %v4831, 2
      %v4939 = vsel %vm1959, %v4936, %v4938
      %v4940 = vrot.slane %v4832, 2
      %v4941 = vrot.slane %v4833, 2
      %v4942 = vsel %vm1959, %v4940, %v4941
      %v4943 = vrot.slane %v4834, 2
      %v4944 = vsel %vm1959, %v4941, %v4943
      %v4945 = vrot.slane %v4835, 2
      %v4946 = vrot.slane %v4836, 2
      %v4947 = vsel %vm1959, %v4945, %v4946
      %v4948 = vrot.slane %v4837, 2
      %v4949 = vsel %vm1959, %v4946, %v4948
      %v4950 = vrot.slane %v4838, 2
      %v4951 = vrot.slane %v4839, 2
      %v4952 = vsel %vm1959, %v4950, %v4951
      %v4953 = vrot.slane %v4840, 2
      %v4954 = vsel %vm1959, %v4951, %v4953
      %v4955 = vrot.slane %v4841, 2
      %v4956 = vrot.slane %v4842, 2
      %v4957 = vsel %vm1959, %v4955, %v4956
      %v4958 = vrot.slane %v4843, 2
      %v4959 = vsel %vm1959, %v4956, %v4958
      %v4960 = vrot.slane %v4844, 2
      %v4961 = vrot.slane %v4845, 2
      %v4962 = vsel %vm1959, %v4960, %v4961
      %v4963 = vrot.slane %v4846, 2
      %v4964 = vsel %vm1959, %v4961, %v4963
      %v4965 = vrot.slane %v4847, 2
      %v4966 = vrot.slane %v4848, 2
      %v4967 = vsel %vm1959, %v4965, %v4966
      %v4968 = vrot.slane %v4849, 2
      %v4969 = vsel %vm1959, %v4966, %v4968
      %v4970 = vrot.slane %v4850, 2
      %v4971 = vrot.slane %v4851, 2
      %v4972 = vsel %vm1959, %v4970, %v4971
      %v4973 = vrot.slane %v4852, 2
      %v4974 = vsel %vm1959, %v4971, %v4973
      %v4975 = vrot.slane %v4853, 2
      %v4976 = vrot.slane %v4854, 2
      %v4977 = vsel %vm1959, %v4975, %v4976
      %v4978 = vrot.slane %v4855, 2
      %v4979 = vsel %vm1959, %v4976, %v4978
      %v4980 = vrot.slane %v4856, 2
      %v4981 = vrot.slane %v4857, 2
      %v4982 = vsel %vm1959, %v4980, %v4981
      %v4983 = vrot.slane %v4858, 2
      %v4984 = vsel %vm1959, %v4981, %v4983
      %v4985 = vrot.slane %v4859, 2
      %v4986 = vrot.slane %v4860, 2
      %v4987 = vsel %vm1959, %v4985, %v4986
      %v4988 = vrot.slane %v4861, 2
      %v4989 = vsel %vm1959, %v4986, %v4988
      %v5022 = vadd.f32 %v4578, %v4912
      %v5023 = vadd.f32 %v4579, %v4914
      %v5024 = vadd.f32 %v4580, %v4917
      %v5025 = vadd.f32 %v4581, %v4919
      %v5026 = vadd.f32 %v4582, %v4922
      %v5027 = vadd.f32 %v4583, %v4924
      %v5028 = vadd.f32 %v4584, %v4927
      %v5029 = vadd.f32 %v4585, %v4929
      %v5030 = vadd.f32 %v4586, %v4932
      %v5031 = vadd.f32 %v4587, %v4934
      %v5032 = vadd.f32 %v4588, %v4937
      %v5033 = vadd.f32 %v4589, %v4939
      %v5034 = vadd.f32 %v4590, %v4942
      %v5035 = vadd.f32 %v4591, %v4944
      %v5036 = vadd.f32 %v4592, %v4947
      %v5037 = vadd.f32 %v4593, %v4949
      %v5038 = vadd.f32 %v4594, %v4952
      %v5039 = vadd.f32 %v4595, %v4954
      %v5040 = vadd.f32 %v4596, %v4957
      %v5041 = vadd.f32 %v4597, %v4959
      %v5042 = vadd.f32 %v4598, %v4962
      %v5043 = vadd.f32 %v4599, %v4964
      %v5044 = vadd.f32 %v4600, %v4967
      %v5045 = vadd.f32 %v4601, %v4969
      %v5046 = vadd.f32 %v4602, %v4972
      %v5047 = vadd.f32 %v4603, %v4974
      %v5048 = vadd.f32 %v4604, %v4977
      %v5049 = vadd.f32 %v4605, %v4979
      %v5050 = vadd.f32 %v4606, %v4982
      %v5051 = vadd.f32 %v4607, %v4984
      %v5052 = vadd.f32 %v4608, %v4987
      %v5053 = vadd.f32 %v4609, %v4989
      %v5054 = vld [vmem:[%s9] sm:$0x1]
      %v5056 = vlaneseq
      %v5057 = vshrl.u32 %v5056, 7
      %v5058 = vsub.s32 0, %v5057
      %v5059 = vrot.slane %v5054, %v5058
      %v5061 = vadd.f32 %v5022, %v5059
      %v5062 = vadd.f32 %v5023, %v5059
      %v5063 = vadd.f32 %v5024, %v5059
      %v5064 = vadd.f32 %v5025, %v5059
      %v5065 = vadd.f32 %v5026, %v5059
      %v5066 = vadd.f32 %v5027, %v5059
      %v5067 = vadd.f32 %v5028, %v5059
      %v5068 = vadd.f32 %v5029, %v5059
      %v5069 = vadd.f32 %v5030, %v5059
      %v5070 = vadd.f32 %v5031, %v5059
      %v5071 = vadd.f32 %v5032, %v5059
      %v5072 = vadd.f32 %v5033, %v5059
      %v5073 = vadd.f32 %v5034, %v5059
      %v5074 = vadd.f32 %v5035, %v5059
      %v5075 = vadd.f32 %v5036, %v5059
      %v5076 = vadd.f32 %v5037, %v5059
      %v5077 = vadd.f32 %v5038, %v5059
      %v5078 = vadd.f32 %v5039, %v5059
      %v5079 = vadd.f32 %v5040, %v5059
      %v5080 = vadd.f32 %v5041, %v5059
      %v5081 = vadd.f32 %v5042, %v5059
      %v5082 = vadd.f32 %v5043, %v5059
      %v5083 = vadd.f32 %v5044, %v5059
      %v5084 = vadd.f32 %v5045, %v5059
      %v5085 = vadd.f32 %v5046, %v5059
      %v5086 = vadd.f32 %v5047, %v5059
      %v5087 = vadd.f32 %v5048, %v5059
      %v5088 = vadd.f32 %v5049, %v5059
      %v5089 = vadd.f32 %v5050, %v5059
      %v5090 = vadd.f32 %v5051, %v5059
      %v5091 = vadd.f32 %v5052, %v5059
      %v5092 = vadd.f32 %v5053, %v5059
      %s5093 = scalar_lea.vmem %s6, 2
      %v5094 = vld [vmem:[%s5093] sm:$0x3]
      %s5095 = scalar_lea.vmem %s7, 1
      %v5096 = vld [vmem:[%s5095] sm:$0x1]
      %v5098 = vlaneseq
      %v5099 = vshrl.u32 %v5098, 7
      %v5100 = vsub.s32 0, %v5099
      %v5101 = vrot.slane %v5096, %v5100
      %v5104 = vsel %vm697, %v5094, 0
      %5106 = vmatprep.subr.bf16.mxu0 0
      %5107 = vmatpush1.bf16.msra.mxu0 %v5104
      %5108 = vmatprep.subr.bf16.mxu0 0
      %5109 = vmatpush1.bf16.msra.mxu0 0
      %5110 = vmatprep.subr.bf16.mxu0 0
      %5111 = vmatpush1.bf16.msra.mxu0 0
      %5112 = vmatprep.subr.bf16.mxu0 0
      %5113 = vmatpush1.bf16.msra.mxu0 0
      %5114 = vmatprep.subr.bf16.mxu0 0
      %5115 = vmatpush1.bf16.msra.mxu0 0
      %5116 = vmatprep.subr.bf16.mxu0 0
      %5117 = vmatpush1.bf16.msra.mxu0 0
      %5118 = vmatprep.subr.bf16.mxu0 0
      %5119 = vmatpush1.bf16.msra.mxu0 0
      %5120 = vmatprep.subr.bf16.mxu0 0
      %5121 = vmatpush1.bf16.msra.mxu0 0
      %5122 = vmatprep.subr.bf16.mxu0 0
      %5123 = vmatpush1.bf16.msra.mxu0 0
      %5124 = vmatprep.subr.bf16.mxu0 0
      %5125 = vmatpush1.bf16.msra.mxu0 0
      %5126 = vmatprep.subr.bf16.mxu0 0
      %5127 = vmatpush1.bf16.msra.mxu0 0
      %5128 = vmatprep.subr.bf16.mxu0 0
      %5129 = vmatpush1.bf16.msra.mxu0 0
      %5130 = vmatprep.subr.bf16.mxu0 0
      %5131 = vmatpush1.bf16.msra.mxu0 0
      %5132 = vmatprep.subr.bf16.mxu0 0
      %5133 = vmatpush1.bf16.msra.mxu0 0
      %5134 = vmatprep.subr.bf16.mxu0 0
      %5135 = vmatpush1.bf16.msra.mxu0 0
      %5136 = vmatprep.subr.bf16.mxu0 0
      %5137 = vmatpush1.bf16.msra.mxu0 0
      %5138 = vmatprep.mubr.bf16.mxu0 0
      %5139 = vmatmul.mubr.bf16.gmra.mrb[0].mxu0 %v3605
      %v5140 = vpop.f32.mrb[0].mxu0
      %v5141 = vadd.f32 %v5101, %v5140
      %v5142 = vpop.f32.mrb[0].mxu0
      %v5143 = vpop.f32.mrb[0].mxu0
      %v5144 = vadd.f32 %v5101, %v5143
      %v5145 = vpop.f32.mrb[0].mxu0
      %5146 = vmatprep.mubr.bf16.mxu0 0
      %5147 = vmatmul.mubr.bf16.gmra.mrb[0].mxu0 %v3608
      %v5148 = vpop.f32.mrb[0].mxu0
      %v5149 = vadd.f32 %v5101, %v5148
      %v5150 = vpop.f32.mrb[0].mxu0
      %v5151 = vpop.f32.mrb[0].mxu0
      %v5152 = vadd.f32 %v5101, %v5151
      %v5153 = vpop.f32.mrb[0].mxu0
      %5154 = vmatprep.mubr.bf16.mxu0 0
      %5155 = vmatmul.mubr.bf16.gmra.mrb[0].mxu0 %v3611
      %v5156 = vpop.f32.mrb[0].mxu0
      %v5157 = vadd.f32 %v5101, %v5156
      %v5158 = vpop.f32.mrb[0].mxu0
      %v5159 = vpop.f32.mrb[0].mxu0
      %v5160 = vadd.f32 %v5101, %v5159
      %v5161 = vpop.f32.mrb[0].mxu0
      %5162 = vmatprep.mubr.bf16.mxu0 0
      %5163 = vmatmul.mubr.bf16.gmra.mrb[0].mxu0 %v3614
      %v5164 = vpop.f32.mrb[0].mxu0
      %v5165 = vadd.f32 %v5101, %v5164
      %v5166 = vpop.f32.mrb[0].mxu0
      %v5167 = vpop.f32.mrb[0].mxu0
      %v5168 = vadd.f32 %v5101, %v5167
      %v5169 = vpop.f32.mrb[0].mxu0
      %5170 = vmatprep.mubr.bf16.mxu0 0
      %5171 = vmatmul.mubr.bf16.gmra.mrb[0].mxu0 %v3617
      %v5172 = vpop.f32.mrb[0].mxu0
      %v5173 = vadd.f32 %v5101, %v5172
      %v5174 = vpop.f32.mrb[0].mxu0
      %v5175 = vpop.f32.mrb[0].mxu0
      %v5176 = vadd.f32 %v5101, %v5175
      %v5177 = vpop.f32.mrb[0].mxu0
      %5178 = vmatprep.mubr.bf16.mxu0 0
      %5179 = vmatmul.mubr.bf16.gmra.mrb[0].mxu0 %v3620
      %v5180 = vpop.f32.mrb[0].mxu0
      %v5181 = vadd.f32 %v5101, %v5180
      %v5182 = vpop.f32.mrb[0].mxu0
      %v5183 = vpop.f32.mrb[0].mxu0
      %v5184 = vadd.f32 %v5101, %v5183
      %v5185 = vpop.f32.mrb[0].mxu0
      %5186 = vmatprep.mubr.bf16.mxu0 0
      %5187 = vmatmul.mubr.bf16.gmra.mrb[0].mxu0 %v3623
      %v5188 = vpop.f32.mrb[0].mxu0
      %v5189 = vadd.f32 %v5101, %v5188
      %v5190 = vpop.f32.mrb[0].mxu0
      %v5191 = vpop.f32.mrb[0].mxu0
      %v5192 = vadd.f32 %v5101, %v5191
      %v5193 = vpop.f32.mrb[0].mxu0
      %5194 = vmatprep.mubr.bf16.mxu0 0
      %5195 = vmatmul.mubr.bf16.gmra.mrb[0].mxu0 %v3626
      %v5196 = vpop.f32.mrb[0].mxu0
      %v5197 = vadd.f32 %v5101, %v5196
      %v5198 = vpop.f32.mrb[0].mxu0
      %v5199 = vpop.f32.mrb[0].mxu0
      %v5200 = vadd.f32 %v5101, %v5199
      %v5201 = vpop.f32.mrb[0].mxu0
      %5202 = vmatprep.mubr.bf16.mxu0 0
      %5203 = vmatmul.mubr.bf16.gmra.mrb[0].mxu0 %v3629
      %v5204 = vpop.f32.mrb[0].mxu0
      %v5205 = vadd.f32 %v5101, %v5204
      %v5206 = vpop.f32.mrb[0].mxu0
      %v5207 = vpop.f32.mrb[0].mxu0
      %v5208 = vadd.f32 %v5101, %v5207
      %v5209 = vpop.f32.mrb[0].mxu0
      %5210 = vmatprep.mubr.bf16.mxu0 0
      %5211 = vmatmul.mubr.bf16.gmra.mrb[0].mxu0 %v3632
      %v5212 = vpop.f32.mrb[0].mxu0
      %v5213 = vadd.f32 %v5101, %v5212
      %v5214 = vpop.f32.mrb[0].mxu0
      %v5215 = vpop.f32.mrb[0].mxu0
      %v5216 = vadd.f32 %v5101, %v5215
      %v5217 = vpop.f32.mrb[0].mxu0
      %5218 = vmatprep.mubr.bf16.mxu0 0
      %5219 = vmatmul.mubr.bf16.gmra.mrb[0].mxu0 %v3635
      %v5220 = vpop.f32.mrb[0].mxu0
      %v5221 = vadd.f32 %v5101, %v5220
      %v5222 = vpop.f32.mrb[0].mxu0
      %v5223 = vpop.f32.mrb[0].mxu0
      %v5224 = vadd.f32 %v5101, %v5223
      %v5225 = vpop.f32.mrb[0].mxu0
      %5226 = vmatprep.mubr.bf16.mxu0 0
      %5227 = vmatmul.mubr.bf16.gmra.mrb[0].mxu0 %v3638
      %v5228 = vpop.f32.mrb[0].mxu0
      %v5229 = vadd.f32 %v5101, %v5228
      %v5230 = vpop.f32.mrb[0].mxu0
      %v5231 = vpop.f32.mrb[0].mxu0
      %v5232 = vadd.f32 %v5101, %v5231
      %v5233 = vpop.f32.mrb[0].mxu0
      %5234 = vmatprep.mubr.bf16.mxu0 0
      %5235 = vmatmul.mubr.bf16.gmra.mrb[0].mxu0 %v3641
      %v5236 = vpop.f32.mrb[0].mxu0
      %v5237 = vadd.f32 %v5101, %v5236
      %v5238 = vpop.f32.mrb[0].mxu0
      %v5239 = vpop.f32.mrb[0].mxu0
      %v5240 = vadd.f32 %v5101, %v5239
      %v5241 = vpop.f32.mrb[0].mxu0
      %5242 = vmatprep.mubr.bf16.mxu0 0
      %5243 = vmatmul.mubr.bf16.gmra.mrb[0].mxu0 %v3644
      %v5244 = vpop.f32.mrb[0].mxu0
      %v5245 = vadd.f32 %v5101, %v5244
      %v5246 = vpop.f32.mrb[0].mxu0
      %v5247 = vpop.f32.mrb[0].mxu0
      %v5248 = vadd.f32 %v5101, %v5247
      %v5249 = vpop.f32.mrb[0].mxu0
      %5250 = vmatprep.mubr.bf16.mxu0 0
      %5251 = vmatmul.mubr.bf16.gmra.mrb[0].mxu0 %v3647
      %v5252 = vpop.f32.mrb[0].mxu0
      %v5253 = vadd.f32 %v5101, %v5252
      %v5254 = vpop.f32.mrb[0].mxu0
      %v5255 = vpop.f32.mrb[0].mxu0
      %v5256 = vadd.f32 %v5101, %v5255
      %v5257 = vpop.f32.mrb[0].mxu0
      %5258 = vmatprep.mubr.bf16.mxu0 0
      %5259 = vmatmul.mubr.bf16.gmra.mrb[0].mxu0 %v3650
      %v5260 = vpop.f32.mrb[0].mxu0
      %v5261 = vadd.f32 %v5101, %v5260
      %v5262 = vpop.f32.mrb[0].mxu0
      %v5263 = vpop.f32.mrb[0].mxu0
      %v5264 = vadd.f32 %v5101, %v5263
      %v5265 = vpop.f32.mrb[0].mxu0
      %5266 = vdwg.mxu0
      %5267 = vst.msk [vmem:[%s862 + $0x1] sm:$0xff] %vm489, %v5141
      %5268 = vst.msk [vmem:[%s862 + $0x9] sm:$0xff] %vm489, %v5144
      %5269 = vst.msk [vmem:[%s862 + $0x19] sm:$0xff] %vm489, %v5149
      %5270 = vst.msk [vmem:[%s862 + $0x21] sm:$0xff] %vm489, %v5152
      %5271 = vst.msk [vmem:[%s862 + $0x31] sm:$0xff] %vm489, %v5157
      %5272 = vst.msk [vmem:[%s862 + $0x39] sm:$0xff] %vm489, %v5160
      %5273 = vst.msk [vmem:[%s862 + $0x49] sm:$0xff] %vm489, %v5165
      %5274 = vst.msk [vmem:[%s862 + $0x51] sm:$0xff] %vm489, %v5168
      %5275 = vst.msk [vmem:[%s862 + $0x61] sm:$0xff] %vm489, %v5173
      %5276 = vst.msk [vmem:[%s862 + $0x69] sm:$0xff] %vm489, %v5176
      %5277 = vst.msk [vmem:[%s862 + $0x79] sm:$0xff] %vm489, %v5181
      %5278 = vst.msk [vmem:[%s862 + $0x81] sm:$0xff] %vm489, %v5184
      %5279 = vst.msk [vmem:[%s862 + $0x91] sm:$0xff] %vm489, %v5189
      %5280 = vst.msk [vmem:[%s862 + $0x99] sm:$0xff] %vm489, %v5192
      %5281 = vst.msk [vmem:[%s862 + $0xa9] sm:$0xff] %vm489, %v5197
      %5282 = vst.msk [vmem:[%s862 + $0xb1] sm:$0xff] %vm489, %v5200
      %5283 = vst.msk [vmem:[%s862 + $0xc1] sm:$0xff] %vm489, %v5205
      %5284 = vst.msk [vmem:[%s862 + $0xc9] sm:$0xff] %vm489, %v5208
      %5285 = vst.msk [vmem:[%s862 + $0xd9] sm:$0xff] %vm489, %v5213
      %5286 = vst.msk [vmem:[%s862 + $0xe1] sm:$0xff] %vm489, %v5216
      %5287 = vst.msk [vmem:[%s862 + $0xf1] sm:$0xff] %vm489, %v5221
      %5288 = vst.msk [vmem:[%s862 + $0xf9] sm:$0xff] %vm489, %v5224
      %5289 = vst.msk [vmem:[%s862 + $0x109] sm:$0xff] %vm489, %v5229
      %5290 = vst.msk [vmem:[%s862 + $0x111] sm:$0xff] %vm489, %v5232
      %5291 = vst.msk [vmem:[%s862 + $0x121] sm:$0xff] %vm489, %v5237
      %5292 = vst.msk [vmem:[%s862 + $0x129] sm:$0xff] %vm489, %v5240
      %5293 = vst.msk [vmem:[%s862 + $0x139] sm:$0xff] %vm489, %v5245
      %5294 = vst.msk [vmem:[%s862 + $0x141] sm:$0xff] %vm489, %v5248
      %5295 = vst.msk [vmem:[%s862 + $0x151] sm:$0xff] %vm489, %v5253
      %5296 = vst.msk [vmem:[%s862 + $0x159] sm:$0xff] %vm489, %v5256
      %5297 = vst.msk [vmem:[%s862 + $0x169] sm:$0xff] %vm489, %v5261
      %5298 = vst.msk [vmem:[%s862 + $0x171] sm:$0xff] %vm489, %v5264
      %s5299 = scalar_lea.vmem %s8, 16
      %v5300 = vld [vmem:[%s5299] sm:$0xff]
      %v5301 = vld [vmem:[%s5299 + $0x8] sm:$0x1]
      %v5302 = vld [vmem:[#allocation2] sm:$0xff]
      %v5303 = vld [vmem:[#allocation2 + $0x8] sm:$0xff]
      %v5304 = vld [vmem:[#allocation2 + $0x10] sm:$0x3]
      %v5305 = vld [vmem:[#allocation2 + $0x18] sm:$0xff]
      %v5306 = vld [vmem:[#allocation2 + $0x20] sm:$0xff]
      %v5307 = vld [vmem:[#allocation2 + $0x28] sm:$0x3]
      %v5308 = vld [vmem:[#allocation2 + $0x30] sm:$0xff]
      %v5309 = vld [vmem:[#allocation2 + $0x38] sm:$0xff]
      %v5310 = vld [vmem:[#allocation2 + $0x40] sm:$0x3]
      %v5311 = vld [vmem:[#allocation2 + $0x48] sm:$0xff]
      %v5312 = vld [vmem:[#allocation2 + $0x50] sm:$0xff]
      %v5313 = vld [vmem:[#allocation2 + $0x58] sm:$0x3]
      %v5314 = vld [vmem:[#allocation2 + $0x60] sm:$0xff]
      %v5315 = vld [vmem:[#allocation2 + $0x68] sm:$0xff]
      %v5316 = vld [vmem:[#allocation2 + $0x70] sm:$0x3]
      %v5317 = vld [vmem:[#allocation2 + $0x78] sm:$0xff]
      %v5318 = vld [vmem:[#allocation2 + $0x80] sm:$0xff]
      %v5319 = vld [vmem:[#allocation2 + $0x88] sm:$0x3]
      %v5320 = vld [vmem:[#allocation2 + $0x90] sm:$0xff]
      %v5321 = vld [vmem:[#allocation2 + $0x98] sm:$0xff]
      %v5322 = vld [vmem:[#allocation2 + $0xa0] sm:$0x3]
      %v5323 = vld [vmem:[#allocation2 + $0xa8] sm:$0xff]
      %v5324 = vld [vmem:[#allocation2 + $0xb0] sm:$0xff]
      %v5325 = vld [vmem:[#allocation2 + $0xb8] sm:$0x3]
      %v5326 = vld [vmem:[#allocation2 + $0xc0] sm:$0xff]
      %v5327 = vld [vmem:[#allocation2 + $0xc8] sm:$0xff]
      %v5328 = vld [vmem:[#allocation2 + $0xd0] sm:$0x3]
      %v5329 = vld [vmem:[#allocation2 + $0xd8] sm:$0xff]
      %v5330 = vld [vmem:[#allocation2 + $0xe0] sm:$0xff]
      %v5331 = vld [vmem:[#allocation2 + $0xe8] sm:$0x3]
      %v5332 = vld [vmem:[#allocation2 + $0xf0] sm:$0xff]
      %v5333 = vld [vmem:[#allocation2 + $0xf8] sm:$0xff]
      %v5334 = vld [vmem:[#allocation2 + $0x100] sm:$0x3]
      %v5335 = vld [vmem:[#allocation2 + $0x108] sm:$0xff]
      %v5336 = vld [vmem:[#allocation2 + $0x110] sm:$0xff]
      %v5337 = vld [vmem:[#allocation2 + $0x118] sm:$0x3]
      %v5338 = vld [vmem:[#allocation2 + $0x120] sm:$0xff]
      %v5339 = vld [vmem:[#allocation2 + $0x128] sm:$0xff]
      %v5340 = vld [vmem:[#allocation2 + $0x130] sm:$0x3]
      %v5341 = vld [vmem:[#allocation2 + $0x138] sm:$0xff]
      %v5342 = vld [vmem:[#allocation2 + $0x140] sm:$0xff]
      %v5343 = vld [vmem:[#allocation2 + $0x148] sm:$0x3]
      %v5344 = vld [vmem:[#allocation2 + $0x150] sm:$0xff]
      %v5345 = vld [vmem:[#allocation2 + $0x158] sm:$0xff]
      %v5346 = vld [vmem:[#allocation2 + $0x160] sm:$0x3]
      %v5347 = vld [vmem:[#allocation2 + $0x168] sm:$0xff]
      %v5348 = vld [vmem:[#allocation2 + $0x170] sm:$0xff]
      %v5349 = vld [vmem:[#allocation2 + $0x178] sm:$0x3]
      %v5350 = vld [vmem:[%s862] sm:$0xff]
      %v5351 = vld [vmem:[%s862 + $0x8] sm:$0xff]
      %v5352 = vld [vmem:[%s862 + $0x10] sm:$0x3]
      %v5353 = vld [vmem:[%s862 + $0x18] sm:$0xff]
      %v5354 = vld [vmem:[%s862 + $0x20] sm:$0xff]
      %v5355 = vld [vmem:[%s862 + $0x28] sm:$0x3]
      %v5356 = vld [vmem:[%s862 + $0x30] sm:$0xff]
      %v5357 = vld [vmem:[%s862 + $0x38] sm:$0xff]
      %v5358 = vld [vmem:[%s862 + $0x40] sm:$0x3]
      %v5359 = vld [vmem:[%s862 + $0x48] sm:$0xff]
      %v5360 = vld [vmem:[%s862 + $0x50] sm:$0xff]
      %v5361 = vld [vmem:[%s862 + $0x58] sm:$0x3]
      %v5362 = vld [vmem:[%s862 + $0x60] sm:$0xff]
      %v5363 = vld [vmem:[%s862 + $0x68] sm:$0xff]
      %v5364 = vld [vmem:[%s862 + $0x70] sm:$0x3]
      %v5365 = vld [vmem:[%s862 + $0x78] sm:$0xff]
      %v5366 = vld [vmem:[%s862 + $0x80] sm:$0xff]
      %v5367 = vld [vmem:[%s862 + $0x88] sm:$0x3]
      %v5368 = vld [vmem:[%s862 + $0x90] sm:$0xff]
      %v5369 = vld [vmem:[%s862 + $0x98] sm:$0xff]
      %v5370 = vld [vmem:[%s862 + $0xa0] sm:$0x3]
      %v5371 = vld [vmem:[%s862 + $0xa8] sm:$0xff]
      %v5372 = vld [vmem:[%s862 + $0xb0] sm:$0xff]
      %v5373 = vld [vmem:[%s862 + $0xb8] sm:$0x3]
      %v5374 = vld [vmem:[%s862 + $0xc0] sm:$0xff]
      %v5375 = vld [vmem:[%s862 + $0xc8] sm:$0xff]
      %v5376 = vld [vmem:[%s862 + $0xd0] sm:$0x3]
      %v5377 = vld [vmem:[%s862 + $0xd8] sm:$0xff]
      %v5378 = vld [vmem:[%s862 + $0xe0] sm:$0xff]
      %v5379 = vld [vmem:[%s862 + $0xe8] sm:$0x3]
      %v5380 = vld [vmem:[%s862 + $0xf0] sm:$0xff]
      %v5381 = vld [vmem:[%s862 + $0xf8] sm:$0xff]
      %v5382 = vld [vmem:[%s862 + $0x100] sm:$0x3]
      %v5383 = vld [vmem:[%s862 + $0x108] sm:$0xff]
      %v5384 = vld [vmem:[%s862 + $0x110] sm:$0xff]
      %v5385 = vld [vmem:[%s862 + $0x118] sm:$0x3]
      %v5386 = vld [vmem:[%s862 + $0x120] sm:$0xff]
      %v5387 = vld [vmem:[%s862 + $0x128] sm:$0xff]
      %v5388 = vld [vmem:[%s862 + $0x130] sm:$0x3]
      %v5389 = vld [vmem:[%s862 + $0x138] sm:$0xff]
      %v5390 = vld [vmem:[%s862 + $0x140] sm:$0xff]
      %v5391 = vld [vmem:[%s862 + $0x148] sm:$0x3]
      %v5392 = vld [vmem:[%s862 + $0x150] sm:$0xff]
      %v5393 = vld [vmem:[%s862 + $0x158] sm:$0xff]
      %v5394 = vld [vmem:[%s862 + $0x160] sm:$0x3]
      %v5395 = vld [vmem:[%s862 + $0x168] sm:$0xff]
      %v5396 = vld [vmem:[%s862 + $0x170] sm:$0xff]
      %v5397 = vld [vmem:[%s862 + $0x178] sm:$0x3]
      %v5398 = vld [vmem:[%s993] sm:$0xff]
      %v5399 = vld [vmem:[%s993 + $0x8] sm:$0xff]
      %v5400 = vld [vmem:[%s993 + $0x10] sm:$0x3]
      %v5401 = vld [vmem:[%s993 + $0x18] sm:$0xff]
      %v5402 = vld [vmem:[%s993 + $0x20] sm:$0xff]
      %v5403 = vld [vmem:[%s993 + $0x28] sm:$0x3]
      %v5404 = vld [vmem:[%s993 + $0x30] sm:$0xff]
      %v5405 = vld [vmem:[%s993 + $0x38] sm:$0xff]
      %v5406 = vld [vmem:[%s993 + $0x40] sm:$0x3]
      %v5407 = vld [vmem:[%s993 + $0x48] sm:$0xff]
      %v5408 = vld [vmem:[%s993 + $0x50] sm:$0xff]
      %v5409 = vld [vmem:[%s993 + $0x58] sm:$0x3]
      %v5410 = vld [vmem:[%s993 + $0x60] sm:$0xff]
      %v5411 = vld [vmem:[%s993 + $0x68] sm:$0xff]
      %v5412 = vld [vmem:[%s993 + $0x70] sm:$0x3]
      %v5413 = vld [vmem:[%s993 + $0x78] sm:$0xff]
      %v5414 = vld [vmem:[%s993 + $0x80] sm:$0xff]
      %v5415 = vld [vmem:[%s993 + $0x88] sm:$0x3]
      %v5416 = vld [vmem:[%s993 + $0x90] sm:$0xff]
      %v5417 = vld [vmem:[%s993 + $0x98] sm:$0xff]
      %v5418 = vld [vmem:[%s993 + $0xa0] sm:$0x3]
      %v5419 = vld [vmem:[%s993 + $0xa8] sm:$0xff]
      %v5420 = vld [vmem:[%s993 + $0xb0] sm:$0xff]
      %v5421 = vld [vmem:[%s993 + $0xb8] sm:$0x3]
      %v5422 = vld [vmem:[%s993 + $0xc0] sm:$0xff]
      %v5423 = vld [vmem:[%s993 + $0xc8] sm:$0xff]
      %v5424 = vld [vmem:[%s993 + $0xd0] sm:$0x3]
      %v5425 = vld [vmem:[%s993 + $0xd8] sm:$0xff]
      %v5426 = vld [vmem:[%s993 + $0xe0] sm:$0xff]
      %v5427 = vld [vmem:[%s993 + $0xe8] sm:$0x3]
      %v5428 = vld [vmem:[%s993 + $0xf0] sm:$0xff]
      %v5429 = vld [vmem:[%s993 + $0xf8] sm:$0xff]
      %v5430 = vld [vmem:[%s993 + $0x100] sm:$0x3]
      %v5431 = vld [vmem:[%s993 + $0x108] sm:$0xff]
      %v5432 = vld [vmem:[%s993 + $0x110] sm:$0xff]
      %v5433 = vld [vmem:[%s993 + $0x118] sm:$0x3]
      %v5434 = vld [vmem:[%s993 + $0x120] sm:$0xff]
      %v5435 = vld [vmem:[%s993 + $0x128] sm:$0xff]
      %v5436 = vld [vmem:[%s993 + $0x130] sm:$0x3]
      %v5437 = vld [vmem:[%s993 + $0x138] sm:$0xff]
      %v5438 = vld [vmem:[%s993 + $0x140] sm:$0xff]
      %v5439 = vld [vmem:[%s993 + $0x148] sm:$0x3]
      %v5440 = vld [vmem:[%s993 + $0x150] sm:$0xff]
      %v5441 = vld [vmem:[%s993 + $0x158] sm:$0xff]
      %v5442 = vld [vmem:[%s993 + $0x160] sm:$0x3]
      %v5443 = vld [vmem:[%s993 + $0x168] sm:$0xff]
      %v5444 = vld [vmem:[%s993 + $0x170] sm:$0xff]
      %v5445 = vld [vmem:[%s993 + $0x178] sm:$0x3]
      %v5446 = vlaneseq
      %v5447 = vshrl.u32 %v5446, 7
      %v5448 = vsub.s32 0, %v5447
      %v5449 = vrot.slane %v5300, %v5448
      %v5450 = vmul.f32 %v5302, %v5449
      %v5451 = vmul.f32 %v5303, %v5449
      %v5452 = vmul.f32 %v5305, %v5449
      %v5453 = vmul.f32 %v5306, %v5449
      %v5454 = vmul.f32 %v5308, %v5449
      %v5455 = vmul.f32 %v5309, %v5449
      %v5456 = vmul.f32 %v5311, %v5449
      %v5457 = vmul.f32 %v5312, %v5449
      %v5458 = vmul.f32 %v5314, %v5449
      %v5459 = vmul.f32 %v5315, %v5449
      %v5460 = vmul.f32 %v5317, %v5449
      %v5461 = vmul.f32 %v5318, %v5449
      %v5462 = vmul.f32 %v5320, %v5449
      %v5463 = vmul.f32 %v5321, %v5449
      %v5464 = vmul.f32 %v5323, %v5449
      %v5465 = vmul.f32 %v5324, %v5449
      %v5466 = vmul.f32 %v5326, %v5449
      %v5467 = vmul.f32 %v5327, %v5449
      %v5468 = vmul.f32 %v5329, %v5449
      %v5469 = vmul.f32 %v5330, %v5449
      %v5470 = vmul.f32 %v5332, %v5449
      %v5471 = vmul.f32 %v5333, %v5449
      %v5472 = vmul.f32 %v5335, %v5449
      %v5473 = vmul.f32 %v5336, %v5449
      %v5474 = vmul.f32 %v5338, %v5449
      %v5475 = vmul.f32 %v5339, %v5449
      %v5476 = vmul.f32 %v5341, %v5449
      %v5477 = vmul.f32 %v5342, %v5449
      %v5478 = vmul.f32 %v5344, %v5449
      %v5479 = vmul.f32 %v5345, %v5449
      %v5480 = vmul.f32 %v5347, %v5449
      %v5481 = vmul.f32 %v5348, %v5449
      %v5482 = vlaneseq
      %v5483 = vshrl.u32 %v5482, 7
      %v5484 = vsub.s32 3, %v5483
      %v5485 = vrot.slane %v5300, %v5484
      %v5486 = vmul.f32 %v5350, %v5485
      %v5487 = vmul.f32 %v5351, %v5485
      %v5488 = vmul.f32 %v5353, %v5485
      %v5489 = vmul.f32 %v5354, %v5485
      %v5490 = vmul.f32 %v5356, %v5485
      %v5491 = vmul.f32 %v5357, %v5485
      %v5492 = vmul.f32 %v5359, %v5485
      %v5493 = vmul.f32 %v5360, %v5485
      %v5494 = vmul.f32 %v5362, %v5485
      %v5495 = vmul.f32 %v5363, %v5485
      %v5496 = vmul.f32 %v5365, %v5485
      %v5497 = vmul.f32 %v5366, %v5485
      %v5498 = vmul.f32 %v5368, %v5485
      %v5499 = vmul.f32 %v5369, %v5485
      %v5500 = vmul.f32 %v5371, %v5485
      %v5501 = vmul.f32 %v5372, %v5485
      %v5502 = vmul.f32 %v5374, %v5485
      %v5503 = vmul.f32 %v5375, %v5485
      %v5504 = vmul.f32 %v5377, %v5485
      %v5505 = vmul.f32 %v5378, %v5485
      %v5506 = vmul.f32 %v5380, %v5485
      %v5507 = vmul.f32 %v5381, %v5485
      %v5508 = vmul.f32 %v5383, %v5485
      %v5509 = vmul.f32 %v5384, %v5485
      %v5510 = vmul.f32 %v5386, %v5485
      %v5511 = vmul.f32 %v5387, %v5485
      %v5512 = vmul.f32 %v5389, %v5485
      %v5513 = vmul.f32 %v5390, %v5485
      %v5514 = vmul.f32 %v5392, %v5485
      %v5515 = vmul.f32 %v5393, %v5485
      %v5516 = vmul.f32 %v5395, %v5485
      %v5517 = vmul.f32 %v5396, %v5485
      %v5518 = vadd.f32 %v5450, %v5486
      %v5519 = vadd.f32 %v5451, %v5487
      %v5520 = vadd.f32 %v5452, %v5488
      %v5521 = vadd.f32 %v5453, %v5489
      %v5522 = vadd.f32 %v5454, %v5490
      %v5523 = vadd.f32 %v5455, %v5491
      %v5524 = vadd.f32 %v5456, %v5492
      %v5525 = vadd.f32 %v5457, %v5493
      %v5526 = vadd.f32 %v5458, %v5494
      %v5527 = vadd.f32 %v5459, %v5495
      %v5528 = vadd.f32 %v5460, %v5496
      %v5529 = vadd.f32 %v5461, %v5497
      %v5530 = vadd.f32 %v5462, %v5498
      %v5531 = vadd.f32 %v5463, %v5499
      %v5532 = vadd.f32 %v5464, %v5500
      %v5533 = vadd.f32 %v5465, %v5501
      %v5534 = vadd.f32 %v5466, %v5502
      %v5535 = vadd.f32 %v5467, %v5503
      %v5536 = vadd.f32 %v5468, %v5504
      %v5537 = vadd.f32 %v5469, %v5505
      %v5538 = vadd.f32 %v5470, %v5506
      %v5539 = vadd.f32 %v5471, %v5507
      %v5540 = vadd.f32 %v5472, %v5508
      %v5541 = vadd.f32 %v5473, %v5509
      %v5542 = vadd.f32 %v5474, %v5510
      %v5543 = vadd.f32 %v5475, %v5511
      %v5544 = vadd.f32 %v5476, %v5512
      %v5545 = vadd.f32 %v5477, %v5513
      %v5546 = vadd.f32 %v5478, %v5514
      %v5547 = vadd.f32 %v5479, %v5515
      %v5548 = vadd.f32 %v5480, %v5516
      %v5549 = vadd.f32 %v5481, %v5517
      %v5550 = vlaneseq
      %v5551 = vshrl.u32 %v5550, 7
      %v5552 = vsub.s32 6, %v5551
      %v5553 = vrot.slane %v5300, %v5552
      %v5554 = vmul.f32 %v5398, %v5553
      %v5555 = vmul.f32 %v5399, %v5553
      %v5556 = vmul.f32 %v5401, %v5553
      %v5557 = vmul.f32 %v5402, %v5553
      %v5558 = vmul.f32 %v5404, %v5553
      %v5559 = vmul.f32 %v5405, %v5553
      %v5560 = vmul.f32 %v5407, %v5553
      %v5561 = vmul.f32 %v5408, %v5553
      %v5562 = vmul.f32 %v5410, %v5553
      %v5563 = vmul.f32 %v5411, %v5553
      %v5564 = vmul.f32 %v5413, %v5553
      %v5565 = vmul.f32 %v5414, %v5553
      %v5566 = vmul.f32 %v5416, %v5553
      %v5567 = vmul.f32 %v5417, %v5553
      %v5568 = vmul.f32 %v5419, %v5553
      %v5569 = vmul.f32 %v5420, %v5553
      %v5570 = vmul.f32 %v5422, %v5553
      %v5571 = vmul.f32 %v5423, %v5553
      %v5572 = vmul.f32 %v5425, %v5553
      %v5573 = vmul.f32 %v5426, %v5553
      %v5574 = vmul.f32 %v5428, %v5553
      %v5575 = vmul.f32 %v5429, %v5553
      %v5576 = vmul.f32 %v5431, %v5553
      %v5577 = vmul.f32 %v5432, %v5553
      %v5578 = vmul.f32 %v5434, %v5553
      %v5579 = vmul.f32 %v5435, %v5553
      %v5580 = vmul.f32 %v5437, %v5553
      %v5581 = vmul.f32 %v5438, %v5553
      %v5582 = vmul.f32 %v5440, %v5553
      %v5583 = vmul.f32 %v5441, %v5553
      %v5584 = vmul.f32 %v5443, %v5553
      %v5585 = vmul.f32 %v5444, %v5553
      %v5586 = vadd.f32 %v5518, %v5554
      %v5587 = vadd.f32 %v5519, %v5555
      %v5588 = vadd.f32 %v5520, %v5556
      %v5589 = vadd.f32 %v5521, %v5557
      %v5590 = vadd.f32 %v5522, %v5558
      %v5591 = vadd.f32 %v5523, %v5559
      %v5592 = vadd.f32 %v5524, %v5560
      %v5593 = vadd.f32 %v5525, %v5561
      %v5594 = vadd.f32 %v5526, %v5562
      %v5595 = vadd.f32 %v5527, %v5563
      %v5596 = vadd.f32 %v5528, %v5564
      %v5597 = vadd.f32 %v5529, %v5565
      %v5598 = vadd.f32 %v5530, %v5566
      %v5599 = vadd.f32 %v5531, %v5567
      %v5600 = vadd.f32 %v5532, %v5568
      %v5601 = vadd.f32 %v5533, %v5569
      %v5602 = vadd.f32 %v5534, %v5570
      %v5603 = vadd.f32 %v5535, %v5571
      %v5604 = vadd.f32 %v5536, %v5572
      %v5605 = vadd.f32 %v5537, %v5573
      %v5606 = vadd.f32 %v5538, %v5574
      %v5607 = vadd.f32 %v5539, %v5575
      %v5608 = vadd.f32 %v5540, %v5576
      %v5609 = vadd.f32 %v5541, %v5577
      %v5610 = vadd.f32 %v5542, %v5578
      %v5611 = vadd.f32 %v5543, %v5579
      %v5612 = vadd.f32 %v5544, %v5580
      %v5613 = vadd.f32 %v5545, %v5581
      %v5614 = vadd.f32 %v5546, %v5582
      %v5615 = vadd.f32 %v5547, %v5583
      %v5616 = vadd.f32 %v5548, %v5584
      %v5617 = vadd.f32 %v5549, %v5585
      %v5618 = vlaneseq
      %v5619 = vshrl.u32 %v5618, 7
      %v5620 = vsub.s32 1, %v5619
      %v5621 = vrot.slane %v5300, %v5620
      %v5622 = vmul.f32 %v5302, %v5621
      %v5623 = vmul.f32 %v5303, %v5621
      %v5624 = vmul.f32 %v5304, %v5621
      %v5625 = vmul.f32 %v5305, %v5621
      %v5626 = vmul.f32 %v5306, %v5621
      %v5627 = vmul.f32 %v5307, %v5621
      %v5628 = vmul.f32 %v5308, %v5621
      %v5629 = vmul.f32 %v5309, %v5621
      %v5630 = vmul.f32 %v5310, %v5621
      %v5631 = vmul.f32 %v5311, %v5621
      %v5632 = vmul.f32 %v5312, %v5621
      %v5633 = vmul.f32 %v5313, %v5621
      %v5634 = vmul.f32 %v5314, %v5621
      %v5635 = vmul.f32 %v5315, %v5621
      %v5636 = vmul.f32 %v5316, %v5621
      %v5637 = vmul.f32 %v5317, %v5621
      %v5638 = vmul.f32 %v5318, %v5621
      %v5639 = vmul.f32 %v5319, %v5621
      %v5640 = vmul.f32 %v5320, %v5621
      %v5641 = vmul.f32 %v5321, %v5621
      %v5642 = vmul.f32 %v5322, %v5621
      %v5643 = vmul.f32 %v5323, %v5621
      %v5644 = vmul.f32 %v5324, %v5621
      %v5645 = vmul.f32 %v5325, %v5621
      %v5646 = vmul.f32 %v5326, %v5621
      %v5647 = vmul.f32 %v5327, %v5621
      %v5648 = vmul.f32 %v5328, %v5621
      %v5649 = vmul.f32 %v5329, %v5621
      %v5650 = vmul.f32 %v5330, %v5621
      %v5651 = vmul.f32 %v5331, %v5621
      %v5652 = vmul.f32 %v5332, %v5621
      %v5653 = vmul.f32 %v5333, %v5621
      %v5654 = vmul.f32 %v5334, %v5621
      %v5655 = vmul.f32 %v5335, %v5621
      %v5656 = vmul.f32 %v5336, %v5621
      %v5657 = vmul.f32 %v5337, %v5621
      %v5658 = vmul.f32 %v5338, %v5621
      %v5659 = vmul.f32 %v5339, %v5621
      %v5660 = vmul.f32 %v5340, %v5621
      %v5661 = vmul.f32 %v5341, %v5621
      %v5662 = vmul.f32 %v5342, %v5621
      %v5663 = vmul.f32 %v5343, %v5621
      %v5664 = vmul.f32 %v5344, %v5621
      %v5665 = vmul.f32 %v5345, %v5621
      %v5666 = vmul.f32 %v5346, %v5621
      %v5667 = vmul.f32 %v5347, %v5621
      %v5668 = vmul.f32 %v5348, %v5621
      %v5669 = vmul.f32 %v5349, %v5621
      %v5670 = vlaneseq
      %v5671 = vshrl.u32 %v5670, 7
      %v5672 = vsub.s32 4, %v5671
      %v5673 = vrot.slane %v5300, %v5672
      %v5674 = vmul.f32 %v5350, %v5673
      %v5675 = vmul.f32 %v5351, %v5673
      %v5676 = vmul.f32 %v5352, %v5673
      %v5677 = vmul.f32 %v5353, %v5673
      %v5678 = vmul.f32 %v5354, %v5673
      %v5679 = vmul.f32 %v5355, %v5673
      %v5680 = vmul.f32 %v5356, %v5673
      %v5681 = vmul.f32 %v5357, %v5673
      %v5682 = vmul.f32 %v5358, %v5673
      %v5683 = vmul.f32 %v5359, %v5673
      %v5684 = vmul.f32 %v5360, %v5673
      %v5685 = vmul.f32 %v5361, %v5673
      %v5686 = vmul.f32 %v5362, %v5673
      %v5687 = vmul.f32 %v5363, %v5673
      %v5688 = vmul.f32 %v5364, %v5673
      %v5689 = vmul.f32 %v5365, %v5673
      %v5690 = vmul.f32 %v5366, %v5673
      %v5691 = vmul.f32 %v5367, %v5673
      %v5692 = vmul.f32 %v5368, %v5673
      %v5693 = vmul.f32 %v5369, %v5673
      %v5694 = vmul.f32 %v5370, %v5673
      %v5695 = vmul.f32 %v5371, %v5673
      %v5696 = vmul.f32 %v5372, %v5673
      %v5697 = vmul.f32 %v5373, %v5673
      %v5698 = vmul.f32 %v5374, %v5673
      %v5699 = vmul.f32 %v5375, %v5673
      %v5700 = vmul.f32 %v5376, %v5673
      %v5701 = vmul.f32 %v5377, %v5673
      %v5702 = vmul.f32 %v5378, %v5673
      %v5703 = vmul.f32 %v5379, %v5673
      %v5704 = vmul.f32 %v5380, %v5673
      %v5705 = vmul.f32 %v5381, %v5673
      %v5706 = vmul.f32 %v5382, %v5673
      %v5707 = vmul.f32 %v5383, %v5673
      %v5708 = vmul.f32 %v5384, %v5673
      %v5709 = vmul.f32 %v5385, %v5673
      %v5710 = vmul.f32 %v5386, %v5673
      %v5711 = vmul.f32 %v5387, %v5673
      %v5712 = vmul.f32 %v5388, %v5673
      %v5713 = vmul.f32 %v5389, %v5673
      %v5714 = vmul.f32 %v5390, %v5673
      %v5715 = vmul.f32 %v5391, %v5673
      %v5716 = vmul.f32 %v5392, %v5673
      %v5717 = vmul.f32 %v5393, %v5673
      %v5718 = vmul.f32 %v5394, %v5673
      %v5719 = vmul.f32 %v5395, %v5673
      %v5720 = vmul.f32 %v5396, %v5673
      %v5721 = vmul.f32 %v5397, %v5673
      %v5722 = vadd.f32 %v5622, %v5674
      %v5723 = vadd.f32 %v5623, %v5675
      %v5724 = vadd.f32 %v5624, %v5676
      %v5725 = vadd.f32 %v5625, %v5677
      %v5726 = vadd.f32 %v5626, %v5678
      %v5727 = vadd.f32 %v5627, %v5679
      %v5728 = vadd.f32 %v5628, %v5680
      %v5729 = vadd.f32 %v5629, %v5681
      %v5730 = vadd.f32 %v5630, %v5682
      %v5731 = vadd.f32 %v5631, %v5683
      %v5732 = vadd.f32 %v5632, %v5684
      %v5733 = vadd.f32 %v5633, %v5685
      %v5734 = vadd.f32 %v5634, %v5686
      %v5735 = vadd.f32 %v5635, %v5687
      %v5736 = vadd.f32 %v5636, %v5688
      %v5737 = vadd.f32 %v5637, %v5689
      %v5738 = vadd.f32 %v5638, %v5690
      %v5739 = vadd.f32 %v5639, %v5691
      %v5740 = vadd.f32 %v5640, %v5692
      %v5741 = vadd.f32 %v5641, %v5693
      %v5742 = vadd.f32 %v5642, %v5694
      %v5743 = vadd.f32 %v5643, %v5695
      %v5744 = vadd.f32 %v5644, %v5696
      %v5745 = vadd.f32 %v5645, %v5697
      %v5746 = vadd.f32 %v5646, %v5698
      %v5747 = vadd.f32 %v5647, %v5699
      %v5748 = vadd.f32 %v5648, %v5700
      %v5749 = vadd.f32 %v5649, %v5701
      %v5750 = vadd.f32 %v5650, %v5702
      %v5751 = vadd.f32 %v5651, %v5703
      %v5752 = vadd.f32 %v5652, %v5704
      %v5753 = vadd.f32 %v5653, %v5705
      %v5754 = vadd.f32 %v5654, %v5706
      %v5755 = vadd.f32 %v5655, %v5707
      %v5756 = vadd.f32 %v5656, %v5708
      %v5757 = vadd.f32 %v5657, %v5709
      %v5758 = vadd.f32 %v5658, %v5710
      %v5759 = vadd.f32 %v5659, %v5711
      %v5760 = vadd.f32 %v5660, %v5712
      %v5761 = vadd.f32 %v5661, %v5713
      %v5762 = vadd.f32 %v5662, %v5714
      %v5763 = vadd.f32 %v5663, %v5715
      %v5764 = vadd.f32 %v5664, %v5716
      %v5765 = vadd.f32 %v5665, %v5717
      %v5766 = vadd.f32 %v5666, %v5718
      %v5767 = vadd.f32 %v5667, %v5719
      %v5768 = vadd.f32 %v5668, %v5720
      %v5769 = vadd.f32 %v5669, %v5721
      %v5770 = vlaneseq
      %v5771 = vshrl.u32 %v5770, 7
      %v5772 = vsub.s32 7, %v5771
      %v5773 = vrot.slane %v5300, %v5772
      %v5774 = vmul.f32 %v5398, %v5773
      %v5775 = vmul.f32 %v5399, %v5773
      %v5776 = vmul.f32 %v5400, %v5773
      %v5777 = vmul.f32 %v5401, %v5773
      %v5778 = vmul.f32 %v5402, %v5773
      %v5779 = vmul.f32 %v5403, %v5773
      %v5780 = vmul.f32 %v5404, %v5773
      %v5781 = vmul.f32 %v5405, %v5773
      %v5782 = vmul.f32 %v5406, %v5773
      %v5783 = vmul.f32 %v5407, %v5773
      %v5784 = vmul.f32 %v5408, %v5773
      %v5785 = vmul.f32 %v5409, %v5773
      %v5786 = vmul.f32 %v5410, %v5773
      %v5787 = vmul.f32 %v5411, %v5773
      %v5788 = vmul.f32 %v5412, %v5773
      %v5789 = vmul.f32 %v5413, %v5773
      %v5790 = vmul.f32 %v5414, %v5773
      %v5791 = vmul.f32 %v5415, %v5773
      %v5792 = vmul.f32 %v5416, %v5773
      %v5793 = vmul.f32 %v5417, %v5773
      %v5794 = vmul.f32 %v5418, %v5773
      %v5795 = vmul.f32 %v5419, %v5773
      %v5796 = vmul.f32 %v5420, %v5773
      %v5797 = vmul.f32 %v5421, %v5773
      %v5798 = vmul.f32 %v5422, %v5773
      %v5799 = vmul.f32 %v5423, %v5773
      %v5800 = vmul.f32 %v5424, %v5773
      %v5801 = vmul.f32 %v5425, %v5773
      %v5802 = vmul.f32 %v5426, %v5773
      %v5803 = vmul.f32 %v5427, %v5773
      %v5804 = vmul.f32 %v5428, %v5773
      %v5805 = vmul.f32 %v5429, %v5773
      %v5806 = vmul.f32 %v5430, %v5773
      %v5807 = vmul.f32 %v5431, %v5773
      %v5808 = vmul.f32 %v5432, %v5773
      %v5809 = vmul.f32 %v5433, %v5773
      %v5810 = vmul.f32 %v5434, %v5773
      %v5811 = vmul.f32 %v5435, %v5773
      %v5812 = vmul.f32 %v5436, %v5773
      %v5813 = vmul.f32 %v5437, %v5773
      %v5814 = vmul.f32 %v5438, %v5773
      %v5815 = vmul.f32 %v5439, %v5773
      %v5816 = vmul.f32 %v5440, %v5773
      %v5817 = vmul.f32 %v5441, %v5773
      %v5818 = vmul.f32 %v5442, %v5773
      %v5819 = vmul.f32 %v5443, %v5773
      %v5820 = vmul.f32 %v5444, %v5773
      %v5821 = vmul.f32 %v5445, %v5773
      %v5822 = vadd.f32 %v5722, %v5774
      %v5823 = vadd.f32 %v5723, %v5775
      %v5824 = vadd.f32 %v5724, %v5776
      %v5825 = vadd.f32 %v5725, %v5777
      %v5826 = vadd.f32 %v5726, %v5778
      %v5827 = vadd.f32 %v5727, %v5779
      %v5828 = vadd.f32 %v5728, %v5780
      %v5829 = vadd.f32 %v5729, %v5781
      %v5830 = vadd.f32 %v5730, %v5782
      %v5831 = vadd.f32 %v5731, %v5783
      %v5832 = vadd.f32 %v5732, %v5784
      %v5833 = vadd.f32 %v5733, %v5785
      %v5834 = vadd.f32 %v5734, %v5786
      %v5835 = vadd.f32 %v5735, %v5787
      %v5836 = vadd.f32 %v5736, %v5788
      %v5837 = vadd.f32 %v5737, %v5789
      %v5838 = vadd.f32 %v5738, %v5790
      %v5839 = vadd.f32 %v5739, %v5791
      %v5840 = vadd.f32 %v5740, %v5792
      %v5841 = vadd.f32 %v5741, %v5793
      %v5842 = vadd.f32 %v5742, %v5794
      %v5843 = vadd.f32 %v5743, %v5795
      %v5844 = vadd.f32 %v5744, %v5796
      %v5845 = vadd.f32 %v5745, %v5797
      %v5846 = vadd.f32 %v5746, %v5798
      %v5847 = vadd.f32 %v5747, %v5799
      %v5848 = vadd.f32 %v5748, %v5800
      %v5849 = vadd.f32 %v5749, %v5801
      %v5850 = vadd.f32 %v5750, %v5802
      %v5851 = vadd.f32 %v5751, %v5803
      %v5852 = vadd.f32 %v5752, %v5804
      %v5853 = vadd.f32 %v5753, %v5805
      %v5854 = vadd.f32 %v5754, %v5806
      %v5855 = vadd.f32 %v5755, %v5807
      %v5856 = vadd.f32 %v5756, %v5808
      %v5857 = vadd.f32 %v5757, %v5809
      %v5858 = vadd.f32 %v5758, %v5810
      %v5859 = vadd.f32 %v5759, %v5811
      %v5860 = vadd.f32 %v5760, %v5812
      %v5861 = vadd.f32 %v5761, %v5813
      %v5862 = vadd.f32 %v5762, %v5814
      %v5863 = vadd.f32 %v5763, %v5815
      %v5864 = vadd.f32 %v5764, %v5816
      %v5865 = vadd.f32 %v5765, %v5817
      %v5866 = vadd.f32 %v5766, %v5818
      %v5867 = vadd.f32 %v5767, %v5819
      %v5868 = vadd.f32 %v5768, %v5820
      %v5869 = vadd.f32 %v5769, %v5821
      %v5918 = vrot.slane %v5822, 1
      %v5919 = vrot.slane %v5823, 1
      %v5920 = vsel %vm1514, %v5918, %v5919
      %v5921 = vrot.slane %v5824, 1
      %v5922 = vsel %vm1514, %v5919, %v5921
      %v5923 = vrot.slane %v5825, 1
      %v5924 = vrot.slane %v5826, 1
      %v5925 = vsel %vm1514, %v5923, %v5924
      %v5926 = vrot.slane %v5827, 1
      %v5927 = vsel %vm1514, %v5924, %v5926
      %v5928 = vrot.slane %v5828, 1
      %v5929 = vrot.slane %v5829, 1
      %v5930 = vsel %vm1514, %v5928, %v5929
      %v5931 = vrot.slane %v5830, 1
      %v5932 = vsel %vm1514, %v5929, %v5931
      %v5933 = vrot.slane %v5831, 1
      %v5934 = vrot.slane %v5832, 1
      %v5935 = vsel %vm1514, %v5933, %v5934
      %v5936 = vrot.slane %v5833, 1
      %v5937 = vsel %vm1514, %v5934, %v5936
      %v5938 = vrot.slane %v5834, 1
      %v5939 = vrot.slane %v5835, 1
      %v5940 = vsel %vm1514, %v5938, %v5939
      %v5941 = vrot.slane %v5836, 1
      %v5942 = vsel %vm1514, %v5939, %v5941
      %v5943 = vrot.slane %v5837, 1
      %v5944 = vrot.slane %v5838, 1
      %v5945 = vsel %vm1514, %v5943, %v5944
      %v5946 = vrot.slane %v5839, 1
      %v5947 = vsel %vm1514, %v5944, %v5946
      %v5948 = vrot.slane %v5840, 1
      %v5949 = vrot.slane %v5841, 1
      %v5950 = vsel %vm1514, %v5948, %v5949
      %v5951 = vrot.slane %v5842, 1
      %v5952 = vsel %vm1514, %v5949, %v5951
      %v5953 = vrot.slane %v5843, 1
      %v5954 = vrot.slane %v5844, 1
      %v5955 = vsel %vm1514, %v5953, %v5954
      %v5956 = vrot.slane %v5845, 1
      %v5957 = vsel %vm1514, %v5954, %v5956
      %v5958 = vrot.slane %v5846, 1
      %v5959 = vrot.slane %v5847, 1
      %v5960 = vsel %vm1514, %v5958, %v5959
      %v5961 = vrot.slane %v5848, 1
      %v5962 = vsel %vm1514, %v5959, %v5961
      %v5963 = vrot.slane %v5849, 1
      %v5964 = vrot.slane %v5850, 1
      %v5965 = vsel %vm1514, %v5963, %v5964
      %v5966 = vrot.slane %v5851, 1
      %v5967 = vsel %vm1514, %v5964, %v5966
      %v5968 = vrot.slane %v5852, 1
      %v5969 = vrot.slane %v5853, 1
      %v5970 = vsel %vm1514, %v5968, %v5969
      %v5971 = vrot.slane %v5854, 1
      %v5972 = vsel %vm1514, %v5969, %v5971
      %v5973 = vrot.slane %v5855, 1
      %v5974 = vrot.slane %v5856, 1
      %v5975 = vsel %vm1514, %v5973, %v5974
      %v5976 = vrot.slane %v5857, 1
      %v5977 = vsel %vm1514, %v5974, %v5976
      %v5978 = vrot.slane %v5858, 1
      %v5979 = vrot.slane %v5859, 1
      %v5980 = vsel %vm1514, %v5978, %v5979
      %v5981 = vrot.slane %v5860, 1
      %v5982 = vsel %vm1514, %v5979, %v5981
      %v5983 = vrot.slane %v5861, 1
      %v5984 = vrot.slane %v5862, 1
      %v5985 = vsel %vm1514, %v5983, %v5984
      %v5986 = vrot.slane %v5863, 1
      %v5987 = vsel %vm1514, %v5984, %v5986
      %v5988 = vrot.slane %v5864, 1
      %v5989 = vrot.slane %v5865, 1
      %v5990 = vsel %vm1514, %v5988, %v5989
      %v5991 = vrot.slane %v5866, 1
      %v5992 = vsel %vm1514, %v5989, %v5991
      %v5993 = vrot.slane %v5867, 1
      %v5994 = vrot.slane %v5868, 1
      %v5995 = vsel %vm1514, %v5993, %v5994
      %v5996 = vrot.slane %v5869, 1
      %v5997 = vsel %vm1514, %v5994, %v5996
      %v6030 = vadd.f32 %v5586, %v5920
      %v6031 = vadd.f32 %v5587, %v5922
      %v6032 = vadd.f32 %v5588, %v5925
      %v6033 = vadd.f32 %v5589, %v5927
      %v6034 = vadd.f32 %v5590, %v5930
      %v6035 = vadd.f32 %v5591, %v5932
      %v6036 = vadd.f32 %v5592, %v5935
      %v6037 = vadd.f32 %v5593, %v5937
      %v6038 = vadd.f32 %v5594, %v5940
      %v6039 = vadd.f32 %v5595, %v5942
      %v6040 = vadd.f32 %v5596, %v5945
      %v6041 = vadd.f32 %v5597, %v5947
      %v6042 = vadd.f32 %v5598, %v5950
      %v6043 = vadd.f32 %v5599, %v5952
      %v6044 = vadd.f32 %v5600, %v5955
      %v6045 = vadd.f32 %v5601, %v5957
      %v6046 = vadd.f32 %v5602, %v5960
      %v6047 = vadd.f32 %v5603, %v5962
      %v6048 = vadd.f32 %v5604, %v5965
      %v6049 = vadd.f32 %v5605, %v5967
      %v6050 = vadd.f32 %v5606, %v5970
      %v6051 = vadd.f32 %v5607, %v5972
      %v6052 = vadd.f32 %v5608, %v5975
      %v6053 = vadd.f32 %v5609, %v5977
      %v6054 = vadd.f32 %v5610, %v5980
      %v6055 = vadd.f32 %v5611, %v5982
      %v6056 = vadd.f32 %v5612, %v5985
      %v6057 = vadd.f32 %v5613, %v5987
      %v6058 = vadd.f32 %v5614, %v5990
      %v6059 = vadd.f32 %v5615, %v5992
      %v6060 = vadd.f32 %v5616, %v5995
      %v6061 = vadd.f32 %v5617, %v5997
      %v6062 = vlaneseq
      %v6063 = vshrl.u32 %v6062, 7
      %v6064 = vsub.s32 2, %v6063
      %v6065 = vrot.slane %v5300, %v6064
      %v6066 = vmul.f32 %v5302, %v6065
      %v6067 = vmul.f32 %v5303, %v6065
      %v6068 = vmul.f32 %v5304, %v6065
      %v6069 = vmul.f32 %v5305, %v6065
      %v6070 = vmul.f32 %v5306, %v6065
      %v6071 = vmul.f32 %v5307, %v6065
      %v6072 = vmul.f32 %v5308, %v6065
      %v6073 = vmul.f32 %v5309, %v6065
      %v6074 = vmul.f32 %v5310, %v6065
      %v6075 = vmul.f32 %v5311, %v6065
      %v6076 = vmul.f32 %v5312, %v6065
      %v6077 = vmul.f32 %v5313, %v6065
      %v6078 = vmul.f32 %v5314, %v6065
      %v6079 = vmul.f32 %v5315, %v6065
      %v6080 = vmul.f32 %v5316, %v6065
      %v6081 = vmul.f32 %v5317, %v6065
      %v6082 = vmul.f32 %v5318, %v6065
      %v6083 = vmul.f32 %v5319, %v6065
      %v6084 = vmul.f32 %v5320, %v6065
      %v6085 = vmul.f32 %v5321, %v6065
      %v6086 = vmul.f32 %v5322, %v6065
      %v6087 = vmul.f32 %v5323, %v6065
      %v6088 = vmul.f32 %v5324, %v6065
      %v6089 = vmul.f32 %v5325, %v6065
      %v6090 = vmul.f32 %v5326, %v6065
      %v6091 = vmul.f32 %v5327, %v6065
      %v6092 = vmul.f32 %v5328, %v6065
      %v6093 = vmul.f32 %v5329, %v6065
      %v6094 = vmul.f32 %v5330, %v6065
      %v6095 = vmul.f32 %v5331, %v6065
      %v6096 = vmul.f32 %v5332, %v6065
      %v6097 = vmul.f32 %v5333, %v6065
      %v6098 = vmul.f32 %v5334, %v6065
      %v6099 = vmul.f32 %v5335, %v6065
      %v6100 = vmul.f32 %v5336, %v6065
      %v6101 = vmul.f32 %v5337, %v6065
      %v6102 = vmul.f32 %v5338, %v6065
      %v6103 = vmul.f32 %v5339, %v6065
      %v6104 = vmul.f32 %v5340, %v6065
      %v6105 = vmul.f32 %v5341, %v6065
      %v6106 = vmul.f32 %v5342, %v6065
      %v6107 = vmul.f32 %v5343, %v6065
      %v6108 = vmul.f32 %v5344, %v6065
      %v6109 = vmul.f32 %v5345, %v6065
      %v6110 = vmul.f32 %v5346, %v6065
      %v6111 = vmul.f32 %v5347, %v6065
      %v6112 = vmul.f32 %v5348, %v6065
      %v6113 = vmul.f32 %v5349, %v6065
      %v6114 = vlaneseq
      %v6115 = vshrl.u32 %v6114, 7
      %v6116 = vsub.s32 5, %v6115
      %v6117 = vrot.slane %v5300, %v6116
      %v6118 = vmul.f32 %v5350, %v6117
      %v6119 = vmul.f32 %v5351, %v6117
      %v6120 = vmul.f32 %v5352, %v6117
      %v6121 = vmul.f32 %v5353, %v6117
      %v6122 = vmul.f32 %v5354, %v6117
      %v6123 = vmul.f32 %v5355, %v6117
      %v6124 = vmul.f32 %v5356, %v6117
      %v6125 = vmul.f32 %v5357, %v6117
      %v6126 = vmul.f32 %v5358, %v6117
      %v6127 = vmul.f32 %v5359, %v6117
      %v6128 = vmul.f32 %v5360, %v6117
      %v6129 = vmul.f32 %v5361, %v6117
      %v6130 = vmul.f32 %v5362, %v6117
      %v6131 = vmul.f32 %v5363, %v6117
      %v6132 = vmul.f32 %v5364, %v6117
      %v6133 = vmul.f32 %v5365, %v6117
      %v6134 = vmul.f32 %v5366, %v6117
      %v6135 = vmul.f32 %v5367, %v6117
      %v6136 = vmul.f32 %v5368, %v6117
      %v6137 = vmul.f32 %v5369, %v6117
      %v6138 = vmul.f32 %v5370, %v6117
      %v6139 = vmul.f32 %v5371, %v6117
      %v6140 = vmul.f32 %v5372, %v6117
      %v6141 = vmul.f32 %v5373, %v6117
      %v6142 = vmul.f32 %v5374, %v6117
      %v6143 = vmul.f32 %v5375, %v6117
      %v6144 = vmul.f32 %v5376, %v6117
      %v6145 = vmul.f32 %v5377, %v6117
      %v6146 = vmul.f32 %v5378, %v6117
      %v6147 = vmul.f32 %v5379, %v6117
      %v6148 = vmul.f32 %v5380, %v6117
      %v6149 = vmul.f32 %v5381, %v6117
      %v6150 = vmul.f32 %v5382, %v6117
      %v6151 = vmul.f32 %v5383, %v6117
      %v6152 = vmul.f32 %v5384, %v6117
      %v6153 = vmul.f32 %v5385, %v6117
      %v6154 = vmul.f32 %v5386, %v6117
      %v6155 = vmul.f32 %v5387, %v6117
      %v6156 = vmul.f32 %v5388, %v6117
      %v6157 = vmul.f32 %v5389, %v6117
      %v6158 = vmul.f32 %v5390, %v6117
      %v6159 = vmul.f32 %v5391, %v6117
      %v6160 = vmul.f32 %v5392, %v6117
      %v6161 = vmul.f32 %v5393, %v6117
      %v6162 = vmul.f32 %v5394, %v6117
      %v6163 = vmul.f32 %v5395, %v6117
      %v6164 = vmul.f32 %v5396, %v6117
      %v6165 = vmul.f32 %v5397, %v6117
      %v6166 = vadd.f32 %v6066, %v6118
      %v6167 = vadd.f32 %v6067, %v6119
      %v6168 = vadd.f32 %v6068, %v6120
      %v6169 = vadd.f32 %v6069, %v6121
      %v6170 = vadd.f32 %v6070, %v6122
      %v6171 = vadd.f32 %v6071, %v6123
      %v6172 = vadd.f32 %v6072, %v6124
      %v6173 = vadd.f32 %v6073, %v6125
      %v6174 = vadd.f32 %v6074, %v6126
      %v6175 = vadd.f32 %v6075, %v6127
      %v6176 = vadd.f32 %v6076, %v6128
      %v6177 = vadd.f32 %v6077, %v6129
      %v6178 = vadd.f32 %v6078, %v6130
      %v6179 = vadd.f32 %v6079, %v6131
      %v6180 = vadd.f32 %v6080, %v6132
      %v6181 = vadd.f32 %v6081, %v6133
      %v6182 = vadd.f32 %v6082, %v6134
      %v6183 = vadd.f32 %v6083, %v6135
      %v6184 = vadd.f32 %v6084, %v6136
      %v6185 = vadd.f32 %v6085, %v6137
      %v6186 = vadd.f32 %v6086, %v6138
      %v6187 = vadd.f32 %v6087, %v6139
      %v6188 = vadd.f32 %v6088, %v6140
      %v6189 = vadd.f32 %v6089, %v6141
      %v6190 = vadd.f32 %v6090, %v6142
      %v6191 = vadd.f32 %v6091, %v6143
      %v6192 = vadd.f32 %v6092, %v6144
      %v6193 = vadd.f32 %v6093, %v6145
      %v6194 = vadd.f32 %v6094, %v6146
      %v6195 = vadd.f32 %v6095, %v6147
      %v6196 = vadd.f32 %v6096, %v6148
      %v6197 = vadd.f32 %v6097, %v6149
      %v6198 = vadd.f32 %v6098, %v6150
      %v6199 = vadd.f32 %v6099, %v6151
      %v6200 = vadd.f32 %v6100, %v6152
      %v6201 = vadd.f32 %v6101, %v6153
      %v6202 = vadd.f32 %v6102, %v6154
      %v6203 = vadd.f32 %v6103, %v6155
      %v6204 = vadd.f32 %v6104, %v6156
      %v6205 = vadd.f32 %v6105, %v6157
      %v6206 = vadd.f32 %v6106, %v6158
      %v6207 = vadd.f32 %v6107, %v6159
      %v6208 = vadd.f32 %v6108, %v6160
      %v6209 = vadd.f32 %v6109, %v6161
      %v6210 = vadd.f32 %v6110, %v6162
      %v6211 = vadd.f32 %v6111, %v6163
      %v6212 = vadd.f32 %v6112, %v6164
      %v6213 = vadd.f32 %v6113, %v6165
      %v6214 = vlaneseq
      %v6215 = vshrl.u32 %v6214, 7
      %v6216 = vsub.s32 0, %v6215
      %v6217 = vrot.slane %v5301, %v6216
      %v6218 = vmul.f32 %v5398, %v6217
      %v6219 = vmul.f32 %v5399, %v6217
      %v6220 = vmul.f32 %v5400, %v6217
      %v6221 = vmul.f32 %v5401, %v6217
      %v6222 = vmul.f32 %v5402, %v6217
      %v6223 = vmul.f32 %v5403, %v6217
      %v6224 = vmul.f32 %v5404, %v6217
      %v6225 = vmul.f32 %v5405, %v6217
      %v6226 = vmul.f32 %v5406, %v6217
      %v6227 = vmul.f32 %v5407, %v6217
      %v6228 = vmul.f32 %v5408, %v6217
      %v6229 = vmul.f32 %v5409, %v6217
      %v6230 = vmul.f32 %v5410, %v6217
      %v6231 = vmul.f32 %v5411, %v6217
      %v6232 = vmul.f32 %v5412, %v6217
      %v6233 = vmul.f32 %v5413, %v6217
      %v6234 = vmul.f32 %v5414, %v6217
      %v6235 = vmul.f32 %v5415, %v6217
      %v6236 = vmul.f32 %v5416, %v6217
      %v6237 = vmul.f32 %v5417, %v6217
      %v6238 = vmul.f32 %v5418, %v6217
      %v6239 = vmul.f32 %v5419, %v6217
      %v6240 = vmul.f32 %v5420, %v6217
      %v6241 = vmul.f32 %v5421, %v6217
      %v6242 = vmul.f32 %v5422, %v6217
      %v6243 = vmul.f32 %v5423, %v6217
      %v6244 = vmul.f32 %v5424, %v6217
      %v6245 = vmul.f32 %v5425, %v6217
      %v6246 = vmul.f32 %v5426, %v6217
      %v6247 = vmul.f32 %v5427, %v6217
      %v6248 = vmul.f32 %v5428, %v6217
      %v6249 = vmul.f32 %v5429, %v6217
      %v6250 = vmul.f32 %v5430, %v6217
      %v6251 = vmul.f32 %v5431, %v6217
      %v6252 = vmul.f32 %v5432, %v6217
      %v6253 = vmul.f32 %v5433, %v6217
      %v6254 = vmul.f32 %v5434, %v6217
      %v6255 = vmul.f32 %v5435, %v6217
      %v6256 = vmul.f32 %v5436, %v6217
      %v6257 = vmul.f32 %v5437, %v6217
      %v6258 = vmul.f32 %v5438, %v6217
      %v6259 = vmul.f32 %v5439, %v6217
      %v6260 = vmul.f32 %v5440, %v6217
      %v6261 = vmul.f32 %v5441, %v6217
      %v6262 = vmul.f32 %v5442, %v6217
      %v6263 = vmul.f32 %v5443, %v6217
      %v6264 = vmul.f32 %v5444, %v6217
      %v6265 = vmul.f32 %v5445, %v6217
      %v6266 = vadd.f32 %v6166, %v6218
      %v6267 = vadd.f32 %v6167, %v6219
      %v6268 = vadd.f32 %v6168, %v6220
      %v6269 = vadd.f32 %v6169, %v6221
      %v6270 = vadd.f32 %v6170, %v6222
      %v6271 = vadd.f32 %v6171, %v6223
      %v6272 = vadd.f32 %v6172, %v6224
      %v6273 = vadd.f32 %v6173, %v6225
      %v6274 = vadd.f32 %v6174, %v6226
      %v6275 = vadd.f32 %v6175, %v6227
      %v6276 = vadd.f32 %v6176, %v6228
      %v6277 = vadd.f32 %v6177, %v6229
      %v6278 = vadd.f32 %v6178, %v6230
      %v6279 = vadd.f32 %v6179, %v6231
      %v6280 = vadd.f32 %v6180, %v6232
      %v6281 = vadd.f32 %v6181, %v6233
      %v6282 = vadd.f32 %v6182, %v6234
      %v6283 = vadd.f32 %v6183, %v6235
      %v6284 = vadd.f32 %v6184, %v6236
      %v6285 = vadd.f32 %v6185, %v6237
      %v6286 = vadd.f32 %v6186, %v6238
      %v6287 = vadd.f32 %v6187, %v6239
      %v6288 = vadd.f32 %v6188, %v6240
      %v6289 = vadd.f32 %v6189, %v6241
      %v6290 = vadd.f32 %v6190, %v6242
      %v6291 = vadd.f32 %v6191, %v6243
      %v6292 = vadd.f32 %v6192, %v6244
      %v6293 = vadd.f32 %v6193, %v6245
      %v6294 = vadd.f32 %v6194, %v6246
      %v6295 = vadd.f32 %v6195, %v6247
      %v6296 = vadd.f32 %v6196, %v6248
      %v6297 = vadd.f32 %v6197, %v6249
      %v6298 = vadd.f32 %v6198, %v6250
      %v6299 = vadd.f32 %v6199, %v6251
      %v6300 = vadd.f32 %v6200, %v6252
      %v6301 = vadd.f32 %v6201, %v6253
      %v6302 = vadd.f32 %v6202, %v6254
      %v6303 = vadd.f32 %v6203, %v6255
      %v6304 = vadd.f32 %v6204, %v6256
      %v6305 = vadd.f32 %v6205, %v6257
      %v6306 = vadd.f32 %v6206, %v6258
      %v6307 = vadd.f32 %v6207, %v6259
      %v6308 = vadd.f32 %v6208, %v6260
      %v6309 = vadd.f32 %v6209, %v6261
      %v6310 = vadd.f32 %v6210, %v6262
      %v6311 = vadd.f32 %v6211, %v6263
      %v6312 = vadd.f32 %v6212, %v6264
      %v6313 = vadd.f32 %v6213, %v6265
      %v6362 = vrot.slane %v6266, 2
      %v6363 = vrot.slane %v6267, 2
      %v6364 = vsel %vm1959, %v6362, %v6363
      %v6365 = vrot.slane %v6268, 2
      %v6366 = vsel %vm1959, %v6363, %v6365
      %v6367 = vrot.slane %v6269, 2
      %v6368 = vrot.slane %v6270, 2
      %v6369 = vsel %vm1959, %v6367, %v6368
      %v6370 = vrot.slane %v6271, 2
      %v6371 = vsel %vm1959, %v6368, %v6370
      %v6372 = vrot.slane %v6272, 2
      %v6373 = vrot.slane %v6273, 2
      %v6374 = vsel %vm1959, %v6372, %v6373
      %v6375 = vrot.slane %v6274, 2
      %v6376 = vsel %vm1959, %v6373, %v6375
      %v6377 = vrot.slane %v6275, 2
      %v6378 = vrot.slane %v6276, 2
      %v6379 = vsel %vm1959, %v6377, %v6378
      %v6380 = vrot.slane %v6277, 2
      %v6381 = vsel %vm1959, %v6378, %v6380
      %v6382 = vrot.slane %v6278, 2
      %v6383 = vrot.slane %v6279, 2
      %v6384 = vsel %vm1959, %v6382, %v6383
      %v6385 = vrot.slane %v6280, 2
      %v6386 = vsel %vm1959, %v6383, %v6385
      %v6387 = vrot.slane %v6281, 2
      %v6388 = vrot.slane %v6282, 2
      %v6389 = vsel %vm1959, %v6387, %v6388
      %v6390 = vrot.slane %v6283, 2
      %v6391 = vsel %vm1959, %v6388, %v6390
      %v6392 = vrot.slane %v6284, 2
      %v6393 = vrot.slane %v6285, 2
      %v6394 = vsel %vm1959, %v6392, %v6393
      %v6395 = vrot.slane %v6286, 2
      %v6396 = vsel %vm1959, %v6393, %v6395
      %v6397 = vrot.slane %v6287, 2
      %v6398 = vrot.slane %v6288, 2
      %v6399 = vsel %vm1959, %v6397, %v6398
      %v6400 = vrot.slane %v6289, 2
      %v6401 = vsel %vm1959, %v6398, %v6400
      %v6402 = vrot.slane %v6290, 2
      %v6403 = vrot.slane %v6291, 2
      %v6404 = vsel %vm1959, %v6402, %v6403
      %v6405 = vrot.slane %v6292, 2
      %v6406 = vsel %vm1959, %v6403, %v6405
      %v6407 = vrot.slane %v6293, 2
      %v6408 = vrot.slane %v6294, 2
      %v6409 = vsel %vm1959, %v6407, %v6408
      %v6410 = vrot.slane %v6295, 2
      %v6411 = vsel %vm1959, %v6408, %v6410
      %v6412 = vrot.slane %v6296, 2
      %v6413 = vrot.slane %v6297, 2
      %v6414 = vsel %vm1959, %v6412, %v6413
      %v6415 = vrot.slane %v6298, 2
      %v6416 = vsel %vm1959, %v6413, %v6415
      %v6417 = vrot.slane %v6299, 2
      %v6418 = vrot.slane %v6300, 2
      %v6419 = vsel %vm1959, %v6417, %v6418
      %v6420 = vrot.slane %v6301, 2
      %v6421 = vsel %vm1959, %v6418, %v6420
      %v6422 = vrot.slane %v6302, 2
      %v6423 = vrot.slane %v6303, 2
      %v6424 = vsel %vm1959, %v6422, %v6423
      %v6425 = vrot.slane %v6304, 2
      %v6426 = vsel %vm1959, %v6423, %v6425
      %v6427 = vrot.slane %v6305, 2
      %v6428 = vrot.slane %v6306, 2
      %v6429 = vsel %vm1959, %v6427, %v6428
      %v6430 = vrot.slane %v6307, 2
      %v6431 = vsel %vm1959, %v6428, %v6430
      %v6432 = vrot.slane %v6308, 2
      %v6433 = vrot.slane %v6309, 2
      %v6434 = vsel %vm1959, %v6432, %v6433
      %v6435 = vrot.slane %v6310, 2
      %v6436 = vsel %vm1959, %v6433, %v6435
      %v6437 = vrot.slane %v6311, 2
      %v6438 = vrot.slane %v6312, 2
      %v6439 = vsel %vm1959, %v6437, %v6438
      %v6440 = vrot.slane %v6313, 2
      %v6441 = vsel %vm1959, %v6438, %v6440
      %v6474 = vadd.f32 %v6030, %v6364
      %v6475 = vadd.f32 %v6031, %v6366
      %v6476 = vadd.f32 %v6032, %v6369
      %v6477 = vadd.f32 %v6033, %v6371
      %v6478 = vadd.f32 %v6034, %v6374
      %v6479 = vadd.f32 %v6035, %v6376
      %v6480 = vadd.f32 %v6036, %v6379
      %v6481 = vadd.f32 %v6037, %v6381
      %v6482 = vadd.f32 %v6038, %v6384
      %v6483 = vadd.f32 %v6039, %v6386
      %v6484 = vadd.f32 %v6040, %v6389
      %v6485 = vadd.f32 %v6041, %v6391
      %v6486 = vadd.f32 %v6042, %v6394
      %v6487 = vadd.f32 %v6043, %v6396
      %v6488 = vadd.f32 %v6044, %v6399
      %v6489 = vadd.f32 %v6045, %v6401
      %v6490 = vadd.f32 %v6046, %v6404
      %v6491 = vadd.f32 %v6047, %v6406
      %v6492 = vadd.f32 %v6048, %v6409
      %v6493 = vadd.f32 %v6049, %v6411
      %v6494 = vadd.f32 %v6050, %v6414
      %v6495 = vadd.f32 %v6051, %v6416
      %v6496 = vadd.f32 %v6052, %v6419
      %v6497 = vadd.f32 %v6053, %v6421
      %v6498 = vadd.f32 %v6054, %v6424
      %v6499 = vadd.f32 %v6055, %v6426
      %v6500 = vadd.f32 %v6056, %v6429
      %v6501 = vadd.f32 %v6057, %v6431
      %v6502 = vadd.f32 %v6058, %v6434
      %v6503 = vadd.f32 %v6059, %v6436
      %v6504 = vadd.f32 %v6060, %v6439
      %v6505 = vadd.f32 %v6061, %v6441
      %s6506 = scalar_lea.vmem %s9, 1
      %v6507 = vld [vmem:[%s6506] sm:$0x1]
      %v6509 = vlaneseq
      %v6510 = vshrl.u32 %v6509, 7
      %v6511 = vsub.s32 0, %v6510
      %v6512 = vrot.slane %v6507, %v6511
      %v6514 = vadd.f32 %v6474, %v6512
      %v6515 = vadd.f32 %v6475, %v6512
      %v6516 = vadd.f32 %v6476, %v6512
      %v6517 = vadd.f32 %v6477, %v6512
      %v6518 = vadd.f32 %v6478, %v6512
      %v6519 = vadd.f32 %v6479, %v6512
      %v6520 = vadd.f32 %v6480, %v6512
      %v6521 = vadd.f32 %v6481, %v6512
      %v6522 = vadd.f32 %v6482, %v6512
      %v6523 = vadd.f32 %v6483, %v6512
      %v6524 = vadd.f32 %v6484, %v6512
      %v6525 = vadd.f32 %v6485, %v6512
      %v6526 = vadd.f32 %v6486, %v6512
      %v6527 = vadd.f32 %v6487, %v6512
      %v6528 = vadd.f32 %v6488, %v6512
      %v6529 = vadd.f32 %v6489, %v6512
      %v6530 = vadd.f32 %v6490, %v6512
      %v6531 = vadd.f32 %v6491, %v6512
      %v6532 = vadd.f32 %v6492, %v6512
      %v6533 = vadd.f32 %v6493, %v6512
      %v6534 = vadd.f32 %v6494, %v6512
      %v6535 = vadd.f32 %v6495, %v6512
      %v6536 = vadd.f32 %v6496, %v6512
      %v6537 = vadd.f32 %v6497, %v6512
      %v6538 = vadd.f32 %v6498, %v6512
      %v6539 = vadd.f32 %v6499, %v6512
      %v6540 = vadd.f32 %v6500, %v6512
      %v6541 = vadd.f32 %v6501, %v6512
      %v6542 = vadd.f32 %v6502, %v6512
      %v6543 = vadd.f32 %v6503, %v6512
      %v6544 = vadd.f32 %v6504, %v6512
      %v6545 = vadd.f32 %v6505, %v6512
      %v6546 = vmul.f32 %v2111, 0.5
      %v6547 = vmul.f32 %v2112, 0.5
      %v6548 = vmul.f32 %v2113, 0.5
      %v6549 = vmul.f32 %v2114, 0.5
      %v6550 = vmul.f32 %v2115, 0.5
      %v6551 = vmul.f32 %v2116, 0.5
      %v6552 = vmul.f32 %v2117, 0.5
      %v6553 = vmul.f32 %v2118, 0.5
      %v6554 = vmul.f32 %v2119, 0.5
      %v6555 = vmul.f32 %v2120, 0.5
      %v6556 = vmul.f32 %v2121, 0.5
      %v6557 = vmul.f32 %v2122, 0.5
      %v6558 = vmul.f32 %v2123, 0.5
      %v6559 = vmul.f32 %v2124, 0.5
      %v6560 = vmul.f32 %v2125, 0.5
      %v6561 = vmul.f32 %v2126, 0.5
      %v6562 = vmul.f32 %v2127, 0.5
      %v6563 = vmul.f32 %v2128, 0.5
      %v6564 = vmul.f32 %v2129, 0.5
      %v6565 = vmul.f32 %v2130, 0.5
      %v6566 = vmul.f32 %v2131, 0.5
      %v6567 = vmul.f32 %v2132, 0.5
      %v6568 = vmul.f32 %v2133, 0.5
      %v6569 = vmul.f32 %v2134, 0.5
      %v6570 = vmul.f32 %v2135, 0.5
      %v6571 = vmul.f32 %v2136, 0.5
      %v6572 = vmul.f32 %v2137, 0.5
      %v6573 = vmul.f32 %v2138, 0.5
      %v6574 = vmul.f32 %v2139, 0.5
      %v6575 = vmul.f32 %v2140, 0.5
      %v6576 = vmul.f32 %v2141, 0.5
      %v6577 = vmul.f32 %v2142, 0.5
      %v6578 = vpack.c.bf16 %v6547, %v6546
      %v6579 = vpack.c.bf16 %v6549, %v6548
      %v6580 = vpack.c.bf16 %v6551, %v6550
      %v6581 = vpack.c.bf16 %v6553, %v6552
      %v6582 = vpack.c.bf16 %v6555, %v6554
      %v6583 = vpack.c.bf16 %v6557, %v6556
      %v6584 = vpack.c.bf16 %v6559, %v6558
      %v6585 = vpack.c.bf16 %v6561, %v6560
      %v6586 = vpack.c.bf16 %v6563, %v6562
      %v6587 = vpack.c.bf16 %v6565, %v6564
      %v6588 = vpack.c.bf16 %v6567, %v6566
      %v6589 = vpack.c.bf16 %v6569, %v6568
      %v6590 = vpack.c.bf16 %v6571, %v6570
      %v6591 = vpack.c.bf16 %v6573, %v6572
      %v6592 = vpack.c.bf16 %v6575, %v6574
      %v6593 = vpack.c.bf16 %v6577, %v6576
      %v6594 = vpack.c.bf16 %v5062, %v5061
      %v6595 = vpack.c.bf16 %v5064, %v5063
      %v6596 = vpack.c.bf16 %v5066, %v5065
      %v6597 = vpack.c.bf16 %v5068, %v5067
      %v6598 = vpack.c.bf16 %v5070, %v5069
      %v6599 = vpack.c.bf16 %v5072, %v5071
      %v6600 = vpack.c.bf16 %v5074, %v5073
      %v6601 = vpack.c.bf16 %v5076, %v5075
      %v6602 = vpack.c.bf16 %v5078, %v5077
      %v6603 = vpack.c.bf16 %v5080, %v5079
      %v6604 = vpack.c.bf16 %v5082, %v5081
      %v6605 = vpack.c.bf16 %v5084, %v5083
      %v6606 = vpack.c.bf16 %v5086, %v5085
      %v6607 = vpack.c.bf16 %v5088, %v5087
      %v6608 = vpack.c.bf16 %v5090, %v5089
      %v6609 = vpack.c.bf16 %v5092, %v5091
      %v6610 = vpack.c.bf16 %v3565, %v3564
      %v6611 = vpack.c.bf16 %v3567, %v3566
      %v6612 = vpack.c.bf16 %v3569, %v3568
      %v6613 = vpack.c.bf16 %v3571, %v3570
      %v6614 = vpack.c.bf16 %v3573, %v3572
      %v6615 = vpack.c.bf16 %v3575, %v3574
      %v6616 = vpack.c.bf16 %v3577, %v3576
      %v6617 = vpack.c.bf16 %v3579, %v3578
      %v6618 = vpack.c.bf16 %v3581, %v3580
      %v6619 = vpack.c.bf16 %v3583, %v3582
      %v6620 = vpack.c.bf16 %v3585, %v3584
      %v6621 = vpack.c.bf16 %v3587, %v3586
      %v6622 = vpack.c.bf16 %v3589, %v3588
      %v6623 = vpack.c.bf16 %v3591, %v3590
      %v6624 = vpack.c.bf16 %v3593, %v3592
      %v6625 = vpack.c.bf16 %v3595, %v3594
      %v6626 = vpack.c.bf16 %v6515, %v6514
      %v6627 = vpack.c.bf16 %v6517, %v6516
      %v6628 = vpack.c.bf16 %v6519, %v6518
      %v6629 = vpack.c.bf16 %v6521, %v6520
      %v6630 = vpack.c.bf16 %v6523, %v6522
      %v6631 = vpack.c.bf16 %v6525, %v6524
      %v6632 = vpack.c.bf16 %v6527, %v6526
      %v6633 = vpack.c.bf16 %v6529, %v6528
      %v6634 = vpack.c.bf16 %v6531, %v6530
      %v6635 = vpack.c.bf16 %v6533, %v6532
      %v6636 = vpack.c.bf16 %v6535, %v6534
      %v6637 = vpack.c.bf16 %v6537, %v6536
      %v6638 = vpack.c.bf16 %v6539, %v6538
      %v6639 = vpack.c.bf16 %v6541, %v6540
      %v6640 = vpack.c.bf16 %v6543, %v6542
      %v6641 = vpack.c.bf16 %v6545, %v6544
      %v6643 = vsel %vm489, %v6578, 0
      %v6646 = vsel %vm489, %v6594, 0
      %6648 = vmatprep.subr.bf16.mxu0 0
      %6649 = vmatpush1.bf16.xpose.msra.mxu0 %v6646
      %6650 = vmatprep.subr.bf16.mxu0 0
      %6651 = vmatpush1.bf16.xpose.msra.mxu0 0
      %6652 = vmatprep.subr.bf16.mxu0 0
      %6653 = vmatpush1.bf16.xpose.msra.mxu0 0
      %6654 = vmatprep.subr.bf16.mxu0 0
      %6655 = vmatpush1.bf16.xpose.msra.mxu0 0
      %6656 = vmatprep.subr.bf16.mxu0 0
      %6657 = vmatpush1.bf16.xpose.msra.mxu0 0
      %6658 = vmatprep.subr.bf16.mxu0 0
      %6659 = vmatpush1.bf16.xpose.msra.mxu0 0
      %6660 = vmatprep.subr.bf16.mxu0 0
      %6661 = vmatpush1.bf16.xpose.msra.mxu0 0
      %6662 = vmatprep.subr.bf16.mxu0 0
      %6663 = vmatpush1.bf16.xpose.msra.mxu0 0
      %6664 = vmatprep.subr.bf16.mxu0 0
      %6665 = vmatpush1.bf16.xpose.msra.mxu0 0
      %6666 = vmatprep.subr.bf16.mxu0 0
      %6667 = vmatpush1.bf16.xpose.msra.mxu0 0
      %6668 = vmatprep.subr.bf16.mxu0 0
      %6669 = vmatpush1.bf16.xpose.msra.mxu0 0
      %6670 = vmatprep.subr.bf16.mxu0 0
      %6671 = vmatpush1.bf16.xpose.msra.mxu0 0
      %6672 = vmatprep.subr.bf16.mxu0 0
      %6673 = vmatpush1.bf16.xpose.msra.mxu0 0
      %6674 = vmatprep.subr.bf16.mxu0 0
      %6675 = vmatpush1.bf16.xpose.msra.mxu0 0
      %6676 = vmatprep.subr.bf16.mxu0 0
      %6677 = vmatpush1.bf16.xpose.msra.mxu0 0
      %6678 = vmatprep.subr.bf16.mxu0 0
      %6679 = vmatpush1.bf16.xpose.msra.mxu0 0
      %6680 = vmatprep.mubr.bf16.mxu0 0
      %6681 = vmatmul.mubr.bf16.gmra.mrb[0].mxu0 %v6643
      %v6682 = vpop.f32.mrb[0].mxu0
      %v6683 = vadd.f32 0.0, %v6682
      %v6684 = vpop.f32.mrb[0].mxu0
      %v6685 = vpop.f32.mrb[0].mxu0
      %v6686 = vadd.f32 0.0, %v6685
      %v6687 = vpop.f32.mrb[0].mxu0
      %6688 = vdwg.mxu0
      %v6690 = vsel %vm489, %v6579, 0
      %v6693 = vsel %vm489, %v6595, 0
      %6695 = vmatprep.subr.bf16.mxu0 0
      %6696 = vmatpush1.bf16.xpose.msra.mxu0 %v6693
      %6697 = vmatprep.subr.bf16.mxu0 0
      %6698 = vmatpush1.bf16.xpose.msra.mxu0 0
      %6699 = vmatprep.subr.bf16.mxu0 0
      %6700 = vmatpush1.bf16.xpose.msra.mxu0 0
      %6701 = vmatprep.subr.bf16.mxu0 0
      %6702 = vmatpush1.bf16.xpose.msra.mxu0 0
      %6703 = vmatprep.subr.bf16.mxu0 0
      %6704 = vmatpush1.bf16.xpose.msra.mxu0 0
      %6705 = vmatprep.subr.bf16.mxu0 0
      %6706 = vmatpush1.bf16.xpose.msra.mxu0 0
      %6707 = vmatprep.subr.bf16.mxu0 0
      %6708 = vmatpush1.bf16.xpose.msra.mxu0 0
      %6709 = vmatprep.subr.bf16.mxu0 0
      %6710 = vmatpush1.bf16.xpose.msra.mxu0 0
      %6711 = vmatprep.subr.bf16.mxu0 0
      %6712 = vmatpush1.bf16.xpose.msra.mxu0 0
      %6713 = vmatprep.subr.bf16.mxu0 0
      %6714 = vmatpush1.bf16.xpose.msra.mxu0 0
      %6715 = vmatprep.subr.bf16.mxu0 0
      %6716 = vmatpush1.bf16.xpose.msra.mxu0 0
      %6717 = vmatprep.subr.bf16.mxu0 0
      %6718 = vmatpush1.bf16.xpose.msra.mxu0 0
      %6719 = vmatprep.subr.bf16.mxu0 0
      %6720 = vmatpush1.bf16.xpose.msra.mxu0 0
      %6721 = vmatprep.subr.bf16.mxu0 0
      %6722 = vmatpush1.bf16.xpose.msra.mxu0 0
      %6723 = vmatprep.subr.bf16.mxu0 0
      %6724 = vmatpush1.bf16.xpose.msra.mxu0 0
      %6725 = vmatprep.subr.bf16.mxu0 0
      %6726 = vmatpush1.bf16.xpose.msra.mxu0 0
      %6727 = vmatprep.mubr.bf16.mxu0 0
      %6728 = vmatmul.mubr.bf16.gmra.mrb[0].mxu0 %v6690
      %v6729 = vpop.f32.mrb[0].mxu0
      %v6730 = vadd.f32 0.0, %v6729
      %v6731 = vpop.f32.mrb[0].mxu0
      %v6732 = vpop.f32.mrb[0].mxu0
      %v6733 = vadd.f32 0.0, %v6732
      %v6734 = vpop.f32.mrb[0].mxu0
      %6735 = vdwg.mxu0
      %v6737 = vsel %vm489, %v6580, 0
      %v6740 = vsel %vm489, %v6596, 0
      %6742 = vmatprep.subr.bf16.mxu0 0
      %6743 = vmatpush1.bf16.xpose.msra.mxu0 %v6740
      %6744 = vmatprep.subr.bf16.mxu0 0
      %6745 = vmatpush1.bf16.xpose.msra.mxu0 0
      %6746 = vmatprep.subr.bf16.mxu0 0
      %6747 = vmatpush1.bf16.xpose.msra.mxu0 0
      %6748 = vmatprep.subr.bf16.mxu0 0
      %6749 = vmatpush1.bf16.xpose.msra.mxu0 0
      %6750 = vmatprep.subr.bf16.mxu0 0
      %6751 = vmatpush1.bf16.xpose.msra.mxu0 0
      %6752 = vmatprep.subr.bf16.mxu0 0
      %6753 = vmatpush1.bf16.xpose.msra.mxu0 0
      %6754 = vmatprep.subr.bf16.mxu0 0
      %6755 = vmatpush1.bf16.xpose.msra.mxu0 0
      %6756 = vmatprep.subr.bf16.mxu0 0
      %6757 = vmatpush1.bf16.xpose.msra.mxu0 0
      %6758 = vmatprep.subr.bf16.mxu0 0
      %6759 = vmatpush1.bf16.xpose.msra.mxu0 0
      %6760 = vmatprep.subr.bf16.mxu0 0
      %6761 = vmatpush1.bf16.xpose.msra.mxu0 0
      %6762 = vmatprep.subr.bf16.mxu0 0
      %6763 = vmatpush1.bf16.xpose.msra.mxu0 0
      %6764 = vmatprep.subr.bf16.mxu0 0
      %6765 = vmatpush1.bf16.xpose.msra.mxu0 0
      %6766 = vmatprep.subr.bf16.mxu0 0
      %6767 = vmatpush1.bf16.xpose.msra.mxu0 0
      %6768 = vmatprep.subr.bf16.mxu0 0
      %6769 = vmatpush1.bf16.xpose.msra.mxu0 0
      %6770 = vmatprep.subr.bf16.mxu0 0
      %6771 = vmatpush1.bf16.xpose.msra.mxu0 0
      %6772 = vmatprep.subr.bf16.mxu0 0
      %6773 = vmatpush1.bf16.xpose.msra.mxu0 0
      %6774 = vmatprep.mubr.bf16.mxu0 0
      %6775 = vmatmul.mubr.bf16.gmra.mrb[0].mxu0 %v6737
      %v6776 = vpop.f32.mrb[0].mxu0
      %v6777 = vadd.f32 0.0, %v6776
      %v6778 = vpop.f32.mrb[0].mxu0
      %v6779 = vpop.f32.mrb[0].mxu0
      %v6780 = vadd.f32 0.0, %v6779
      %v6781 = vpop.f32.mrb[0].mxu0
      %6782 = vdwg.mxu0
      %v6784 = vsel %vm489, %v6581, 0
      %v6787 = vsel %vm489, %v6597, 0
      %6789 = vmatprep.subr.bf16.mxu0 0
      %6790 = vmatpush1.bf16.xpose.msra.mxu0 %v6787
      %6791 = vmatprep.subr.bf16.mxu0 0
      %6792 = vmatpush1.bf16.xpose.msra.mxu0 0
      %6793 = vmatprep.subr.bf16.mxu0 0
      %6794 = vmatpush1.bf16.xpose.msra.mxu0 0
      %6795 = vmatprep.subr.bf16.mxu0 0
      %6796 = vmatpush1.bf16.xpose.msra.mxu0 0
      %6797 = vmatprep.subr.bf16.mxu0 0
      %6798 = vmatpush1.bf16.xpose.msra.mxu0 0
      %6799 = vmatprep.subr.bf16.mxu0 0
      %6800 = vmatpush1.bf16.xpose.msra.mxu0 0
      %6801 = vmatprep.subr.bf16.mxu0 0
      %6802 = vmatpush1.bf16.xpose.msra.mxu0 0
      %6803 = vmatprep.subr.bf16.mxu0 0
      %6804 = vmatpush1.bf16.xpose.msra.mxu0 0
      %6805 = vmatprep.subr.bf16.mxu0 0
      %6806 = vmatpush1.bf16.xpose.msra.mxu0 0
      %6807 = vmatprep.subr.bf16.mxu0 0
      %6808 = vmatpush1.bf16.xpose.msra.mxu0 0
      %6809 = vmatprep.subr.bf16.mxu0 0
      %6810 = vmatpush1.bf16.xpose.msra.mxu0 0
      %6811 = vmatprep.subr.bf16.mxu0 0
      %6812 = vmatpush1.bf16.xpose.msra.mxu0 0
      %6813 = vmatprep.subr.bf16.mxu0 0
      %6814 = vmatpush1.bf16.xpose.msra.mxu0 0
      %6815 = vmatprep.subr.bf16.mxu0 0
      %6816 = vmatpush1.bf16.xpose.msra.mxu0 0
      %6817 = vmatprep.subr.bf16.mxu0 0
      %6818 = vmatpush1.bf16.xpose.msra.mxu0 0
      %6819 = vmatprep.subr.bf16.mxu0 0
      %6820 = vmatpush1.bf16.xpose.msra.mxu0 0
      %6821 = vmatprep.mubr.bf16.mxu0 0
      %6822 = vmatmul.mubr.bf16.gmra.mrb[0].mxu0 %v6784
      %v6823 = vpop.f32.mrb[0].mxu0
      %v6824 = vadd.f32 0.0, %v6823
      %v6825 = vpop.f32.mrb[0].mxu0
      %v6826 = vpop.f32.mrb[0].mxu0
      %v6827 = vadd.f32 0.0, %v6826
      %v6828 = vpop.f32.mrb[0].mxu0
      %6829 = vdwg.mxu0
      %v6831 = vsel %vm489, %v6582, 0
      %v6834 = vsel %vm489, %v6598, 0
      %6836 = vmatprep.subr.bf16.mxu0 0
      %6837 = vmatpush1.bf16.xpose.msra.mxu0 %v6834
      %6838 = vmatprep.subr.bf16.mxu0 0
      %6839 = vmatpush1.bf16.xpose.msra.mxu0 0
      %6840 = vmatprep.subr.bf16.mxu0 0
      %6841 = vmatpush1.bf16.xpose.msra.mxu0 0
      %6842 = vmatprep.subr.bf16.mxu0 0
      %6843 = vmatpush1.bf16.xpose.msra.mxu0 0
      %6844 = vmatprep.subr.bf16.mxu0 0
      %6845 = vmatpush1.bf16.xpose.msra.mxu0 0
      %6846 = vmatprep.subr.bf16.mxu0 0
      %6847 = vmatpush1.bf16.xpose.msra.mxu0 0
      %6848 = vmatprep.subr.bf16.mxu0 0
      %6849 = vmatpush1.bf16.xpose.msra.mxu0 0
      %6850 = vmatprep.subr.bf16.mxu0 0
      %6851 = vmatpush1.bf16.xpose.msra.mxu0 0
      %6852 = vmatprep.subr.bf16.mxu0 0
      %6853 = vmatpush1.bf16.xpose.msra.mxu0 0
      %6854 = vmatprep.subr.bf16.mxu0 0
      %6855 = vmatpush1.bf16.xpose.msra.mxu0 0
      %6856 = vmatprep.subr.bf16.mxu0 0
      %6857 = vmatpush1.bf16.xpose.msra.mxu0 0
      %6858 = vmatprep.subr.bf16.mxu0 0
      %6859 = vmatpush1.bf16.xpose.msra.mxu0 0
      %6860 = vmatprep.subr.bf16.mxu0 0
      %6861 = vmatpush1.bf16.xpose.msra.mxu0 0
      %6862 = vmatprep.subr.bf16.mxu0 0
      %6863 = vmatpush1.bf16.xpose.msra.mxu0 0
      %6864 = vmatprep.subr.bf16.mxu0 0
      %6865 = vmatpush1.bf16.xpose.msra.mxu0 0
      %6866 = vmatprep.subr.bf16.mxu0 0
      %6867 = vmatpush1.bf16.xpose.msra.mxu0 0
      %6868 = vmatprep.mubr.bf16.mxu0 0
      %6869 = vmatmul.mubr.bf16.gmra.mrb[0].mxu0 %v6831
      %v6870 = vpop.f32.mrb[0].mxu0
      %v6871 = vadd.f32 0.0, %v6870
      %v6872 = vpop.f32.mrb[0].mxu0
      %v6873 = vpop.f32.mrb[0].mxu0
      %v6874 = vadd.f32 0.0, %v6873
      %v6875 = vpop.f32.mrb[0].mxu0
      %6876 = vdwg.mxu0
      %v6878 = vsel %vm489, %v6583, 0
      %v6881 = vsel %vm489, %v6599, 0
      %6883 = vmatprep.subr.bf16.mxu0 0
      %6884 = vmatpush1.bf16.xpose.msra.mxu0 %v6881
      %6885 = vmatprep.subr.bf16.mxu0 0
      %6886 = vmatpush1.bf16.xpose.msra.mxu0 0
      %6887 = vmatprep.subr.bf16.mxu0 0
      %6888 = vmatpush1.bf16.xpose.msra.mxu0 0
      %6889 = vmatprep.subr.bf16.mxu0 0
      %6890 = vmatpush1.bf16.xpose.msra.mxu0 0
      %6891 = vmatprep.subr.bf16.mxu0 0
      %6892 = vmatpush1.bf16.xpose.msra.mxu0 0
      %6893 = vmatprep.subr.bf16.mxu0 0
      %6894 = vmatpush1.bf16.xpose.msra.mxu0 0
      %6895 = vmatprep.subr.bf16.mxu0 0
      %6896 = vmatpush1.bf16.xpose.msra.mxu0 0
      %6897 = vmatprep.subr.bf16.mxu0 0
      %6898 = vmatpush1.bf16.xpose.msra.mxu0 0
      %6899 = vmatprep.subr.bf16.mxu0 0
      %6900 = vmatpush1.bf16.xpose.msra.mxu0 0
      %6901 = vmatprep.subr.bf16.mxu0 0
      %6902 = vmatpush1.bf16.xpose.msra.mxu0 0
      %6903 = vmatprep.subr.bf16.mxu0 0
      %6904 = vmatpush1.bf16.xpose.msra.mxu0 0
      %6905 = vmatprep.subr.bf16.mxu0 0
      %6906 = vmatpush1.bf16.xpose.msra.mxu0 0
      %6907 = vmatprep.subr.bf16.mxu0 0
      %6908 = vmatpush1.bf16.xpose.msra.mxu0 0
      %6909 = vmatprep.subr.bf16.mxu0 0
      %6910 = vmatpush1.bf16.xpose.msra.mxu0 0
      %6911 = vmatprep.subr.bf16.mxu0 0
      %6912 = vmatpush1.bf16.xpose.msra.mxu0 0
      %6913 = vmatprep.subr.bf16.mxu0 0
      %6914 = vmatpush1.bf16.xpose.msra.mxu0 0
      %6915 = vmatprep.mubr.bf16.mxu0 0
      %6916 = vmatmul.mubr.bf16.gmra.mrb[0].mxu0 %v6878
      %v6917 = vpop.f32.mrb[0].mxu0
      %v6918 = vadd.f32 0.0, %v6917
      %v6919 = vpop.f32.mrb[0].mxu0
      %v6920 = vpop.f32.mrb[0].mxu0
      %v6921 = vadd.f32 0.0, %v6920
      %v6922 = vpop.f32.mrb[0].mxu0
      %6923 = vdwg.mxu0
      %v6925 = vsel %vm489, %v6584, 0
      %v6928 = vsel %vm489, %v6600, 0
      %6930 = vmatprep.subr.bf16.mxu0 0
      %6931 = vmatpush1.bf16.xpose.msra.mxu0 %v6928
      %6932 = vmatprep.subr.bf16.mxu0 0
      %6933 = vmatpush1.bf16.xpose.msra.mxu0 0
      %6934 = vmatprep.subr.bf16.mxu0 0
      %6935 = vmatpush1.bf16.xpose.msra.mxu0 0
      %6936 = vmatprep.subr.bf16.mxu0 0
      %6937 = vmatpush1.bf16.xpose.msra.mxu0 0
      %6938 = vmatprep.subr.bf16.mxu0 0
      %6939 = vmatpush1.bf16.xpose.msra.mxu0 0
      %6940 = vmatprep.subr.bf16.mxu0 0
      %6941 = vmatpush1.bf16.xpose.msra.mxu0 0
      %6942 = vmatprep.subr.bf16.mxu0 0
      %6943 = vmatpush1.bf16.xpose.msra.mxu0 0
      %6944 = vmatprep.subr.bf16.mxu0 0
      %6945 = vmatpush1.bf16.xpose.msra.mxu0 0
      %6946 = vmatprep.subr.bf16.mxu0 0
      %6947 = vmatpush1.bf16.xpose.msra.mxu0 0
      %6948 = vmatprep.subr.bf16.mxu0 0
      %6949 = vmatpush1.bf16.xpose.msra.mxu0 0
      %6950 = vmatprep.subr.bf16.mxu0 0
      %6951 = vmatpush1.bf16.xpose.msra.mxu0 0
      %6952 = vmatprep.subr.bf16.mxu0 0
      %6953 = vmatpush1.bf16.xpose.msra.mxu0 0
      %6954 = vmatprep.subr.bf16.mxu0 0
      %6955 = vmatpush1.bf16.xpose.msra.mxu0 0
      %6956 = vmatprep.subr.bf16.mxu0 0
      %6957 = vmatpush1.bf16.xpose.msra.mxu0 0
      %6958 = vmatprep.subr.bf16.mxu0 0
      %6959 = vmatpush1.bf16.xpose.msra.mxu0 0
      %6960 = vmatprep.subr.bf16.mxu0 0
      %6961 = vmatpush1.bf16.xpose.msra.mxu0 0
      %6962 = vmatprep.mubr.bf16.mxu0 0
      %6963 = vmatmul.mubr.bf16.gmra.mrb[0].mxu0 %v6925
      %v6964 = vpop.f32.mrb[0].mxu0
      %v6965 = vadd.f32 0.0, %v6964
      %v6966 = vpop.f32.mrb[0].mxu0
      %v6967 = vpop.f32.mrb[0].mxu0
      %v6968 = vadd.f32 0.0, %v6967
      %v6969 = vpop.f32.mrb[0].mxu0
      %6970 = vdwg.mxu0
      %v6972 = vsel %vm489, %v6585, 0
      %v6975 = vsel %vm489, %v6601, 0
      %6977 = vmatprep.subr.bf16.mxu0 0
      %6978 = vmatpush1.bf16.xpose.msra.mxu0 %v6975
      %6979 = vmatprep.subr.bf16.mxu0 0
      %6980 = vmatpush1.bf16.xpose.msra.mxu0 0
      %6981 = vmatprep.subr.bf16.mxu0 0
      %6982 = vmatpush1.bf16.xpose.msra.mxu0 0
      %6983 = vmatprep.subr.bf16.mxu0 0
      %6984 = vmatpush1.bf16.xpose.msra.mxu0 0
      %6985 = vmatprep.subr.bf16.mxu0 0
      %6986 = vmatpush1.bf16.xpose.msra.mxu0 0
      %6987 = vmatprep.subr.bf16.mxu0 0
      %6988 = vmatpush1.bf16.xpose.msra.mxu0 0
      %6989 = vmatprep.subr.bf16.mxu0 0
      %6990 = vmatpush1.bf16.xpose.msra.mxu0 0
      %6991 = vmatprep.subr.bf16.mxu0 0
      %6992 = vmatpush1.bf16.xpose.msra.mxu0 0
      %6993 = vmatprep.subr.bf16.mxu0 0
      %6994 = vmatpush1.bf16.xpose.msra.mxu0 0
      %6995 = vmatprep.subr.bf16.mxu0 0
      %6996 = vmatpush1.bf16.xpose.msra.mxu0 0
      %6997 = vmatprep.subr.bf16.mxu0 0
      %6998 = vmatpush1.bf16.xpose.msra.mxu0 0
      %6999 = vmatprep.subr.bf16.mxu0 0
      %7000 = vmatpush1.bf16.xpose.msra.mxu0 0
      %7001 = vmatprep.subr.bf16.mxu0 0
      %7002 = vmatpush1.bf16.xpose.msra.mxu0 0
      %7003 = vmatprep.subr.bf16.mxu0 0
      %7004 = vmatpush1.bf16.xpose.msra.mxu0 0
      %7005 = vmatprep.subr.bf16.mxu0 0
      %7006 = vmatpush1.bf16.xpose.msra.mxu0 0
      %7007 = vmatprep.subr.bf16.mxu0 0
      %7008 = vmatpush1.bf16.xpose.msra.mxu0 0
      %7009 = vmatprep.mubr.bf16.mxu0 0
      %7010 = vmatmul.mubr.bf16.gmra.mrb[0].mxu0 %v6972
      %v7011 = vpop.f32.mrb[0].mxu0
      %v7012 = vadd.f32 0.0, %v7011
      %v7013 = vpop.f32.mrb[0].mxu0
      %v7014 = vpop.f32.mrb[0].mxu0
      %v7015 = vadd.f32 0.0, %v7014
      %v7016 = vpop.f32.mrb[0].mxu0
      %7017 = vdwg.mxu0
      %v7019 = vsel %vm489, %v6586, 0
      %v7022 = vsel %vm489, %v6602, 0
      %7024 = vmatprep.subr.bf16.mxu0 0
      %7025 = vmatpush1.bf16.xpose.msra.mxu0 %v7022
      %7026 = vmatprep.subr.bf16.mxu0 0
      %7027 = vmatpush1.bf16.xpose.msra.mxu0 0
      %7028 = vmatprep.subr.bf16.mxu0 0
      %7029 = vmatpush1.bf16.xpose.msra.mxu0 0
      %7030 = vmatprep.subr.bf16.mxu0 0
      %7031 = vmatpush1.bf16.xpose.msra.mxu0 0
      %7032 = vmatprep.subr.bf16.mxu0 0
      %7033 = vmatpush1.bf16.xpose.msra.mxu0 0
      %7034 = vmatprep.subr.bf16.mxu0 0
      %7035 = vmatpush1.bf16.xpose.msra.mxu0 0
      %7036 = vmatprep.subr.bf16.mxu0 0
      %7037 = vmatpush1.bf16.xpose.msra.mxu0 0
      %7038 = vmatprep.subr.bf16.mxu0 0
      %7039 = vmatpush1.bf16.xpose.msra.mxu0 0
      %7040 = vmatprep.subr.bf16.mxu0 0
      %7041 = vmatpush1.bf16.xpose.msra.mxu0 0
      %7042 = vmatprep.subr.bf16.mxu0 0
      %7043 = vmatpush1.bf16.xpose.msra.mxu0 0
      %7044 = vmatprep.subr.bf16.mxu0 0
      %7045 = vmatpush1.bf16.xpose.msra.mxu0 0
      %7046 = vmatprep.subr.bf16.mxu0 0
      %7047 = vmatpush1.bf16.xpose.msra.mxu0 0
      %7048 = vmatprep.subr.bf16.mxu0 0
      %7049 = vmatpush1.bf16.xpose.msra.mxu0 0
      %7050 = vmatprep.subr.bf16.mxu0 0
      %7051 = vmatpush1.bf16.xpose.msra.mxu0 0
      %7052 = vmatprep.subr.bf16.mxu0 0
      %7053 = vmatpush1.bf16.xpose.msra.mxu0 0
      %7054 = vmatprep.subr.bf16.mxu0 0
      %7055 = vmatpush1.bf16.xpose.msra.mxu0 0
      %7056 = vmatprep.mubr.bf16.mxu0 0
      %7057 = vmatmul.mubr.bf16.gmra.mrb[0].mxu0 %v7019
      %v7058 = vpop.f32.mrb[0].mxu0
      %v7059 = vadd.f32 0.0, %v7058
      %v7060 = vpop.f32.mrb[0].mxu0
      %v7061 = vpop.f32.mrb[0].mxu0
      %v7062 = vadd.f32 0.0, %v7061
      %v7063 = vpop.f32.mrb[0].mxu0
      %7064 = vdwg.mxu0
      %v7066 = vsel %vm489, %v6587, 0
      %v7069 = vsel %vm489, %v6603, 0
      %7071 = vmatprep.subr.bf16.mxu0 0
      %7072 = vmatpush1.bf16.xpose.msra.mxu0 %v7069
      %7073 = vmatprep.subr.bf16.mxu0 0
      %7074 = vmatpush1.bf16.xpose.msra.mxu0 0
      %7075 = vmatprep.subr.bf16.mxu0 0
      %7076 = vmatpush1.bf16.xpose.msra.mxu0 0
      %7077 = vmatprep.subr.bf16.mxu0 0
      %7078 = vmatpush1.bf16.xpose.msra.mxu0 0
      %7079 = vmatprep.subr.bf16.mxu0 0
      %7080 = vmatpush1.bf16.xpose.msra.mxu0 0
      %7081 = vmatprep.subr.bf16.mxu0 0
      %7082 = vmatpush1.bf16.xpose.msra.mxu0 0
      %7083 = vmatprep.subr.bf16.mxu0 0
      %7084 = vmatpush1.bf16.xpose.msra.mxu0 0
      %7085 = vmatprep.subr.bf16.mxu0 0
      %7086 = vmatpush1.bf16.xpose.msra.mxu0 0
      %7087 = vmatprep.subr.bf16.mxu0 0
      %7088 = vmatpush1.bf16.xpose.msra.mxu0 0
      %7089 = vmatprep.subr.bf16.mxu0 0
      %7090 = vmatpush1.bf16.xpose.msra.mxu0 0
      %7091 = vmatprep.subr.bf16.mxu0 0
      %7092 = vmatpush1.bf16.xpose.msra.mxu0 0
      %7093 = vmatprep.subr.bf16.mxu0 0
      %7094 = vmatpush1.bf16.xpose.msra.mxu0 0
      %7095 = vmatprep.subr.bf16.mxu0 0
      %7096 = vmatpush1.bf16.xpose.msra.mxu0 0
      %7097 = vmatprep.subr.bf16.mxu0 0
      %7098 = vmatpush1.bf16.xpose.msra.mxu0 0
      %7099 = vmatprep.subr.bf16.mxu0 0
      %7100 = vmatpush1.bf16.xpose.msra.mxu0 0
      %7101 = vmatprep.subr.bf16.mxu0 0
      %7102 = vmatpush1.bf16.xpose.msra.mxu0 0
      %7103 = vmatprep.mubr.bf16.mxu0 0
      %7104 = vmatmul.mubr.bf16.gmra.mrb[0].mxu0 %v7066
      %v7105 = vpop.f32.mrb[0].mxu0
      %v7106 = vadd.f32 0.0, %v7105
      %v7107 = vpop.f32.mrb[0].mxu0
      %v7108 = vpop.f32.mrb[0].mxu0
      %v7109 = vadd.f32 0.0, %v7108
      %v7110 = vpop.f32.mrb[0].mxu0
      %7111 = vdwg.mxu0
      %v7113 = vsel %vm489, %v6588, 0
      %v7116 = vsel %vm489, %v6604, 0
      %7118 = vmatprep.subr.bf16.mxu0 0
      %7119 = vmatpush1.bf16.xpose.msra.mxu0 %v7116
      %7120 = vmatprep.subr.bf16.mxu0 0
      %7121 = vmatpush1.bf16.xpose.msra.mxu0 0
      %7122 = vmatprep.subr.bf16.mxu0 0
      %7123 = vmatpush1.bf16.xpose.msra.mxu0 0
      %7124 = vmatprep.subr.bf16.mxu0 0
      %7125 = vmatpush1.bf16.xpose.msra.mxu0 0
      %7126 = vmatprep.subr.bf16.mxu0 0
      %7127 = vmatpush1.bf16.xpose.msra.mxu0 0
      %7128 = vmatprep.subr.bf16.mxu0 0
      %7129 = vmatpush1.bf16.xpose.msra.mxu0 0
      %7130 = vmatprep.subr.bf16.mxu0 0
      %7131 = vmatpush1.bf16.xpose.msra.mxu0 0
      %7132 = vmatprep.subr.bf16.mxu0 0
      %7133 = vmatpush1.bf16.xpose.msra.mxu0 0
      %7134 = vmatprep.subr.bf16.mxu0 0
      %7135 = vmatpush1.bf16.xpose.msra.mxu0 0
      %7136 = vmatprep.subr.bf16.mxu0 0
      %7137 = vmatpush1.bf16.xpose.msra.mxu0 0
      %7138 = vmatprep.subr.bf16.mxu0 0
      %7139 = vmatpush1.bf16.xpose.msra.mxu0 0
      %7140 = vmatprep.subr.bf16.mxu0 0
      %7141 = vmatpush1.bf16.xpose.msra.mxu0 0
      %7142 = vmatprep.subr.bf16.mxu0 0
      %7143 = vmatpush1.bf16.xpose.msra.mxu0 0
      %7144 = vmatprep.subr.bf16.mxu0 0
      %7145 = vmatpush1.bf16.xpose.msra.mxu0 0
      %7146 = vmatprep.subr.bf16.mxu0 0
      %7147 = vmatpush1.bf16.xpose.msra.mxu0 0
      %7148 = vmatprep.subr.bf16.mxu0 0
      %7149 = vmatpush1.bf16.xpose.msra.mxu0 0
      %7150 = vmatprep.mubr.bf16.mxu0 0
      %7151 = vmatmul.mubr.bf16.gmra.mrb[0].mxu0 %v7113
      %v7152 = vpop.f32.mrb[0].mxu0
      %v7153 = vadd.f32 0.0, %v7152
      %v7154 = vpop.f32.mrb[0].mxu0
      %v7155 = vpop.f32.mrb[0].mxu0
      %v7156 = vadd.f32 0.0, %v7155
      %v7157 = vpop.f32.mrb[0].mxu0
      %7158 = vdwg.mxu0
      %v7160 = vsel %vm489, %v6589, 0
      %v7163 = vsel %vm489, %v6605, 0
      %7165 = vmatprep.subr.bf16.mxu0 0
      %7166 = vmatpush1.bf16.xpose.msra.mxu0 %v7163
      %7167 = vmatprep.subr.bf16.mxu0 0
      %7168 = vmatpush1.bf16.xpose.msra.mxu0 0
      %7169 = vmatprep.subr.bf16.mxu0 0
      %7170 = vmatpush1.bf16.xpose.msra.mxu0 0
      %7171 = vmatprep.subr.bf16.mxu0 0
      %7172 = vmatpush1.bf16.xpose.msra.mxu0 0
      %7173 = vmatprep.subr.bf16.mxu0 0
      %7174 = vmatpush1.bf16.xpose.msra.mxu0 0
      %7175 = vmatprep.subr.bf16.mxu0 0
      %7176 = vmatpush1.bf16.xpose.msra.mxu0 0
      %7177 = vmatprep.subr.bf16.mxu0 0
      %7178 = vmatpush1.bf16.xpose.msra.mxu0 0
      %7179 = vmatprep.subr.bf16.mxu0 0
      %7180 = vmatpush1.bf16.xpose.msra.mxu0 0
      %7181 = vmatprep.subr.bf16.mxu0 0
      %7182 = vmatpush1.bf16.xpose.msra.mxu0 0
      %7183 = vmatprep.subr.bf16.mxu0 0
      %7184 = vmatpush1.bf16.xpose.msra.mxu0 0
      %7185 = vmatprep.subr.bf16.mxu0 0
      %7186 = vmatpush1.bf16.xpose.msra.mxu0 0
      %7187 = vmatprep.subr.bf16.mxu0 0
      %7188 = vmatpush1.bf16.xpose.msra.mxu0 0
      %7189 = vmatprep.subr.bf16.mxu0 0
      %7190 = vmatpush1.bf16.xpose.msra.mxu0 0
      %7191 = vmatprep.subr.bf16.mxu0 0
      %7192 = vmatpush1.bf16.xpose.msra.mxu0 0
      %7193 = vmatprep.subr.bf16.mxu0 0
      %7194 = vmatpush1.bf16.xpose.msra.mxu0 0
      %7195 = vmatprep.subr.bf16.mxu0 0
      %7196 = vmatpush1.bf16.xpose.msra.mxu0 0
      %7197 = vmatprep.mubr.bf16.mxu0 0
      %7198 = vmatmul.mubr.bf16.gmra.mrb[0].mxu0 %v7160
      %v7199 = vpop.f32.mrb[0].mxu0
      %v7200 = vadd.f32 0.0, %v7199
      %v7201 = vpop.f32.mrb[0].mxu0
      %v7202 = vpop.f32.mrb[0].mxu0
      %v7203 = vadd.f32 0.0, %v7202
      %v7204 = vpop.f32.mrb[0].mxu0
      %7205 = vdwg.mxu0
      %v7207 = vsel %vm489, %v6590, 0
      %v7210 = vsel %vm489, %v6606, 0
      %7212 = vmatprep.subr.bf16.mxu0 0
      %7213 = vmatpush1.bf16.xpose.msra.mxu0 %v7210
      %7214 = vmatprep.subr.bf16.mxu0 0
      %7215 = vmatpush1.bf16.xpose.msra.mxu0 0
      %7216 = vmatprep.subr.bf16.mxu0 0
      %7217 = vmatpush1.bf16.xpose.msra.mxu0 0
      %7218 = vmatprep.subr.bf16.mxu0 0
      %7219 = vmatpush1.bf16.xpose.msra.mxu0 0
      %7220 = vmatprep.subr.bf16.mxu0 0
      %7221 = vmatpush1.bf16.xpose.msra.mxu0 0
      %7222 = vmatprep.subr.bf16.mxu0 0
      %7223 = vmatpush1.bf16.xpose.msra.mxu0 0
      %7224 = vmatprep.subr.bf16.mxu0 0
      %7225 = vmatpush1.bf16.xpose.msra.mxu0 0
      %7226 = vmatprep.subr.bf16.mxu0 0
      %7227 = vmatpush1.bf16.xpose.msra.mxu0 0
      %7228 = vmatprep.subr.bf16.mxu0 0
      %7229 = vmatpush1.bf16.xpose.msra.mxu0 0
      %7230 = vmatprep.subr.bf16.mxu0 0
      %7231 = vmatpush1.bf16.xpose.msra.mxu0 0
      %7232 = vmatprep.subr.bf16.mxu0 0
      %7233 = vmatpush1.bf16.xpose.msra.mxu0 0
      %7234 = vmatprep.subr.bf16.mxu0 0
      %7235 = vmatpush1.bf16.xpose.msra.mxu0 0
      %7236 = vmatprep.subr.bf16.mxu0 0
      %7237 = vmatpush1.bf16.xpose.msra.mxu0 0
      %7238 = vmatprep.subr.bf16.mxu0 0
      %7239 = vmatpush1.bf16.xpose.msra.mxu0 0
      %7240 = vmatprep.subr.bf16.mxu0 0
      %7241 = vmatpush1.bf16.xpose.msra.mxu0 0
      %7242 = vmatprep.subr.bf16.mxu0 0
      %7243 = vmatpush1.bf16.xpose.msra.mxu0 0
      %7244 = vmatprep.mubr.bf16.mxu0 0
      %7245 = vmatmul.mubr.bf16.gmra.mrb[0].mxu0 %v7207
      %v7246 = vpop.f32.mrb[0].mxu0
      %v7247 = vadd.f32 0.0, %v7246
      %v7248 = vpop.f32.mrb[0].mxu0
      %v7249 = vpop.f32.mrb[0].mxu0
      %v7250 = vadd.f32 0.0, %v7249
      %v7251 = vpop.f32.mrb[0].mxu0
      %7252 = vdwg.mxu0
      %v7254 = vsel %vm489, %v6591, 0
      %v7257 = vsel %vm489, %v6607, 0
      %7259 = vmatprep.subr.bf16.mxu0 0
      %7260 = vmatpush1.bf16.xpose.msra.mxu0 %v7257
      %7261 = vmatprep.subr.bf16.mxu0 0
      %7262 = vmatpush1.bf16.xpose.msra.mxu0 0
      %7263 = vmatprep.subr.bf16.mxu0 0
      %7264 = vmatpush1.bf16.xpose.msra.mxu0 0
      %7265 = vmatprep.subr.bf16.mxu0 0
      %7266 = vmatpush1.bf16.xpose.msra.mxu0 0
      %7267 = vmatprep.subr.bf16.mxu0 0
      %7268 = vmatpush1.bf16.xpose.msra.mxu0 0
      %7269 = vmatprep.subr.bf16.mxu0 0
      %7270 = vmatpush1.bf16.xpose.msra.mxu0 0
      %7271 = vmatprep.subr.bf16.mxu0 0
      %7272 = vmatpush1.bf16.xpose.msra.mxu0 0
      %7273 = vmatprep.subr.bf16.mxu0 0
      %7274 = vmatpush1.bf16.xpose.msra.mxu0 0
      %7275 = vmatprep.subr.bf16.mxu0 0
      %7276 = vmatpush1.bf16.xpose.msra.mxu0 0
      %7277 = vmatprep.subr.bf16.mxu0 0
      %7278 = vmatpush1.bf16.xpose.msra.mxu0 0
      %7279 = vmatprep.subr.bf16.mxu0 0
      %7280 = vmatpush1.bf16.xpose.msra.mxu0 0
      %7281 = vmatprep.subr.bf16.mxu0 0
      %7282 = vmatpush1.bf16.xpose.msra.mxu0 0
      %7283 = vmatprep.subr.bf16.mxu0 0
      %7284 = vmatpush1.bf16.xpose.msra.mxu0 0
      %7285 = vmatprep.subr.bf16.mxu0 0
      %7286 = vmatpush1.bf16.xpose.msra.mxu0 0
      %7287 = vmatprep.subr.bf16.mxu0 0
      %7288 = vmatpush1.bf16.xpose.msra.mxu0 0
      %7289 = vmatprep.subr.bf16.mxu0 0
      %7290 = vmatpush1.bf16.xpose.msra.mxu0 0
      %7291 = vmatprep.mubr.bf16.mxu0 0
      %7292 = vmatmul.mubr.bf16.gmra.mrb[0].mxu0 %v7254
      %v7293 = vpop.f32.mrb[0].mxu0
      %v7294 = vadd.f32 0.0, %v7293
      %v7295 = vpop.f32.mrb[0].mxu0
      %v7296 = vpop.f32.mrb[0].mxu0
      %v7297 = vadd.f32 0.0, %v7296
      %v7298 = vpop.f32.mrb[0].mxu0
      %7299 = vdwg.mxu0
      %v7301 = vsel %vm489, %v6592, 0
      %v7304 = vsel %vm489, %v6608, 0
      %7306 = vmatprep.subr.bf16.mxu0 0
      %7307 = vmatpush1.bf16.xpose.msra.mxu0 %v7304
      %7308 = vmatprep.subr.bf16.mxu0 0
      %7309 = vmatpush1.bf16.xpose.msra.mxu0 0
      %7310 = vmatprep.subr.bf16.mxu0 0
      %7311 = vmatpush1.bf16.xpose.msra.mxu0 0
      %7312 = vmatprep.subr.bf16.mxu0 0
      %7313 = vmatpush1.bf16.xpose.msra.mxu0 0
      %7314 = vmatprep.subr.bf16.mxu0 0
      %7315 = vmatpush1.bf16.xpose.msra.mxu0 0
      %7316 = vmatprep.subr.bf16.mxu0 0
      %7317 = vmatpush1.bf16.xpose.msra.mxu0 0
      %7318 = vmatprep.subr.bf16.mxu0 0
      %7319 = vmatpush1.bf16.xpose.msra.mxu0 0
      %7320 = vmatprep.subr.bf16.mxu0 0
      %7321 = vmatpush1.bf16.xpose.msra.mxu0 0
      %7322 = vmatprep.subr.bf16.mxu0 0
      %7323 = vmatpush1.bf16.xpose.msra.mxu0 0
      %7324 = vmatprep.subr.bf16.mxu0 0
      %7325 = vmatpush1.bf16.xpose.msra.mxu0 0
      %7326 = vmatprep.subr.bf16.mxu0 0
      %7327 = vmatpush1.bf16.xpose.msra.mxu0 0
      %7328 = vmatprep.subr.bf16.mxu0 0
      %7329 = vmatpush1.bf16.xpose.msra.mxu0 0
      %7330 = vmatprep.subr.bf16.mxu0 0
      %7331 = vmatpush1.bf16.xpose.msra.mxu0 0
      %7332 = vmatprep.subr.bf16.mxu0 0
      %7333 = vmatpush1.bf16.xpose.msra.mxu0 0
      %7334 = vmatprep.subr.bf16.mxu0 0
      %7335 = vmatpush1.bf16.xpose.msra.mxu0 0
      %7336 = vmatprep.subr.bf16.mxu0 0
      %7337 = vmatpush1.bf16.xpose.msra.mxu0 0
      %7338 = vmatprep.mubr.bf16.mxu0 0
      %7339 = vmatmul.mubr.bf16.gmra.mrb[0].mxu0 %v7301
      %v7340 = vpop.f32.mrb[0].mxu0
      %v7341 = vadd.f32 0.0, %v7340
      %v7342 = vpop.f32.mrb[0].mxu0
      %v7343 = vpop.f32.mrb[0].mxu0
      %v7344 = vadd.f32 0.0, %v7343
      %v7345 = vpop.f32.mrb[0].mxu0
      %7346 = vdwg.mxu0
      %v7348 = vsel %vm489, %v6593, 0
      %v7351 = vsel %vm489, %v6609, 0
      %7353 = vmatprep.subr.bf16.mxu0 0
      %7354 = vmatpush1.bf16.xpose.msra.mxu0 %v7351
      %7355 = vmatprep.subr.bf16.mxu0 0
      %7356 = vmatpush1.bf16.xpose.msra.mxu0 0
      %7357 = vmatprep.subr.bf16.mxu0 0
      %7358 = vmatpush1.bf16.xpose.msra.mxu0 0
      %7359 = vmatprep.subr.bf16.mxu0 0
      %7360 = vmatpush1.bf16.xpose.msra.mxu0 0
      %7361 = vmatprep.subr.bf16.mxu0 0
      %7362 = vmatpush1.bf16.xpose.msra.mxu0 0
      %7363 = vmatprep.subr.bf16.mxu0 0
      %7364 = vmatpush1.bf16.xpose.msra.mxu0 0
      %7365 = vmatprep.subr.bf16.mxu0 0
      %7366 = vmatpush1.bf16.xpose.msra.mxu0 0
      %7367 = vmatprep.subr.bf16.mxu0 0
      %7368 = vmatpush1.bf16.xpose.msra.mxu0 0
      %7369 = vmatprep.subr.bf16.mxu0 0
      %7370 = vmatpush1.bf16.xpose.msra.mxu0 0
      %7371 = vmatprep.subr.bf16.mxu0 0
      %7372 = vmatpush1.bf16.xpose.msra.mxu0 0
      %7373 = vmatprep.subr.bf16.mxu0 0
      %7374 = vmatpush1.bf16.xpose.msra.mxu0 0
      %7375 = vmatprep.subr.bf16.mxu0 0
      %7376 = vmatpush1.bf16.xpose.msra.mxu0 0
      %7377 = vmatprep.subr.bf16.mxu0 0
      %7378 = vmatpush1.bf16.xpose.msra.mxu0 0
      %7379 = vmatprep.subr.bf16.mxu0 0
      %7380 = vmatpush1.bf16.xpose.msra.mxu0 0
      %7381 = vmatprep.subr.bf16.mxu0 0
      %7382 = vmatpush1.bf16.xpose.msra.mxu0 0
      %7383 = vmatprep.subr.bf16.mxu0 0
      %7384 = vmatpush1.bf16.xpose.msra.mxu0 0
      %7385 = vmatprep.mubr.bf16.mxu0 0
      %7386 = vmatmul.mubr.bf16.gmra.mrb[0].mxu0 %v7348
      %v7387 = vpop.f32.mrb[0].mxu0
      %v7388 = vadd.f32 0.0, %v7387
      %v7389 = vpop.f32.mrb[0].mxu0
      %v7390 = vpop.f32.mrb[0].mxu0
      %v7391 = vadd.f32 0.0, %v7390
      %v7392 = vpop.f32.mrb[0].mxu0
      %7393 = vdwg.mxu0
      %7394 = vmatprep.subr.bf16.mxu0 0
      %7395 = vmatpush1.bf16.xpose.msra.mxu0 %v6643
      %7396 = vmatprep.subr.bf16.mxu0 0
      %7397 = vmatpush1.bf16.xpose.msra.mxu0 0
      %7398 = vmatprep.subr.bf16.mxu0 0
      %7399 = vmatpush1.bf16.xpose.msra.mxu0 0
      %7400 = vmatprep.subr.bf16.mxu0 0
      %7401 = vmatpush1.bf16.xpose.msra.mxu0 0
      %7402 = vmatprep.subr.bf16.mxu0 0
      %7403 = vmatpush1.bf16.xpose.msra.mxu0 0
      %7404 = vmatprep.subr.bf16.mxu0 0
      %7405 = vmatpush1.bf16.xpose.msra.mxu0 0
      %7406 = vmatprep.subr.bf16.mxu0 0
      %7407 = vmatpush1.bf16.xpose.msra.mxu0 0
      %7408 = vmatprep.subr.bf16.mxu0 0
      %7409 = vmatpush1.bf16.xpose.msra.mxu0 0
      %7410 = vmatprep.subr.bf16.mxu0 0
      %7411 = vmatpush1.bf16.xpose.msra.mxu0 0
      %7412 = vmatprep.subr.bf16.mxu0 0
      %7413 = vmatpush1.bf16.xpose.msra.mxu0 0
      %7414 = vmatprep.subr.bf16.mxu0 0
      %7415 = vmatpush1.bf16.xpose.msra.mxu0 0
      %7416 = vmatprep.subr.bf16.mxu0 0
      %7417 = vmatpush1.bf16.xpose.msra.mxu0 0
      %7418 = vmatprep.subr.bf16.mxu0 0
      %7419 = vmatpush1.bf16.xpose.msra.mxu0 0
      %7420 = vmatprep.subr.bf16.mxu0 0
      %7421 = vmatpush1.bf16.xpose.msra.mxu0 0
      %7422 = vmatprep.subr.bf16.mxu0 0
      %7423 = vmatpush1.bf16.xpose.msra.mxu0 0
      %7424 = vmatprep.subr.bf16.mxu0 0
      %7425 = vmatpush1.bf16.xpose.msra.mxu0 0
      %7426 = vmatprep.mubr.bf16.mxu0 0
      %7427 = vmatmul.mubr.bf16.gmra.mrb[0].mxu0 %v6646
      %v7428 = vpop.f32.mrb[0].mxu0
      %v7429 = vadd.f32 0.0, %v7428
      %v7430 = vpop.f32.mrb[0].mxu0
      %v7431 = vpop.f32.mrb[0].mxu0
      %v7432 = vadd.f32 0.0, %v7431
      %v7433 = vpop.f32.mrb[0].mxu0
      %7434 = vdwg.mxu0
      %7435 = vmatprep.subr.bf16.mxu0 0
      %7436 = vmatpush1.bf16.xpose.msra.mxu0 %v6690
      %7437 = vmatprep.subr.bf16.mxu0 0
      %7438 = vmatpush1.bf16.xpose.msra.mxu0 0
      %7439 = vmatprep.subr.bf16.mxu0 0
      %7440 = vmatpush1.bf16.xpose.msra.mxu0 0
      %7441 = vmatprep.subr.bf16.mxu0 0
      %7442 = vmatpush1.bf16.xpose.msra.mxu0 0
      %7443 = vmatprep.subr.bf16.mxu0 0
      %7444 = vmatpush1.bf16.xpose.msra.mxu0 0
      %7445 = vmatprep.subr.bf16.mxu0 0
      %7446 = vmatpush1.bf16.xpose.msra.mxu0 0
      %7447 = vmatprep.subr.bf16.mxu0 0
      %7448 = vmatpush1.bf16.xpose.msra.mxu0 0
      %7449 = vmatprep.subr.bf16.mxu0 0
      %7450 = vmatpush1.bf16.xpose.msra.mxu0 0
      %7451 = vmatprep.subr.bf16.mxu0 0
      %7452 = vmatpush1.bf16.xpose.msra.mxu0 0
      %7453 = vmatprep.subr.bf16.mxu0 0
      %7454 = vmatpush1.bf16.xpose.msra.mxu0 0
      %7455 = vmatprep.subr.bf16.mxu0 0
      %7456 = vmatpush1.bf16.xpose.msra.mxu0 0
      %7457 = vmatprep.subr.bf16.mxu0 0
      %7458 = vmatpush1.bf16.xpose.msra.mxu0 0
      %7459 = vmatprep.subr.bf16.mxu0 0
      %7460 = vmatpush1.bf16.xpose.msra.mxu0 0
      %7461 = vmatprep.subr.bf16.mxu0 0
      %7462 = vmatpush1.bf16.xpose.msra.mxu0 0
      %7463 = vmatprep.subr.bf16.mxu0 0
      %7464 = vmatpush1.bf16.xpose.msra.mxu0 0
      %7465 = vmatprep.subr.bf16.mxu0 0
      %7466 = vmatpush1.bf16.xpose.msra.mxu0 0
      %7467 = vmatprep.mubr.bf16.mxu0 0
      %7468 = vmatmul.mubr.bf16.gmra.mrb[0].mxu0 %v6693
      %v7469 = vpop.f32.mrb[0].mxu0
      %v7470 = vadd.f32 0.0, %v7469
      %v7471 = vpop.f32.mrb[0].mxu0
      %v7472 = vpop.f32.mrb[0].mxu0
      %v7473 = vadd.f32 0.0, %v7472
      %v7474 = vpop.f32.mrb[0].mxu0
      %7475 = vdwg.mxu0
      %7476 = vmatprep.subr.bf16.mxu0 0
      %7477 = vmatpush1.bf16.xpose.msra.mxu0 %v6737
      %7478 = vmatprep.subr.bf16.mxu0 0
      %7479 = vmatpush1.bf16.xpose.msra.mxu0 0
      %7480 = vmatprep.subr.bf16.mxu0 0
      %7481 = vmatpush1.bf16.xpose.msra.mxu0 0
      %7482 = vmatprep.subr.bf16.mxu0 0
      %7483 = vmatpush1.bf16.xpose.msra.mxu0 0
      %7484 = vmatprep.subr.bf16.mxu0 0
      %7485 = vmatpush1.bf16.xpose.msra.mxu0 0
      %7486 = vmatprep.subr.bf16.mxu0 0
      %7487 = vmatpush1.bf16.xpose.msra.mxu0 0
      %7488 = vmatprep.subr.bf16.mxu0 0
      %7489 = vmatpush1.bf16.xpose.msra.mxu0 0
      %7490 = vmatprep.subr.bf16.mxu0 0
      %7491 = vmatpush1.bf16.xpose.msra.mxu0 0
      %7492 = vmatprep.subr.bf16.mxu0 0
      %7493 = vmatpush1.bf16.xpose.msra.mxu0 0
      %7494 = vmatprep.subr.bf16.mxu0 0
      %7495 = vmatpush1.bf16.xpose.msra.mxu0 0
      %7496 = vmatprep.subr.bf16.mxu0 0
      %7497 = vmatpush1.bf16.xpose.msra.mxu0 0
      %7498 = vmatprep.subr.bf16.mxu0 0
      %7499 = vmatpush1.bf16.xpose.msra.mxu0 0
      %7500 = vmatprep.subr.bf16.mxu0 0
      %7501 = vmatpush1.bf16.xpose.msra.mxu0 0
      %7502 = vmatprep.subr.bf16.mxu0 0
      %7503 = vmatpush1.bf16.xpose.msra.mxu0 0
      %7504 = vmatprep.subr.bf16.mxu0 0
      %7505 = vmatpush1.bf16.xpose.msra.mxu0 0
      %7506 = vmatprep.subr.bf16.mxu0 0
      %7507 = vmatpush1.bf16.xpose.msra.mxu0 0
      %7508 = vmatprep.mubr.bf16.mxu0 0
      %7509 = vmatmul.mubr.bf16.gmra.mrb[0].mxu0 %v6740
      %v7510 = vpop.f32.mrb[0].mxu0
      %v7511 = vadd.f32 0.0, %v7510
      %v7512 = vpop.f32.mrb[0].mxu0
      %v7513 = vpop.f32.mrb[0].mxu0
      %v7514 = vadd.f32 0.0, %v7513
      %v7515 = vpop.f32.mrb[0].mxu0
      %7516 = vdwg.mxu0
      %7517 = vmatprep.subr.bf16.mxu0 0
      %7518 = vmatpush1.bf16.xpose.msra.mxu0 %v6784
      %7519 = vmatprep.subr.bf16.mxu0 0
      %7520 = vmatpush1.bf16.xpose.msra.mxu0 0
      %7521 = vmatprep.subr.bf16.mxu0 0
      %7522 = vmatpush1.bf16.xpose.msra.mxu0 0
      %7523 = vmatprep.subr.bf16.mxu0 0
      %7524 = vmatpush1.bf16.xpose.msra.mxu0 0
      %7525 = vmatprep.subr.bf16.mxu0 0
      %7526 = vmatpush1.bf16.xpose.msra.mxu0 0
      %7527 = vmatprep.subr.bf16.mxu0 0
      %7528 = vmatpush1.bf16.xpose.msra.mxu0 0
      %7529 = vmatprep.subr.bf16.mxu0 0
      %7530 = vmatpush1.bf16.xpose.msra.mxu0 0
      %7531 = vmatprep.subr.bf16.mxu0 0
      %7532 = vmatpush1.bf16.xpose.msra.mxu0 0
      %7533 = vmatprep.subr.bf16.mxu0 0
      %7534 = vmatpush1.bf16.xpose.msra.mxu0 0
      %7535 = vmatprep.subr.bf16.mxu0 0
      %7536 = vmatpush1.bf16.xpose.msra.mxu0 0
      %7537 = vmatprep.subr.bf16.mxu0 0
      %7538 = vmatpush1.bf16.xpose.msra.mxu0 0
      %7539 = vmatprep.subr.bf16.mxu0 0
      %7540 = vmatpush1.bf16.xpose.msra.mxu0 0
      %7541 = vmatprep.subr.bf16.mxu0 0
      %7542 = vmatpush1.bf16.xpose.msra.mxu0 0
      %7543 = vmatprep.subr.bf16.mxu0 0
      %7544 = vmatpush1.bf16.xpose.msra.mxu0 0
      %7545 = vmatprep.subr.bf16.mxu0 0
      %7546 = vmatpush1.bf16.xpose.msra.mxu0 0
      %7547 = vmatprep.subr.bf16.mxu0 0
      %7548 = vmatpush1.bf16.xpose.msra.mxu0 0
      %7549 = vmatprep.mubr.bf16.mxu0 0
      %7550 = vmatmul.mubr.bf16.gmra.mrb[0].mxu0 %v6787
      %v7551 = vpop.f32.mrb[0].mxu0
      %v7552 = vadd.f32 0.0, %v7551
      %v7553 = vpop.f32.mrb[0].mxu0
      %v7554 = vpop.f32.mrb[0].mxu0
      %v7555 = vadd.f32 0.0, %v7554
      %v7556 = vpop.f32.mrb[0].mxu0
      %7557 = vdwg.mxu0
      %7558 = vmatprep.subr.bf16.mxu0 0
      %7559 = vmatpush1.bf16.xpose.msra.mxu0 %v6831
      %7560 = vmatprep.subr.bf16.mxu0 0
      %7561 = vmatpush1.bf16.xpose.msra.mxu0 0
      %7562 = vmatprep.subr.bf16.mxu0 0
      %7563 = vmatpush1.bf16.xpose.msra.mxu0 0
      %7564 = vmatprep.subr.bf16.mxu0 0
      %7565 = vmatpush1.bf16.xpose.msra.mxu0 0
      %7566 = vmatprep.subr.bf16.mxu0 0
      %7567 = vmatpush1.bf16.xpose.msra.mxu0 0
      %7568 = vmatprep.subr.bf16.mxu0 0
      %7569 = vmatpush1.bf16.xpose.msra.mxu0 0
      %7570 = vmatprep.subr.bf16.mxu0 0
      %7571 = vmatpush1.bf16.xpose.msra.mxu0 0
      %7572 = vmatprep.subr.bf16.mxu0 0
      %7573 = vmatpush1.bf16.xpose.msra.mxu0 0
      %7574 = vmatprep.subr.bf16.mxu0 0
      %7575 = vmatpush1.bf16.xpose.msra.mxu0 0
      %7576 = vmatprep.subr.bf16.mxu0 0
      %7577 = vmatpush1.bf16.xpose.msra.mxu0 0
      %7578 = vmatprep.subr.bf16.mxu0 0
      %7579 = vmatpush1.bf16.xpose.msra.mxu0 0
      %7580 = vmatprep.subr.bf16.mxu0 0
      %7581 = vmatpush1.bf16.xpose.msra.mxu0 0
      %7582 = vmatprep.subr.bf16.mxu0 0
      %7583 = vmatpush1.bf16.xpose.msra.mxu0 0
      %7584 = vmatprep.subr.bf16.mxu0 0
      %7585 = vmatpush1.bf16.xpose.msra.mxu0 0
      %7586 = vmatprep.subr.bf16.mxu0 0
      %7587 = vmatpush1.bf16.xpose.msra.mxu0 0
      %7588 = vmatprep.subr.bf16.mxu0 0
      %7589 = vmatpush1.bf16.xpose.msra.mxu0 0
      %7590 = vmatprep.mubr.bf16.mxu0 0
      %7591 = vmatmul.mubr.bf16.gmra.mrb[0].mxu0 %v6834
      %v7592 = vpop.f32.mrb[0].mxu0
      %v7593 = vadd.f32 0.0, %v7592
      %v7594 = vpop.f32.mrb[0].mxu0
      %v7595 = vpop.f32.mrb[0].mxu0
      %v7596 = vadd.f32 0.0, %v7595
      %v7597 = vpop.f32.mrb[0].mxu0
      %7598 = vdwg.mxu0
      %7599 = vmatprep.subr.bf16.mxu0 0
      %7600 = vmatpush1.bf16.xpose.msra.mxu0 %v6878
      %7601 = vmatprep.subr.bf16.mxu0 0
      %7602 = vmatpush1.bf16.xpose.msra.mxu0 0
      %7603 = vmatprep.subr.bf16.mxu0 0
      %7604 = vmatpush1.bf16.xpose.msra.mxu0 0
      %7605 = vmatprep.subr.bf16.mxu0 0
      %7606 = vmatpush1.bf16.xpose.msra.mxu0 0
      %7607 = vmatprep.subr.bf16.mxu0 0
      %7608 = vmatpush1.bf16.xpose.msra.mxu0 0
      %7609 = vmatprep.subr.bf16.mxu0 0
      %7610 = vmatpush1.bf16.xpose.msra.mxu0 0
      %7611 = vmatprep.subr.bf16.mxu0 0
      %7612 = vmatpush1.bf16.xpose.msra.mxu0 0
      %7613 = vmatprep.subr.bf16.mxu0 0
      %7614 = vmatpush1.bf16.xpose.msra.mxu0 0
      %7615 = vmatprep.subr.bf16.mxu0 0
      %7616 = vmatpush1.bf16.xpose.msra.mxu0 0
      %7617 = vmatprep.subr.bf16.mxu0 0
      %7618 = vmatpush1.bf16.xpose.msra.mxu0 0
      %7619 = vmatprep.subr.bf16.mxu0 0
      %7620 = vmatpush1.bf16.xpose.msra.mxu0 0
      %7621 = vmatprep.subr.bf16.mxu0 0
      %7622 = vmatpush1.bf16.xpose.msra.mxu0 0
      %7623 = vmatprep.subr.bf16.mxu0 0
      %7624 = vmatpush1.bf16.xpose.msra.mxu0 0
      %7625 = vmatprep.subr.bf16.mxu0 0
      %7626 = vmatpush1.bf16.xpose.msra.mxu0 0
      %7627 = vmatprep.subr.bf16.mxu0 0
      %7628 = vmatpush1.bf16.xpose.msra.mxu0 0
      %7629 = vmatprep.subr.bf16.mxu0 0
      %7630 = vmatpush1.bf16.xpose.msra.mxu0 0
      %7631 = vmatprep.mubr.bf16.mxu0 0
      %7632 = vmatmul.mubr.bf16.gmra.mrb[0].mxu0 %v6881
      %v7633 = vpop.f32.mrb[0].mxu0
      %v7634 = vadd.f32 0.0, %v7633
      %v7635 = vpop.f32.mrb[0].mxu0
      %v7636 = vpop.f32.mrb[0].mxu0
      %v7637 = vadd.f32 0.0, %v7636
      %v7638 = vpop.f32.mrb[0].mxu0
      %7639 = vdwg.mxu0
      %7640 = vmatprep.subr.bf16.mxu0 0
      %7641 = vmatpush1.bf16.xpose.msra.mxu0 %v6925
      %7642 = vmatprep.subr.bf16.mxu0 0
      %7643 = vmatpush1.bf16.xpose.msra.mxu0 0
      %7644 = vmatprep.subr.bf16.mxu0 0
      %7645 = vmatpush1.bf16.xpose.msra.mxu0 0
      %7646 = vmatprep.subr.bf16.mxu0 0
      %7647 = vmatpush1.bf16.xpose.msra.mxu0 0
      %7648 = vmatprep.subr.bf16.mxu0 0
      %7649 = vmatpush1.bf16.xpose.msra.mxu0 0
      %7650 = vmatprep.subr.bf16.mxu0 0
      %7651 = vmatpush1.bf16.xpose.msra.mxu0 0
      %7652 = vmatprep.subr.bf16.mxu0 0
      %7653 = vmatpush1.bf16.xpose.msra.mxu0 0
      %7654 = vmatprep.subr.bf16.mxu0 0
      %7655 = vmatpush1.bf16.xpose.msra.mxu0 0
      %7656 = vmatprep.subr.bf16.mxu0 0
      %7657 = vmatpush1.bf16.xpose.msra.mxu0 0
      %7658 = vmatprep.subr.bf16.mxu0 0
      %7659 = vmatpush1.bf16.xpose.msra.mxu0 0
      %7660 = vmatprep.subr.bf16.mxu0 0
      %7661 = vmatpush1.bf16.xpose.msra.mxu0 0
      %7662 = vmatprep.subr.bf16.mxu0 0
      %7663 = vmatpush1.bf16.xpose.msra.mxu0 0
      %7664 = vmatprep.subr.bf16.mxu0 0
      %7665 = vmatpush1.bf16.xpose.msra.mxu0 0
      %7666 = vmatprep.subr.bf16.mxu0 0
      %7667 = vmatpush1.bf16.xpose.msra.mxu0 0
      %7668 = vmatprep.subr.bf16.mxu0 0
      %7669 = vmatpush1.bf16.xpose.msra.mxu0 0
      %7670 = vmatprep.subr.bf16.mxu0 0
      %7671 = vmatpush1.bf16.xpose.msra.mxu0 0
      %7672 = vmatprep.mubr.bf16.mxu0 0
      %7673 = vmatmul.mubr.bf16.gmra.mrb[0].mxu0 %v6928
      %v7674 = vpop.f32.mrb[0].mxu0
      %v7675 = vadd.f32 0.0, %v7674
      %v7676 = vpop.f32.mrb[0].mxu0
      %v7677 = vpop.f32.mrb[0].mxu0
      %v7678 = vadd.f32 0.0, %v7677
      %v7679 = vpop.f32.mrb[0].mxu0
      %7680 = vdwg.mxu0
      %7681 = vmatprep.subr.bf16.mxu0 0
      %7682 = vmatpush1.bf16.xpose.msra.mxu0 %v6972
      %7683 = vmatprep.subr.bf16.mxu0 0
      %7684 = vmatpush1.bf16.xpose.msra.mxu0 0
      %7685 = vmatprep.subr.bf16.mxu0 0
      %7686 = vmatpush1.bf16.xpose.msra.mxu0 0
      %7687 = vmatprep.subr.bf16.mxu0 0
      %7688 = vmatpush1.bf16.xpose.msra.mxu0 0
      %7689 = vmatprep.subr.bf16.mxu0 0
      %7690 = vmatpush1.bf16.xpose.msra.mxu0 0
      %7691 = vmatprep.subr.bf16.mxu0 0
      %7692 = vmatpush1.bf16.xpose.msra.mxu0 0
      %7693 = vmatprep.subr.bf16.mxu0 0
      %7694 = vmatpush1.bf16.xpose.msra.mxu0 0
      %7695 = vmatprep.subr.bf16.mxu0 0
      %7696 = vmatpush1.bf16.xpose.msra.mxu0 0
      %7697 = vmatprep.subr.bf16.mxu0 0
      %7698 = vmatpush1.bf16.xpose.msra.mxu0 0
      %7699 = vmatprep.subr.bf16.mxu0 0
      %7700 = vmatpush1.bf16.xpose.msra.mxu0 0
      %7701 = vmatprep.subr.bf16.mxu0 0
      %7702 = vmatpush1.bf16.xpose.msra.mxu0 0
      %7703 = vmatprep.subr.bf16.mxu0 0
      %7704 = vmatpush1.bf16.xpose.msra.mxu0 0
      %7705 = vmatprep.subr.bf16.mxu0 0
      %7706 = vmatpush1.bf16.xpose.msra.mxu0 0
      %7707 = vmatprep.subr.bf16.mxu0 0
      %7708 = vmatpush1.bf16.xpose.msra.mxu0 0
      %7709 = vmatprep.subr.bf16.mxu0 0
      %7710 = vmatpush1.bf16.xpose.msra.mxu0 0
      %7711 = vmatprep.subr.bf16.mxu0 0
      %7712 = vmatpush1.bf16.xpose.msra.mxu0 0
      %7713 = vmatprep.mubr.bf16.mxu0 0
      %7714 = vmatmul.mubr.bf16.gmra.mrb[0].mxu0 %v6975
      %v7715 = vpop.f32.mrb[0].mxu0
      %v7716 = vadd.f32 0.0, %v7715
      %v7717 = vpop.f32.mrb[0].mxu0
      %v7718 = vpop.f32.mrb[0].mxu0
      %v7719 = vadd.f32 0.0, %v7718
      %v7720 = vpop.f32.mrb[0].mxu0
      %7721 = vdwg.mxu0
      %7722 = vmatprep.subr.bf16.mxu0 0
      %7723 = vmatpush1.bf16.xpose.msra.mxu0 %v7019
      %7724 = vmatprep.subr.bf16.mxu0 0
      %7725 = vmatpush1.bf16.xpose.msra.mxu0 0
      %7726 = vmatprep.subr.bf16.mxu0 0
      %7727 = vmatpush1.bf16.xpose.msra.mxu0 0
      %7728 = vmatprep.subr.bf16.mxu0 0
      %7729 = vmatpush1.bf16.xpose.msra.mxu0 0
      %7730 = vmatprep.subr.bf16.mxu0 0
      %7731 = vmatpush1.bf16.xpose.msra.mxu0 0
      %7732 = vmatprep.subr.bf16.mxu0 0
      %7733 = vmatpush1.bf16.xpose.msra.mxu0 0
      %7734 = vmatprep.subr.bf16.mxu0 0
      %7735 = vmatpush1.bf16.xpose.msra.mxu0 0
      %7736 = vmatprep.subr.bf16.mxu0 0
      %7737 = vmatpush1.bf16.xpose.msra.mxu0 0
      %7738 = vmatprep.subr.bf16.mxu0 0
      %7739 = vmatpush1.bf16.xpose.msra.mxu0 0
      %7740 = vmatprep.subr.bf16.mxu0 0
      %7741 = vmatpush1.bf16.xpose.msra.mxu0 0
      %7742 = vmatprep.subr.bf16.mxu0 0
      %7743 = vmatpush1.bf16.xpose.msra.mxu0 0
      %7744 = vmatprep.subr.bf16.mxu0 0
      %7745 = vmatpush1.bf16.xpose.msra.mxu0 0
      %7746 = vmatprep.subr.bf16.mxu0 0
      %7747 = vmatpush1.bf16.xpose.msra.mxu0 0
      %7748 = vmatprep.subr.bf16.mxu0 0
      %7749 = vmatpush1.bf16.xpose.msra.mxu0 0
      %7750 = vmatprep.subr.bf16.mxu0 0
      %7751 = vmatpush1.bf16.xpose.msra.mxu0 0
      %7752 = vmatprep.subr.bf16.mxu0 0
      %7753 = vmatpush1.bf16.xpose.msra.mxu0 0
      %7754 = vmatprep.mubr.bf16.mxu0 0
      %7755 = vmatmul.mubr.bf16.gmra.mrb[0].mxu0 %v7022
      %v7756 = vpop.f32.mrb[0].mxu0
      %v7757 = vadd.f32 0.0, %v7756
      %v7758 = vpop.f32.mrb[0].mxu0
      %v7759 = vpop.f32.mrb[0].mxu0
      %v7760 = vadd.f32 0.0, %v7759
      %v7761 = vpop.f32.mrb[0].mxu0
      %7762 = vdwg.mxu0
      %7763 = vmatprep.subr.bf16.mxu0 0
      %7764 = vmatpush1.bf16.xpose.msra.mxu0 %v7066
      %7765 = vmatprep.subr.bf16.mxu0 0
      %7766 = vmatpush1.bf16.xpose.msra.mxu0 0
      %7767 = vmatprep.subr.bf16.mxu0 0
      %7768 = vmatpush1.bf16.xpose.msra.mxu0 0
      %7769 = vmatprep.subr.bf16.mxu0 0
      %7770 = vmatpush1.bf16.xpose.msra.mxu0 0
      %7771 = vmatprep.subr.bf16.mxu0 0
      %7772 = vmatpush1.bf16.xpose.msra.mxu0 0
      %7773 = vmatprep.subr.bf16.mxu0 0
      %7774 = vmatpush1.bf16.xpose.msra.mxu0 0
      %7775 = vmatprep.subr.bf16.mxu0 0
      %7776 = vmatpush1.bf16.xpose.msra.mxu0 0
      %7777 = vmatprep.subr.bf16.mxu0 0
      %7778 = vmatpush1.bf16.xpose.msra.mxu0 0
      %7779 = vmatprep.subr.bf16.mxu0 0
      %7780 = vmatpush1.bf16.xpose.msra.mxu0 0
      %7781 = vmatprep.subr.bf16.mxu0 0
      %7782 = vmatpush1.bf16.xpose.msra.mxu0 0
      %7783 = vmatprep.subr.bf16.mxu0 0
      %7784 = vmatpush1.bf16.xpose.msra.mxu0 0
      %7785 = vmatprep.subr.bf16.mxu0 0
      %7786 = vmatpush1.bf16.xpose.msra.mxu0 0
      %7787 = vmatprep.subr.bf16.mxu0 0
      %7788 = vmatpush1.bf16.xpose.msra.mxu0 0
      %7789 = vmatprep.subr.bf16.mxu0 0
      %7790 = vmatpush1.bf16.xpose.msra.mxu0 0
      %7791 = vmatprep.subr.bf16.mxu0 0
      %7792 = vmatpush1.bf16.xpose.msra.mxu0 0
      %7793 = vmatprep.subr.bf16.mxu0 0
      %7794 = vmatpush1.bf16.xpose.msra.mxu0 0
      %7795 = vmatprep.mubr.bf16.mxu0 0
      %7796 = vmatmul.mubr.bf16.gmra.mrb[0].mxu0 %v7069
      %v7797 = vpop.f32.mrb[0].mxu0
      %v7798 = vadd.f32 0.0, %v7797
      %v7799 = vpop.f32.mrb[0].mxu0
      %v7800 = vpop.f32.mrb[0].mxu0
      %v7801 = vadd.f32 0.0, %v7800
      %v7802 = vpop.f32.mrb[0].mxu0
      %7803 = vdwg.mxu0
      %7804 = vmatprep.subr.bf16.mxu0 0
      %7805 = vmatpush1.bf16.xpose.msra.mxu0 %v7113
      %7806 = vmatprep.subr.bf16.mxu0 0
      %7807 = vmatpush1.bf16.xpose.msra.mxu0 0
      %7808 = vmatprep.subr.bf16.mxu0 0
      %7809 = vmatpush1.bf16.xpose.msra.mxu0 0
      %7810 = vmatprep.subr.bf16.mxu0 0
      %7811 = vmatpush1.bf16.xpose.msra.mxu0 0
      %7812 = vmatprep.subr.bf16.mxu0 0
      %7813 = vmatpush1.bf16.xpose.msra.mxu0 0
      %7814 = vmatprep.subr.bf16.mxu0 0
      %7815 = vmatpush1.bf16.xpose.msra.mxu0 0
      %7816 = vmatprep.subr.bf16.mxu0 0
      %7817 = vmatpush1.bf16.xpose.msra.mxu0 0
      %7818 = vmatprep.subr.bf16.mxu0 0
      %7819 = vmatpush1.bf16.xpose.msra.mxu0 0
      %7820 = vmatprep.subr.bf16.mxu0 0
      %7821 = vmatpush1.bf16.xpose.msra.mxu0 0
      %7822 = vmatprep.subr.bf16.mxu0 0
      %7823 = vmatpush1.bf16.xpose.msra.mxu0 0
      %7824 = vmatprep.subr.bf16.mxu0 0
      %7825 = vmatpush1.bf16.xpose.msra.mxu0 0
      %7826 = vmatprep.subr.bf16.mxu0 0
      %7827 = vmatpush1.bf16.xpose.msra.mxu0 0
      %7828 = vmatprep.subr.bf16.mxu0 0
      %7829 = vmatpush1.bf16.xpose.msra.mxu0 0
      %7830 = vmatprep.subr.bf16.mxu0 0
      %7831 = vmatpush1.bf16.xpose.msra.mxu0 0
      %7832 = vmatprep.subr.bf16.mxu0 0
      %7833 = vmatpush1.bf16.xpose.msra.mxu0 0
      %7834 = vmatprep.subr.bf16.mxu0 0
      %7835 = vmatpush1.bf16.xpose.msra.mxu0 0
      %7836 = vmatprep.mubr.bf16.mxu0 0
      %7837 = vmatmul.mubr.bf16.gmra.mrb[0].mxu0 %v7116
      %v7838 = vpop.f32.mrb[0].mxu0
      %v7839 = vadd.f32 0.0, %v7838
      %v7840 = vpop.f32.mrb[0].mxu0
      %v7841 = vpop.f32.mrb[0].mxu0
      %v7842 = vadd.f32 0.0, %v7841
      %v7843 = vpop.f32.mrb[0].mxu0
      %7844 = vdwg.mxu0
      %7845 = vmatprep.subr.bf16.mxu0 0
      %7846 = vmatpush1.bf16.xpose.msra.mxu0 %v7160
      %7847 = vmatprep.subr.bf16.mxu0 0
      %7848 = vmatpush1.bf16.xpose.msra.mxu0 0
      %7849 = vmatprep.subr.bf16.mxu0 0
      %7850 = vmatpush1.bf16.xpose.msra.mxu0 0
      %7851 = vmatprep.subr.bf16.mxu0 0
      %7852 = vmatpush1.bf16.xpose.msra.mxu0 0
      %7853 = vmatprep.subr.bf16.mxu0 0
      %7854 = vmatpush1.bf16.xpose.msra.mxu0 0
      %7855 = vmatprep.subr.bf16.mxu0 0
      %7856 = vmatpush1.bf16.xpose.msra.mxu0 0
      %7857 = vmatprep.subr.bf16.mxu0 0
      %7858 = vmatpush1.bf16.xpose.msra.mxu0 0
      %7859 = vmatprep.subr.bf16.mxu0 0
      %7860 = vmatpush1.bf16.xpose.msra.mxu0 0
      %7861 = vmatprep.subr.bf16.mxu0 0
      %7862 = vmatpush1.bf16.xpose.msra.mxu0 0
      %7863 = vmatprep.subr.bf16.mxu0 0
      %7864 = vmatpush1.bf16.xpose.msra.mxu0 0
      %7865 = vmatprep.subr.bf16.mxu0 0
      %7866 = vmatpush1.bf16.xpose.msra.mxu0 0
      %7867 = vmatprep.subr.bf16.mxu0 0
      %7868 = vmatpush1.bf16.xpose.msra.mxu0 0
      %7869 = vmatprep.subr.bf16.mxu0 0
      %7870 = vmatpush1.bf16.xpose.msra.mxu0 0
      %7871 = vmatprep.subr.bf16.mxu0 0
      %7872 = vmatpush1.bf16.xpose.msra.mxu0 0
      %7873 = vmatprep.subr.bf16.mxu0 0
      %7874 = vmatpush1.bf16.xpose.msra.mxu0 0
      %7875 = vmatprep.subr.bf16.mxu0 0
      %7876 = vmatpush1.bf16.xpose.msra.mxu0 0
      %7877 = vmatprep.mubr.bf16.mxu0 0
      %7878 = vmatmul.mubr.bf16.gmra.mrb[0].mxu0 %v7163
      %v7879 = vpop.f32.mrb[0].mxu0
      %v7880 = vadd.f32 0.0, %v7879
      %v7881 = vpop.f32.mrb[0].mxu0
      %v7882 = vpop.f32.mrb[0].mxu0
      %v7883 = vadd.f32 0.0, %v7882
      %v7884 = vpop.f32.mrb[0].mxu0
      %7885 = vdwg.mxu0
      %7886 = vmatprep.subr.bf16.mxu0 0
      %7887 = vmatpush1.bf16.xpose.msra.mxu0 %v7207
      %7888 = vmatprep.subr.bf16.mxu0 0
      %7889 = vmatpush1.bf16.xpose.msra.mxu0 0
      %7890 = vmatprep.subr.bf16.mxu0 0
      %7891 = vmatpush1.bf16.xpose.msra.mxu0 0
      %7892 = vmatprep.subr.bf16.mxu0 0
      %7893 = vmatpush1.bf16.xpose.msra.mxu0 0
      %7894 = vmatprep.subr.bf16.mxu0 0
      %7895 = vmatpush1.bf16.xpose.msra.mxu0 0
      %7896 = vmatprep.subr.bf16.mxu0 0
      %7897 = vmatpush1.bf16.xpose.msra.mxu0 0
      %7898 = vmatprep.subr.bf16.mxu0 0
      %7899 = vmatpush1.bf16.xpose.msra.mxu0 0
      %7900 = vmatprep.subr.bf16.mxu0 0
      %7901 = vmatpush1.bf16.xpose.msra.mxu0 0
      %7902 = vmatprep.subr.bf16.mxu0 0
      %7903 = vmatpush1.bf16.xpose.msra.mxu0 0
      %7904 = vmatprep.subr.bf16.mxu0 0
      %7905 = vmatpush1.bf16.xpose.msra.mxu0 0
      %7906 = vmatprep.subr.bf16.mxu0 0
      %7907 = vmatpush1.bf16.xpose.msra.mxu0 0
      %7908 = vmatprep.subr.bf16.mxu0 0
      %7909 = vmatpush1.bf16.xpose.msra.mxu0 0
      %7910 = vmatprep.subr.bf16.mxu0 0
      %7911 = vmatpush1.bf16.xpose.msra.mxu0 0
      %7912 = vmatprep.subr.bf16.mxu0 0
      %7913 = vmatpush1.bf16.xpose.msra.mxu0 0
      %7914 = vmatprep.subr.bf16.mxu0 0
      %7915 = vmatpush1.bf16.xpose.msra.mxu0 0
      %7916 = vmatprep.subr.bf16.mxu0 0
      %7917 = vmatpush1.bf16.xpose.msra.mxu0 0
      %7918 = vmatprep.mubr.bf16.mxu0 0
      %7919 = vmatmul.mubr.bf16.gmra.mrb[0].mxu0 %v7210
      %v7920 = vpop.f32.mrb[0].mxu0
      %v7921 = vadd.f32 0.0, %v7920
      %v7922 = vpop.f32.mrb[0].mxu0
      %v7923 = vpop.f32.mrb[0].mxu0
      %v7924 = vadd.f32 0.0, %v7923
      %v7925 = vpop.f32.mrb[0].mxu0
      %7926 = vdwg.mxu0
      %7927 = vmatprep.subr.bf16.mxu0 0
      %7928 = vmatpush1.bf16.xpose.msra.mxu0 %v7254
      %7929 = vmatprep.subr.bf16.mxu0 0
      %7930 = vmatpush1.bf16.xpose.msra.mxu0 0
      %7931 = vmatprep.subr.bf16.mxu0 0
      %7932 = vmatpush1.bf16.xpose.msra.mxu0 0
      %7933 = vmatprep.subr.bf16.mxu0 0
      %7934 = vmatpush1.bf16.xpose.msra.mxu0 0
      %7935 = vmatprep.subr.bf16.mxu0 0
      %7936 = vmatpush1.bf16.xpose.msra.mxu0 0
      %7937 = vmatprep.subr.bf16.mxu0 0
      %7938 = vmatpush1.bf16.xpose.msra.mxu0 0
      %7939 = vmatprep.subr.bf16.mxu0 0
      %7940 = vmatpush1.bf16.xpose.msra.mxu0 0
      %7941 = vmatprep.subr.bf16.mxu0 0
      %7942 = vmatpush1.bf16.xpose.msra.mxu0 0
      %7943 = vmatprep.subr.bf16.mxu0 0
      %7944 = vmatpush1.bf16.xpose.msra.mxu0 0
      %7945 = vmatprep.subr.bf16.mxu0 0
      %7946 = vmatpush1.bf16.xpose.msra.mxu0 0
      %7947 = vmatprep.subr.bf16.mxu0 0
      %7948 = vmatpush1.bf16.xpose.msra.mxu0 0
      %7949 = vmatprep.subr.bf16.mxu0 0
      %7950 = vmatpush1.bf16.xpose.msra.mxu0 0
      %7951 = vmatprep.subr.bf16.mxu0 0
      %7952 = vmatpush1.bf16.xpose.msra.mxu0 0
      %7953 = vmatprep.subr.bf16.mxu0 0
      %7954 = vmatpush1.bf16.xpose.msra.mxu0 0
      %7955 = vmatprep.subr.bf16.mxu0 0
      %7956 = vmatpush1.bf16.xpose.msra.mxu0 0
      %7957 = vmatprep.subr.bf16.mxu0 0
      %7958 = vmatpush1.bf16.xpose.msra.mxu0 0
      %7959 = vmatprep.mubr.bf16.mxu0 0
      %7960 = vmatmul.mubr.bf16.gmra.mrb[0].mxu0 %v7257
      %v7961 = vpop.f32.mrb[0].mxu0
      %v7962 = vadd.f32 0.0, %v7961
      %v7963 = vpop.f32.mrb[0].mxu0
      %v7964 = vpop.f32.mrb[0].mxu0
      %v7965 = vadd.f32 0.0, %v7964
      %v7966 = vpop.f32.mrb[0].mxu0
      %7967 = vdwg.mxu0
      %7968 = vmatprep.subr.bf16.mxu0 0
      %7969 = vmatpush1.bf16.xpose.msra.mxu0 %v7301
      %7970 = vmatprep.subr.bf16.mxu0 0
      %7971 = vmatpush1.bf16.xpose.msra.mxu0 0
      %7972 = vmatprep.subr.bf16.mxu0 0
      %7973 = vmatpush1.bf16.xpose.msra.mxu0 0
      %7974 = vmatprep.subr.bf16.mxu0 0
      %7975 = vmatpush1.bf16.xpose.msra.mxu0 0
      %7976 = vmatprep.subr.bf16.mxu0 0
      %7977 = vmatpush1.bf16.xpose.msra.mxu0 0
      %7978 = vmatprep.subr.bf16.mxu0 0
      %7979 = vmatpush1.bf16.xpose.msra.mxu0 0
      %7980 = vmatprep.subr.bf16.mxu0 0
      %7981 = vmatpush1.bf16.xpose.msra.mxu0 0
      %7982 = vmatprep.subr.bf16.mxu0 0
      %7983 = vmatpush1.bf16.xpose.msra.mxu0 0
      %7984 = vmatprep.subr.bf16.mxu0 0
      %7985 = vmatpush1.bf16.xpose.msra.mxu0 0
      %7986 = vmatprep.subr.bf16.mxu0 0
      %7987 = vmatpush1.bf16.xpose.msra.mxu0 0
      %7988 = vmatprep.subr.bf16.mxu0 0
      %7989 = vmatpush1.bf16.xpose.msra.mxu0 0
      %7990 = vmatprep.subr.bf16.mxu0 0
      %7991 = vmatpush1.bf16.xpose.msra.mxu0 0
      %7992 = vmatprep.subr.bf16.mxu0 0
      %7993 = vmatpush1.bf16.xpose.msra.mxu0 0
      %7994 = vmatprep.subr.bf16.mxu0 0
      %7995 = vmatpush1.bf16.xpose.msra.mxu0 0
      %7996 = vmatprep.subr.bf16.mxu0 0
      %7997 = vmatpush1.bf16.xpose.msra.mxu0 0
      %7998 = vmatprep.subr.bf16.mxu0 0
      %7999 = vmatpush1.bf16.xpose.msra.mxu0 0
      %8000 = vmatprep.mubr.bf16.mxu0 0
      %8001 = vmatmul.mubr.bf16.gmra.mrb[0].mxu0 %v7304
      %v8002 = vpop.f32.mrb[0].mxu0
      %v8003 = vadd.f32 0.0, %v8002
      %v8004 = vpop.f32.mrb[0].mxu0
      %v8005 = vpop.f32.mrb[0].mxu0
      %v8006 = vadd.f32 0.0, %v8005
      %v8007 = vpop.f32.mrb[0].mxu0
      %8008 = vdwg.mxu0
      %8009 = vmatprep.subr.bf16.mxu0 0
      %8010 = vmatpush1.bf16.xpose.msra.mxu0 %v7348
      %8011 = vmatprep.subr.bf16.mxu0 0
      %8012 = vmatpush1.bf16.xpose.msra.mxu0 0
      %8013 = vmatprep.subr.bf16.mxu0 0
      %8014 = vmatpush1.bf16.xpose.msra.mxu0 0
      %8015 = vmatprep.subr.bf16.mxu0 0
      %8016 = vmatpush1.bf16.xpose.msra.mxu0 0
      %8017 = vmatprep.subr.bf16.mxu0 0
      %8018 = vmatpush1.bf16.xpose.msra.mxu0 0
      %8019 = vmatprep.subr.bf16.mxu0 0
      %8020 = vmatpush1.bf16.xpose.msra.mxu0 0
      %8021 = vmatprep.subr.bf16.mxu0 0
      %8022 = vmatpush1.bf16.xpose.msra.mxu0 0
      %8023 = vmatprep.subr.bf16.mxu0 0
      %8024 = vmatpush1.bf16.xpose.msra.mxu0 0
      %8025 = vmatprep.subr.bf16.mxu0 0
      %8026 = vmatpush1.bf16.xpose.msra.mxu0 0
      %8027 = vmatprep.subr.bf16.mxu0 0
      %8028 = vmatpush1.bf16.xpose.msra.mxu0 0
      %8029 = vmatprep.subr.bf16.mxu0 0
      %8030 = vmatpush1.bf16.xpose.msra.mxu0 0
      %8031 = vmatprep.subr.bf16.mxu0 0
      %8032 = vmatpush1.bf16.xpose.msra.mxu0 0
      %8033 = vmatprep.subr.bf16.mxu0 0
      %8034 = vmatpush1.bf16.xpose.msra.mxu0 0
      %8035 = vmatprep.subr.bf16.mxu0 0
      %8036 = vmatpush1.bf16.xpose.msra.mxu0 0
      %8037 = vmatprep.subr.bf16.mxu0 0
      %8038 = vmatpush1.bf16.xpose.msra.mxu0 0
      %8039 = vmatprep.subr.bf16.mxu0 0
      %8040 = vmatpush1.bf16.xpose.msra.mxu0 0
      %8041 = vmatprep.mubr.bf16.mxu0 0
      %8042 = vmatmul.mubr.bf16.gmra.mrb[0].mxu0 %v7351
      %v8043 = vpop.f32.mrb[0].mxu0
      %v8044 = vadd.f32 0.0, %v8043
      %v8045 = vpop.f32.mrb[0].mxu0
      %v8046 = vpop.f32.mrb[0].mxu0
      %v8047 = vadd.f32 0.0, %v8046
      %v8048 = vpop.f32.mrb[0].mxu0
      %8049 = vdwg.mxu0
      %vm8050 = vcmask 130048
      %v8051 = vsel %vm8050, %v6683, -inf
      %8052 = vmax.xlane.f32.xlu0 %v8051
      %v8053 = vpop.xlane.xlu0 %8052
      %v8054 = vsel %vm8050, %v6686, -inf
      %8055 = vmax.xlane.f32.xlu0 %v8054
      %v8056 = vpop.xlane.xlu0 %8055
      %v8057 = vsel %vm8050, %v6730, -inf
      %8058 = vmax.xlane.f32.xlu0 %v8057
      %v8059 = vpop.xlane.xlu0 %8058
      %v8060 = vsel %vm8050, %v6733, -inf
      %8061 = vmax.xlane.f32.xlu0 %v8060
      %v8062 = vpop.xlane.xlu0 %8061
      %v8063 = vsel %vm8050, %v6777, -inf
      %8064 = vmax.xlane.f32.xlu0 %v8063
      %v8065 = vpop.xlane.xlu0 %8064
      %v8066 = vsel %vm8050, %v6780, -inf
      %8067 = vmax.xlane.f32.xlu0 %v8066
      %v8068 = vpop.xlane.xlu0 %8067
      %v8069 = vsel %vm8050, %v6824, -inf
      %8070 = vmax.xlane.f32.xlu0 %v8069
      %v8071 = vpop.xlane.xlu0 %8070
      %v8072 = vsel %vm8050, %v6827, -inf
      %8073 = vmax.xlane.f32.xlu0 %v8072
      %v8074 = vpop.xlane.xlu0 %8073
      %v8075 = vsel %vm8050, %v6871, -inf
      %8076 = vmax.xlane.f32.xlu0 %v8075
      %v8077 = vpop.xlane.xlu0 %8076
      %v8078 = vsel %vm8050, %v6874, -inf
      %8079 = vmax.xlane.f32.xlu0 %v8078
      %v8080 = vpop.xlane.xlu0 %8079
      %v8081 = vsel %vm8050, %v6918, -inf
      %8082 = vmax.xlane.f32.xlu0 %v8081
      %v8083 = vpop.xlane.xlu0 %8082
      %v8084 = vsel %vm8050, %v6921, -inf
      %8085 = vmax.xlane.f32.xlu0 %v8084
      %v8086 = vpop.xlane.xlu0 %8085
      %v8087 = vsel %vm8050, %v6965, -inf
      %8088 = vmax.xlane.f32.xlu0 %v8087
      %v8089 = vpop.xlane.xlu0 %8088
      %v8090 = vsel %vm8050, %v6968, -inf
      %8091 = vmax.xlane.f32.xlu0 %v8090
      %v8092 = vpop.xlane.xlu0 %8091
      %v8093 = vsel %vm8050, %v7012, -inf
      %8094 = vmax.xlane.f32.xlu0 %v8093
      %v8095 = vpop.xlane.xlu0 %8094
      %v8096 = vsel %vm8050, %v7015, -inf
      %8097 = vmax.xlane.f32.xlu0 %v8096
      %v8098 = vpop.xlane.xlu0 %8097
      %v8099 = vsel %vm8050, %v7059, -inf
      %8100 = vmax.xlane.f32.xlu0 %v8099
      %v8101 = vpop.xlane.xlu0 %8100
      %v8102 = vsel %vm8050, %v7062, -inf
      %8103 = vmax.xlane.f32.xlu0 %v8102
      %v8104 = vpop.xlane.xlu0 %8103
      %v8105 = vsel %vm8050, %v7106, -inf
      %8106 = vmax.xlane.f32.xlu0 %v8105
      %v8107 = vpop.xlane.xlu0 %8106
      %v8108 = vsel %vm8050, %v7109, -inf
      %8109 = vmax.xlane.f32.xlu0 %v8108
      %v8110 = vpop.xlane.xlu0 %8109
      %v8111 = vsel %vm8050, %v7153, -inf
      %8112 = vmax.xlane.f32.xlu0 %v8111
      %v8113 = vpop.xlane.xlu0 %8112
      %v8114 = vsel %vm8050, %v7156, -inf
      %8115 = vmax.xlane.f32.xlu0 %v8114
      %v8116 = vpop.xlane.xlu0 %8115
      %v8117 = vsel %vm8050, %v7200, -inf
      %8118 = vmax.xlane.f32.xlu0 %v8117
      %v8119 = vpop.xlane.xlu0 %8118
      %v8120 = vsel %vm8050, %v7203, -inf
      %8121 = vmax.xlane.f32.xlu0 %v8120
      %v8122 = vpop.xlane.xlu0 %8121
      %v8123 = vsel %vm8050, %v7247, -inf
      %8124 = vmax.xlane.f32.xlu0 %v8123
      %v8125 = vpop.xlane.xlu0 %8124
      %v8126 = vsel %vm8050, %v7250, -inf
      %8127 = vmax.xlane.f32.xlu0 %v8126
      %v8128 = vpop.xlane.xlu0 %8127
      %v8129 = vsel %vm8050, %v7294, -inf
      %8130 = vmax.xlane.f32.xlu0 %v8129
      %v8131 = vpop.xlane.xlu0 %8130
      %v8132 = vsel %vm8050, %v7297, -inf
      %8133 = vmax.xlane.f32.xlu0 %v8132
      %v8134 = vpop.xlane.xlu0 %8133
      %v8135 = vsel %vm8050, %v7341, -inf
      %8136 = vmax.xlane.f32.xlu0 %v8135
      %v8137 = vpop.xlane.xlu0 %8136
      %v8138 = vsel %vm8050, %v7344, -inf
      %8139 = vmax.xlane.f32.xlu0 %v8138
      %v8140 = vpop.xlane.xlu0 %8139
      %v8141 = vsel %vm8050, %v7388, -inf
      %8142 = vmax.xlane.f32.xlu0 %v8141
      %v8143 = vpop.xlane.xlu0 %8142
      %v8144 = vsel %vm8050, %v7391, -inf
      %8145 = vmax.xlane.f32.xlu0 %v8144
      %v8146 = vpop.xlane.xlu0 %8145
      %v8147 = vsub.f32 %v6683, %v8053
      %v8148 = vsub.f32 %v6686, %v8056
      %v8149 = vsub.f32 %v6730, %v8059
      %v8150 = vsub.f32 %v6733, %v8062
      %v8151 = vsub.f32 %v6777, %v8065
      %v8152 = vsub.f32 %v6780, %v8068
      %v8153 = vsub.f32 %v6824, %v8071
      %v8154 = vsub.f32 %v6827, %v8074
      %v8155 = vsub.f32 %v6871, %v8077
      %v8156 = vsub.f32 %v6874, %v8080
      %v8157 = vsub.f32 %v6918, %v8083
      %v8158 = vsub.f32 %v6921, %v8086
      %v8159 = vsub.f32 %v6965, %v8089
      %v8160 = vsub.f32 %v6968, %v8092
      %v8161 = vsub.f32 %v7012, %v8095
      %v8162 = vsub.f32 %v7015, %v8098
      %v8163 = vsub.f32 %v7059, %v8101
      %v8164 = vsub.f32 %v7062, %v8104
      %v8165 = vsub.f32 %v7106, %v8107
      %v8166 = vsub.f32 %v7109, %v8110
      %v8167 = vsub.f32 %v7153, %v8113
      %v8168 = vsub.f32 %v7156, %v8116
      %v8169 = vsub.f32 %v7200, %v8119
      %v8170 = vsub.f32 %v7203, %v8122
      %v8171 = vsub.f32 %v7247, %v8125
      %v8172 = vsub.f32 %v7250, %v8128
      %v8173 = vsub.f32 %v7294, %v8131
      %v8174 = vsub.f32 %v7297, %v8134
      %v8175 = vsub.f32 %v7341, %v8137
      %v8176 = vsub.f32 %v7344, %v8140
      %v8177 = vsub.f32 %v7388, %v8143
      %v8178 = vsub.f32 %v7391, %v8146
      %v8179 = vmul.f32 %v8147, 1.442695
      %v8180 = vpow.pop %v8179
      %v8181 = vmul.f32 %v8148, 1.442695
      %v8182 = vpow.pop %v8181
      %v8183 = vmul.f32 %v8149, 1.442695
      %v8184 = vpow.pop %v8183
      %v8185 = vmul.f32 %v8150, 1.442695
      %v8186 = vpow.pop %v8185
      %v8187 = vmul.f32 %v8151, 1.442695
      %v8188 = vpow.pop %v8187
      %v8189 = vmul.f32 %v8152, 1.442695
      %v8190 = vpow.pop %v8189
      %v8191 = vmul.f32 %v8153, 1.442695
      %v8192 = vpow.pop %v8191
      %v8193 = vmul.f32 %v8154, 1.442695
      %v8194 = vpow.pop %v8193
      %v8195 = vmul.f32 %v8155, 1.442695
      %v8196 = vpow.pop %v8195
      %v8197 = vmul.f32 %v8156, 1.442695
      %v8198 = vpow.pop %v8197
      %v8199 = vmul.f32 %v8157, 1.442695
      %v8200 = vpow.pop %v8199
      %v8201 = vmul.f32 %v8158, 1.442695
      %v8202 = vpow.pop %v8201
      %v8203 = vmul.f32 %v8159, 1.442695
      %v8204 = vpow.pop %v8203
      %v8205 = vmul.f32 %v8160, 1.442695
      %v8206 = vpow.pop %v8205
      %v8207 = vmul.f32 %v8161, 1.442695
      %v8208 = vpow.pop %v8207
      %v8209 = vmul.f32 %v8162, 1.442695
      %v8210 = vpow.pop %v8209
      %v8211 = vmul.f32 %v8163, 1.442695
      %v8212 = vpow.pop %v8211
      %v8213 = vmul.f32 %v8164, 1.442695
      %v8214 = vpow.pop %v8213
      %v8215 = vmul.f32 %v8165, 1.442695
      %v8216 = vpow.pop %v8215
      %v8217 = vmul.f32 %v8166, 1.442695
      %v8218 = vpow.pop %v8217
      %v8219 = vmul.f32 %v8167, 1.442695
      %v8220 = vpow.pop %v8219
      %v8221 = vmul.f32 %v8168, 1.442695
      %v8222 = vpow.pop %v8221
      %v8223 = vmul.f32 %v8169, 1.442695
      %v8224 = vpow.pop %v8223
      %v8225 = vmul.f32 %v8170, 1.442695
      %v8226 = vpow.pop %v8225
      %v8227 = vmul.f32 %v8171, 1.442695
      %v8228 = vpow.pop %v8227
      %v8229 = vmul.f32 %v8172, 1.442695
      %v8230 = vpow.pop %v8229
      %v8231 = vmul.f32 %v8173, 1.442695
      %v8232 = vpow.pop %v8231
      %v8233 = vmul.f32 %v8174, 1.442695
      %v8234 = vpow.pop %v8233
      %v8235 = vmul.f32 %v8175, 1.442695
      %v8236 = vpow.pop %v8235
      %v8237 = vmul.f32 %v8176, 1.442695
      %v8238 = vpow.pop %v8237
      %v8239 = vmul.f32 %v8177, 1.442695
      %v8240 = vpow.pop %v8239
      %v8241 = vmul.f32 %v8178, 1.442695
      %v8242 = vpow.pop %v8241
      %v8243 = vsel %vm8050, %v8180, 0.0
      %8244 = vadd.xlane.f32.xlu0 %v8243
      %v8245 = vpop.xlane.xlu0 %8244
      %v8246 = vsel %vm8050, %v8182, 0.0
      %8247 = vadd.xlane.f32.xlu0 %v8246
      %v8248 = vpop.xlane.xlu0 %8247
      %v8249 = vsel %vm8050, %v8184, 0.0
      %8250 = vadd.xlane.f32.xlu0 %v8249
      %v8251 = vpop.xlane.xlu0 %8250
      %v8252 = vsel %vm8050, %v8186, 0.0
      %8253 = vadd.xlane.f32.xlu0 %v8252
      %v8254 = vpop.xlane.xlu0 %8253
      %v8255 = vsel %vm8050, %v8188, 0.0
      %8256 = vadd.xlane.f32.xlu0 %v8255
      %v8257 = vpop.xlane.xlu0 %8256
      %v8258 = vsel %vm8050, %v8190, 0.0
      %8259 = vadd.xlane.f32.xlu0 %v8258
      %v8260 = vpop.xlane.xlu0 %8259
      %v8261 = vsel %vm8050, %v8192, 0.0
      %8262 = vadd.xlane.f32.xlu0 %v8261
      %v8263 = vpop.xlane.xlu0 %8262
      %v8264 = vsel %vm8050, %v8194, 0.0
      %8265 = vadd.xlane.f32.xlu0 %v8264
      %v8266 = vpop.xlane.xlu0 %8265
      %v8267 = vsel %vm8050, %v8196, 0.0
      %8268 = vadd.xlane.f32.xlu0 %v8267
      %v8269 = vpop.xlane.xlu0 %8268
      %v8270 = vsel %vm8050, %v8198, 0.0
      %8271 = vadd.xlane.f32.xlu0 %v8270
      %v8272 = vpop.xlane.xlu0 %8271
      %v8273 = vsel %vm8050, %v8200, 0.0
      %8274 = vadd.xlane.f32.xlu0 %v8273
      %v8275 = vpop.xlane.xlu0 %8274
      %v8276 = vsel %vm8050, %v8202, 0.0
      %8277 = vadd.xlane.f32.xlu0 %v8276
      %v8278 = vpop.xlane.xlu0 %8277
      %v8279 = vsel %vm8050, %v8204, 0.0
      %8280 = vadd.xlane.f32.xlu0 %v8279
      %v8281 = vpop.xlane.xlu0 %8280
      %v8282 = vsel %vm8050, %v8206, 0.0
      %8283 = vadd.xlane.f32.xlu0 %v8282
      %v8284 = vpop.xlane.xlu0 %8283
      %v8285 = vsel %vm8050, %v8208, 0.0
      %8286 = vadd.xlane.f32.xlu0 %v8285
      %v8287 = vpop.xlane.xlu0 %8286
      %v8288 = vsel %vm8050, %v8210, 0.0
      %8289 = vadd.xlane.f32.xlu0 %v8288
      %v8290 = vpop.xlane.xlu0 %8289
      %v8291 = vsel %vm8050, %v8212, 0.0
      %8292 = vadd.xlane.f32.xlu0 %v8291
      %v8293 = vpop.xlane.xlu0 %8292
      %v8294 = vsel %vm8050, %v8214, 0.0
      %8295 = vadd.xlane.f32.xlu0 %v8294
      %v8296 = vpop.xlane.xlu0 %8295
      %v8297 = vsel %vm8050, %v8216, 0.0
      %8298 = vadd.xlane.f32.xlu0 %v8297
      %v8299 = vpop.xlane.xlu0 %8298
      %v8300 = vsel %vm8050, %v8218, 0.0
      %8301 = vadd.xlane.f32.xlu0 %v8300
      %v8302 = vpop.xlane.xlu0 %8301
      %v8303 = vsel %vm8050, %v8220, 0.0
      %8304 = vadd.xlane.f32.xlu0 %v8303
      %v8305 = vpop.xlane.xlu0 %8304
      %v8306 = vsel %vm8050, %v8222, 0.0
      %8307 = vadd.xlane.f32.xlu0 %v8306
      %v8308 = vpop.xlane.xlu0 %8307
      %v8309 = vsel %vm8050, %v8224, 0.0
      %8310 = vadd.xlane.f32.xlu0 %v8309
      %v8311 = vpop.xlane.xlu0 %8310
      %v8312 = vsel %vm8050, %v8226, 0.0
      %8313 = vadd.xlane.f32.xlu0 %v8312
      %v8314 = vpop.xlane.xlu0 %8313
      %v8315 = vsel %vm8050, %v8228, 0.0
      %8316 = vadd.xlane.f32.xlu0 %v8315
      %v8317 = vpop.xlane.xlu0 %8316
      %v8318 = vsel %vm8050, %v8230, 0.0
      %8319 = vadd.xlane.f32.xlu0 %v8318
      %v8320 = vpop.xlane.xlu0 %8319
      %v8321 = vsel %vm8050, %v8232, 0.0
      %8322 = vadd.xlane.f32.xlu0 %v8321
      %v8323 = vpop.xlane.xlu0 %8322
      %v8324 = vsel %vm8050, %v8234, 0.0
      %8325 = vadd.xlane.f32.xlu0 %v8324
      %v8326 = vpop.xlane.xlu0 %8325
      %v8327 = vsel %vm8050, %v8236, 0.0
      %8328 = vadd.xlane.f32.xlu0 %v8327
      %v8329 = vpop.xlane.xlu0 %8328
      %v8330 = vsel %vm8050, %v8238, 0.0
      %8331 = vadd.xlane.f32.xlu0 %v8330
      %v8332 = vpop.xlane.xlu0 %8331
      %v8333 = vsel %vm8050, %v8240, 0.0
      %8334 = vadd.xlane.f32.xlu0 %v8333
      %v8335 = vpop.xlane.xlu0 %8334
      %v8336 = vsel %vm8050, %v8242, 0.0
      %8337 = vadd.xlane.f32.xlu0 %v8336
      %v8338 = vpop.xlane.xlu0 %8337
      %v8339 = vrcp.pop %v8245
      %v8340 = vrcp.pop %v8248
      %v8341 = vrcp.pop %v8251
      %v8342 = vrcp.pop %v8254
      %v8343 = vrcp.pop %v8257
      %v8344 = vrcp.pop %v8260
      %v8345 = vrcp.pop %v8263
      %v8346 = vrcp.pop %v8266
      %v8347 = vrcp.pop %v8269
      %v8348 = vrcp.pop %v8272
      %v8349 = vrcp.pop %v8275
      %v8350 = vrcp.pop %v8278
      %v8351 = vrcp.pop %v8281
      %v8352 = vrcp.pop %v8284
      %v8353 = vrcp.pop %v8287
      %v8354 = vrcp.pop %v8290
      %v8355 = vrcp.pop %v8293
      %v8356 = vrcp.pop %v8296
      %v8357 = vrcp.pop %v8299
      %v8358 = vrcp.pop %v8302
      %v8359 = vrcp.pop %v8305
      %v8360 = vrcp.pop %v8308
      %v8361 = vrcp.pop %v8311
      %v8362 = vrcp.pop %v8314
      %v8363 = vrcp.pop %v8317
      %v8364 = vrcp.pop %v8320
      %v8365 = vrcp.pop %v8323
      %v8366 = vrcp.pop %v8326
      %v8367 = vrcp.pop %v8329
      %v8368 = vrcp.pop %v8332
      %v8369 = vrcp.pop %v8335
      %v8370 = vrcp.pop %v8338
      %v8371 = vmul.f32 %v8180, %v8339
      %v8372 = vmul.f32 %v8182, %v8340
      %v8373 = vmul.f32 %v8184, %v8341
      %v8374 = vmul.f32 %v8186, %v8342
      %v8375 = vmul.f32 %v8188, %v8343
      %v8376 = vmul.f32 %v8190, %v8344
      %v8377 = vmul.f32 %v8192, %v8345
      %v8378 = vmul.f32 %v8194, %v8346
      %v8379 = vmul.f32 %v8196, %v8347
      %v8380 = vmul.f32 %v8198, %v8348
      %v8381 = vmul.f32 %v8200, %v8349
      %v8382 = vmul.f32 %v8202, %v8350
      %v8383 = vmul.f32 %v8204, %v8351
      %v8384 = vmul.f32 %v8206, %v8352
      %v8385 = vmul.f32 %v8208, %v8353
      %v8386 = vmul.f32 %v8210, %v8354
      %v8387 = vmul.f32 %v8212, %v8355
      %v8388 = vmul.f32 %v8214, %v8356
      %v8389 = vmul.f32 %v8216, %v8357
      %v8390 = vmul.f32 %v8218, %v8358
      %v8391 = vmul.f32 %v8220, %v8359
      %v8392 = vmul.f32 %v8222, %v8360
      %v8393 = vmul.f32 %v8224, %v8361
      %v8394 = vmul.f32 %v8226, %v8362
      %v8395 = vmul.f32 %v8228, %v8363
      %v8396 = vmul.f32 %v8230, %v8364
      %v8397 = vmul.f32 %v8232, %v8365
      %v8398 = vmul.f32 %v8234, %v8366
      %v8399 = vmul.f32 %v8236, %v8367
      %v8400 = vmul.f32 %v8238, %v8368
      %v8401 = vmul.f32 %v8240, %v8369
      %v8402 = vmul.f32 %v8242, %v8370
      %v8403 = vpack.c.bf16 %v8372, %v8371
      %v8404 = vpack.c.bf16 %v8374, %v8373
      %v8405 = vpack.c.bf16 %v8376, %v8375
      %v8406 = vpack.c.bf16 %v8378, %v8377
      %v8407 = vpack.c.bf16 %v8380, %v8379
      %v8408 = vpack.c.bf16 %v8382, %v8381
      %v8409 = vpack.c.bf16 %v8384, %v8383
      %v8410 = vpack.c.bf16 %v8386, %v8385
      %v8411 = vpack.c.bf16 %v8388, %v8387
      %v8412 = vpack.c.bf16 %v8390, %v8389
      %v8413 = vpack.c.bf16 %v8392, %v8391
      %v8414 = vpack.c.bf16 %v8394, %v8393
      %v8415 = vpack.c.bf16 %v8396, %v8395
      %v8416 = vpack.c.bf16 %v8398, %v8397
      %v8417 = vpack.c.bf16 %v8400, %v8399
      %v8418 = vpack.c.bf16 %v8402, %v8401
      %v8419 = vsel %vm8050, %v7429, -inf
      %8420 = vmax.xlane.f32.xlu0 %v8419
      %v8421 = vpop.xlane.xlu0 %8420
      %v8422 = vsel %vm8050, %v7432, -inf
      %8423 = vmax.xlane.f32.xlu0 %v8422
      %v8424 = vpop.xlane.xlu0 %8423
      %v8425 = vsel %vm8050, %v7470, -inf
      %8426 = vmax.xlane.f32.xlu0 %v8425
      %v8427 = vpop.xlane.xlu0 %8426
      %v8428 = vsel %vm8050, %v7473, -inf
      %8429 = vmax.xlane.f32.xlu0 %v8428
      %v8430 = vpop.xlane.xlu0 %8429
      %v8431 = vsel %vm8050, %v7511, -inf
      %8432 = vmax.xlane.f32.xlu0 %v8431
      %v8433 = vpop.xlane.xlu0 %8432
      %v8434 = vsel %vm8050, %v7514, -inf
      %8435 = vmax.xlane.f32.xlu0 %v8434
      %v8436 = vpop.xlane.xlu0 %8435
      %v8437 = vsel %vm8050, %v7552, -inf
      %8438 = vmax.xlane.f32.xlu0 %v8437
      %v8439 = vpop.xlane.xlu0 %8438
      %v8440 = vsel %vm8050, %v7555, -inf
      %8441 = vmax.xlane.f32.xlu0 %v8440
      %v8442 = vpop.xlane.xlu0 %8441
      %v8443 = vsel %vm8050, %v7593, -inf
      %8444 = vmax.xlane.f32.xlu0 %v8443
      %v8445 = vpop.xlane.xlu0 %8444
      %v8446 = vsel %vm8050, %v7596, -inf
      %8447 = vmax.xlane.f32.xlu0 %v8446
      %v8448 = vpop.xlane.xlu0 %8447
      %v8449 = vsel %vm8050, %v7634, -inf
      %8450 = vmax.xlane.f32.xlu0 %v8449
      %v8451 = vpop.xlane.xlu0 %8450
      %v8452 = vsel %vm8050, %v7637, -inf
      %8453 = vmax.xlane.f32.xlu0 %v8452
      %v8454 = vpop.xlane.xlu0 %8453
      %v8455 = vsel %vm8050, %v7675, -inf
      %8456 = vmax.xlane.f32.xlu0 %v8455
      %v8457 = vpop.xlane.xlu0 %8456
      %v8458 = vsel %vm8050, %v7678, -inf
      %8459 = vmax.xlane.f32.xlu0 %v8458
      %v8460 = vpop.xlane.xlu0 %8459
      %v8461 = vsel %vm8050, %v7716, -inf
      %8462 = vmax.xlane.f32.xlu0 %v8461
      %v8463 = vpop.xlane.xlu0 %8462
      %v8464 = vsel %vm8050, %v7719, -inf
      %8465 = vmax.xlane.f32.xlu0 %v8464
      %v8466 = vpop.xlane.xlu0 %8465
      %v8467 = vsel %vm8050, %v7757, -inf
      %8468 = vmax.xlane.f32.xlu0 %v8467
      %v8469 = vpop.xlane.xlu0 %8468
      %v8470 = vsel %vm8050, %v7760, -inf
      %8471 = vmax.xlane.f32.xlu0 %v8470
      %v8472 = vpop.xlane.xlu0 %8471
      %v8473 = vsel %vm8050, %v7798, -inf
      %8474 = vmax.xlane.f32.xlu0 %v8473
      %v8475 = vpop.xlane.xlu0 %8474
      %v8476 = vsel %vm8050, %v7801, -inf
      %8477 = vmax.xlane.f32.xlu0 %v8476
      %v8478 = vpop.xlane.xlu0 %8477
      %v8479 = vsel %vm8050, %v7839, -inf
      %8480 = vmax.xlane.f32.xlu0 %v8479
      %v8481 = vpop.xlane.xlu0 %8480
      %v8482 = vsel %vm8050, %v7842, -inf
      %8483 = vmax.xlane.f32.xlu0 %v8482
      %v8484 = vpop.xlane.xlu0 %8483
      %v8485 = vsel %vm8050, %v7880, -inf
      %8486 = vmax.xlane.f32.xlu0 %v8485
      %v8487 = vpop.xlane.xlu0 %8486
      %v8488 = vsel %vm8050, %v7883, -inf
      %8489 = vmax.xlane.f32.xlu0 %v8488
      %v8490 = vpop.xlane.xlu0 %8489
      %v8491 = vsel %vm8050, %v7921, -inf
      %8492 = vmax.xlane.f32.xlu0 %v8491
      %v8493 = vpop.xlane.xlu0 %8492
      %v8494 = vsel %vm8050, %v7924, -inf
      %8495 = vmax.xlane.f32.xlu0 %v8494
      %v8496 = vpop.xlane.xlu0 %8495
      %v8497 = vsel %vm8050, %v7962, -inf
      %8498 = vmax.xlane.f32.xlu0 %v8497
      %v8499 = vpop.xlane.xlu0 %8498
      %v8500 = vsel %vm8050, %v7965, -inf
      %8501 = vmax.xlane.f32.xlu0 %v8500
      %v8502 = vpop.xlane.xlu0 %8501
      %v8503 = vsel %vm8050, %v8003, -inf
      %8504 = vmax.xlane.f32.xlu0 %v8503
      %v8505 = vpop.xlane.xlu0 %8504
      %v8506 = vsel %vm8050, %v8006, -inf
      %8507 = vmax.xlane.f32.xlu0 %v8506
      %v8508 = vpop.xlane.xlu0 %8507
      %v8509 = vsel %vm8050, %v8044, -inf
      %8510 = vmax.xlane.f32.xlu0 %v8509
      %v8511 = vpop.xlane.xlu0 %8510
      %v8512 = vsel %vm8050, %v8047, -inf
      %8513 = vmax.xlane.f32.xlu0 %v8512
      %v8514 = vpop.xlane.xlu0 %8513
      %v8515 = vsub.f32 %v7429, %v8421
      %v8516 = vsub.f32 %v7432, %v8424
      %v8517 = vsub.f32 %v7470, %v8427
      %v8518 = vsub.f32 %v7473, %v8430
      %v8519 = vsub.f32 %v7511, %v8433
      %v8520 = vsub.f32 %v7514, %v8436
      %v8521 = vsub.f32 %v7552, %v8439
      %v8522 = vsub.f32 %v7555, %v8442
      %v8523 = vsub.f32 %v7593, %v8445
      %v8524 = vsub.f32 %v7596, %v8448
      %v8525 = vsub.f32 %v7634, %v8451
      %v8526 = vsub.f32 %v7637, %v8454
      %v8527 = vsub.f32 %v7675, %v8457
      %v8528 = vsub.f32 %v7678, %v8460
      %v8529 = vsub.f32 %v7716, %v8463
      %v8530 = vsub.f32 %v7719, %v8466
      %v8531 = vsub.f32 %v7757, %v8469
      %v8532 = vsub.f32 %v7760, %v8472
      %v8533 = vsub.f32 %v7798, %v8475
      %v8534 = vsub.f32 %v7801, %v8478
      %v8535 = vsub.f32 %v7839, %v8481
      %v8536 = vsub.f32 %v7842, %v8484
      %v8537 = vsub.f32 %v7880, %v8487
      %v8538 = vsub.f32 %v7883, %v8490
      %v8539 = vsub.f32 %v7921, %v8493
      %v8540 = vsub.f32 %v7924, %v8496
      %v8541 = vsub.f32 %v7962, %v8499
      %v8542 = vsub.f32 %v7965, %v8502
      %v8543 = vsub.f32 %v8003, %v8505
      %v8544 = vsub.f32 %v8006, %v8508
      %v8545 = vsub.f32 %v8044, %v8511
      %v8546 = vsub.f32 %v8047, %v8514
      %v8547 = vmul.f32 %v8515, 1.442695
      %v8548 = vpow.pop %v8547
      %v8549 = vmul.f32 %v8516, 1.442695
      %v8550 = vpow.pop %v8549
      %v8551 = vmul.f32 %v8517, 1.442695
      %v8552 = vpow.pop %v8551
      %v8553 = vmul.f32 %v8518, 1.442695
      %v8554 = vpow.pop %v8553
      %v8555 = vmul.f32 %v8519, 1.442695
      %v8556 = vpow.pop %v8555
      %v8557 = vmul.f32 %v8520, 1.442695
      %v8558 = vpow.pop %v8557
      %v8559 = vmul.f32 %v8521, 1.442695
      %v8560 = vpow.pop %v8559
      %v8561 = vmul.f32 %v8522, 1.442695
      %v8562 = vpow.pop %v8561
      %v8563 = vmul.f32 %v8523, 1.442695
      %v8564 = vpow.pop %v8563
      %v8565 = vmul.f32 %v8524, 1.442695
      %v8566 = vpow.pop %v8565
      %v8567 = vmul.f32 %v8525, 1.442695
      %v8568 = vpow.pop %v8567
      %v8569 = vmul.f32 %v8526, 1.442695
      %v8570 = vpow.pop %v8569
      %v8571 = vmul.f32 %v8527, 1.442695
      %v8572 = vpow.pop %v8571
      %v8573 = vmul.f32 %v8528, 1.442695
      %v8574 = vpow.pop %v8573
      %v8575 = vmul.f32 %v8529, 1.442695
      %v8576 = vpow.pop %v8575
      %v8577 = vmul.f32 %v8530, 1.442695
      %v8578 = vpow.pop %v8577
      %v8579 = vmul.f32 %v8531, 1.442695
      %v8580 = vpow.pop %v8579
      %v8581 = vmul.f32 %v8532, 1.442695
      %v8582 = vpow.pop %v8581
      %v8583 = vmul.f32 %v8533, 1.442695
      %v8584 = vpow.pop %v8583
      %v8585 = vmul.f32 %v8534, 1.442695
      %v8586 = vpow.pop %v8585
      %v8587 = vmul.f32 %v8535, 1.442695
      %v8588 = vpow.pop %v8587
      %v8589 = vmul.f32 %v8536, 1.442695
      %v8590 = vpow.pop %v8589
      %v8591 = vmul.f32 %v8537, 1.442695
      %v8592 = vpow.pop %v8591
      %v8593 = vmul.f32 %v8538, 1.442695
      %v8594 = vpow.pop %v8593
      %v8595 = vmul.f32 %v8539, 1.442695
      %v8596 = vpow.pop %v8595
      %v8597 = vmul.f32 %v8540, 1.442695
      %v8598 = vpow.pop %v8597
      %v8599 = vmul.f32 %v8541, 1.442695
      %v8600 = vpow.pop %v8599
      %v8601 = vmul.f32 %v8542, 1.442695
      %v8602 = vpow.pop %v8601
      %v8603 = vmul.f32 %v8543, 1.442695
      %v8604 = vpow.pop %v8603
      %v8605 = vmul.f32 %v8544, 1.442695
      %v8606 = vpow.pop %v8605
      %v8607 = vmul.f32 %v8545, 1.442695
      %v8608 = vpow.pop %v8607
      %v8609 = vmul.f32 %v8546, 1.442695
      %v8610 = vpow.pop %v8609
      %v8611 = vsel %vm8050, %v8548, 0.0
      %8612 = vadd.xlane.f32.xlu0 %v8611
      %v8613 = vpop.xlane.xlu0 %8612
      %v8614 = vsel %vm8050, %v8550, 0.0
      %8615 = vadd.xlane.f32.xlu0 %v8614
      %v8616 = vpop.xlane.xlu0 %8615
      %v8617 = vsel %vm8050, %v8552, 0.0
      %8618 = vadd.xlane.f32.xlu0 %v8617
      %v8619 = vpop.xlane.xlu0 %8618
      %v8620 = vsel %vm8050, %v8554, 0.0
      %8621 = vadd.xlane.f32.xlu0 %v8620
      %v8622 = vpop.xlane.xlu0 %8621
      %v8623 = vsel %vm8050, %v8556, 0.0
      %8624 = vadd.xlane.f32.xlu0 %v8623
      %v8625 = vpop.xlane.xlu0 %8624
      %v8626 = vsel %vm8050, %v8558, 0.0
      %8627 = vadd.xlane.f32.xlu0 %v8626
      %v8628 = vpop.xlane.xlu0 %8627
      %v8629 = vsel %vm8050, %v8560, 0.0
      %8630 = vadd.xlane.f32.xlu0 %v8629
      %v8631 = vpop.xlane.xlu0 %8630
      %v8632 = vsel %vm8050, %v8562, 0.0
      %8633 = vadd.xlane.f32.xlu0 %v8632
      %v8634 = vpop.xlane.xlu0 %8633
      %v8635 = vsel %vm8050, %v8564, 0.0
      %8636 = vadd.xlane.f32.xlu0 %v8635
      %v8637 = vpop.xlane.xlu0 %8636
      %v8638 = vsel %vm8050, %v8566, 0.0
      %8639 = vadd.xlane.f32.xlu0 %v8638
      %v8640 = vpop.xlane.xlu0 %8639
      %v8641 = vsel %vm8050, %v8568, 0.0
      %8642 = vadd.xlane.f32.xlu0 %v8641
      %v8643 = vpop.xlane.xlu0 %8642
      %v8644 = vsel %vm8050, %v8570, 0.0
      %8645 = vadd.xlane.f32.xlu0 %v8644
      %v8646 = vpop.xlane.xlu0 %8645
      %v8647 = vsel %vm8050, %v8572, 0.0
      %8648 = vadd.xlane.f32.xlu0 %v8647
      %v8649 = vpop.xlane.xlu0 %8648
      %v8650 = vsel %vm8050, %v8574, 0.0
      %8651 = vadd.xlane.f32.xlu0 %v8650
      %v8652 = vpop.xlane.xlu0 %8651
      %v8653 = vsel %vm8050, %v8576, 0.0
      %8654 = vadd.xlane.f32.xlu0 %v8653
      %v8655 = vpop.xlane.xlu0 %8654
      %v8656 = vsel %vm8050, %v8578, 0.0
      %8657 = vadd.xlane.f32.xlu0 %v8656
      %v8658 = vpop.xlane.xlu0 %8657
      %v8659 = vsel %vm8050, %v8580, 0.0
      %8660 = vadd.xlane.f32.xlu0 %v8659
      %v8661 = vpop.xlane.xlu0 %8660
      %v8662 = vsel %vm8050, %v8582, 0.0
      %8663 = vadd.xlane.f32.xlu0 %v8662
      %v8664 = vpop.xlane.xlu0 %8663
      %v8665 = vsel %vm8050, %v8584, 0.0
      %8666 = vadd.xlane.f32.xlu0 %v8665
      %v8667 = vpop.xlane.xlu0 %8666
      %v8668 = vsel %vm8050, %v8586, 0.0
      %8669 = vadd.xlane.f32.xlu0 %v8668
      %v8670 = vpop.xlane.xlu0 %8669
      %v8671 = vsel %vm8050, %v8588, 0.0
      %8672 = vadd.xlane.f32.xlu0 %v8671
      %v8673 = vpop.xlane.xlu0 %8672
      %v8674 = vsel %vm8050, %v8590, 0.0
      %8675 = vadd.xlane.f32.xlu0 %v8674
      %v8676 = vpop.xlane.xlu0 %8675
      %v8677 = vsel %vm8050, %v8592, 0.0
      %8678 = vadd.xlane.f32.xlu0 %v8677
      %v8679 = vpop.xlane.xlu0 %8678
      %v8680 = vsel %vm8050, %v8594, 0.0
      %8681 = vadd.xlane.f32.xlu0 %v8680
      %v8682 = vpop.xlane.xlu0 %8681
      %v8683 = vsel %vm8050, %v8596, 0.0
      %8684 = vadd.xlane.f32.xlu0 %v8683
      %v8685 = vpop.xlane.xlu0 %8684
      %v8686 = vsel %vm8050, %v8598, 0.0
      %8687 = vadd.xlane.f32.xlu0 %v8686
      %v8688 = vpop.xlane.xlu0 %8687
      %v8689 = vsel %vm8050, %v8600, 0.0
      %8690 = vadd.xlane.f32.xlu0 %v8689
      %v8691 = vpop.xlane.xlu0 %8690
      %v8692 = vsel %vm8050, %v8602, 0.0
      %8693 = vadd.xlane.f32.xlu0 %v8692
      %v8694 = vpop.xlane.xlu0 %8693
      %v8695 = vsel %vm8050, %v8604, 0.0
      %8696 = vadd.xlane.f32.xlu0 %v8695
      %v8697 = vpop.xlane.xlu0 %8696
      %v8698 = vsel %vm8050, %v8606, 0.0
      %8699 = vadd.xlane.f32.xlu0 %v8698
      %v8700 = vpop.xlane.xlu0 %8699
      %v8701 = vsel %vm8050, %v8608, 0.0
      %8702 = vadd.xlane.f32.xlu0 %v8701
      %v8703 = vpop.xlane.xlu0 %8702
      %v8704 = vsel %vm8050, %v8610, 0.0
      %8705 = vadd.xlane.f32.xlu0 %v8704
      %v8706 = vpop.xlane.xlu0 %8705
      %v8707 = vrcp.pop %v8613
      %v8708 = vrcp.pop %v8616
      %v8709 = vrcp.pop %v8619
      %v8710 = vrcp.pop %v8622
      %v8711 = vrcp.pop %v8625
      %v8712 = vrcp.pop %v8628
      %v8713 = vrcp.pop %v8631
      %v8714 = vrcp.pop %v8634
      %v8715 = vrcp.pop %v8637
      %v8716 = vrcp.pop %v8640
      %v8717 = vrcp.pop %v8643
      %v8718 = vrcp.pop %v8646
      %v8719 = vrcp.pop %v8649
      %v8720 = vrcp.pop %v8652
      %v8721 = vrcp.pop %v8655
      %v8722 = vrcp.pop %v8658
      %v8723 = vrcp.pop %v8661
      %v8724 = vrcp.pop %v8664
      %v8725 = vrcp.pop %v8667
      %v8726 = vrcp.pop %v8670
      %v8727 = vrcp.pop %v8673
      %v8728 = vrcp.pop %v8676
      %v8729 = vrcp.pop %v8679
      %v8730 = vrcp.pop %v8682
      %v8731 = vrcp.pop %v8685
      %v8732 = vrcp.pop %v8688
      %v8733 = vrcp.pop %v8691
      %v8734 = vrcp.pop %v8694
      %v8735 = vrcp.pop %v8697
      %v8736 = vrcp.pop %v8700
      %v8737 = vrcp.pop %v8703
      %v8738 = vrcp.pop %v8706
      %v8739 = vmul.f32 %v8548, %v8707
      %v8740 = vmul.f32 %v8550, %v8708
      %v8741 = vmul.f32 %v8552, %v8709
      %v8742 = vmul.f32 %v8554, %v8710
      %v8743 = vmul.f32 %v8556, %v8711
      %v8744 = vmul.f32 %v8558, %v8712
      %v8745 = vmul.f32 %v8560, %v8713
      %v8746 = vmul.f32 %v8562, %v8714
      %v8747 = vmul.f32 %v8564, %v8715
      %v8748 = vmul.f32 %v8566, %v8716
      %v8749 = vmul.f32 %v8568, %v8717
      %v8750 = vmul.f32 %v8570, %v8718
      %v8751 = vmul.f32 %v8572, %v8719
      %v8752 = vmul.f32 %v8574, %v8720
      %v8753 = vmul.f32 %v8576, %v8721
      %v8754 = vmul.f32 %v8578, %v8722
      %v8755 = vmul.f32 %v8580, %v8723
      %v8756 = vmul.f32 %v8582, %v8724
      %v8757 = vmul.f32 %v8584, %v8725
      %v8758 = vmul.f32 %v8586, %v8726
      %v8759 = vmul.f32 %v8588, %v8727
      %v8760 = vmul.f32 %v8590, %v8728
      %v8761 = vmul.f32 %v8592, %v8729
      %v8762 = vmul.f32 %v8594, %v8730
      %v8763 = vmul.f32 %v8596, %v8731
      %v8764 = vmul.f32 %v8598, %v8732
      %v8765 = vmul.f32 %v8600, %v8733
      %v8766 = vmul.f32 %v8602, %v8734
      %v8767 = vmul.f32 %v8604, %v8735
      %v8768 = vmul.f32 %v8606, %v8736
      %v8769 = vmul.f32 %v8608, %v8737
      %v8770 = vmul.f32 %v8610, %v8738
      %v8771 = vpack.c.bf16 %v8740, %v8739
      %v8772 = vpack.c.bf16 %v8742, %v8741
      %v8773 = vpack.c.bf16 %v8744, %v8743
      %v8774 = vpack.c.bf16 %v8746, %v8745
      %v8775 = vpack.c.bf16 %v8748, %v8747
      %v8776 = vpack.c.bf16 %v8750, %v8749
      %v8777 = vpack.c.bf16 %v8752, %v8751
      %v8778 = vpack.c.bf16 %v8754, %v8753
      %v8779 = vpack.c.bf16 %v8756, %v8755
      %v8780 = vpack.c.bf16 %v8758, %v8757
      %v8781 = vpack.c.bf16 %v8760, %v8759
      %v8782 = vpack.c.bf16 %v8762, %v8761
      %v8783 = vpack.c.bf16 %v8764, %v8763
      %v8784 = vpack.c.bf16 %v8766, %v8765
      %v8785 = vpack.c.bf16 %v8768, %v8767
      %v8786 = vpack.c.bf16 %v8770, %v8769
      %v8788 = vsel %vm8050, %v8403, 0
      %8790 = vmatprep.subr.bf16.mxu0 0
      %8791 = vmatpush1.bf16.msra.mxu0 %v6626
      %8792 = vmatprep.subr.bf16.mxu0 0
      %8793 = vmatpush1.bf16.msra.mxu0 0
      %8794 = vmatprep.subr.bf16.mxu0 0
      %8795 = vmatpush1.bf16.msra.mxu0 0
      %8796 = vmatprep.subr.bf16.mxu0 0
      %8797 = vmatpush1.bf16.msra.mxu0 0
      %8798 = vmatprep.subr.bf16.mxu0 0
      %8799 = vmatpush1.bf16.msra.mxu0 0
      %8800 = vmatprep.subr.bf16.mxu0 0
      %8801 = vmatpush1.bf16.msra.mxu0 0
      %8802 = vmatprep.subr.bf16.mxu0 0
      %8803 = vmatpush1.bf16.msra.mxu0 0
      %8804 = vmatprep.subr.bf16.mxu0 0
      %8805 = vmatpush1.bf16.msra.mxu0 0
      %8806 = vmatprep.subr.bf16.mxu0 0
      %8807 = vmatpush1.bf16.msra.mxu0 0
      %8808 = vmatprep.subr.bf16.mxu0 0
      %8809 = vmatpush1.bf16.msra.mxu0 0
      %8810 = vmatprep.subr.bf16.mxu0 0
      %8811 = vmatpush1.bf16.msra.mxu0 0
      %8812 = vmatprep.subr.bf16.mxu0 0
      %8813 = vmatpush1.bf16.msra.mxu0 0
      %8814 = vmatprep.subr.bf16.mxu0 0
      %8815 = vmatpush1.bf16.msra.mxu0 0
      %8816 = vmatprep.subr.bf16.mxu0 0
      %8817 = vmatpush1.bf16.msra.mxu0 0
      %8818 = vmatprep.subr.bf16.mxu0 0
      %8819 = vmatpush1.bf16.msra.mxu0 0
      %8820 = vmatprep.subr.bf16.mxu0 0
      %8821 = vmatpush1.bf16.msra.mxu0 0
      %8822 = vmatprep.mubr.bf16.mxu0 0
      %8823 = vmatmul.mubr.bf16.gmra.mrb[0].mxu0 %v8788
      %v8824 = vpop.f32.mrb[0].mxu0
      %v8825 = vadd.f32 0.0, %v8824
      %v8826 = vpop.f32.mrb[0].mxu0
      %v8827 = vpop.f32.mrb[0].mxu0
      %v8828 = vadd.f32 0.0, %v8827
      %v8829 = vpop.f32.mrb[0].mxu0
      %8830 = vdwg.mxu0
      %v8832 = vsel %vm8050, %v8404, 0
      %8834 = vmatprep.subr.bf16.mxu0 0
      %8835 = vmatpush1.bf16.msra.mxu0 %v6627
      %8836 = vmatprep.subr.bf16.mxu0 0
      %8837 = vmatpush1.bf16.msra.mxu0 0
      %8838 = vmatprep.subr.bf16.mxu0 0
      %8839 = vmatpush1.bf16.msra.mxu0 0
      %8840 = vmatprep.subr.bf16.mxu0 0
      %8841 = vmatpush1.bf16.msra.mxu0 0
      %8842 = vmatprep.subr.bf16.mxu0 0
      %8843 = vmatpush1.bf16.msra.mxu0 0
      %8844 = vmatprep.subr.bf16.mxu0 0
      %8845 = vmatpush1.bf16.msra.mxu0 0
      %8846 = vmatprep.subr.bf16.mxu0 0
      %8847 = vmatpush1.bf16.msra.mxu0 0
      %8848 = vmatprep.subr.bf16.mxu0 0
      %8849 = vmatpush1.bf16.msra.mxu0 0
      %8850 = vmatprep.subr.bf16.mxu0 0
      %8851 = vmatpush1.bf16.msra.mxu0 0
      %8852 = vmatprep.subr.bf16.mxu0 0
      %8853 = vmatpush1.bf16.msra.mxu0 0
      %8854 = vmatprep.subr.bf16.mxu0 0
      %8855 = vmatpush1.bf16.msra.mxu0 0
      %8856 = vmatprep.subr.bf16.mxu0 0
      %8857 = vmatpush1.bf16.msra.mxu0 0
      %8858 = vmatprep.subr.bf16.mxu0 0
      %8859 = vmatpush1.bf16.msra.mxu0 0
      %8860 = vmatprep.subr.bf16.mxu0 0
      %8861 = vmatpush1.bf16.msra.mxu0 0
      %8862 = vmatprep.subr.bf16.mxu0 0
      %8863 = vmatpush1.bf16.msra.mxu0 0
      %8864 = vmatprep.subr.bf16.mxu0 0
      %8865 = vmatpush1.bf16.msra.mxu0 0
      %8866 = vmatprep.mubr.bf16.mxu0 0
      %8867 = vmatmul.mubr.bf16.gmra.mrb[0].mxu0 %v8832
      %v8868 = vpop.f32.mrb[0].mxu0
      %v8869 = vadd.f32 0.0, %v8868
      %v8870 = vpop.f32.mrb[0].mxu0
      %v8871 = vpop.f32.mrb[0].mxu0
      %v8872 = vadd.f32 0.0, %v8871
      %v8873 = vpop.f32.mrb[0].mxu0
      %8874 = vdwg.mxu0
      %v8876 = vsel %vm8050, %v8405, 0
      %8878 = vmatprep.subr.bf16.mxu0 0
      %8879 = vmatpush1.bf16.msra.mxu0 %v6628
      %8880 = vmatprep.subr.bf16.mxu0 0
      %8881 = vmatpush1.bf16.msra.mxu0 0
      %8882 = vmatprep.subr.bf16.mxu0 0
      %8883 = vmatpush1.bf16.msra.mxu0 0
      %8884 = vmatprep.subr.bf16.mxu0 0
      %8885 = vmatpush1.bf16.msra.mxu0 0
      %8886 = vmatprep.subr.bf16.mxu0 0
      %8887 = vmatpush1.bf16.msra.mxu0 0
      %8888 = vmatprep.subr.bf16.mxu0 0
      %8889 = vmatpush1.bf16.msra.mxu0 0
      %8890 = vmatprep.subr.bf16.mxu0 0
      %8891 = vmatpush1.bf16.msra.mxu0 0
      %8892 = vmatprep.subr.bf16.mxu0 0
      %8893 = vmatpush1.bf16.msra.mxu0 0
      %8894 = vmatprep.subr.bf16.mxu0 0
      %8895 = vmatpush1.bf16.msra.mxu0 0
      %8896 = vmatprep.subr.bf16.mxu0 0
      %8897 = vmatpush1.bf16.msra.mxu0 0
      %8898 = vmatprep.subr.bf16.mxu0 0
      %8899 = vmatpush1.bf16.msra.mxu0 0
      %8900 = vmatprep.subr.bf16.mxu0 0
      %8901 = vmatpush1.bf16.msra.mxu0 0
      %8902 = vmatprep.subr.bf16.mxu0 0
      %8903 = vmatpush1.bf16.msra.mxu0 0
      %8904 = vmatprep.subr.bf16.mxu0 0
      %8905 = vmatpush1.bf16.msra.mxu0 0
      %8906 = vmatprep.subr.bf16.mxu0 0
      %8907 = vmatpush1.bf16.msra.mxu0 0
      %8908 = vmatprep.subr.bf16.mxu0 0
      %8909 = vmatpush1.bf16.msra.mxu0 0
      %8910 = vmatprep.mubr.bf16.mxu0 0
      %8911 = vmatmul.mubr.bf16.gmra.mrb[0].mxu0 %v8876
      %v8912 = vpop.f32.mrb[0].mxu0
      %v8913 = vadd.f32 0.0, %v8912
      %v8914 = vpop.f32.mrb[0].mxu0
      %v8915 = vpop.f32.mrb[0].mxu0
      %v8916 = vadd.f32 0.0, %v8915
      %v8917 = vpop.f32.mrb[0].mxu0
      %8918 = vdwg.mxu0
      %v8920 = vsel %vm8050, %v8406, 0
      %8922 = vmatprep.subr.bf16.mxu0 0
      %8923 = vmatpush1.bf16.msra.mxu0 %v6629
      %8924 = vmatprep.subr.bf16.mxu0 0
      %8925 = vmatpush1.bf16.msra.mxu0 0
      %8926 = vmatprep.subr.bf16.mxu0 0
      %8927 = vmatpush1.bf16.msra.mxu0 0
      %8928 = vmatprep.subr.bf16.mxu0 0
      %8929 = vmatpush1.bf16.msra.mxu0 0
      %8930 = vmatprep.subr.bf16.mxu0 0
      %8931 = vmatpush1.bf16.msra.mxu0 0
      %8932 = vmatprep.subr.bf16.mxu0 0
      %8933 = vmatpush1.bf16.msra.mxu0 0
      %8934 = vmatprep.subr.bf16.mxu0 0
      %8935 = vmatpush1.bf16.msra.mxu0 0
      %8936 = vmatprep.subr.bf16.mxu0 0
      %8937 = vmatpush1.bf16.msra.mxu0 0
      %8938 = vmatprep.subr.bf16.mxu0 0
      %8939 = vmatpush1.bf16.msra.mxu0 0
      %8940 = vmatprep.subr.bf16.mxu0 0
      %8941 = vmatpush1.bf16.msra.mxu0 0
      %8942 = vmatprep.subr.bf16.mxu0 0
      %8943 = vmatpush1.bf16.msra.mxu0 0
      %8944 = vmatprep.subr.bf16.mxu0 0
      %8945 = vmatpush1.bf16.msra.mxu0 0
      %8946 = vmatprep.subr.bf16.mxu0 0
      %8947 = vmatpush1.bf16.msra.mxu0 0
      %8948 = vmatprep.subr.bf16.mxu0 0
      %8949 = vmatpush1.bf16.msra.mxu0 0
      %8950 = vmatprep.subr.bf16.mxu0 0
      %8951 = vmatpush1.bf16.msra.mxu0 0
      %8952 = vmatprep.subr.bf16.mxu0 0
      %8953 = vmatpush1.bf16.msra.mxu0 0
      %8954 = vmatprep.mubr.bf16.mxu0 0
      %8955 = vmatmul.mubr.bf16.gmra.mrb[0].mxu0 %v8920
      %v8956 = vpop.f32.mrb[0].mxu0
      %v8957 = vadd.f32 0.0, %v8956
      %v8958 = vpop.f32.mrb[0].mxu0
      %v8959 = vpop.f32.mrb[0].mxu0
      %v8960 = vadd.f32 0.0, %v8959
      %v8961 = vpop.f32.mrb[0].mxu0
      %8962 = vdwg.mxu0
      %v8964 = vsel %vm8050, %v8407, 0
      %8966 = vmatprep.subr.bf16.mxu0 0
      %8967 = vmatpush1.bf16.msra.mxu0 %v6630
      %8968 = vmatprep.subr.bf16.mxu0 0
      %8969 = vmatpush1.bf16.msra.mxu0 0
      %8970 = vmatprep.subr.bf16.mxu0 0
      %8971 = vmatpush1.bf16.msra.mxu0 0
      %8972 = vmatprep.subr.bf16.mxu0 0
      %8973 = vmatpush1.bf16.msra.mxu0 0
      %8974 = vmatprep.subr.bf16.mxu0 0
      %8975 = vmatpush1.bf16.msra.mxu0 0
      %8976 = vmatprep.subr.bf16.mxu0 0
      %8977 = vmatpush1.bf16.msra.mxu0 0
      %8978 = vmatprep.subr.bf16.mxu0 0
      %8979 = vmatpush1.bf16.msra.mxu0 0
      %8980 = vmatprep.subr.bf16.mxu0 0
      %8981 = vmatpush1.bf16.msra.mxu0 0
      %8982 = vmatprep.subr.bf16.mxu0 0
      %8983 = vmatpush1.bf16.msra.mxu0 0
      %8984 = vmatprep.subr.bf16.mxu0 0
      %8985 = vmatpush1.bf16.msra.mxu0 0
      %8986 = vmatprep.subr.bf16.mxu0 0
      %8987 = vmatpush1.bf16.msra.mxu0 0
      %8988 = vmatprep.subr.bf16.mxu0 0
      %8989 = vmatpush1.bf16.msra.mxu0 0
      %8990 = vmatprep.subr.bf16.mxu0 0
      %8991 = vmatpush1.bf16.msra.mxu0 0
      %8992 = vmatprep.subr.bf16.mxu0 0
      %8993 = vmatpush1.bf16.msra.mxu0 0
      %8994 = vmatprep.subr.bf16.mxu0 0
      %8995 = vmatpush1.bf16.msra.mxu0 0
      %8996 = vmatprep.subr.bf16.mxu0 0
      %8997 = vmatpush1.bf16.msra.mxu0 0
      %8998 = vmatprep.mubr.bf16.mxu0 0
      %8999 = vmatmul.mubr.bf16.gmra.mrb[0].mxu0 %v8964
      %v9000 = vpop.f32.mrb[0].mxu0
      %v9001 = vadd.f32 0.0, %v9000
      %v9002 = vpop.f32.mrb[0].mxu0
      %v9003 = vpop.f32.mrb[0].mxu0
      %v9004 = vadd.f32 0.0, %v9003
      %v9005 = vpop.f32.mrb[0].mxu0
      %9006 = vdwg.mxu0
      %v9008 = vsel %vm8050, %v8408, 0
      %9010 = vmatprep.subr.bf16.mxu0 0
      %9011 = vmatpush1.bf16.msra.mxu0 %v6631
      %9012 = vmatprep.subr.bf16.mxu0 0
      %9013 = vmatpush1.bf16.msra.mxu0 0
      %9014 = vmatprep.subr.bf16.mxu0 0
      %9015 = vmatpush1.bf16.msra.mxu0 0
      %9016 = vmatprep.subr.bf16.mxu0 0
      %9017 = vmatpush1.bf16.msra.mxu0 0
      %9018 = vmatprep.subr.bf16.mxu0 0
      %9019 = vmatpush1.bf16.msra.mxu0 0
      %9020 = vmatprep.subr.bf16.mxu0 0
      %9021 = vmatpush1.bf16.msra.mxu0 0
      %9022 = vmatprep.subr.bf16.mxu0 0
      %9023 = vmatpush1.bf16.msra.mxu0 0
      %9024 = vmatprep.subr.bf16.mxu0 0
      %9025 = vmatpush1.bf16.msra.mxu0 0
      %9026 = vmatprep.subr.bf16.mxu0 0
      %9027 = vmatpush1.bf16.msra.mxu0 0
      %9028 = vmatprep.subr.bf16.mxu0 0
      %9029 = vmatpush1.bf16.msra.mxu0 0
      %9030 = vmatprep.subr.bf16.mxu0 0
      %9031 = vmatpush1.bf16.msra.mxu0 0
      %9032 = vmatprep.subr.bf16.mxu0 0
      %9033 = vmatpush1.bf16.msra.mxu0 0
      %9034 = vmatprep.subr.bf16.mxu0 0
      %9035 = vmatpush1.bf16.msra.mxu0 0
      %9036 = vmatprep.subr.bf16.mxu0 0
      %9037 = vmatpush1.bf16.msra.mxu0 0
      %9038 = vmatprep.subr.bf16.mxu0 0
      %9039 = vmatpush1.bf16.msra.mxu0 0
      %9040 = vmatprep.subr.bf16.mxu0 0
      %9041 = vmatpush1.bf16.msra.mxu0 0
      %9042 = vmatprep.mubr.bf16.mxu0 0
      %9043 = vmatmul.mubr.bf16.gmra.mrb[0].mxu0 %v9008
      %v9044 = vpop.f32.mrb[0].mxu0
      %v9045 = vadd.f32 0.0, %v9044
      %v9046 = vpop.f32.mrb[0].mxu0
      %v9047 = vpop.f32.mrb[0].mxu0
      %v9048 = vadd.f32 0.0, %v9047
      %v9049 = vpop.f32.mrb[0].mxu0
      %9050 = vdwg.mxu0
      %v9052 = vsel %vm8050, %v8409, 0
      %9054 = vmatprep.subr.bf16.mxu0 0
      %9055 = vmatpush1.bf16.msra.mxu0 %v6632
      %9056 = vmatprep.subr.bf16.mxu0 0
      %9057 = vmatpush1.bf16.msra.mxu0 0
      %9058 = vmatprep.subr.bf16.mxu0 0
      %9059 = vmatpush1.bf16.msra.mxu0 0
      %9060 = vmatprep.subr.bf16.mxu0 0
      %9061 = vmatpush1.bf16.msra.mxu0 0
      %9062 = vmatprep.subr.bf16.mxu0 0
      %9063 = vmatpush1.bf16.msra.mxu0 0
      %9064 = vmatprep.subr.bf16.mxu0 0
      %9065 = vmatpush1.bf16.msra.mxu0 0
      %9066 = vmatprep.subr.bf16.mxu0 0
      %9067 = vmatpush1.bf16.msra.mxu0 0
      %9068 = vmatprep.subr.bf16.mxu0 0
      %9069 = vmatpush1.bf16.msra.mxu0 0
      %9070 = vmatprep.subr.bf16.mxu0 0
      %9071 = vmatpush1.bf16.msra.mxu0 0
      %9072 = vmatprep.subr.bf16.mxu0 0
      %9073 = vmatpush1.bf16.msra.mxu0 0
      %9074 = vmatprep.subr.bf16.mxu0 0
      %9075 = vmatpush1.bf16.msra.mxu0 0
      %9076 = vmatprep.subr.bf16.mxu0 0
      %9077 = vmatpush1.bf16.msra.mxu0 0
      %9078 = vmatprep.subr.bf16.mxu0 0
      %9079 = vmatpush1.bf16.msra.mxu0 0
      %9080 = vmatprep.subr.bf16.mxu0 0
      %9081 = vmatpush1.bf16.msra.mxu0 0
      %9082 = vmatprep.subr.bf16.mxu0 0
      %9083 = vmatpush1.bf16.msra.mxu0 0
      %9084 = vmatprep.subr.bf16.mxu0 0
      %9085 = vmatpush1.bf16.msra.mxu0 0
      %9086 = vmatprep.mubr.bf16.mxu0 0
      %9087 = vmatmul.mubr.bf16.gmra.mrb[0].mxu0 %v9052
      %v9088 = vpop.f32.mrb[0].mxu0
      %v9089 = vadd.f32 0.0, %v9088
      %v9090 = vpop.f32.mrb[0].mxu0
      %v9091 = vpop.f32.mrb[0].mxu0
      %v9092 = vadd.f32 0.0, %v9091
      %v9093 = vpop.f32.mrb[0].mxu0
      %9094 = vdwg.mxu0
      %v9096 = vsel %vm8050, %v8410, 0
      %9098 = vmatprep.subr.bf16.mxu0 0
      %9099 = vmatpush1.bf16.msra.mxu0 %v6633
      %9100 = vmatprep.subr.bf16.mxu0 0
      %9101 = vmatpush1.bf16.msra.mxu0 0
      %9102 = vmatprep.subr.bf16.mxu0 0
      %9103 = vmatpush1.bf16.msra.mxu0 0
      %9104 = vmatprep.subr.bf16.mxu0 0
      %9105 = vmatpush1.bf16.msra.mxu0 0
      %9106 = vmatprep.subr.bf16.mxu0 0
      %9107 = vmatpush1.bf16.msra.mxu0 0
      %9108 = vmatprep.subr.bf16.mxu0 0
      %9109 = vmatpush1.bf16.msra.mxu0 0
      %9110 = vmatprep.subr.bf16.mxu0 0
      %9111 = vmatpush1.bf16.msra.mxu0 0
      %9112 = vmatprep.subr.bf16.mxu0 0
      %9113 = vmatpush1.bf16.msra.mxu0 0
      %9114 = vmatprep.subr.bf16.mxu0 0
      %9115 = vmatpush1.bf16.msra.mxu0 0
      %9116 = vmatprep.subr.bf16.mxu0 0
      %9117 = vmatpush1.bf16.msra.mxu0 0
      %9118 = vmatprep.subr.bf16.mxu0 0
      %9119 = vmatpush1.bf16.msra.mxu0 0
      %9120 = vmatprep.subr.bf16.mxu0 0
      %9121 = vmatpush1.bf16.msra.mxu0 0
      %9122 = vmatprep.subr.bf16.mxu0 0
      %9123 = vmatpush1.bf16.msra.mxu0 0
      %9124 = vmatprep.subr.bf16.mxu0 0
      %9125 = vmatpush1.bf16.msra.mxu0 0
      %9126 = vmatprep.subr.bf16.mxu0 0
      %9127 = vmatpush1.bf16.msra.mxu0 0
      %9128 = vmatprep.subr.bf16.mxu0 0
      %9129 = vmatpush1.bf16.msra.mxu0 0
      %9130 = vmatprep.mubr.bf16.mxu0 0
      %9131 = vmatmul.mubr.bf16.gmra.mrb[0].mxu0 %v9096
      %v9132 = vpop.f32.mrb[0].mxu0
      %v9133 = vadd.f32 0.0, %v9132
      %v9134 = vpop.f32.mrb[0].mxu0
      %v9135 = vpop.f32.mrb[0].mxu0
      %v9136 = vadd.f32 0.0, %v9135
      %v9137 = vpop.f32.mrb[0].mxu0
      %9138 = vdwg.mxu0
      %v9140 = vsel %vm8050, %v8411, 0
      %9142 = vmatprep.subr.bf16.mxu0 0
      %9143 = vmatpush1.bf16.msra.mxu0 %v6634
      %9144 = vmatprep.subr.bf16.mxu0 0
      %9145 = vmatpush1.bf16.msra.mxu0 0
      %9146 = vmatprep.subr.bf16.mxu0 0
      %9147 = vmatpush1.bf16.msra.mxu0 0
      %9148 = vmatprep.subr.bf16.mxu0 0
      %9149 = vmatpush1.bf16.msra.mxu0 0
      %9150 = vmatprep.subr.bf16.mxu0 0
      %9151 = vmatpush1.bf16.msra.mxu0 0
      %9152 = vmatprep.subr.bf16.mxu0 0
      %9153 = vmatpush1.bf16.msra.mxu0 0
      %9154 = vmatprep.subr.bf16.mxu0 0
      %9155 = vmatpush1.bf16.msra.mxu0 0
      %9156 = vmatprep.subr.bf16.mxu0 0
      %9157 = vmatpush1.bf16.msra.mxu0 0
      %9158 = vmatprep.subr.bf16.mxu0 0
      %9159 = vmatpush1.bf16.msra.mxu0 0
      %9160 = vmatprep.subr.bf16.mxu0 0
      %9161 = vmatpush1.bf16.msra.mxu0 0
      %9162 = vmatprep.subr.bf16.mxu0 0
      %9163 = vmatpush1.bf16.msra.mxu0 0
      %9164 = vmatprep.subr.bf16.mxu0 0
      %9165 = vmatpush1.bf16.msra.mxu0 0
      %9166 = vmatprep.subr.bf16.mxu0 0
      %9167 = vmatpush1.bf16.msra.mxu0 0
      %9168 = vmatprep.subr.bf16.mxu0 0
      %9169 = vmatpush1.bf16.msra.mxu0 0
      %9170 = vmatprep.subr.bf16.mxu0 0
      %9171 = vmatpush1.bf16.msra.mxu0 0
      %9172 = vmatprep.subr.bf16.mxu0 0
      %9173 = vmatpush1.bf16.msra.mxu0 0
      %9174 = vmatprep.mubr.bf16.mxu0 0
      %9175 = vmatmul.mubr.bf16.gmra.mrb[0].mxu0 %v9140
      %v9176 = vpop.f32.mrb[0].mxu0
      %v9177 = vadd.f32 0.0, %v9176
      %v9178 = vpop.f32.mrb[0].mxu0
      %v9179 = vpop.f32.mrb[0].mxu0
      %v9180 = vadd.f32 0.0, %v9179
      %v9181 = vpop.f32.mrb[0].mxu0
      %9182 = vdwg.mxu0
      %v9184 = vsel %vm8050, %v8412, 0
      %9186 = vmatprep.subr.bf16.mxu0 0
      %9187 = vmatpush1.bf16.msra.mxu0 %v6635
      %9188 = vmatprep.subr.bf16.mxu0 0
      %9189 = vmatpush1.bf16.msra.mxu0 0
      %9190 = vmatprep.subr.bf16.mxu0 0
      %9191 = vmatpush1.bf16.msra.mxu0 0
      %9192 = vmatprep.subr.bf16.mxu0 0
      %9193 = vmatpush1.bf16.msra.mxu0 0
      %9194 = vmatprep.subr.bf16.mxu0 0
      %9195 = vmatpush1.bf16.msra.mxu0 0
      %9196 = vmatprep.subr.bf16.mxu0 0
      %9197 = vmatpush1.bf16.msra.mxu0 0
      %9198 = vmatprep.subr.bf16.mxu0 0
      %9199 = vmatpush1.bf16.msra.mxu0 0
      %9200 = vmatprep.subr.bf16.mxu0 0
      %9201 = vmatpush1.bf16.msra.mxu0 0
      %9202 = vmatprep.subr.bf16.mxu0 0
      %9203 = vmatpush1.bf16.msra.mxu0 0
      %9204 = vmatprep.subr.bf16.mxu0 0
      %9205 = vmatpush1.bf16.msra.mxu0 0
      %9206 = vmatprep.subr.bf16.mxu0 0
      %9207 = vmatpush1.bf16.msra.mxu0 0
      %9208 = vmatprep.subr.bf16.mxu0 0
      %9209 = vmatpush1.bf16.msra.mxu0 0
      %9210 = vmatprep.subr.bf16.mxu0 0
      %9211 = vmatpush1.bf16.msra.mxu0 0
      %9212 = vmatprep.subr.bf16.mxu0 0
      %9213 = vmatpush1.bf16.msra.mxu0 0
      %9214 = vmatprep.subr.bf16.mxu0 0
      %9215 = vmatpush1.bf16.msra.mxu0 0
      %9216 = vmatprep.subr.bf16.mxu0 0
      %9217 = vmatpush1.bf16.msra.mxu0 0
      %9218 = vmatprep.mubr.bf16.mxu0 0
      %9219 = vmatmul.mubr.bf16.gmra.mrb[0].mxu0 %v9184
      %v9220 = vpop.f32.mrb[0].mxu0
      %v9221 = vadd.f32 0.0, %v9220
      %v9222 = vpop.f32.mrb[0].mxu0
      %v9223 = vpop.f32.mrb[0].mxu0
      %v9224 = vadd.f32 0.0, %v9223
      %v9225 = vpop.f32.mrb[0].mxu0
      %9226 = vdwg.mxu0
      %v9228 = vsel %vm8050, %v8413, 0
      %9230 = vmatprep.subr.bf16.mxu0 0
      %9231 = vmatpush1.bf16.msra.mxu0 %v6636
      %9232 = vmatprep.subr.bf16.mxu0 0
      %9233 = vmatpush1.bf16.msra.mxu0 0
      %9234 = vmatprep.subr.bf16.mxu0 0
      %9235 = vmatpush1.bf16.msra.mxu0 0
      %9236 = vmatprep.subr.bf16.mxu0 0
      %9237 = vmatpush1.bf16.msra.mxu0 0
      %9238 = vmatprep.subr.bf16.mxu0 0
      %9239 = vmatpush1.bf16.msra.mxu0 0
      %9240 = vmatprep.subr.bf16.mxu0 0
      %9241 = vmatpush1.bf16.msra.mxu0 0
      %9242 = vmatprep.subr.bf16.mxu0 0
      %9243 = vmatpush1.bf16.msra.mxu0 0
      %9244 = vmatprep.subr.bf16.mxu0 0
      %9245 = vmatpush1.bf16.msra.mxu0 0
      %9246 = vmatprep.subr.bf16.mxu0 0
      %9247 = vmatpush1.bf16.msra.mxu0 0
      %9248 = vmatprep.subr.bf16.mxu0 0
      %9249 = vmatpush1.bf16.msra.mxu0 0
      %9250 = vmatprep.subr.bf16.mxu0 0
      %9251 = vmatpush1.bf16.msra.mxu0 0
      %9252 = vmatprep.subr.bf16.mxu0 0
      %9253 = vmatpush1.bf16.msra.mxu0 0
      %9254 = vmatprep.subr.bf16.mxu0 0
      %9255 = vmatpush1.bf16.msra.mxu0 0
      %9256 = vmatprep.subr.bf16.mxu0 0
      %9257 = vmatpush1.bf16.msra.mxu0 0
      %9258 = vmatprep.subr.bf16.mxu0 0
      %9259 = vmatpush1.bf16.msra.mxu0 0
      %9260 = vmatprep.subr.bf16.mxu0 0
      %9261 = vmatpush1.bf16.msra.mxu0 0
      %9262 = vmatprep.mubr.bf16.mxu0 0
      %9263 = vmatmul.mubr.bf16.gmra.mrb[0].mxu0 %v9228
      %v9264 = vpop.f32.mrb[0].mxu0
      %v9265 = vadd.f32 0.0, %v9264
      %v9266 = vpop.f32.mrb[0].mxu0
      %v9267 = vpop.f32.mrb[0].mxu0
      %v9268 = vadd.f32 0.0, %v9267
      %v9269 = vpop.f32.mrb[0].mxu0
      %9270 = vdwg.mxu0
      %v9272 = vsel %vm8050, %v8414, 0
      %9274 = vmatprep.subr.bf16.mxu0 0
      %9275 = vmatpush1.bf16.msra.mxu0 %v6637
      %9276 = vmatprep.subr.bf16.mxu0 0
      %9277 = vmatpush1.bf16.msra.mxu0 0
      %9278 = vmatprep.subr.bf16.mxu0 0
      %9279 = vmatpush1.bf16.msra.mxu0 0
      %9280 = vmatprep.subr.bf16.mxu0 0
      %9281 = vmatpush1.bf16.msra.mxu0 0
      %9282 = vmatprep.subr.bf16.mxu0 0
      %9283 = vmatpush1.bf16.msra.mxu0 0
      %9284 = vmatprep.subr.bf16.mxu0 0
      %9285 = vmatpush1.bf16.msra.mxu0 0
      %9286 = vmatprep.subr.bf16.mxu0 0
      %9287 = vmatpush1.bf16.msra.mxu0 0
      %9288 = vmatprep.subr.bf16.mxu0 0
      %9289 = vmatpush1.bf16.msra.mxu0 0
      %9290 = vmatprep.subr.bf16.mxu0 0
      %9291 = vmatpush1.bf16.msra.mxu0 0
      %9292 = vmatprep.subr.bf16.mxu0 0
      %9293 = vmatpush1.bf16.msra.mxu0 0
      %9294 = vmatprep.subr.bf16.mxu0 0
      %9295 = vmatpush1.bf16.msra.mxu0 0
      %9296 = vmatprep.subr.bf16.mxu0 0
      %9297 = vmatpush1.bf16.msra.mxu0 0
      %9298 = vmatprep.subr.bf16.mxu0 0
      %9299 = vmatpush1.bf16.msra.mxu0 0
      %9300 = vmatprep.subr.bf16.mxu0 0
      %9301 = vmatpush1.bf16.msra.mxu0 0
      %9302 = vmatprep.subr.bf16.mxu0 0
      %9303 = vmatpush1.bf16.msra.mxu0 0
      %9304 = vmatprep.subr.bf16.mxu0 0
      %9305 = vmatpush1.bf16.msra.mxu0 0
      %9306 = vmatprep.mubr.bf16.mxu0 0
      %9307 = vmatmul.mubr.bf16.gmra.mrb[0].mxu0 %v9272
      %v9308 = vpop.f32.mrb[0].mxu0
      %v9309 = vadd.f32 0.0, %v9308
      %v9310 = vpop.f32.mrb[0].mxu0
      %v9311 = vpop.f32.mrb[0].mxu0
      %v9312 = vadd.f32 0.0, %v9311
      %v9313 = vpop.f32.mrb[0].mxu0
      %9314 = vdwg.mxu0
      %v9316 = vsel %vm8050, %v8415, 0
      %9318 = vmatprep.subr.bf16.mxu0 0
      %9319 = vmatpush1.bf16.msra.mxu0 %v6638
      %9320 = vmatprep.subr.bf16.mxu0 0
      %9321 = vmatpush1.bf16.msra.mxu0 0
      %9322 = vmatprep.subr.bf16.mxu0 0
      %9323 = vmatpush1.bf16.msra.mxu0 0
      %9324 = vmatprep.subr.bf16.mxu0 0
      %9325 = vmatpush1.bf16.msra.mxu0 0
      %9326 = vmatprep.subr.bf16.mxu0 0
      %9327 = vmatpush1.bf16.msra.mxu0 0
      %9328 = vmatprep.subr.bf16.mxu0 0
      %9329 = vmatpush1.bf16.msra.mxu0 0
      %9330 = vmatprep.subr.bf16.mxu0 0
      %9331 = vmatpush1.bf16.msra.mxu0 0
      %9332 = vmatprep.subr.bf16.mxu0 0
      %9333 = vmatpush1.bf16.msra.mxu0 0
      %9334 = vmatprep.subr.bf16.mxu0 0
      %9335 = vmatpush1.bf16.msra.mxu0 0
      %9336 = vmatprep.subr.bf16.mxu0 0
      %9337 = vmatpush1.bf16.msra.mxu0 0
      %9338 = vmatprep.subr.bf16.mxu0 0
      %9339 = vmatpush1.bf16.msra.mxu0 0
      %9340 = vmatprep.subr.bf16.mxu0 0
      %9341 = vmatpush1.bf16.msra.mxu0 0
      %9342 = vmatprep.subr.bf16.mxu0 0
      %9343 = vmatpush1.bf16.msra.mxu0 0
      %9344 = vmatprep.subr.bf16.mxu0 0
      %9345 = vmatpush1.bf16.msra.mxu0 0
      %9346 = vmatprep.subr.bf16.mxu0 0
      %9347 = vmatpush1.bf16.msra.mxu0 0
      %9348 = vmatprep.subr.bf16.mxu0 0
      %9349 = vmatpush1.bf16.msra.mxu0 0
      %9350 = vmatprep.mubr.bf16.mxu0 0
      %9351 = vmatmul.mubr.bf16.gmra.mrb[0].mxu0 %v9316
      %v9352 = vpop.f32.mrb[0].mxu0
      %v9353 = vadd.f32 0.0, %v9352
      %v9354 = vpop.f32.mrb[0].mxu0
      %v9355 = vpop.f32.mrb[0].mxu0
      %v9356 = vadd.f32 0.0, %v9355
      %v9357 = vpop.f32.mrb[0].mxu0
      %9358 = vdwg.mxu0
      %v9360 = vsel %vm8050, %v8416, 0
      %9362 = vmatprep.subr.bf16.mxu0 0
      %9363 = vmatpush1.bf16.msra.mxu0 %v6639
      %9364 = vmatprep.subr.bf16.mxu0 0
      %9365 = vmatpush1.bf16.msra.mxu0 0
      %9366 = vmatprep.subr.bf16.mxu0 0
      %9367 = vmatpush1.bf16.msra.mxu0 0
      %9368 = vmatprep.subr.bf16.mxu0 0
      %9369 = vmatpush1.bf16.msra.mxu0 0
      %9370 = vmatprep.subr.bf16.mxu0 0
      %9371 = vmatpush1.bf16.msra.mxu0 0
      %9372 = vmatprep.subr.bf16.mxu0 0
      %9373 = vmatpush1.bf16.msra.mxu0 0
      %9374 = vmatprep.subr.bf16.mxu0 0
      %9375 = vmatpush1.bf16.msra.mxu0 0
      %9376 = vmatprep.subr.bf16.mxu0 0
      %9377 = vmatpush1.bf16.msra.mxu0 0
      %9378 = vmatprep.subr.bf16.mxu0 0
      %9379 = vmatpush1.bf16.msra.mxu0 0
      %9380 = vmatprep.subr.bf16.mxu0 0
      %9381 = vmatpush1.bf16.msra.mxu0 0
      %9382 = vmatprep.subr.bf16.mxu0 0
      %9383 = vmatpush1.bf16.msra.mxu0 0
      %9384 = vmatprep.subr.bf16.mxu0 0
      %9385 = vmatpush1.bf16.msra.mxu0 0
      %9386 = vmatprep.subr.bf16.mxu0 0
      %9387 = vmatpush1.bf16.msra.mxu0 0
      %9388 = vmatprep.subr.bf16.mxu0 0
      %9389 = vmatpush1.bf16.msra.mxu0 0
      %9390 = vmatprep.subr.bf16.mxu0 0
      %9391 = vmatpush1.bf16.msra.mxu0 0
      %9392 = vmatprep.subr.bf16.mxu0 0
      %9393 = vmatpush1.bf16.msra.mxu0 0
      %9394 = vmatprep.mubr.bf16.mxu0 0
      %9395 = vmatmul.mubr.bf16.gmra.mrb[0].mxu0 %v9360
      %v9396 = vpop.f32.mrb[0].mxu0
      %v9397 = vadd.f32 0.0, %v9396
      %v9398 = vpop.f32.mrb[0].mxu0
      %v9399 = vpop.f32.mrb[0].mxu0
      %v9400 = vadd.f32 0.0, %v9399
      %v9401 = vpop.f32.mrb[0].mxu0
      %9402 = vdwg.mxu0
      %v9404 = vsel %vm8050, %v8417, 0
      %9406 = vmatprep.subr.bf16.mxu0 0
      %9407 = vmatpush1.bf16.msra.mxu0 %v6640
      %9408 = vmatprep.subr.bf16.mxu0 0
      %9409 = vmatpush1.bf16.msra.mxu0 0
      %9410 = vmatprep.subr.bf16.mxu0 0
      %9411 = vmatpush1.bf16.msra.mxu0 0
      %9412 = vmatprep.subr.bf16.mxu0 0
      %9413 = vmatpush1.bf16.msra.mxu0 0
      %9414 = vmatprep.subr.bf16.mxu0 0
      %9415 = vmatpush1.bf16.msra.mxu0 0
      %9416 = vmatprep.subr.bf16.mxu0 0
      %9417 = vmatpush1.bf16.msra.mxu0 0
      %9418 = vmatprep.subr.bf16.mxu0 0
      %9419 = vmatpush1.bf16.msra.mxu0 0
      %9420 = vmatprep.subr.bf16.mxu0 0
      %9421 = vmatpush1.bf16.msra.mxu0 0
      %9422 = vmatprep.subr.bf16.mxu0 0
      %9423 = vmatpush1.bf16.msra.mxu0 0
      %9424 = vmatprep.subr.bf16.mxu0 0
      %9425 = vmatpush1.bf16.msra.mxu0 0
      %9426 = vmatprep.subr.bf16.mxu0 0
      %9427 = vmatpush1.bf16.msra.mxu0 0
      %9428 = vmatprep.subr.bf16.mxu0 0
      %9429 = vmatpush1.bf16.msra.mxu0 0
      %9430 = vmatprep.subr.bf16.mxu0 0
      %9431 = vmatpush1.bf16.msra.mxu0 0
      %9432 = vmatprep.subr.bf16.mxu0 0
      %9433 = vmatpush1.bf16.msra.mxu0 0
      %9434 = vmatprep.subr.bf16.mxu0 0
      %9435 = vmatpush1.bf16.msra.mxu0 0
      %9436 = vmatprep.subr.bf16.mxu0 0
      %9437 = vmatpush1.bf16.msra.mxu0 0
      %9438 = vmatprep.mubr.bf16.mxu0 0
      %9439 = vmatmul.mubr.bf16.gmra.mrb[0].mxu0 %v9404
      %v9440 = vpop.f32.mrb[0].mxu0
      %v9441 = vadd.f32 0.0, %v9440
      %v9442 = vpop.f32.mrb[0].mxu0
      %v9443 = vpop.f32.mrb[0].mxu0
      %v9444 = vadd.f32 0.0, %v9443
      %v9445 = vpop.f32.mrb[0].mxu0
      %9446 = vdwg.mxu0
      %v9448 = vsel %vm8050, %v8418, 0
      %9450 = vmatprep.subr.bf16.mxu0 0
      %9451 = vmatpush1.bf16.msra.mxu0 %v6641
      %9452 = vmatprep.subr.bf16.mxu0 0
      %9453 = vmatpush1.bf16.msra.mxu0 0
      %9454 = vmatprep.subr.bf16.mxu0 0
      %9455 = vmatpush1.bf16.msra.mxu0 0
      %9456 = vmatprep.subr.bf16.mxu0 0
      %9457 = vmatpush1.bf16.msra.mxu0 0
      %9458 = vmatprep.subr.bf16.mxu0 0
      %9459 = vmatpush1.bf16.msra.mxu0 0
      %9460 = vmatprep.subr.bf16.mxu0 0
      %9461 = vmatpush1.bf16.msra.mxu0 0
      %9462 = vmatprep.subr.bf16.mxu0 0
      %9463 = vmatpush1.bf16.msra.mxu0 0
      %9464 = vmatprep.subr.bf16.mxu0 0
      %9465 = vmatpush1.bf16.msra.mxu0 0
      %9466 = vmatprep.subr.bf16.mxu0 0
      %9467 = vmatpush1.bf16.msra.mxu0 0
      %9468 = vmatprep.subr.bf16.mxu0 0
      %9469 = vmatpush1.bf16.msra.mxu0 0
      %9470 = vmatprep.subr.bf16.mxu0 0
      %9471 = vmatpush1.bf16.msra.mxu0 0
      %9472 = vmatprep.subr.bf16.mxu0 0
      %9473 = vmatpush1.bf16.msra.mxu0 0
      %9474 = vmatprep.subr.bf16.mxu0 0
      %9475 = vmatpush1.bf16.msra.mxu0 0
      %9476 = vmatprep.subr.bf16.mxu0 0
      %9477 = vmatpush1.bf16.msra.mxu0 0
      %9478 = vmatprep.subr.bf16.mxu0 0
      %9479 = vmatpush1.bf16.msra.mxu0 0
      %9480 = vmatprep.subr.bf16.mxu0 0
      %9481 = vmatpush1.bf16.msra.mxu0 0
      %9482 = vmatprep.mubr.bf16.mxu0 0
      %9483 = vmatmul.mubr.bf16.gmra.mrb[0].mxu0 %v9448
      %v9484 = vpop.f32.mrb[0].mxu0
      %v9485 = vadd.f32 0.0, %v9484
      %v9486 = vpop.f32.mrb[0].mxu0
      %v9487 = vpop.f32.mrb[0].mxu0
      %v9488 = vadd.f32 0.0, %v9487
      %v9489 = vpop.f32.mrb[0].mxu0
      %9490 = vdwg.mxu0
      %v9492 = vsel %vm8050, %v8771, 0
      %9494 = vmatprep.subr.bf16.mxu0 0
      %9495 = vmatpush1.bf16.msra.mxu0 %v6610
      %9496 = vmatprep.subr.bf16.mxu0 0
      %9497 = vmatpush1.bf16.msra.mxu0 0
      %9498 = vmatprep.subr.bf16.mxu0 0
      %9499 = vmatpush1.bf16.msra.mxu0 0
      %9500 = vmatprep.subr.bf16.mxu0 0
      %9501 = vmatpush1.bf16.msra.mxu0 0
      %9502 = vmatprep.subr.bf16.mxu0 0
      %9503 = vmatpush1.bf16.msra.mxu0 0
      %9504 = vmatprep.subr.bf16.mxu0 0
      %9505 = vmatpush1.bf16.msra.mxu0 0
      %9506 = vmatprep.subr.bf16.mxu0 0
      %9507 = vmatpush1.bf16.msra.mxu0 0
      %9508 = vmatprep.subr.bf16.mxu0 0
      %9509 = vmatpush1.bf16.msra.mxu0 0
      %9510 = vmatprep.subr.bf16.mxu0 0
      %9511 = vmatpush1.bf16.msra.mxu0 0
      %9512 = vmatprep.subr.bf16.mxu0 0
      %9513 = vmatpush1.bf16.msra.mxu0 0
      %9514 = vmatprep.subr.bf16.mxu0 0
      %9515 = vmatpush1.bf16.msra.mxu0 0
      %9516 = vmatprep.subr.bf16.mxu0 0
      %9517 = vmatpush1.bf16.msra.mxu0 0
      %9518 = vmatprep.subr.bf16.mxu0 0
      %9519 = vmatpush1.bf16.msra.mxu0 0
      %9520 = vmatprep.subr.bf16.mxu0 0
      %9521 = vmatpush1.bf16.msra.mxu0 0
      %9522 = vmatprep.subr.bf16.mxu0 0
      %9523 = vmatpush1.bf16.msra.mxu0 0
      %9524 = vmatprep.subr.bf16.mxu0 0
      %9525 = vmatpush1.bf16.msra.mxu0 0
      %9526 = vmatprep.mubr.bf16.mxu0 0
      %9527 = vmatmul.mubr.bf16.gmra.mrb[0].mxu0 %v9492
      %v9528 = vpop.f32.mrb[0].mxu0
      %v9529 = vadd.f32 0.0, %v9528
      %v9530 = vpop.f32.mrb[0].mxu0
      %v9531 = vpop.f32.mrb[0].mxu0
      %v9532 = vadd.f32 0.0, %v9531
      %v9533 = vpop.f32.mrb[0].mxu0
      %9534 = vdwg.mxu0
      %v9536 = vsel %vm8050, %v8772, 0
      %9538 = vmatprep.subr.bf16.mxu0 0
      %9539 = vmatpush1.bf16.msra.mxu0 %v6611
      %9540 = vmatprep.subr.bf16.mxu0 0
      %9541 = vmatpush1.bf16.msra.mxu0 0
      %9542 = vmatprep.subr.bf16.mxu0 0
      %9543 = vmatpush1.bf16.msra.mxu0 0
      %9544 = vmatprep.subr.bf16.mxu0 0
      %9545 = vmatpush1.bf16.msra.mxu0 0
      %9546 = vmatprep.subr.bf16.mxu0 0
      %9547 = vmatpush1.bf16.msra.mxu0 0
      %9548 = vmatprep.subr.bf16.mxu0 0
      %9549 = vmatpush1.bf16.msra.mxu0 0
      %9550 = vmatprep.subr.bf16.mxu0 0
      %9551 = vmatpush1.bf16.msra.mxu0 0
      %9552 = vmatprep.subr.bf16.mxu0 0
      %9553 = vmatpush1.bf16.msra.mxu0 0
      %9554 = vmatprep.subr.bf16.mxu0 0
      %9555 = vmatpush1.bf16.msra.mxu0 0
      %9556 = vmatprep.subr.bf16.mxu0 0
      %9557 = vmatpush1.bf16.msra.mxu0 0
      %9558 = vmatprep.subr.bf16.mxu0 0
      %9559 = vmatpush1.bf16.msra.mxu0 0
      %9560 = vmatprep.subr.bf16.mxu0 0
      %9561 = vmatpush1.bf16.msra.mxu0 0
      %9562 = vmatprep.subr.bf16.mxu0 0
      %9563 = vmatpush1.bf16.msra.mxu0 0
      %9564 = vmatprep.subr.bf16.mxu0 0
      %9565 = vmatpush1.bf16.msra.mxu0 0
      %9566 = vmatprep.subr.bf16.mxu0 0
      %9567 = vmatpush1.bf16.msra.mxu0 0
      %9568 = vmatprep.subr.bf16.mxu0 0
      %9569 = vmatpush1.bf16.msra.mxu0 0
      %9570 = vmatprep.mubr.bf16.mxu0 0
      %9571 = vmatmul.mubr.bf16.gmra.mrb[0].mxu0 %v9536
      %v9572 = vpop.f32.mrb[0].mxu0
      %v9573 = vadd.f32 0.0, %v9572
      %v9574 = vpop.f32.mrb[0].mxu0
      %v9575 = vpop.f32.mrb[0].mxu0
      %v9576 = vadd.f32 0.0, %v9575
      %v9577 = vpop.f32.mrb[0].mxu0
      %9578 = vdwg.mxu0
      %v9580 = vsel %vm8050, %v8773, 0
      %9582 = vmatprep.subr.bf16.mxu0 0
      %9583 = vmatpush1.bf16.msra.mxu0 %v6612
      %9584 = vmatprep.subr.bf16.mxu0 0
      %9585 = vmatpush1.bf16.msra.mxu0 0
      %9586 = vmatprep.subr.bf16.mxu0 0
      %9587 = vmatpush1.bf16.msra.mxu0 0
      %9588 = vmatprep.subr.bf16.mxu0 0
      %9589 = vmatpush1.bf16.msra.mxu0 0
      %9590 = vmatprep.subr.bf16.mxu0 0
      %9591 = vmatpush1.bf16.msra.mxu0 0
      %9592 = vmatprep.subr.bf16.mxu0 0
      %9593 = vmatpush1.bf16.msra.mxu0 0
      %9594 = vmatprep.subr.bf16.mxu0 0
      %9595 = vmatpush1.bf16.msra.mxu0 0
      %9596 = vmatprep.subr.bf16.mxu0 0
      %9597 = vmatpush1.bf16.msra.mxu0 0
      %9598 = vmatprep.subr.bf16.mxu0 0
      %9599 = vmatpush1.bf16.msra.mxu0 0
      %9600 = vmatprep.subr.bf16.mxu0 0
      %9601 = vmatpush1.bf16.msra.mxu0 0
      %9602 = vmatprep.subr.bf16.mxu0 0
      %9603 = vmatpush1.bf16.msra.mxu0 0
      %9604 = vmatprep.subr.bf16.mxu0 0
      %9605 = vmatpush1.bf16.msra.mxu0 0
      %9606 = vmatprep.subr.bf16.mxu0 0
      %9607 = vmatpush1.bf16.msra.mxu0 0
      %9608 = vmatprep.subr.bf16.mxu0 0
      %9609 = vmatpush1.bf16.msra.mxu0 0
      %9610 = vmatprep.subr.bf16.mxu0 0
      %9611 = vmatpush1.bf16.msra.mxu0 0
      %9612 = vmatprep.subr.bf16.mxu0 0
      %9613 = vmatpush1.bf16.msra.mxu0 0
      %9614 = vmatprep.mubr.bf16.mxu0 0
      %9615 = vmatmul.mubr.bf16.gmra.mrb[0].mxu0 %v9580
      %v9616 = vpop.f32.mrb[0].mxu0
      %v9617 = vadd.f32 0.0, %v9616
      %v9618 = vpop.f32.mrb[0].mxu0
      %v9619 = vpop.f32.mrb[0].mxu0
      %v9620 = vadd.f32 0.0, %v9619
      %v9621 = vpop.f32.mrb[0].mxu0
      %9622 = vdwg.mxu0
      %v9624 = vsel %vm8050, %v8774, 0
      %9626 = vmatprep.subr.bf16.mxu0 0
      %9627 = vmatpush1.bf16.msra.mxu0 %v6613
      %9628 = vmatprep.subr.bf16.mxu0 0
      %9629 = vmatpush1.bf16.msra.mxu0 0
      %9630 = vmatprep.subr.bf16.mxu0 0
      %9631 = vmatpush1.bf16.msra.mxu0 0
      %9632 = vmatprep.subr.bf16.mxu0 0
      %9633 = vmatpush1.bf16.msra.mxu0 0
      %9634 = vmatprep.subr.bf16.mxu0 0
      %9635 = vmatpush1.bf16.msra.mxu0 0
      %9636 = vmatprep.subr.bf16.mxu0 0
      %9637 = vmatpush1.bf16.msra.mxu0 0
      %9638 = vmatprep.subr.bf16.mxu0 0
      %9639 = vmatpush1.bf16.msra.mxu0 0
      %9640 = vmatprep.subr.bf16.mxu0 0
      %9641 = vmatpush1.bf16.msra.mxu0 0
      %9642 = vmatprep.subr.bf16.mxu0 0
      %9643 = vmatpush1.bf16.msra.mxu0 0
      %9644 = vmatprep.subr.bf16.mxu0 0
      %9645 = vmatpush1.bf16.msra.mxu0 0
      %9646 = vmatprep.subr.bf16.mxu0 0
      %9647 = vmatpush1.bf16.msra.mxu0 0
      %9648 = vmatprep.subr.bf16.mxu0 0
      %9649 = vmatpush1.bf16.msra.mxu0 0
      %9650 = vmatprep.subr.bf16.mxu0 0
      %9651 = vmatpush1.bf16.msra.mxu0 0
      %9652 = vmatprep.subr.bf16.mxu0 0
      %9653 = vmatpush1.bf16.msra.mxu0 0
      %9654 = vmatprep.subr.bf16.mxu0 0
      %9655 = vmatpush1.bf16.msra.mxu0 0
      %9656 = vmatprep.subr.bf16.mxu0 0
      %9657 = vmatpush1.bf16.msra.mxu0 0
      %9658 = vmatprep.mubr.bf16.mxu0 0
      %9659 = vmatmul.mubr.bf16.gmra.mrb[0].mxu0 %v9624
      %v9660 = vpop.f32.mrb[0].mxu0
      %v9661 = vadd.f32 0.0, %v9660
      %v9662 = vpop.f32.mrb[0].mxu0
      %v9663 = vpop.f32.mrb[0].mxu0
      %v9664 = vadd.f32 0.0, %v9663
      %v9665 = vpop.f32.mrb[0].mxu0
      %9666 = vdwg.mxu0
      %v9668 = vsel %vm8050, %v8775, 0
      %9670 = vmatprep.subr.bf16.mxu0 0
      %9671 = vmatpush1.bf16.msra.mxu0 %v6614
      %9672 = vmatprep.subr.bf16.mxu0 0
      %9673 = vmatpush1.bf16.msra.mxu0 0
      %9674 = vmatprep.subr.bf16.mxu0 0
      %9675 = vmatpush1.bf16.msra.mxu0 0
      %9676 = vmatprep.subr.bf16.mxu0 0
      %9677 = vmatpush1.bf16.msra.mxu0 0
      %9678 = vmatprep.subr.bf16.mxu0 0
      %9679 = vmatpush1.bf16.msra.mxu0 0
      %9680 = vmatprep.subr.bf16.mxu0 0
      %9681 = vmatpush1.bf16.msra.mxu0 0
      %9682 = vmatprep.subr.bf16.mxu0 0
      %9683 = vmatpush1.bf16.msra.mxu0 0
      %9684 = vmatprep.subr.bf16.mxu0 0
      %9685 = vmatpush1.bf16.msra.mxu0 0
      %9686 = vmatprep.subr.bf16.mxu0 0
      %9687 = vmatpush1.bf16.msra.mxu0 0
      %9688 = vmatprep.subr.bf16.mxu0 0
      %9689 = vmatpush1.bf16.msra.mxu0 0
      %9690 = vmatprep.subr.bf16.mxu0 0
      %9691 = vmatpush1.bf16.msra.mxu0 0
      %9692 = vmatprep.subr.bf16.mxu0 0
      %9693 = vmatpush1.bf16.msra.mxu0 0
      %9694 = vmatprep.subr.bf16.mxu0 0
      %9695 = vmatpush1.bf16.msra.mxu0 0
      %9696 = vmatprep.subr.bf16.mxu0 0
      %9697 = vmatpush1.bf16.msra.mxu0 0
      %9698 = vmatprep.subr.bf16.mxu0 0
      %9699 = vmatpush1.bf16.msra.mxu0 0
      %9700 = vmatprep.subr.bf16.mxu0 0
      %9701 = vmatpush1.bf16.msra.mxu0 0
      %9702 = vmatprep.mubr.bf16.mxu0 0
      %9703 = vmatmul.mubr.bf16.gmra.mrb[0].mxu0 %v9668
      %v9704 = vpop.f32.mrb[0].mxu0
      %v9705 = vadd.f32 0.0, %v9704
      %v9706 = vpop.f32.mrb[0].mxu0
      %v9707 = vpop.f32.mrb[0].mxu0
      %v9708 = vadd.f32 0.0, %v9707
      %v9709 = vpop.f32.mrb[0].mxu0
      %9710 = vdwg.mxu0
      %v9712 = vsel %vm8050, %v8776, 0
      %9714 = vmatprep.subr.bf16.mxu0 0
      %9715 = vmatpush1.bf16.msra.mxu0 %v6615
      %9716 = vmatprep.subr.bf16.mxu0 0
      %9717 = vmatpush1.bf16.msra.mxu0 0
      %9718 = vmatprep.subr.bf16.mxu0 0
      %9719 = vmatpush1.bf16.msra.mxu0 0
      %9720 = vmatprep.subr.bf16.mxu0 0
      %9721 = vmatpush1.bf16.msra.mxu0 0
      %9722 = vmatprep.subr.bf16.mxu0 0
      %9723 = vmatpush1.bf16.msra.mxu0 0
      %9724 = vmatprep.subr.bf16.mxu0 0
      %9725 = vmatpush1.bf16.msra.mxu0 0
      %9726 = vmatprep.subr.bf16.mxu0 0
      %9727 = vmatpush1.bf16.msra.mxu0 0
      %9728 = vmatprep.subr.bf16.mxu0 0
      %9729 = vmatpush1.bf16.msra.mxu0 0
      %9730 = vmatprep.subr.bf16.mxu0 0
      %9731 = vmatpush1.bf16.msra.mxu0 0
      %9732 = vmatprep.subr.bf16.mxu0 0
      %9733 = vmatpush1.bf16.msra.mxu0 0
      %9734 = vmatprep.subr.bf16.mxu0 0
      %9735 = vmatpush1.bf16.msra.mxu0 0
      %9736 = vmatprep.subr.bf16.mxu0 0
      %9737 = vmatpush1.bf16.msra.mxu0 0
      %9738 = vmatprep.subr.bf16.mxu0 0
      %9739 = vmatpush1.bf16.msra.mxu0 0
      %9740 = vmatprep.subr.bf16.mxu0 0
      %9741 = vmatpush1.bf16.msra.mxu0 0
      %9742 = vmatprep.subr.bf16.mxu0 0
      %9743 = vmatpush1.bf16.msra.mxu0 0
      %9744 = vmatprep.subr.bf16.mxu0 0
      %9745 = vmatpush1.bf16.msra.mxu0 0
      %9746 = vmatprep.mubr.bf16.mxu0 0
      %9747 = vmatmul.mubr.bf16.gmra.mrb[0].mxu0 %v9712
      %v9748 = vpop.f32.mrb[0].mxu0
      %v9749 = vadd.f32 0.0, %v9748
      %v9750 = vpop.f32.mrb[0].mxu0
      %v9751 = vpop.f32.mrb[0].mxu0
      %v9752 = vadd.f32 0.0, %v9751
      %v9753 = vpop.f32.mrb[0].mxu0
      %9754 = vdwg.mxu0
      %v9756 = vsel %vm8050, %v8777, 0
      %9758 = vmatprep.subr.bf16.mxu0 0
      %9759 = vmatpush1.bf16.msra.mxu0 %v6616
      %9760 = vmatprep.subr.bf16.mxu0 0
      %9761 = vmatpush1.bf16.msra.mxu0 0
      %9762 = vmatprep.subr.bf16.mxu0 0
      %9763 = vmatpush1.bf16.msra.mxu0 0
      %9764 = vmatprep.subr.bf16.mxu0 0
      %9765 = vmatpush1.bf16.msra.mxu0 0
      %9766 = vmatprep.subr.bf16.mxu0 0
      %9767 = vmatpush1.bf16.msra.mxu0 0
      %9768 = vmatprep.subr.bf16.mxu0 0
      %9769 = vmatpush1.bf16.msra.mxu0 0
      %9770 = vmatprep.subr.bf16.mxu0 0
      %9771 = vmatpush1.bf16.msra.mxu0 0
      %9772 = vmatprep.subr.bf16.mxu0 0
      %9773 = vmatpush1.bf16.msra.mxu0 0
      %9774 = vmatprep.subr.bf16.mxu0 0
      %9775 = vmatpush1.bf16.msra.mxu0 0
      %9776 = vmatprep.subr.bf16.mxu0 0
      %9777 = vmatpush1.bf16.msra.mxu0 0
      %9778 = vmatprep.subr.bf16.mxu0 0
      %9779 = vmatpush1.bf16.msra.mxu0 0
      %9780 = vmatprep.subr.bf16.mxu0 0
      %9781 = vmatpush1.bf16.msra.mxu0 0
      %9782 = vmatprep.subr.bf16.mxu0 0
      %9783 = vmatpush1.bf16.msra.mxu0 0
      %9784 = vmatprep.subr.bf16.mxu0 0
      %9785 = vmatpush1.bf16.msra.mxu0 0
      %9786 = vmatprep.subr.bf16.mxu0 0
      %9787 = vmatpush1.bf16.msra.mxu0 0
      %9788 = vmatprep.subr.bf16.mxu0 0
      %9789 = vmatpush1.bf16.msra.mxu0 0
      %9790 = vmatprep.mubr.bf16.mxu0 0
      %9791 = vmatmul.mubr.bf16.gmra.mrb[0].mxu0 %v9756
      %v9792 = vpop.f32.mrb[0].mxu0
      %v9793 = vadd.f32 0.0, %v9792
      %v9794 = vpop.f32.mrb[0].mxu0
      %v9795 = vpop.f32.mrb[0].mxu0
      %v9796 = vadd.f32 0.0, %v9795
      %v9797 = vpop.f32.mrb[0].mxu0
      %9798 = vdwg.mxu0
      %v9800 = vsel %vm8050, %v8778, 0
      %9802 = vmatprep.subr.bf16.mxu0 0
      %9803 = vmatpush1.bf16.msra.mxu0 %v6617
      %9804 = vmatprep.subr.bf16.mxu0 0
      %9805 = vmatpush1.bf16.msra.mxu0 0
      %9806 = vmatprep.subr.bf16.mxu0 0
      %9807 = vmatpush1.bf16.msra.mxu0 0
      %9808 = vmatprep.subr.bf16.mxu0 0
      %9809 = vmatpush1.bf16.msra.mxu0 0
      %9810 = vmatprep.subr.bf16.mxu0 0
      %9811 = vmatpush1.bf16.msra.mxu0 0
      %9812 = vmatprep.subr.bf16.mxu0 0
      %9813 = vmatpush1.bf16.msra.mxu0 0
      %9814 = vmatprep.subr.bf16.mxu0 0
      %9815 = vmatpush1.bf16.msra.mxu0 0
      %9816 = vmatprep.subr.bf16.mxu0 0
      %9817 = vmatpush1.bf16.msra.mxu0 0
      %9818 = vmatprep.subr.bf16.mxu0 0
      %9819 = vmatpush1.bf16.msra.mxu0 0
      %9820 = vmatprep.subr.bf16.mxu0 0
      %9821 = vmatpush1.bf16.msra.mxu0 0
      %9822 = vmatprep.subr.bf16.mxu0 0
      %9823 = vmatpush1.bf16.msra.mxu0 0
      %9824 = vmatprep.subr.bf16.mxu0 0
      %9825 = vmatpush1.bf16.msra.mxu0 0
      %9826 = vmatprep.subr.bf16.mxu0 0
      %9827 = vmatpush1.bf16.msra.mxu0 0
      %9828 = vmatprep.subr.bf16.mxu0 0
      %9829 = vmatpush1.bf16.msra.mxu0 0
      %9830 = vmatprep.subr.bf16.mxu0 0
      %9831 = vmatpush1.bf16.msra.mxu0 0
      %9832 = vmatprep.subr.bf16.mxu0 0
      %9833 = vmatpush1.bf16.msra.mxu0 0
      %9834 = vmatprep.mubr.bf16.mxu0 0
      %9835 = vmatmul.mubr.bf16.gmra.mrb[0].mxu0 %v9800
      %v9836 = vpop.f32.mrb[0].mxu0
      %v9837 = vadd.f32 0.0, %v9836
      %v9838 = vpop.f32.mrb[0].mxu0
      %v9839 = vpop.f32.mrb[0].mxu0
      %v9840 = vadd.f32 0.0, %v9839
      %v9841 = vpop.f32.mrb[0].mxu0
      %9842 = vdwg.mxu0
      %v9844 = vsel %vm8050, %v8779, 0
      %9846 = vmatprep.subr.bf16.mxu0 0
      %9847 = vmatpush1.bf16.msra.mxu0 %v6618
      %9848 = vmatprep.subr.bf16.mxu0 0
      %9849 = vmatpush1.bf16.msra.mxu0 0
      %9850 = vmatprep.subr.bf16.mxu0 0
      %9851 = vmatpush1.bf16.msra.mxu0 0
      %9852 = vmatprep.subr.bf16.mxu0 0
      %9853 = vmatpush1.bf16.msra.mxu0 0
      %9854 = vmatprep.subr.bf16.mxu0 0
      %9855 = vmatpush1.bf16.msra.mxu0 0
      %9856 = vmatprep.subr.bf16.mxu0 0
      %9857 = vmatpush1.bf16.msra.mxu0 0
      %9858 = vmatprep.subr.bf16.mxu0 0
      %9859 = vmatpush1.bf16.msra.mxu0 0
      %9860 = vmatprep.subr.bf16.mxu0 0
      %9861 = vmatpush1.bf16.msra.mxu0 0
      %9862 = vmatprep.subr.bf16.mxu0 0
      %9863 = vmatpush1.bf16.msra.mxu0 0
      %9864 = vmatprep.subr.bf16.mxu0 0
      %9865 = vmatpush1.bf16.msra.mxu0 0
      %9866 = vmatprep.subr.bf16.mxu0 0
      %9867 = vmatpush1.bf16.msra.mxu0 0
      %9868 = vmatprep.subr.bf16.mxu0 0
      %9869 = vmatpush1.bf16.msra.mxu0 0
      %9870 = vmatprep.subr.bf16.mxu0 0
      %9871 = vmatpush1.bf16.msra.mxu0 0
      %9872 = vmatprep.subr.bf16.mxu0 0
      %9873 = vmatpush1.bf16.msra.mxu0 0
      %9874 = vmatprep.subr.bf16.mxu0 0
      %9875 = vmatpush1.bf16.msra.mxu0 0
      %9876 = vmatprep.subr.bf16.mxu0 0
      %9877 = vmatpush1.bf16.msra.mxu0 0
      %9878 = vmatprep.mubr.bf16.mxu0 0
      %9879 = vmatmul.mubr.bf16.gmra.mrb[0].mxu0 %v9844
      %v9880 = vpop.f32.mrb[0].mxu0
      %v9881 = vadd.f32 0.0, %v9880
      %v9882 = vpop.f32.mrb[0].mxu0
      %v9883 = vpop.f32.mrb[0].mxu0
      %v9884 = vadd.f32 0.0, %v9883
      %v9885 = vpop.f32.mrb[0].mxu0
      %9886 = vdwg.mxu0
      %v9888 = vsel %vm8050, %v8780, 0
      %9890 = vmatprep.subr.bf16.mxu0 0
      %9891 = vmatpush1.bf16.msra.mxu0 %v6619
      %9892 = vmatprep.subr.bf16.mxu0 0
      %9893 = vmatpush1.bf16.msra.mxu0 0
      %9894 = vmatprep.subr.bf16.mxu0 0
      %9895 = vmatpush1.bf16.msra.mxu0 0
      %9896 = vmatprep.subr.bf16.mxu0 0
      %9897 = vmatpush1.bf16.msra.mxu0 0
      %9898 = vmatprep.subr.bf16.mxu0 0
      %9899 = vmatpush1.bf16.msra.mxu0 0
      %9900 = vmatprep.subr.bf16.mxu0 0
      %9901 = vmatpush1.bf16.msra.mxu0 0
      %9902 = vmatprep.subr.bf16.mxu0 0
      %9903 = vmatpush1.bf16.msra.mxu0 0
      %9904 = vmatprep.subr.bf16.mxu0 0
      %9905 = vmatpush1.bf16.msra.mxu0 0
      %9906 = vmatprep.subr.bf16.mxu0 0
      %9907 = vmatpush1.bf16.msra.mxu0 0
      %9908 = vmatprep.subr.bf16.mxu0 0
      %9909 = vmatpush1.bf16.msra.mxu0 0
      %9910 = vmatprep.subr.bf16.mxu0 0
      %9911 = vmatpush1.bf16.msra.mxu0 0
      %9912 = vmatprep.subr.bf16.mxu0 0
      %9913 = vmatpush1.bf16.msra.mxu0 0
      %9914 = vmatprep.subr.bf16.mxu0 0
      %9915 = vmatpush1.bf16.msra.mxu0 0
      %9916 = vmatprep.subr.bf16.mxu0 0
      %9917 = vmatpush1.bf16.msra.mxu0 0
      %9918 = vmatprep.subr.bf16.mxu0 0
      %9919 = vmatpush1.bf16.msra.mxu0 0
      %9920 = vmatprep.subr.bf16.mxu0 0
      %9921 = vmatpush1.bf16.msra.mxu0 0
      %9922 = vmatprep.mubr.bf16.mxu0 0
      %9923 = vmatmul.mubr.bf16.gmra.mrb[0].mxu0 %v9888
      %v9924 = vpop.f32.mrb[0].mxu0
      %v9925 = vadd.f32 0.0, %v9924
      %v9926 = vpop.f32.mrb[0].mxu0
      %v9927 = vpop.f32.mrb[0].mxu0
      %v9928 = vadd.f32 0.0, %v9927
      %v9929 = vpop.f32.mrb[0].mxu0
      %9930 = vdwg.mxu0
      %v9932 = vsel %vm8050, %v8781, 0
      %9934 = vmatprep.subr.bf16.mxu0 0
      %9935 = vmatpush1.bf16.msra.mxu0 %v6620
      %9936 = vmatprep.subr.bf16.mxu0 0
      %9937 = vmatpush1.bf16.msra.mxu0 0
      %9938 = vmatprep.subr.bf16.mxu0 0
      %9939 = vmatpush1.bf16.msra.mxu0 0
      %9940 = vmatprep.subr.bf16.mxu0 0
      %9941 = vmatpush1.bf16.msra.mxu0 0
      %9942 = vmatprep.subr.bf16.mxu0 0
      %9943 = vmatpush1.bf16.msra.mxu0 0
      %9944 = vmatprep.subr.bf16.mxu0 0
      %9945 = vmatpush1.bf16.msra.mxu0 0
      %9946 = vmatprep.subr.bf16.mxu0 0
      %9947 = vmatpush1.bf16.msra.mxu0 0
      %9948 = vmatprep.subr.bf16.mxu0 0
      %9949 = vmatpush1.bf16.msra.mxu0 0
      %9950 = vmatprep.subr.bf16.mxu0 0
      %9951 = vmatpush1.bf16.msra.mxu0 0
      %9952 = vmatprep.subr.bf16.mxu0 0
      %9953 = vmatpush1.bf16.msra.mxu0 0
      %9954 = vmatprep.subr.bf16.mxu0 0
      %9955 = vmatpush1.bf16.msra.mxu0 0
      %9956 = vmatprep.subr.bf16.mxu0 0
      %9957 = vmatpush1.bf16.msra.mxu0 0
      %9958 = vmatprep.subr.bf16.mxu0 0
      %9959 = vmatpush1.bf16.msra.mxu0 0
      %9960 = vmatprep.subr.bf16.mxu0 0
      %9961 = vmatpush1.bf16.msra.mxu0 0
      %9962 = vmatprep.subr.bf16.mxu0 0
      %9963 = vmatpush1.bf16.msra.mxu0 0
      %9964 = vmatprep.subr.bf16.mxu0 0
      %9965 = vmatpush1.bf16.msra.mxu0 0
      %9966 = vmatprep.mubr.bf16.mxu0 0
      %9967 = vmatmul.mubr.bf16.gmra.mrb[0].mxu0 %v9932
      %v9968 = vpop.f32.mrb[0].mxu0
      %v9969 = vadd.f32 0.0, %v9968
      %v9970 = vpop.f32.mrb[0].mxu0
      %v9971 = vpop.f32.mrb[0].mxu0
      %v9972 = vadd.f32 0.0, %v9971
      %v9973 = vpop.f32.mrb[0].mxu0
      %9974 = vdwg.mxu0
      %v9976 = vsel %vm8050, %v8782, 0
      %9978 = vmatprep.subr.bf16.mxu0 0
      %9979 = vmatpush1.bf16.msra.mxu0 %v6621
      %9980 = vmatprep.subr.bf16.mxu0 0
      %9981 = vmatpush1.bf16.msra.mxu0 0
      %9982 = vmatprep.subr.bf16.mxu0 0
      %9983 = vmatpush1.bf16.msra.mxu0 0
      %9984 = vmatprep.subr.bf16.mxu0 0
      %9985 = vmatpush1.bf16.msra.mxu0 0
      %9986 = vmatprep.subr.bf16.mxu0 0
      %9987 = vmatpush1.bf16.msra.mxu0 0
      %9988 = vmatprep.subr.bf16.mxu0 0
      %9989 = vmatpush1.bf16.msra.mxu0 0
      %9990 = vmatprep.subr.bf16.mxu0 0
      %9991 = vmatpush1.bf16.msra.mxu0 0
      %9992 = vmatprep.subr.bf16.mxu0 0
      %9993 = vmatpush1.bf16.msra.mxu0 0
      %9994 = vmatprep.subr.bf16.mxu0 0
      %9995 = vmatpush1.bf16.msra.mxu0 0
      %9996 = vmatprep.subr.bf16.mxu0 0
      %9997 = vmatpush1.bf16.msra.mxu0 0
      %9998 = vmatprep.subr.bf16.mxu0 0
      %9999 = vmatpush1.bf16.msra.mxu0 0
      %10000 = vmatprep.subr.bf16.mxu0 0
      %10001 = vmatpush1.bf16.msra.mxu0 0
      %10002 = vmatprep.subr.bf16.mxu0 0
      %10003 = vmatpush1.bf16.msra.mxu0 0
      %10004 = vmatprep.subr.bf16.mxu0 0
      %10005 = vmatpush1.bf16.msra.mxu0 0
      %10006 = vmatprep.subr.bf16.mxu0 0
      %10007 = vmatpush1.bf16.msra.mxu0 0
      %10008 = vmatprep.subr.bf16.mxu0 0
      %10009 = vmatpush1.bf16.msra.mxu0 0
      %10010 = vmatprep.mubr.bf16.mxu0 0
      %10011 = vmatmul.mubr.bf16.gmra.mrb[0].mxu0 %v9976
      %v10012 = vpop.f32.mrb[0].mxu0
      %v10013 = vadd.f32 0.0, %v10012
      %v10014 = vpop.f32.mrb[0].mxu0
      %v10015 = vpop.f32.mrb[0].mxu0
      %v10016 = vadd.f32 0.0, %v10015
      %v10017 = vpop.f32.mrb[0].mxu0
      %10018 = vdwg.mxu0
      %v10020 = vsel %vm8050, %v8783, 0
      %10022 = vmatprep.subr.bf16.mxu0 0
      %10023 = vmatpush1.bf16.msra.mxu0 %v6622
      %10024 = vmatprep.subr.bf16.mxu0 0
      %10025 = vmatpush1.bf16.msra.mxu0 0
      %10026 = vmatprep.subr.bf16.mxu0 0
      %10027 = vmatpush1.bf16.msra.mxu0 0
      %10028 = vmatprep.subr.bf16.mxu0 0
      %10029 = vmatpush1.bf16.msra.mxu0 0
      %10030 = vmatprep.subr.bf16.mxu0 0
      %10031 = vmatpush1.bf16.msra.mxu0 0
      %10032 = vmatprep.subr.bf16.mxu0 0
      %10033 = vmatpush1.bf16.msra.mxu0 0
      %10034 = vmatprep.subr.bf16.mxu0 0
      %10035 = vmatpush1.bf16.msra.mxu0 0
      %10036 = vmatprep.subr.bf16.mxu0 0
      %10037 = vmatpush1.bf16.msra.mxu0 0
      %10038 = vmatprep.subr.bf16.mxu0 0
      %10039 = vmatpush1.bf16.msra.mxu0 0
      %10040 = vmatprep.subr.bf16.mxu0 0
      %10041 = vmatpush1.bf16.msra.mxu0 0
      %10042 = vmatprep.subr.bf16.mxu0 0
      %10043 = vmatpush1.bf16.msra.mxu0 0
      %10044 = vmatprep.subr.bf16.mxu0 0
      %10045 = vmatpush1.bf16.msra.mxu0 0
      %10046 = vmatprep.subr.bf16.mxu0 0
      %10047 = vmatpush1.bf16.msra.mxu0 0
      %10048 = vmatprep.subr.bf16.mxu0 0
      %10049 = vmatpush1.bf16.msra.mxu0 0
      %10050 = vmatprep.subr.bf16.mxu0 0
      %10051 = vmatpush1.bf16.msra.mxu0 0
      %10052 = vmatprep.subr.bf16.mxu0 0
      %10053 = vmatpush1.bf16.msra.mxu0 0
      %10054 = vmatprep.mubr.bf16.mxu0 0
      %10055 = vmatmul.mubr.bf16.gmra.mrb[0].mxu0 %v10020
      %v10056 = vpop.f32.mrb[0].mxu0
      %v10057 = vadd.f32 0.0, %v10056
      %v10058 = vpop.f32.mrb[0].mxu0
      %v10059 = vpop.f32.mrb[0].mxu0
      %v10060 = vadd.f32 0.0, %v10059
      %v10061 = vpop.f32.mrb[0].mxu0
      %10062 = vdwg.mxu0
      %v10064 = vsel %vm8050, %v8784, 0
      %10066 = vmatprep.subr.bf16.mxu0 0
      %10067 = vmatpush1.bf16.msra.mxu0 %v6623
      %10068 = vmatprep.subr.bf16.mxu0 0
      %10069 = vmatpush1.bf16.msra.mxu0 0
      %10070 = vmatprep.subr.bf16.mxu0 0
      %10071 = vmatpush1.bf16.msra.mxu0 0
      %10072 = vmatprep.subr.bf16.mxu0 0
      %10073 = vmatpush1.bf16.msra.mxu0 0
      %10074 = vmatprep.subr.bf16.mxu0 0
      %10075 = vmatpush1.bf16.msra.mxu0 0
      %10076 = vmatprep.subr.bf16.mxu0 0
      %10077 = vmatpush1.bf16.msra.mxu0 0
      %10078 = vmatprep.subr.bf16.mxu0 0
      %10079 = vmatpush1.bf16.msra.mxu0 0
      %10080 = vmatprep.subr.bf16.mxu0 0
      %10081 = vmatpush1.bf16.msra.mxu0 0
      %10082 = vmatprep.subr.bf16.mxu0 0
      %10083 = vmatpush1.bf16.msra.mxu0 0
      %10084 = vmatprep.subr.bf16.mxu0 0
      %10085 = vmatpush1.bf16.msra.mxu0 0
      %10086 = vmatprep.subr.bf16.mxu0 0
      %10087 = vmatpush1.bf16.msra.mxu0 0
      %10088 = vmatprep.subr.bf16.mxu0 0
      %10089 = vmatpush1.bf16.msra.mxu0 0
      %10090 = vmatprep.subr.bf16.mxu0 0
      %10091 = vmatpush1.bf16.msra.mxu0 0
      %10092 = vmatprep.subr.bf16.mxu0 0
      %10093 = vmatpush1.bf16.msra.mxu0 0
      %10094 = vmatprep.subr.bf16.mxu0 0
      %10095 = vmatpush1.bf16.msra.mxu0 0
      %10096 = vmatprep.subr.bf16.mxu0 0
      %10097 = vmatpush1.bf16.msra.mxu0 0
      %10098 = vmatprep.mubr.bf16.mxu0 0
      %10099 = vmatmul.mubr.bf16.gmra.mrb[0].mxu0 %v10064
      %v10100 = vpop.f32.mrb[0].mxu0
      %v10101 = vadd.f32 0.0, %v10100
      %v10102 = vpop.f32.mrb[0].mxu0
      %v10103 = vpop.f32.mrb[0].mxu0
      %v10104 = vadd.f32 0.0, %v10103
      %v10105 = vpop.f32.mrb[0].mxu0
      %10106 = vdwg.mxu0
      %v10108 = vsel %vm8050, %v8785, 0
      %10110 = vmatprep.subr.bf16.mxu0 0
      %10111 = vmatpush1.bf16.msra.mxu0 %v6624
      %10112 = vmatprep.subr.bf16.mxu0 0
      %10113 = vmatpush1.bf16.msra.mxu0 0
      %10114 = vmatprep.subr.bf16.mxu0 0
      %10115 = vmatpush1.bf16.msra.mxu0 0
      %10116 = vmatprep.subr.bf16.mxu0 0
      %10117 = vmatpush1.bf16.msra.mxu0 0
      %10118 = vmatprep.subr.bf16.mxu0 0
      %10119 = vmatpush1.bf16.msra.mxu0 0
      %10120 = vmatprep.subr.bf16.mxu0 0
      %10121 = vmatpush1.bf16.msra.mxu0 0
      %10122 = vmatprep.subr.bf16.mxu0 0
      %10123 = vmatpush1.bf16.msra.mxu0 0
      %10124 = vmatprep.subr.bf16.mxu0 0
      %10125 = vmatpush1.bf16.msra.mxu0 0
      %10126 = vmatprep.subr.bf16.mxu0 0
      %10127 = vmatpush1.bf16.msra.mxu0 0
      %10128 = vmatprep.subr.bf16.mxu0 0
      %10129 = vmatpush1.bf16.msra.mxu0 0
      %10130 = vmatprep.subr.bf16.mxu0 0
      %10131 = vmatpush1.bf16.msra.mxu0 0
      %10132 = vmatprep.subr.bf16.mxu0 0
      %10133 = vmatpush1.bf16.msra.mxu0 0
      %10134 = vmatprep.subr.bf16.mxu0 0
      %10135 = vmatpush1.bf16.msra.mxu0 0
      %10136 = vmatprep.subr.bf16.mxu0 0
      %10137 = vmatpush1.bf16.msra.mxu0 0
      %10138 = vmatprep.subr.bf16.mxu0 0
      %10139 = vmatpush1.bf16.msra.mxu0 0
      %10140 = vmatprep.subr.bf16.mxu0 0
      %10141 = vmatpush1.bf16.msra.mxu0 0
      %10142 = vmatprep.mubr.bf16.mxu0 0
      %10143 = vmatmul.mubr.bf16.gmra.mrb[0].mxu0 %v10108
      %v10144 = vpop.f32.mrb[0].mxu0
      %v10145 = vadd.f32 0.0, %v10144
      %v10146 = vpop.f32.mrb[0].mxu0
      %v10147 = vpop.f32.mrb[0].mxu0
      %v10148 = vadd.f32 0.0, %v10147
      %v10149 = vpop.f32.mrb[0].mxu0
      %10150 = vdwg.mxu0
      %v10152 = vsel %vm8050, %v8786, 0
      %10154 = vmatprep.subr.bf16.mxu0 0
      %10155 = vmatpush1.bf16.msra.mxu0 %v6625
      %10156 = vmatprep.subr.bf16.mxu0 0
      %10157 = vmatpush1.bf16.msra.mxu0 0
      %10158 = vmatprep.subr.bf16.mxu0 0
      %10159 = vmatpush1.bf16.msra.mxu0 0
      %10160 = vmatprep.subr.bf16.mxu0 0
      %10161 = vmatpush1.bf16.msra.mxu0 0
      %10162 = vmatprep.subr.bf16.mxu0 0
      %10163 = vmatpush1.bf16.msra.mxu0 0
      %10164 = vmatprep.subr.bf16.mxu0 0
      %10165 = vmatpush1.bf16.msra.mxu0 0
      %10166 = vmatprep.subr.bf16.mxu0 0
      %10167 = vmatpush1.bf16.msra.mxu0 0
      %10168 = vmatprep.subr.bf16.mxu0 0
      %10169 = vmatpush1.bf16.msra.mxu0 0
      %10170 = vmatprep.subr.bf16.mxu0 0
      %10171 = vmatpush1.bf16.msra.mxu0 0
      %10172 = vmatprep.subr.bf16.mxu0 0
      %10173 = vmatpush1.bf16.msra.mxu0 0
      %10174 = vmatprep.subr.bf16.mxu0 0
      %10175 = vmatpush1.bf16.msra.mxu0 0
      %10176 = vmatprep.subr.bf16.mxu0 0
      %10177 = vmatpush1.bf16.msra.mxu0 0
      %10178 = vmatprep.subr.bf16.mxu0 0
      %10179 = vmatpush1.bf16.msra.mxu0 0
      %10180 = vmatprep.subr.bf16.mxu0 0
      %10181 = vmatpush1.bf16.msra.mxu0 0
      %10182 = vmatprep.subr.bf16.mxu0 0
      %10183 = vmatpush1.bf16.msra.mxu0 0
      %10184 = vmatprep.subr.bf16.mxu0 0
      %10185 = vmatpush1.bf16.msra.mxu0 0
      %10186 = vmatprep.mubr.bf16.mxu0 0
      %10187 = vmatmul.mubr.bf16.gmra.mrb[0].mxu0 %v10152
      %v10188 = vpop.f32.mrb[0].mxu0
      %v10189 = vadd.f32 0.0, %v10188
      %v10190 = vpop.f32.mrb[0].mxu0
      %v10191 = vpop.f32.mrb[0].mxu0
      %v10192 = vadd.f32 0.0, %v10191
      %v10193 = vpop.f32.mrb[0].mxu0
      %10194 = vdwg.mxu0
      %v10195 = vpack.c.bf16 %v8828, %v8825
      %v10196 = vpack.c.bf16 %v8872, %v8869
      %v10197 = vpack.c.bf16 %v8916, %v8913
      %v10198 = vpack.c.bf16 %v8960, %v8957
      %v10199 = vpack.c.bf16 %v9004, %v9001
      %v10200 = vpack.c.bf16 %v9048, %v9045
      %v10201 = vpack.c.bf16 %v9092, %v9089
      %v10202 = vpack.c.bf16 %v9136, %v9133
      %v10203 = vpack.c.bf16 %v9180, %v9177
      %v10204 = vpack.c.bf16 %v9224, %v9221
      %v10205 = vpack.c.bf16 %v9268, %v9265
      %v10206 = vpack.c.bf16 %v9312, %v9309
      %v10207 = vpack.c.bf16 %v9356, %v9353
      %v10208 = vpack.c.bf16 %v9400, %v9397
      %v10209 = vpack.c.bf16 %v9444, %v9441
      %v10210 = vpack.c.bf16 %v9488, %v9485
      %v10211 = vld [vmem:[%s10] sm:$0x3]
      %v10212 = vld [vmem:[%s11] sm:$0x1]
      %v10214 = vlaneseq
      %v10215 = vshrl.u32 %v10214, 7
      %v10216 = vsub.s32 0, %v10215
      %v10217 = vrot.slane %v10212, %v10216
      %v10220 = vsel %vm489, %v10195, 0
      %v10223 = vsel %vm489, %v10196, 0
      %v10226 = vsel %vm489, %v10197, 0
      %v10229 = vsel %vm489, %v10198, 0
      %v10232 = vsel %vm489, %v10199, 0
      %v10235 = vsel %vm489, %v10200, 0
      %v10238 = vsel %vm489, %v10201, 0
      %v10241 = vsel %vm489, %v10202, 0
      %v10244 = vsel %vm489, %v10203, 0
      %v10247 = vsel %vm489, %v10204, 0
      %v10250 = vsel %vm489, %v10205, 0
      %v10253 = vsel %vm489, %v10206, 0
      %v10256 = vsel %vm489, %v10207, 0
      %v10259 = vsel %vm489, %v10208, 0
      %v10262 = vsel %vm489, %v10209, 0
      %v10265 = vsel %vm489, %v10210, 0
      %v10268 = vsel %vm697, %v10211, 0
      %10270 = vmatprep.subr.bf16.mxu0 0
      %10271 = vmatpush1.bf16.msra.mxu0 %v10268
      %10272 = vmatprep.subr.bf16.mxu0 0
      %10273 = vmatpush1.bf16.msra.mxu0 0
      %10274 = vmatprep.subr.bf16.mxu0 0
      %10275 = vmatpush1.bf16.msra.mxu0 0
      %10276 = vmatprep.subr.bf16.mxu0 0
      %10277 = vmatpush1.bf16.msra.mxu0 0
      %10278 = vmatprep.subr.bf16.mxu0 0
      %10279 = vmatpush1.bf16.msra.mxu0 0
      %10280 = vmatprep.subr.bf16.mxu0 0
      %10281 = vmatpush1.bf16.msra.mxu0 0
      %10282 = vmatprep.subr.bf16.mxu0 0
      %10283 = vmatpush1.bf16.msra.mxu0 0
      %10284 = vmatprep.subr.bf16.mxu0 0
      %10285 = vmatpush1.bf16.msra.mxu0 0
      %10286 = vmatprep.subr.bf16.mxu0 0
      %10287 = vmatpush1.bf16.msra.mxu0 0
      %10288 = vmatprep.subr.bf16.mxu0 0
      %10289 = vmatpush1.bf16.msra.mxu0 0
      %10290 = vmatprep.subr.bf16.mxu0 0
      %10291 = vmatpush1.bf16.msra.mxu0 0
      %10292 = vmatprep.subr.bf16.mxu0 0
      %10293 = vmatpush1.bf16.msra.mxu0 0
      %10294 = vmatprep.subr.bf16.mxu0 0
      %10295 = vmatpush1.bf16.msra.mxu0 0
      %10296 = vmatprep.subr.bf16.mxu0 0
      %10297 = vmatpush1.bf16.msra.mxu0 0
      %10298 = vmatprep.subr.bf16.mxu0 0
      %10299 = vmatpush1.bf16.msra.mxu0 0
      %10300 = vmatprep.subr.bf16.mxu0 0
      %10301 = vmatpush1.bf16.msra.mxu0 0
      %10302 = vmatprep.mubr.bf16.mxu0 0
      %10303 = vmatmul.mubr.bf16.gmra.mrb[0].mxu0 %v10220
      %v10304 = vpop.f32.mrb[0].mxu0
      %v10305 = vadd.f32 %v10217, %v10304
      %v10306 = vpop.f32.mrb[0].mxu0
      %v10307 = vpop.f32.mrb[0].mxu0
      %v10308 = vadd.f32 %v10217, %v10307
      %v10309 = vpop.f32.mrb[0].mxu0
      %10310 = vmatprep.mubr.bf16.mxu0 0
      %10311 = vmatmul.mubr.bf16.gmra.mrb[0].mxu0 %v10223
      %v10312 = vpop.f32.mrb[0].mxu0
      %v10313 = vadd.f32 %v10217, %v10312
      %v10314 = vpop.f32.mrb[0].mxu0
      %v10315 = vpop.f32.mrb[0].mxu0
      %v10316 = vadd.f32 %v10217, %v10315
      %v10317 = vpop.f32.mrb[0].mxu0
      %10318 = vmatprep.mubr.bf16.mxu0 0
      %10319 = vmatmul.mubr.bf16.gmra.mrb[0].mxu0 %v10226
      %v10320 = vpop.f32.mrb[0].mxu0
      %v10321 = vadd.f32 %v10217, %v10320
      %v10322 = vpop.f32.mrb[0].mxu0
      %v10323 = vpop.f32.mrb[0].mxu0
      %v10324 = vadd.f32 %v10217, %v10323
      %v10325 = vpop.f32.mrb[0].mxu0
      %10326 = vmatprep.mubr.bf16.mxu0 0
      %10327 = vmatmul.mubr.bf16.gmra.mrb[0].mxu0 %v10229
      %v10328 = vpop.f32.mrb[0].mxu0
      %v10329 = vadd.f32 %v10217, %v10328
      %v10330 = vpop.f32.mrb[0].mxu0
      %v10331 = vpop.f32.mrb[0].mxu0
      %v10332 = vadd.f32 %v10217, %v10331
      %v10333 = vpop.f32.mrb[0].mxu0
      %10334 = vmatprep.mubr.bf16.mxu0 0
      %10335 = vmatmul.mubr.bf16.gmra.mrb[0].mxu0 %v10232
      %v10336 = vpop.f32.mrb[0].mxu0
      %v10337 = vadd.f32 %v10217, %v10336
      %v10338 = vpop.f32.mrb[0].mxu0
      %v10339 = vpop.f32.mrb[0].mxu0
      %v10340 = vadd.f32 %v10217, %v10339
      %v10341 = vpop.f32.mrb[0].mxu0
      %10342 = vmatprep.mubr.bf16.mxu0 0
      %10343 = vmatmul.mubr.bf16.gmra.mrb[0].mxu0 %v10235
      %v10344 = vpop.f32.mrb[0].mxu0
      %v10345 = vadd.f32 %v10217, %v10344
      %v10346 = vpop.f32.mrb[0].mxu0
      %v10347 = vpop.f32.mrb[0].mxu0
      %v10348 = vadd.f32 %v10217, %v10347
      %v10349 = vpop.f32.mrb[0].mxu0
      %10350 = vmatprep.mubr.bf16.mxu0 0
      %10351 = vmatmul.mubr.bf16.gmra.mrb[0].mxu0 %v10238
      %v10352 = vpop.f32.mrb[0].mxu0
      %v10353 = vadd.f32 %v10217, %v10352
      %v10354 = vpop.f32.mrb[0].mxu0
      %v10355 = vpop.f32.mrb[0].mxu0
      %v10356 = vadd.f32 %v10217, %v10355
      %v10357 = vpop.f32.mrb[0].mxu0
      %10358 = vmatprep.mubr.bf16.mxu0 0
      %10359 = vmatmul.mubr.bf16.gmra.mrb[0].mxu0 %v10241
      %v10360 = vpop.f32.mrb[0].mxu0
      %v10361 = vadd.f32 %v10217, %v10360
      %v10362 = vpop.f32.mrb[0].mxu0
      %v10363 = vpop.f32.mrb[0].mxu0
      %v10364 = vadd.f32 %v10217, %v10363
      %v10365 = vpop.f32.mrb[0].mxu0
      %10366 = vmatprep.mubr.bf16.mxu0 0
      %10367 = vmatmul.mubr.bf16.gmra.mrb[0].mxu0 %v10244
      %v10368 = vpop.f32.mrb[0].mxu0
      %v10369 = vadd.f32 %v10217, %v10368
      %v10370 = vpop.f32.mrb[0].mxu0
      %v10371 = vpop.f32.mrb[0].mxu0
      %v10372 = vadd.f32 %v10217, %v10371
      %v10373 = vpop.f32.mrb[0].mxu0
      %10374 = vmatprep.mubr.bf16.mxu0 0
      %10375 = vmatmul.mubr.bf16.gmra.mrb[0].mxu0 %v10247
      %v10376 = vpop.f32.mrb[0].mxu0
      %v10377 = vadd.f32 %v10217, %v10376
      %v10378 = vpop.f32.mrb[0].mxu0
      %v10379 = vpop.f32.mrb[0].mxu0
      %v10380 = vadd.f32 %v10217, %v10379
      %v10381 = vpop.f32.mrb[0].mxu0
      %10382 = vmatprep.mubr.bf16.mxu0 0
      %10383 = vmatmul.mubr.bf16.gmra.mrb[0].mxu0 %v10250
      %v10384 = vpop.f32.mrb[0].mxu0
      %v10385 = vadd.f32 %v10217, %v10384
      %v10386 = vpop.f32.mrb[0].mxu0
      %v10387 = vpop.f32.mrb[0].mxu0
      %v10388 = vadd.f32 %v10217, %v10387
      %v10389 = vpop.f32.mrb[0].mxu0
      %10390 = vmatprep.mubr.bf16.mxu0 0
      %10391 = vmatmul.mubr.bf16.gmra.mrb[0].mxu0 %v10253
      %v10392 = vpop.f32.mrb[0].mxu0
      %v10393 = vadd.f32 %v10217, %v10392
      %v10394 = vpop.f32.mrb[0].mxu0
      %v10395 = vpop.f32.mrb[0].mxu0
      %v10396 = vadd.f32 %v10217, %v10395
      %v10397 = vpop.f32.mrb[0].mxu0
      %10398 = vmatprep.mubr.bf16.mxu0 0
      %10399 = vmatmul.mubr.bf16.gmra.mrb[0].mxu0 %v10256
      %v10400 = vpop.f32.mrb[0].mxu0
      %v10401 = vadd.f32 %v10217, %v10400
      %v10402 = vpop.f32.mrb[0].mxu0
      %v10403 = vpop.f32.mrb[0].mxu0
      %v10404 = vadd.f32 %v10217, %v10403
      %v10405 = vpop.f32.mrb[0].mxu0
      %10406 = vmatprep.mubr.bf16.mxu0 0
      %10407 = vmatmul.mubr.bf16.gmra.mrb[0].mxu0 %v10259
      %v10408 = vpop.f32.mrb[0].mxu0
      %v10409 = vadd.f32 %v10217, %v10408
      %v10410 = vpop.f32.mrb[0].mxu0
      %v10411 = vpop.f32.mrb[0].mxu0
      %v10412 = vadd.f32 %v10217, %v10411
      %v10413 = vpop.f32.mrb[0].mxu0
      %10414 = vmatprep.mubr.bf16.mxu0 0
      %10415 = vmatmul.mubr.bf16.gmra.mrb[0].mxu0 %v10262
      %v10416 = vpop.f32.mrb[0].mxu0
      %v10417 = vadd.f32 %v10217, %v10416
      %v10418 = vpop.f32.mrb[0].mxu0
      %v10419 = vpop.f32.mrb[0].mxu0
      %v10420 = vadd.f32 %v10217, %v10419
      %v10421 = vpop.f32.mrb[0].mxu0
      %10422 = vmatprep.mubr.bf16.mxu0 0
      %10423 = vmatmul.mubr.bf16.gmra.mrb[0].mxu0 %v10265
      %v10424 = vpop.f32.mrb[0].mxu0
      %v10425 = vadd.f32 %v10217, %v10424
      %v10426 = vpop.f32.mrb[0].mxu0
      %v10427 = vpop.f32.mrb[0].mxu0
      %v10428 = vadd.f32 %v10217, %v10427
      %v10429 = vpop.f32.mrb[0].mxu0
      %10430 = vdwg.mxu0
      %v10431 = vpack.c.bf16 %v9532, %v9529
      %v10432 = vpack.c.bf16 %v9576, %v9573
      %v10433 = vpack.c.bf16 %v9620, %v9617
      %v10434 = vpack.c.bf16 %v9664, %v9661
      %v10435 = vpack.c.bf16 %v9708, %v9705
      %v10436 = vpack.c.bf16 %v9752, %v9749
      %v10437 = vpack.c.bf16 %v9796, %v9793
      %v10438 = vpack.c.bf16 %v9840, %v9837
      %v10439 = vpack.c.bf16 %v9884, %v9881
      %v10440 = vpack.c.bf16 %v9928, %v9925
      %v10441 = vpack.c.bf16 %v9972, %v9969
      %v10442 = vpack.c.bf16 %v10016, %v10013
      %v10443 = vpack.c.bf16 %v10060, %v10057
      %v10444 = vpack.c.bf16 %v10104, %v10101
      %v10445 = vpack.c.bf16 %v10148, %v10145
      %v10446 = vpack.c.bf16 %v10192, %v10189
      %v10447 = vld [vmem:[%s12] sm:$0x3]
      %v10448 = vld [vmem:[%s13] sm:$0x1]
      %v10450 = vlaneseq
      %v10451 = vshrl.u32 %v10450, 7
      %v10452 = vsub.s32 0, %v10451
      %v10453 = vrot.slane %v10448, %v10452
      %v10456 = vsel %vm489, %v10431, 0
      %v10459 = vsel %vm489, %v10432, 0
      %v10462 = vsel %vm489, %v10433, 0
      %v10465 = vsel %vm489, %v10434, 0
      %v10468 = vsel %vm489, %v10435, 0
      %v10471 = vsel %vm489, %v10436, 0
      %v10474 = vsel %vm489, %v10437, 0
      %v10477 = vsel %vm489, %v10438, 0
      %v10480 = vsel %vm489, %v10439, 0
      %v10483 = vsel %vm489, %v10440, 0
      %v10486 = vsel %vm489, %v10441, 0
      %v10489 = vsel %vm489, %v10442, 0
      %v10492 = vsel %vm489, %v10443, 0
      %v10495 = vsel %vm489, %v10444, 0
      %v10498 = vsel %vm489, %v10445, 0
      %v10501 = vsel %vm489, %v10446, 0
      %v10504 = vsel %vm697, %v10447, 0
      %10506 = vmatprep.subr.bf16.mxu0 0
      %10507 = vmatpush1.bf16.msra.mxu0 %v10504
      %10508 = vmatprep.subr.bf16.mxu0 0
      %10509 = vmatpush1.bf16.msra.mxu0 0
      %10510 = vmatprep.subr.bf16.mxu0 0
      %10511 = vmatpush1.bf16.msra.mxu0 0
      %10512 = vmatprep.subr.bf16.mxu0 0
      %10513 = vmatpush1.bf16.msra.mxu0 0
      %10514 = vmatprep.subr.bf16.mxu0 0
      %10515 = vmatpush1.bf16.msra.mxu0 0
      %10516 = vmatprep.subr.bf16.mxu0 0
      %10517 = vmatpush1.bf16.msra.mxu0 0
      %10518 = vmatprep.subr.bf16.mxu0 0
      %10519 = vmatpush1.bf16.msra.mxu0 0
      %10520 = vmatprep.subr.bf16.mxu0 0
      %10521 = vmatpush1.bf16.msra.mxu0 0
      %10522 = vmatprep.subr.bf16.mxu0 0
      %10523 = vmatpush1.bf16.msra.mxu0 0
      %10524 = vmatprep.subr.bf16.mxu0 0
      %10525 = vmatpush1.bf16.msra.mxu0 0
      %10526 = vmatprep.subr.bf16.mxu0 0
      %10527 = vmatpush1.bf16.msra.mxu0 0
      %10528 = vmatprep.subr.bf16.mxu0 0
      %10529 = vmatpush1.bf16.msra.mxu0 0
      %10530 = vmatprep.subr.bf16.mxu0 0
      %10531 = vmatpush1.bf16.msra.mxu0 0
      %10532 = vmatprep.subr.bf16.mxu0 0
      %10533 = vmatpush1.bf16.msra.mxu0 0
      %10534 = vmatprep.subr.bf16.mxu0 0
      %10535 = vmatpush1.bf16.msra.mxu0 0
      %10536 = vmatprep.subr.bf16.mxu0 0
      %10537 = vmatpush1.bf16.msra.mxu0 0
      %10538 = vmatprep.mubr.bf16.mxu0 0
      %10539 = vmatmul.mubr.bf16.gmra.mrb[0].mxu0 %v10456
      %v10540 = vpop.f32.mrb[0].mxu0
      %v10541 = vadd.f32 %v10453, %v10540
      %v10542 = vpop.f32.mrb[0].mxu0
      %v10543 = vpop.f32.mrb[0].mxu0
      %v10544 = vadd.f32 %v10453, %v10543
      %v10545 = vpop.f32.mrb[0].mxu0
      %10546 = vmatprep.mubr.bf16.mxu0 0
      %10547 = vmatmul.mubr.bf16.gmra.mrb[0].mxu0 %v10459
      %v10548 = vpop.f32.mrb[0].mxu0
      %v10549 = vadd.f32 %v10453, %v10548
      %v10550 = vpop.f32.mrb[0].mxu0
      %v10551 = vpop.f32.mrb[0].mxu0
      %v10552 = vadd.f32 %v10453, %v10551
      %v10553 = vpop.f32.mrb[0].mxu0
      %10554 = vmatprep.mubr.bf16.mxu0 0
      %10555 = vmatmul.mubr.bf16.gmra.mrb[0].mxu0 %v10462
      %v10556 = vpop.f32.mrb[0].mxu0
      %v10557 = vadd.f32 %v10453, %v10556
      %v10558 = vpop.f32.mrb[0].mxu0
      %v10559 = vpop.f32.mrb[0].mxu0
      %v10560 = vadd.f32 %v10453, %v10559
      %v10561 = vpop.f32.mrb[0].mxu0
      %10562 = vmatprep.mubr.bf16.mxu0 0
      %10563 = vmatmul.mubr.bf16.gmra.mrb[0].mxu0 %v10465
      %v10564 = vpop.f32.mrb[0].mxu0
      %v10565 = vadd.f32 %v10453, %v10564
      %v10566 = vpop.f32.mrb[0].mxu0
      %v10567 = vpop.f32.mrb[0].mxu0
      %v10568 = vadd.f32 %v10453, %v10567
      %v10569 = vpop.f32.mrb[0].mxu0
      %10570 = vmatprep.mubr.bf16.mxu0 0
      %10571 = vmatmul.mubr.bf16.gmra.mrb[0].mxu0 %v10468
      %v10572 = vpop.f32.mrb[0].mxu0
      %v10573 = vadd.f32 %v10453, %v10572
      %v10574 = vpop.f32.mrb[0].mxu0
      %v10575 = vpop.f32.mrb[0].mxu0
      %v10576 = vadd.f32 %v10453, %v10575
      %v10577 = vpop.f32.mrb[0].mxu0
      %10578 = vmatprep.mubr.bf16.mxu0 0
      %10579 = vmatmul.mubr.bf16.gmra.mrb[0].mxu0 %v10471
      %v10580 = vpop.f32.mrb[0].mxu0
      %v10581 = vadd.f32 %v10453, %v10580
      %v10582 = vpop.f32.mrb[0].mxu0
      %v10583 = vpop.f32.mrb[0].mxu0
      %v10584 = vadd.f32 %v10453, %v10583
      %v10585 = vpop.f32.mrb[0].mxu0
      %10586 = vmatprep.mubr.bf16.mxu0 0
      %10587 = vmatmul.mubr.bf16.gmra.mrb[0].mxu0 %v10474
      %v10588 = vpop.f32.mrb[0].mxu0
      %v10589 = vadd.f32 %v10453, %v10588
      %v10590 = vpop.f32.mrb[0].mxu0
      %v10591 = vpop.f32.mrb[0].mxu0
      %v10592 = vadd.f32 %v10453, %v10591
      %v10593 = vpop.f32.mrb[0].mxu0
      %10594 = vmatprep.mubr.bf16.mxu0 0
      %10595 = vmatmul.mubr.bf16.gmra.mrb[0].mxu0 %v10477
      %v10596 = vpop.f32.mrb[0].mxu0
      %v10597 = vadd.f32 %v10453, %v10596
      %v10598 = vpop.f32.mrb[0].mxu0
      %v10599 = vpop.f32.mrb[0].mxu0
      %v10600 = vadd.f32 %v10453, %v10599
      %v10601 = vpop.f32.mrb[0].mxu0
      %10602 = vmatprep.mubr.bf16.mxu0 0
      %10603 = vmatmul.mubr.bf16.gmra.mrb[0].mxu0 %v10480
      %v10604 = vpop.f32.mrb[0].mxu0
      %v10605 = vadd.f32 %v10453, %v10604
      %v10606 = vpop.f32.mrb[0].mxu0
      %v10607 = vpop.f32.mrb[0].mxu0
      %v10608 = vadd.f32 %v10453, %v10607
      %v10609 = vpop.f32.mrb[0].mxu0
      %10610 = vmatprep.mubr.bf16.mxu0 0
      %10611 = vmatmul.mubr.bf16.gmra.mrb[0].mxu0 %v10483
      %v10612 = vpop.f32.mrb[0].mxu0
      %v10613 = vadd.f32 %v10453, %v10612
      %v10614 = vpop.f32.mrb[0].mxu0
      %v10615 = vpop.f32.mrb[0].mxu0
      %v10616 = vadd.f32 %v10453, %v10615
      %v10617 = vpop.f32.mrb[0].mxu0
      %10618 = vmatprep.mubr.bf16.mxu0 0
      %10619 = vmatmul.mubr.bf16.gmra.mrb[0].mxu0 %v10486
      %v10620 = vpop.f32.mrb[0].mxu0
      %v10621 = vadd.f32 %v10453, %v10620
      %v10622 = vpop.f32.mrb[0].mxu0
      %v10623 = vpop.f32.mrb[0].mxu0
      %v10624 = vadd.f32 %v10453, %v10623
      %v10625 = vpop.f32.mrb[0].mxu0
      %10626 = vmatprep.mubr.bf16.mxu0 0
      %10627 = vmatmul.mubr.bf16.gmra.mrb[0].mxu0 %v10489
      %v10628 = vpop.f32.mrb[0].mxu0
      %v10629 = vadd.f32 %v10453, %v10628
      %v10630 = vpop.f32.mrb[0].mxu0
      %v10631 = vpop.f32.mrb[0].mxu0
      %v10632 = vadd.f32 %v10453, %v10631
      %v10633 = vpop.f32.mrb[0].mxu0
      %10634 = vmatprep.mubr.bf16.mxu0 0
      %10635 = vmatmul.mubr.bf16.gmra.mrb[0].mxu0 %v10492
      %v10636 = vpop.f32.mrb[0].mxu0
      %v10637 = vadd.f32 %v10453, %v10636
      %v10638 = vpop.f32.mrb[0].mxu0
      %v10639 = vpop.f32.mrb[0].mxu0
      %v10640 = vadd.f32 %v10453, %v10639
      %v10641 = vpop.f32.mrb[0].mxu0
      %10642 = vmatprep.mubr.bf16.mxu0 0
      %10643 = vmatmul.mubr.bf16.gmra.mrb[0].mxu0 %v10495
      %v10644 = vpop.f32.mrb[0].mxu0
      %v10645 = vadd.f32 %v10453, %v10644
      %v10646 = vpop.f32.mrb[0].mxu0
      %v10647 = vpop.f32.mrb[0].mxu0
      %v10648 = vadd.f32 %v10453, %v10647
      %v10649 = vpop.f32.mrb[0].mxu0
      %10650 = vmatprep.mubr.bf16.mxu0 0
      %10651 = vmatmul.mubr.bf16.gmra.mrb[0].mxu0 %v10498
      %v10652 = vpop.f32.mrb[0].mxu0
      %v10653 = vadd.f32 %v10453, %v10652
      %v10654 = vpop.f32.mrb[0].mxu0
      %v10655 = vpop.f32.mrb[0].mxu0
      %v10656 = vadd.f32 %v10453, %v10655
      %v10657 = vpop.f32.mrb[0].mxu0
      %10658 = vmatprep.mubr.bf16.mxu0 0
      %10659 = vmatmul.mubr.bf16.gmra.mrb[0].mxu0 %v10501
      %v10660 = vpop.f32.mrb[0].mxu0
      %v10661 = vadd.f32 %v10453, %v10660
      %v10662 = vpop.f32.mrb[0].mxu0
      %v10663 = vpop.f32.mrb[0].mxu0
      %v10664 = vadd.f32 %v10453, %v10663
      %v10665 = vpop.f32.mrb[0].mxu0
      %10666 = vdwg.mxu0
      %v10667 = vadd.f32 %v545, %v577
      %v10668 = vadd.f32 %v546, %v578
      %v10669 = vadd.f32 %v547, %v579
      %v10670 = vadd.f32 %v548, %v580
      %v10671 = vadd.f32 %v549, %v581
      %v10672 = vadd.f32 %v550, %v582
      %v10673 = vadd.f32 %v551, %v583
      %v10674 = vadd.f32 %v552, %v584
      %v10675 = vadd.f32 %v553, %v585
      %v10676 = vadd.f32 %v554, %v586
      %v10677 = vadd.f32 %v555, %v587
      %v10678 = vadd.f32 %v556, %v588
      %v10679 = vadd.f32 %v557, %v589
      %v10680 = vadd.f32 %v558, %v590
      %v10681 = vadd.f32 %v559, %v591
      %v10682 = vadd.f32 %v560, %v592
      %v10683 = vadd.f32 %v561, %v593
      %v10684 = vadd.f32 %v562, %v594
      %v10685 = vadd.f32 %v563, %v595
      %v10686 = vadd.f32 %v564, %v596
      %v10687 = vadd.f32 %v565, %v597
      %v10688 = vadd.f32 %v566, %v598
      %v10689 = vadd.f32 %v567, %v599
      %v10690 = vadd.f32 %v568, %v600
      %v10691 = vadd.f32 %v569, %v601
      %v10692 = vadd.f32 %v570, %v602
      %v10693 = vadd.f32 %v571, %v603
      %v10694 = vadd.f32 %v572, %v604
      %v10695 = vadd.f32 %v573, %v605
      %v10696 = vadd.f32 %v574, %v606
      %v10697 = vadd.f32 %v575, %v607
      %v10698 = vadd.f32 %v576, %v608
      %v10699 = vadd.f32 %v10667, %v10305
      %v10700 = vadd.f32 %v10668, %v10308
      %v10701 = vadd.f32 %v10669, %v10313
      %v10702 = vadd.f32 %v10670, %v10316
      %v10703 = vadd.f32 %v10671, %v10321
      %v10704 = vadd.f32 %v10672, %v10324
      %v10705 = vadd.f32 %v10673, %v10329
      %v10706 = vadd.f32 %v10674, %v10332
      %v10707 = vadd.f32 %v10675, %v10337
      %v10708 = vadd.f32 %v10676, %v10340
      %v10709 = vadd.f32 %v10677, %v10345
      %v10710 = vadd.f32 %v10678, %v10348
      %v10711 = vadd.f32 %v10679, %v10353
      %v10712 = vadd.f32 %v10680, %v10356
      %v10713 = vadd.f32 %v10681, %v10361
      %v10714 = vadd.f32 %v10682, %v10364
      %v10715 = vadd.f32 %v10683, %v10369
      %v10716 = vadd.f32 %v10684, %v10372
      %v10717 = vadd.f32 %v10685, %v10377
      %v10718 = vadd.f32 %v10686, %v10380
      %v10719 = vadd.f32 %v10687, %v10385
      %v10720 = vadd.f32 %v10688, %v10388
      %v10721 = vadd.f32 %v10689, %v10393
      %v10722 = vadd.f32 %v10690, %v10396
      %v10723 = vadd.f32 %v10691, %v10401
      %v10724 = vadd.f32 %v10692, %v10404
      %v10725 = vadd.f32 %v10693, %v10409
      %v10726 = vadd.f32 %v10694, %v10412
      %v10727 = vadd.f32 %v10695, %v10417
      %v10728 = vadd.f32 %v10696, %v10420
      %v10729 = vadd.f32 %v10697, %v10425
      %v10730 = vadd.f32 %v10698, %v10428
      %v10731 = vadd.f32 %v10699, %v10541
      %v10732 = vadd.f32 %v10700, %v10544
      %v10733 = vadd.f32 %v10701, %v10549
      %v10734 = vadd.f32 %v10702, %v10552
      %v10735 = vadd.f32 %v10703, %v10557
      %v10736 = vadd.f32 %v10704, %v10560
      %v10737 = vadd.f32 %v10705, %v10565
      %v10738 = vadd.f32 %v10706, %v10568
      %v10739 = vadd.f32 %v10707, %v10573
      %v10740 = vadd.f32 %v10708, %v10576
      %v10741 = vadd.f32 %v10709, %v10581
      %v10742 = vadd.f32 %v10710, %v10584
      %v10743 = vadd.f32 %v10711, %v10589
      %v10744 = vadd.f32 %v10712, %v10592
      %v10745 = vadd.f32 %v10713, %v10597
      %v10746 = vadd.f32 %v10714, %v10600
      %v10747 = vadd.f32 %v10715, %v10605
      %v10748 = vadd.f32 %v10716, %v10608
      %v10749 = vadd.f32 %v10717, %v10613
      %v10750 = vadd.f32 %v10718, %v10616
      %v10751 = vadd.f32 %v10719, %v10621
      %v10752 = vadd.f32 %v10720, %v10624
      %v10753 = vadd.f32 %v10721, %v10629
      %v10754 = vadd.f32 %v10722, %v10632
      %v10755 = vadd.f32 %v10723, %v10637
      %v10756 = vadd.f32 %v10724, %v10640
      %v10757 = vadd.f32 %v10725, %v10645
      %v10758 = vadd.f32 %v10726, %v10648
      %v10759 = vadd.f32 %v10727, %v10653
      %v10760 = vadd.f32 %v10728, %v10656
      %v10761 = vadd.f32 %v10729, %v10661
      %v10762 = vadd.f32 %v10730, %v10664
      %10763 = vst.msk [vmem:[%s487] sm:$0xff] %vm489, %v10731
      %10764 = vst.msk [vmem:[%s487 + $0x8] sm:$0xff] %vm489, %v10732
      %10765 = vst.msk [vmem:[%s487 + $0x10] sm:$0xff] %vm489, %v10733
      %10766 = vst.msk [vmem:[%s487 + $0x18] sm:$0xff] %vm489, %v10734
      %10767 = vst.msk [vmem:[%s487 + $0x20] sm:$0xff] %vm489, %v10735
      %10768 = vst.msk [vmem:[%s487 + $0x28] sm:$0xff] %vm489, %v10736
      %10769 = vst.msk [vmem:[%s487 + $0x30] sm:$0xff] %vm489, %v10737
      %10770 = vst.msk [vmem:[%s487 + $0x38] sm:$0xff] %vm489, %v10738
      %10771 = vst.msk [vmem:[%s487 + $0x40] sm:$0xff] %vm489, %v10739
      %10772 = vst.msk [vmem:[%s487 + $0x48] sm:$0xff] %vm489, %v10740
      %10773 = vst.msk [vmem:[%s487 + $0x50] sm:$0xff] %vm489, %v10741
      %10774 = vst.msk [vmem:[%s487 + $0x58] sm:$0xff] %vm489, %v10742
      %10775 = vst.msk [vmem:[%s487 + $0x60] sm:$0xff] %vm489, %v10743
      %10776 = vst.msk [vmem:[%s487 + $0x68] sm:$0xff] %vm489, %v10744
      %10777 = vst.msk [vmem:[%s487 + $0x70] sm:$0xff] %vm489, %v10745
      %10778 = vst.msk [vmem:[%s487 + $0x78] sm:$0xff] %vm489, %v10746
      %10779 = vst.msk [vmem:[%s487 + $0x80] sm:$0xff] %vm489, %v10747
      %10780 = vst.msk [vmem:[%s487 + $0x88] sm:$0xff] %vm489, %v10748
      %10781 = vst.msk [vmem:[%s487 + $0x90] sm:$0xff] %vm489, %v10749
      %10782 = vst.msk [vmem:[%s487 + $0x98] sm:$0xff] %vm489, %v10750
      %10783 = vst.msk [vmem:[%s487 + $0xa0] sm:$0xff] %vm489, %v10751
      %10784 = vst.msk [vmem:[%s487 + $0xa8] sm:$0xff] %vm489, %v10752
      %10785 = vst.msk [vmem:[%s487 + $0xb0] sm:$0xff] %vm489, %v10753
      %10786 = vst.msk [vmem:[%s487 + $0xb8] sm:$0xff] %vm489, %v10754
      %10787 = vst.msk [vmem:[%s487 + $0xc0] sm:$0xff] %vm489, %v10755
      %10788 = vst.msk [vmem:[%s487 + $0xc8] sm:$0xff] %vm489, %v10756
      %10789 = vst.msk [vmem:[%s487 + $0xd0] sm:$0xff] %vm489, %v10757
      %10790 = vst.msk [vmem:[%s487 + $0xd8] sm:$0xff] %vm489, %v10758
      %10791 = vst.msk [vmem:[%s487 + $0xe0] sm:$0xff] %vm489, %v10759
      %10792 = vst.msk [vmem:[%s487 + $0xe8] sm:$0xff] %vm489, %v10760
      %10793 = vst.msk [vmem:[%s487 + $0xf0] sm:$0xff] %vm489, %v10761
      %10794 = vst.msk [vmem:[%s487 + $0xf8] sm:$0xff] %vm489, %v10762
      %p10795 = scmp.lt.s32.totalorder %s25, 1
      %s10796 = scalar_select %p10795, %s25, 1
      %s10797 = smul.addr %s10796, 32
      %s10798 = smul.addr %s10797, 8
      %s10799 = scalar_lea.vmem %s14, %s10798
      // Predicated region
      $region77: #{tpu_custom_call.1} parent=75 // pred_check
        %p10800 = pneg %p347
      $region78: #{tpu_custom_call.1} parent=75 // pred_check_branch
        %10802 = sbr.rel (%p10800) target = $region80
      $region79: #{tpu_custom_call.1} parent=75 // pred_region
        _
      $region80: #{tpu_custom_call.1} parent=75 // pred_fallthru
        _
    $region76: #{tpu_custom_call.1} parent=5 // pred_fallthru
      _
    %p10803 = scmp.le.s32.totalorder 2, %s20
    // Predicated region
    $region81: #{tpu_custom_call.1} parent=5 // pred_check
      %p10804 = pneg %p10803
    $region82: #{tpu_custom_call.1} parent=5 // pred_check_branch
      %10806 = sbr.rel (%p10804) target = $region84
    $region83: #{tpu_custom_call.1} parent=5 // pred_region
      %s10807 = ssub.s32 %s20, 2
      // Predicated region
      $region85: #{tpu_custom_call.1} parent=83 // pred_check
        %p10808 = pneg %p353
      $region86: #{tpu_custom_call.1} parent=83 // pred_check_branch
        %10810 = sbr.rel (%p10808) target = $region88
      $region87: #{tpu_custom_call.1} parent=83 // pred_region
        %p10811 = scmp.lt.s32.totalorder %s26, 1
        %s10812 = scalar_select %p10811, %s26, 1
        %s10813 = smul.addr %s10812, 32
        %s10814 = smul.addr %s10813, 8
        %s10815 = scalar_lea.vmem %s14, %s10814
      $region88: #{tpu_custom_call.1} parent=83 // pred_fallthru
        _
    $region84: #{tpu_custom_call.1} parent=5 // pred_fallthru
      _
  $region6: #{tpu_custom_call.1} parent=0 // loop_footer
    %s24 = sadd.s32 1, %s20
  $region7: #{tpu_custom_call.1} parent=0 // loop_footer_branch
    %19 = sbr.rel target = $region3
  $region8: #{tpu_custom_call.1} parent=0 // loop_exit
    _

</llo_original>
